<compile_context>
chip_gen: v6e
topology: v6e:2x2x1
jax: 0.10.0
libtpu: 0.0.40
codegen_flags: <defaults>
</compile_context>

<pallas_src>
import functools

import jax
import jax.numpy as jnp
from jax import lax
from jax.experimental import pallas as pl
from jax.experimental.pallas import tpu as pltpu

EPS = 1e-5
EXPANSION = 4
LANE = 128


def _round_up(v, m):
    return ((v + m - 1) // m) * m


# ---------------------------------------------------------------------------
# Fused bottleneck kernel (one grid step == one image)
# ---------------------------------------------------------------------------
def _bottleneck_kernel(*refs, stride, has_shortcut):
    if has_shortcut:
        (x_ref, w1_ref, s1_ref, b1_ref,
         w2_ref, s2_ref, b2_ref,
         w3_ref, s3_ref, b3_ref,
         ws_ref, ss_ref, bs_ref, o_ref) = refs
    else:
        (x_ref, w1_ref, s1_ref, b1_ref,
         w2_ref, s2_ref, b2_ref,
         w3_ref, s3_ref, b3_ref, o_ref) = refs
        ws_ref = ss_ref = bs_ref = None

    _, H, W, Cin = x_ref.shape
    Cp = w1_ref.shape[1]                 # lane-padded hidden width (planes)
    _, Ho, Wo, Cop = o_ref.shape         # lane-padded output width (4*planes)
    f32 = jnp.float32
    bf16 = jnp.bfloat16

    x3d = x_ref[0]                       # (H, W, Cin) bf16
    x2d = x3d.reshape(H * W, Cin)

    # ---- conv1 (1x1) + bn1 + relu (bf16 operands, f32 accumulate) ----------
    a1 = jnp.dot(x2d, w1_ref[...], preferred_element_type=f32)
    o1 = jnp.maximum(a1 * s1_ref[...] + b1_ref[...], 0.0).astype(bf16)
    o1_3d = o1.reshape(H, W, Cp)

    def conv3_bn3(o2_2d):
        return (jnp.dot(o2_2d, w3_ref[...], preferred_element_type=f32)
                * s3_ref[...] + b3_ref[...])

    if stride == 1:
        # ---- conv2: flat-padded-image trick -> 9 contiguous taps -----------
        Wp = W + 2
        Npts = H * Wp                     # includes 2 garbage cols per row
        p_flat = jnp.pad(o1_3d, ((1, 2), (1, 1), (0, 0))
                         ).reshape((H + 3) * Wp, Cp)      # bf16
        acc2 = None
        for kh in range(3):
            for kw in range(3):
                off = kh * Wp + kw
                tap = p_flat[off:off + Npts]              # contiguous (Npts,Cp)
                d = jnp.dot(tap, w2_ref[kh * 3 + kw],
                            preferred_element_type=f32)
                acc2 = d if acc2 is None else acc2 + d
        o2 = jnp.maximum(acc2 * s2_ref[...] + b2_ref[...], 0.0).astype(bf16)

        # ---- conv3 (1x1) + bn3, drop pad-column rows, add residual, relu ---
        out3 = conv3_bn3(o2).reshape(H, Wp, Cop)[:, :W, :]   # (H, W, Cop) f32
        if has_shortcut:
            res = (jnp.dot(x2d, ws_ref[...], preferred_element_type=f32)
                   * ss_ref[...] + bs_ref[...]).reshape(H, W, Cop)
        else:
            res = x3d.astype(f32)                          # identity: Cin == Co
            if Cin < Cop:
                res = jnp.pad(res, ((0, 0), (0, 0), (0, Cop - Cin)))
        o_ref[0] = jnp.maximum(out3 + res, 0.0).astype(o_ref.dtype)

    else:  # stride == 2
        # ---- parity-plane gather of the strided windows (dense buffers) ----
        def parity_split(v3d):
            c = v3d.shape[-1]
            v4 = v3d.reshape(Ho, 2, W, c)
            out = {}
            for a in (0, 1):
                row = v4[:, a].reshape(Ho, Wo, 2, c)
                out[(a, 0)] = row[:, :, 0, :]
                out[(a, 1)] = row[:, :, 1, :]
            return out                       # out[(a,b)][i,j] = v3d[2i+a, 2j+b]

        e = parity_split(o1_3d)
        # q[(ar,ac)][i,j] = o1_pad[2i+ar, 2j+ac]  (o1_pad = 1-pixel zero pad)
        q = {}
        for ar in (0, 1):
            for ac in (0, 1):
                src = e[(1 - ar, 1 - ac)]
                pr = (1, 0) if ar == 0 else (0, 1)
                pc = (1, 0) if ac == 0 else (0, 1)
                q[(ar, ac)] = jnp.pad(src, (pr, pc, (0, 0)))   # (Ho+1, Wo+1, Cp)

        acc2 = None
        for kh in range(3):
            qh, ar = divmod(kh, 2)
            for kw in range(3):
                qw, ac = divmod(kw, 2)
                tap = q[(ar, ac)][qh:qh + Ho, qw:qw + Wo, :].reshape(Ho * Wo, Cp)
                d = jnp.dot(tap, w2_ref[kh * 3 + kw],
                            preferred_element_type=f32)
                acc2 = d if acc2 is None else acc2 + d
        o2 = jnp.maximum(acc2 * s2_ref[...] + b2_ref[...], 0.0).astype(bf16)

        # ---- conv3 + bn3 + shortcut (one full-M matmul) + relu -------------
        out3 = conv3_bn3(o2)                                  # (Ho*Wo, Cop)
        if has_shortcut:
            xs = parity_split(x3d)[(0, 0)].reshape(Ho * Wo, Cin)
            res = (jnp.dot(xs, ws_ref[...], preferred_element_type=f32)
                   * ss_ref[...] + bs_ref[...])
        else:  # unreachable for the PyTorch module (stride!=1 => shortcut)
            xs = parity_split(x3d)[(0, 0)].reshape(Ho * Wo, Cin).astype(f32)
            res = jnp.pad(xs, ((0, 0), (0, Cop - Cin))) if Cin < Cop else xs
        o_ref[0] = jnp.maximum(out3 + res, 0.0).reshape(Ho, Wo, Cop
                                                        ).astype(o_ref.dtype)


# ---------------------------------------------------------------------------
# Parameter init (PyTorch-like shapes) + BN folding + lane padding
# ---------------------------------------------------------------------------
def _fold_bn(gamma, beta, rm, rv):
    scale = gamma / jnp.sqrt(rv + EPS)
    bias = beta - rm * scale
    return scale, bias


def _pad_vec(v, n):
    return jnp.pad(v, (0, n - v.shape[0])).reshape(1, n).astype(jnp.float32)


def init_params(key, in_planes, planes, stride):
    out_planes = EXPANSION * planes
    ks = list(jax.random.split(key, 8))

    def conv_w(k, shape):  # (Cout, Cin, kh, kw), torch layout
        return 0.1 * jax.random.normal(k, shape, jnp.float32)

    def bn_p(k, c):
        k1, k2, k3, k4 = jax.random.split(k, 4)
        gamma = 1.0 + 0.1 * jax.random.normal(k1, (c,), jnp.float32)
        beta = 0.1 * jax.random.normal(k2, (c,), jnp.float32)
        rm = 0.1 * jax.random.normal(k3, (c,), jnp.float32)
        rv = 1.0 + 0.1 * jax.random.uniform(k4, (c,), jnp.float32)
        return gamma, beta, rm, rv

    raw = {
        "conv1": conv_w(ks[0], (planes, in_planes, 1, 1)),
        "bn1": bn_p(ks[1], planes),
        "conv2": conv_w(ks[2], (planes, planes, 3, 3)),
        "bn2": bn_p(ks[3], planes),
        "conv3": conv_w(ks[4], (out_planes, planes, 1, 1)),
        "bn3": bn_p(ks[5], out_planes),
    }
    has_shortcut = (stride != 1) or (in_planes != out_planes)
    if has_shortcut:
        raw["convs"] = conv_w(ks[6], (out_planes, in_planes, 1, 1))
        raw["bns"] = bn_p(ks[7], out_planes)

    Cp = _round_up(planes, LANE)       # lane-dense hidden width
    Cop = _round_up(out_planes, LANE)  # lane-dense output width

    s1, b1 = _fold_bn(*raw["bn1"])
    s2, b2 = _fold_bn(*raw["bn2"])
    s3, b3 = _fold_bn(*raw["bn3"])

    w1 = jnp.pad(raw["conv1"][:, :, 0, 0].T, ((0, 0), (0, Cp - planes)))
    w2 = jnp.transpose(raw["conv2"], (2, 3, 1, 0)).reshape(9, planes, planes)
    w2 = jnp.pad(w2, ((0, 0), (0, Cp - planes), (0, Cp - planes)))
    w3 = jnp.pad(raw["conv3"][:, :, 0, 0].T,
                 ((0, Cp - planes), (0, Cop - out_planes)))

    folded = {
        "out_planes": out_planes,
        "has_shortcut": has_shortcut,
        "w1": w1.astype(jnp.bfloat16), "s1": _pad_vec(s1, Cp), "b1": _pad_vec(b1, Cp),
        "w2": w2.astype(jnp.bfloat16), "s2": _pad_vec(s2, Cp), "b2": _pad_vec(b2, Cp),
        "w3": w3.astype(jnp.bfloat16), "s3": _pad_vec(s3, Cop), "b3": _pad_vec(b3, Cop),
    }
    if has_shortcut:
        ss, bs = _fold_bn(*raw["bns"])
        ws = jnp.pad(raw["convs"][:, :, 0, 0].T, ((0, 0), (0, Cop - out_planes)))
        folded["ws"] = ws.astype(jnp.bfloat16)
        folded["ss"] = _pad_vec(ss, Cop)
        folded["bs"] = _pad_vec(bs, Cop)
    return raw, folded


# ---------------------------------------------------------------------------
# Forward wrapper: one fused pallas_call per block
# ---------------------------------------------------------------------------
def bottleneck_forward(x_nchw, params, stride):
    assert stride in (1, 2)  # TODO(synk): general stride
    x = jnp.transpose(x_nchw.astype(jnp.bfloat16), (0, 2, 3, 1))  # NHWC bf16
    N, H, W, Cin = x.shape
    if stride == 2:
        assert H % 2 == 0 and W % 2 == 0
    Ho = (H - 1) // stride + 1
    Wo = (W - 1) // stride + 1
    Cp = params["w1"].shape[1]
    Cop = params["w3"].shape[1]
    Co = params["out_planes"]
    has_shortcut = params["has_shortcut"]

    args = [x,
            params["w1"], params["s1"], params["b1"],
            params["w2"], params["s2"], params["b2"],
            params["w3"], params["s3"], params["b3"]]
    in_specs = [
        pl.BlockSpec((1, H, W, Cin), lambda n: (n, 0, 0, 0)),
        pl.BlockSpec((Cin, Cp), lambda n: (0, 0)),
        pl.BlockSpec((1, Cp), lambda n: (0, 0)),
        pl.BlockSpec((1, Cp), lambda n: (0, 0)),
        pl.BlockSpec((9, Cp, Cp), lambda n: (0, 0, 0)),
        pl.BlockSpec((1, Cp), lambda n: (0, 0)),
        pl.BlockSpec((1, Cp), lambda n: (0, 0)),
        pl.BlockSpec((Cp, Cop), lambda n: (0, 0)),
        pl.BlockSpec((1, Cop), lambda n: (0, 0)),
        pl.BlockSpec((1, Cop), lambda n: (0, 0)),
    ]
    if has_shortcut:
        args += [params["ws"], params["ss"], params["bs"]]
        in_specs += [
            pl.BlockSpec((Cin, Cop), lambda n: (0, 0)),
            pl.BlockSpec((1, Cop), lambda n: (0, 0)),
            pl.BlockSpec((1, Cop), lambda n: (0, 0)),
        ]

    # Cost estimate from the padded dims actually executed.
    m2 = H * (W + 2) if stride == 1 else Ho * Wo
    flops = 2 * N * (H * W * Cin * Cp
                     + m2 * 9 * Cp * Cp
                     + m2 * Cp * Cop
                     + (Ho * Wo * Cin * Cop if has_shortcut else 0))
    bytes_accessed = int(sum(int(a.size) * a.dtype.itemsize for a in args)
                         + N * Ho * Wo * Cop * 4)

    kern = functools.partial(_bottleneck_kernel, stride=stride,
                             has_shortcut=has_shortcut)
    out = pl.pallas_call(
        kern,
        out_shape=jax.ShapeDtypeStruct((N, Ho, Wo, Cop), jnp.float32),
        grid=(N,),
        in_specs=in_specs,
        out_specs=pl.BlockSpec((1, Ho, Wo, Cop), lambda n: (n, 0, 0, 0)),
        compiler_params=pltpu.CompilerParams(
            dimension_semantics=("parallel",),
            vmem_limit_bytes=32 * 1024 * 1024),
        cost_estimate=pl.CostEstimate(flops=flops, transcendentals=0,
                                      bytes_accessed=bytes_accessed),
    )(*args)
    out = out[..., :Co]                       # drop lane padding
    return jnp.transpose(out, (0, 3, 1, 2)).astype(jnp.float32)  # -> NCHW


# ---------------------------------------------------------------------------
# Pure-JAX (lax.conv) reference mimicking the PyTorch forward (eval-mode BN)
# ---------------------------------------------------------------------------
def reference_forward(x_nchw, raw, stride, has_shortcut):
    def conv(x, w, s, p):
        return lax.conv_general_dilated(
            x, w, (s, s), ((p, p), (p, p)),
            dimension_numbers=("NCHW", "OIHW", "NCHW"))

    def bn(x, p):
        gamma, beta, rm, rv = p
        sc = (gamma / jnp.sqrt(rv + EPS))[None, :, None, None]
        return (x - rm[None, :, None, None]) * sc + beta[None, :, None, None]

    out = jax.nn.relu(bn(conv(x_nchw, raw["conv1"], 1, 0), raw["bn1"]))
    out = jax.nn.relu(bn(conv(out, raw["conv2"], stride, 1), raw["bn2"]))
    out = bn(conv(out, raw["conv3"], 1, 0), raw["bn3"])
    if has_shortcut:
        sc = bn(conv(x_nchw, raw["convs"], stride, 0), raw["bns"])
    else:
        sc = x_nchw
    return jax.nn.relu(out + sc)


if __name__ == "__main__":
    key = jax.random.PRNGKey(0)
    # (N, in_planes, planes, H, W, stride): exercise both the strided
    # projection-shortcut path and the stride-1 identity path.
    configs = [
        (2, 16, 8, 16, 16, 2),
        (2, 32, 8, 16, 16, 1),
    ]
    for (N, in_planes, planes, H, W, stride) in configs:
        key, kx, kp = jax.random.split(key, 3)
        x = jax.random.normal(kx, (N, in_planes, H, W), jnp.float32)  # NCHW

        raw, folded = init_params(kp, in_planes, planes, stride)

        out = jax.block_until_ready(bottleneck_forward(x, folded, stride))
        ref = jax.block_until_ready(
            reference_forward(x, raw, stride, folded["has_shortcut"]))

        expect = (N, EXPANSION * planes, H // stride, W // stride)
        assert out.shape == expect, (out.shape, expect)
        err = float(jnp.max(jnp.abs(out - ref)))
        # bf16 input / bf16 matmul operands with f32 accumulation.
        assert jnp.allclose(out, ref, atol=5e-2, rtol=5e-2), (stride, err)

    print("KERNEL_OK")
</pallas_src>

<mosaic_0001>
module attributes {stable_mosaic.version = 11 : i64} {
  func.func @_bottleneck_kernel(%arg0: i32, %arg1: memref<1x16x16x16xbf16, #tpu.memory_space<vmem>>, %arg2: memref<16x128xbf16, #tpu.memory_space<vmem>>, %arg3: memref<1x128xf32, #tpu.memory_space<vmem>>, %arg4: memref<1x128xf32, #tpu.memory_space<vmem>>, %arg5: memref<9x128x128xbf16, #tpu.memory_space<vmem>>, %arg6: memref<1x128xf32, #tpu.memory_space<vmem>>, %arg7: memref<1x128xf32, #tpu.memory_space<vmem>>, %arg8: memref<128x128xbf16, #tpu.memory_space<vmem>>, %arg9: memref<1x128xf32, #tpu.memory_space<vmem>>, %arg10: memref<1x128xf32, #tpu.memory_space<vmem>>, %arg11: memref<16x128xbf16, #tpu.memory_space<vmem>>, %arg12: memref<1x128xf32, #tpu.memory_space<vmem>>, %arg13: memref<1x128xf32, #tpu.memory_space<vmem>>, %arg14: memref<1x8x8x128xf32, #tpu.memory_space<vmem>>) attributes {dimension_semantics = [#tpu.dimension_semantics<parallel>], iteration_bounds = array<i64: 2>, scalar_prefetch = 0 : i64, scratch_operands = 0 : i64, tpu.core_type = #tpu.core_type<tc>, window_params = [{transform_indices = @transform_0, window_bounds = array<i64: 1, 16, 16, 16>}, {pipeline_mode = #tpu.pipeline_mode<synchronous>, transform_indices = @transform_1, window_bounds = array<i64: 16, 128>}, {pipeline_mode = #tpu.pipeline_mode<synchronous>, transform_indices = @transform_2, window_bounds = array<i64: 1, 128>}, {pipeline_mode = #tpu.pipeline_mode<synchronous>, transform_indices = @transform_3, window_bounds = array<i64: 1, 128>}, {pipeline_mode = #tpu.pipeline_mode<synchronous>, transform_indices = @transform_4, window_bounds = array<i64: 9, 128, 128>}, {pipeline_mode = #tpu.pipeline_mode<synchronous>, transform_indices = @transform_5, window_bounds = array<i64: 1, 128>}, {pipeline_mode = #tpu.pipeline_mode<synchronous>, transform_indices = @transform_6, window_bounds = array<i64: 1, 128>}, {pipeline_mode = #tpu.pipeline_mode<synchronous>, transform_indices = @transform_7, window_bounds = array<i64: 128, 128>}, {pipeline_mode = #tpu.pipeline_mode<synchronous>, transform_indices = @transform_8, window_bounds = array<i64: 1, 128>}, {pipeline_mode = #tpu.pipeline_mode<synchronous>, transform_indices = @transform_9, window_bounds = array<i64: 1, 128>}, {pipeline_mode = #tpu.pipeline_mode<synchronous>, transform_indices = @transform_10, window_bounds = array<i64: 16, 128>}, {pipeline_mode = #tpu.pipeline_mode<synchronous>, transform_indices = @transform_11, window_bounds = array<i64: 1, 128>}, {pipeline_mode = #tpu.pipeline_mode<synchronous>, transform_indices = @transform_12, window_bounds = array<i64: 1, 128>}, {transform_indices = @transform_13, window_bounds = array<i64: 1, 8, 8, 128>}]} {
    %c0 = arith.constant 0 : index
    %c0_0 = arith.constant 0 : index
    %c0_1 = arith.constant 0 : index
    %c0_2 = arith.constant 0 : index
    %0 = vector.load %arg1[%c0, %c0_0, %c0_1, %c0_2] : memref<1x16x16x16xbf16, #tpu.memory_space<vmem>>, vector<1x16x16x16xbf16>
    %1 = vector.shape_cast %0 : vector<1x16x16x16xbf16> to vector<16x16x16xbf16>
    %2 = vector.shape_cast %1 : vector<16x16x16xbf16> to vector<256x16xbf16>
    %c0_3 = arith.constant 0 : index
    %c0_4 = arith.constant 0 : index
    %3 = vector.load %arg2[%c0_3, %c0_4] : memref<16x128xbf16, #tpu.memory_space<vmem>>, vector<16x128xbf16>
    %cst = arith.constant dense<0.000000e+00> : vector<256x128xf32>
    %4 = tpu.matmul %2, %3, %cst {dimension_numbers = #tpu.dot_dimension_numbers<[1], [0], [0], [1], [0, 0, 1, 1], [], []>} : vector<256x16xbf16>, vector<16x128xbf16>, vector<256x128xf32> -> vector<256x128xf32>
    %c0_5 = arith.constant 0 : index
    %c0_6 = arith.constant 0 : index
    %5 = vector.load %arg3[%c0_5, %c0_6] : memref<1x128xf32, #tpu.memory_space<vmem>>, vector<1x128xf32>
    %6 = vector.broadcast %5 : vector<1x128xf32> to vector<256x128xf32>
    %7 = arith.mulf %4, %6 : vector<256x128xf32>
    %c0_7 = arith.constant 0 : index
    %c0_8 = arith.constant 0 : index
    %8 = vector.load %arg4[%c0_7, %c0_8] : memref<1x128xf32, #tpu.memory_space<vmem>>, vector<1x128xf32>
    %9 = vector.broadcast %8 : vector<1x128xf32> to vector<256x128xf32>
    %10 = arith.addf %7, %9 : vector<256x128xf32>
    %cst_9 = arith.constant 0.000000e+00 : f32
    %11 = vector.broadcast %cst_9 : f32 to vector<256x128xf32>
    %12 = arith.maximumf %10, %11 : vector<256x128xf32>
    %13 = arith.truncf %12 : vector<256x128xf32> to vector<256x128xbf16>
    %14 = vector.shape_cast %13 : vector<256x128xbf16> to vector<16x16x128xbf16>
    %15 = vector.shape_cast %14 : vector<16x16x128xbf16> to vector<8x2x16x128xbf16>
    %16 = vector.extract_strided_slice %15 {offsets = [0, 0, 0, 0], sizes = [8, 1, 16, 128], strides = [1, 1, 1, 1]} : vector<8x2x16x128xbf16> to vector<8x1x16x128xbf16>
    %17 = vector.shape_cast %16 : vector<8x1x16x128xbf16> to vector<8x16x128xbf16>
    %18 = vector.shape_cast %17 : vector<8x16x128xbf16> to vector<8x8x2x128xbf16>
    %19 = vector.extract_strided_slice %18 {offsets = [0, 0, 0, 0], sizes = [8, 8, 1, 128], strides = [1, 1, 1, 1]} : vector<8x8x2x128xbf16> to vector<8x8x1x128xbf16>
    %20 = vector.shape_cast %19 : vector<8x8x1x128xbf16> to vector<8x8x128xbf16>
    %21 = vector.extract_strided_slice %18 {offsets = [0, 0, 1, 0], sizes = [8, 8, 1, 128], strides = [1, 1, 1, 1]} : vector<8x8x2x128xbf16> to vector<8x8x1x128xbf16>
    %22 = vector.shape_cast %21 : vector<8x8x1x128xbf16> to vector<8x8x128xbf16>
    %23 = vector.extract_strided_slice %15 {offsets = [0, 1, 0, 0], sizes = [8, 1, 16, 128], strides = [1, 1, 1, 1]} : vector<8x2x16x128xbf16> to vector<8x1x16x128xbf16>
    %24 = vector.shape_cast %23 : vector<8x1x16x128xbf16> to vector<8x16x128xbf16>
    %25 = vector.shape_cast %24 : vector<8x16x128xbf16> to vector<8x8x2x128xbf16>
    %26 = vector.extract_strided_slice %25 {offsets = [0, 0, 0, 0], sizes = [8, 8, 1, 128], strides = [1, 1, 1, 1]} : vector<8x8x2x128xbf16> to vector<8x8x1x128xbf16>
    %27 = vector.shape_cast %26 : vector<8x8x1x128xbf16> to vector<8x8x128xbf16>
    %28 = vector.extract_strided_slice %25 {offsets = [0, 0, 1, 0], sizes = [8, 8, 1, 128], strides = [1, 1, 1, 1]} : vector<8x8x2x128xbf16> to vector<8x8x1x128xbf16>
    %29 = vector.shape_cast %28 : vector<8x8x1x128xbf16> to vector<8x8x128xbf16>
    %c0_i32 = arith.constant 0 : i32
    %30 = arith.sitofp %c0_i32 : i32 to bf16
    %31 = vector.broadcast %30 : bf16 to vector<1x8x128xbf16>
    %32 = tpu.concatenate %31, %29 in 0 : vector<1x8x128xbf16>, vector<8x8x128xbf16> -> vector<9x8x128xbf16>
    %33 = vector.broadcast %30 : bf16 to vector<9x1x128xbf16>
    %34 = tpu.concatenate %33, %32 in 1 : vector<9x1x128xbf16>, vector<9x8x128xbf16> -> vector<9x9x128xbf16>
    %c0_i32_10 = arith.constant 0 : i32
    %35 = arith.sitofp %c0_i32_10 : i32 to bf16
    %36 = vector.broadcast %35 : bf16 to vector<1x8x128xbf16>
    %37 = tpu.concatenate %36, %27 in 0 : vector<1x8x128xbf16>, vector<8x8x128xbf16> -> vector<9x8x128xbf16>
    %38 = vector.broadcast %35 : bf16 to vector<9x1x128xbf16>
    %39 = tpu.concatenate %37, %38 in 1 : vector<9x8x128xbf16>, vector<9x1x128xbf16> -> vector<9x9x128xbf16>
    %c0_i32_11 = arith.constant 0 : i32
    %40 = arith.sitofp %c0_i32_11 : i32 to bf16
    %41 = vector.broadcast %40 : bf16 to vector<1x8x128xbf16>
    %42 = tpu.concatenate %22, %41 in 0 : vector<8x8x128xbf16>, vector<1x8x128xbf16> -> vector<9x8x128xbf16>
    %43 = vector.broadcast %40 : bf16 to vector<9x1x128xbf16>
    %44 = tpu.concatenate %43, %42 in 1 : vector<9x1x128xbf16>, vector<9x8x128xbf16> -> vector<9x9x128xbf16>
    %c0_i32_12 = arith.constant 0 : i32
    %45 = arith.sitofp %c0_i32_12 : i32 to bf16
    %46 = vector.broadcast %45 : bf16 to vector<1x8x128xbf16>
    %47 = tpu.concatenate %20, %46 in 0 : vector<8x8x128xbf16>, vector<1x8x128xbf16> -> vector<9x8x128xbf16>
    %48 = vector.broadcast %45 : bf16 to vector<9x1x128xbf16>
    %49 = tpu.concatenate %47, %48 in 1 : vector<9x8x128xbf16>, vector<9x1x128xbf16> -> vector<9x9x128xbf16>
    %50 = vector.extract_strided_slice %34 {offsets = [0, 0, 0], sizes = [8, 8, 128], strides = [1, 1, 1]} : vector<9x9x128xbf16> to vector<8x8x128xbf16>
    %51 = vector.shape_cast %50 : vector<8x8x128xbf16> to vector<64x128xbf16>
    %c0_13 = arith.constant 0 : index
    %c0_14 = arith.constant 0 : index
    %c0_15 = arith.constant 0 : index
    %52 = vector.load %arg5[%c0_13, %c0_14, %c0_15] : memref<9x128x128xbf16, #tpu.memory_space<vmem>>, vector<1x128x128xbf16>
    %53 = vector.shape_cast %52 : vector<1x128x128xbf16> to vector<128x128xbf16>
    %cst_16 = arith.constant dense<0.000000e+00> : vector<64x128xf32>
    %54 = tpu.matmul %51, %53, %cst_16 {dimension_numbers = #tpu.dot_dimension_numbers<[1], [0], [0], [1], [0, 0, 1, 1], [], []>} : vector<64x128xbf16>, vector<128x128xbf16>, vector<64x128xf32> -> vector<64x128xf32>
    %55 = vector.extract_strided_slice %39 {offsets = [0, 0, 0], sizes = [8, 8, 128], strides = [1, 1, 1]} : vector<9x9x128xbf16> to vector<8x8x128xbf16>
    %56 = vector.shape_cast %55 : vector<8x8x128xbf16> to vector<64x128xbf16>
    %c1 = arith.constant 1 : index
    %c0_17 = arith.constant 0 : index
    %c0_18 = arith.constant 0 : index
    %57 = vector.load %arg5[%c1, %c0_17, %c0_18] : memref<9x128x128xbf16, #tpu.memory_space<vmem>>, vector<1x128x128xbf16>
    %58 = vector.shape_cast %57 : vector<1x128x128xbf16> to vector<128x128xbf16>
    %cst_19 = arith.constant dense<0.000000e+00> : vector<64x128xf32>
    %59 = tpu.matmul %56, %58, %cst_19 {dimension_numbers = #tpu.dot_dimension_numbers<[1], [0], [0], [1], [0, 0, 1, 1], [], []>} : vector<64x128xbf16>, vector<128x128xbf16>, vector<64x128xf32> -> vector<64x128xf32>
    %60 = arith.addf %54, %59 : vector<64x128xf32>
    %61 = vector.extract_strided_slice %34 {offsets = [0, 1, 0], sizes = [8, 8, 128], strides = [1, 1, 1]} : vector<9x9x128xbf16> to vector<8x8x128xbf16>
    %62 = vector.shape_cast %61 : vector<8x8x128xbf16> to vector<64x128xbf16>
    %c2 = arith.constant 2 : index
    %c0_20 = arith.constant 0 : index
    %c0_21 = arith.constant 0 : index
    %63 = vector.load %arg5[%c2, %c0_20, %c0_21] : memref<9x128x128xbf16, #tpu.memory_space<vmem>>, vector<1x128x128xbf16>
    %64 = vector.shape_cast %63 : vector<1x128x128xbf16> to vector<128x128xbf16>
    %cst_22 = arith.constant dense<0.000000e+00> : vector<64x128xf32>
    %65 = tpu.matmul %62, %64, %cst_22 {dimension_numbers = #tpu.dot_dimension_numbers<[1], [0], [0], [1], [0, 0, 1, 1], [], []>} : vector<64x128xbf16>, vector<128x128xbf16>, vector<64x128xf32> -> vector<64x128xf32>
    %66 = arith.addf %60, %65 : vector<64x128xf32>
    %67 = vector.extract_strided_slice %44 {offsets = [0, 0, 0], sizes = [8, 8, 128], strides = [1, 1, 1]} : vector<9x9x128xbf16> to vector<8x8x128xbf16>
    %68 = vector.shape_cast %67 : vector<8x8x128xbf16> to vector<64x128xbf16>
    %c3 = arith.constant 3 : index
    %c0_23 = arith.constant 0 : index
    %c0_24 = arith.constant 0 : index
    %69 = vector.load %arg5[%c3, %c0_23, %c0_24] : memref<9x128x128xbf16, #tpu.memory_space<vmem>>, vector<1x128x128xbf16>
    %70 = vector.shape_cast %69 : vector<1x128x128xbf16> to vector<128x128xbf16>
    %cst_25 = arith.constant dense<0.000000e+00> : vector<64x128xf32>
    %71 = tpu.matmul %68, %70, %cst_25 {dimension_numbers = #tpu.dot_dimension_numbers<[1], [0], [0], [1], [0, 0, 1, 1], [], []>} : vector<64x128xbf16>, vector<128x128xbf16>, vector<64x128xf32> -> vector<64x128xf32>
    %72 = arith.addf %66, %71 : vector<64x128xf32>
    %73 = vector.extract_strided_slice %49 {offsets = [0, 0, 0], sizes = [8, 8, 128], strides = [1, 1, 1]} : vector<9x9x128xbf16> to vector<8x8x128xbf16>
    %74 = vector.shape_cast %73 : vector<8x8x128xbf16> to vector<64x128xbf16>
    %c4 = arith.constant 4 : index
    %c0_26 = arith.constant 0 : index
    %c0_27 = arith.constant 0 : index
    %75 = vector.load %arg5[%c4, %c0_26, %c0_27] : memref<9x128x128xbf16, #tpu.memory_space<vmem>>, vector<1x128x128xbf16>
    %76 = vector.shape_cast %75 : vector<1x128x128xbf16> to vector<128x128xbf16>
    %cst_28 = arith.constant dense<0.000000e+00> : vector<64x128xf32>
    %77 = tpu.matmul %74, %76, %cst_28 {dimension_numbers = #tpu.dot_dimension_numbers<[1], [0], [0], [1], [0, 0, 1, 1], [], []>} : vector<64x128xbf16>, vector<128x128xbf16>, vector<64x128xf32> -> vector<64x128xf32>
    %78 = arith.addf %72, %77 : vector<64x128xf32>
    %79 = vector.extract_strided_slice %44 {offsets = [0, 1, 0], sizes = [8, 8, 128], strides = [1, 1, 1]} : vector<9x9x128xbf16> to vector<8x8x128xbf16>
    %80 = vector.shape_cast %79 : vector<8x8x128xbf16> to vector<64x128xbf16>
    %c5 = arith.constant 5 : index
    %c0_29 = arith.constant 0 : index
    %c0_30 = arith.constant 0 : index
    %81 = vector.load %arg5[%c5, %c0_29, %c0_30] : memref<9x128x128xbf16, #tpu.memory_space<vmem>>, vector<1x128x128xbf16>
    %82 = vector.shape_cast %81 : vector<1x128x128xbf16> to vector<128x128xbf16>
    %cst_31 = arith.constant dense<0.000000e+00> : vector<64x128xf32>
    %83 = tpu.matmul %80, %82, %cst_31 {dimension_numbers = #tpu.dot_dimension_numbers<[1], [0], [0], [1], [0, 0, 1, 1], [], []>} : vector<64x128xbf16>, vector<128x128xbf16>, vector<64x128xf32> -> vector<64x128xf32>
    %84 = arith.addf %78, %83 : vector<64x128xf32>
    %85 = vector.extract_strided_slice %34 {offsets = [1, 0, 0], sizes = [8, 8, 128], strides = [1, 1, 1]} : vector<9x9x128xbf16> to vector<8x8x128xbf16>
    %86 = vector.shape_cast %85 : vector<8x8x128xbf16> to vector<64x128xbf16>
    %c6 = arith.constant 6 : index
    %c0_32 = arith.constant 0 : index
    %c0_33 = arith.constant 0 : index
    %87 = vector.load %arg5[%c6, %c0_32, %c0_33] : memref<9x128x128xbf16, #tpu.memory_space<vmem>>, vector<1x128x128xbf16>
    %88 = vector.shape_cast %87 : vector<1x128x128xbf16> to vector<128x128xbf16>
    %cst_34 = arith.constant dense<0.000000e+00> : vector<64x128xf32>
    %89 = tpu.matmul %86, %88, %cst_34 {dimension_numbers = #tpu.dot_dimension_numbers<[1], [0], [0], [1], [0, 0, 1, 1], [], []>} : vector<64x128xbf16>, vector<128x128xbf16>, vector<64x128xf32> -> vector<64x128xf32>
    %90 = arith.addf %84, %89 : vector<64x128xf32>
    %91 = vector.extract_strided_slice %39 {offsets = [1, 0, 0], sizes = [8, 8, 128], strides = [1, 1, 1]} : vector<9x9x128xbf16> to vector<8x8x128xbf16>
    %92 = vector.shape_cast %91 : vector<8x8x128xbf16> to vector<64x128xbf16>
    %c7 = arith.constant 7 : index
    %c0_35 = arith.constant 0 : index
    %c0_36 = arith.constant 0 : index
    %93 = vector.load %arg5[%c7, %c0_35, %c0_36] : memref<9x128x128xbf16, #tpu.memory_space<vmem>>, vector<1x128x128xbf16>
    %94 = vector.shape_cast %93 : vector<1x128x128xbf16> to vector<128x128xbf16>
    %cst_37 = arith.constant dense<0.000000e+00> : vector<64x128xf32>
    %95 = tpu.matmul %92, %94, %cst_37 {dimension_numbers = #tpu.dot_dimension_numbers<[1], [0], [0], [1], [0, 0, 1, 1], [], []>} : vector<64x128xbf16>, vector<128x128xbf16>, vector<64x128xf32> -> vector<64x128xf32>
    %96 = arith.addf %90, %95 : vector<64x128xf32>
    %97 = vector.extract_strided_slice %34 {offsets = [1, 1, 0], sizes = [8, 8, 128], strides = [1, 1, 1]} : vector<9x9x128xbf16> to vector<8x8x128xbf16>
    %98 = vector.shape_cast %97 : vector<8x8x128xbf16> to vector<64x128xbf16>
    %c8 = arith.constant 8 : index
    %c0_38 = arith.constant 0 : index
    %c0_39 = arith.constant 0 : index
    %99 = vector.load %arg5[%c8, %c0_38, %c0_39] : memref<9x128x128xbf16, #tpu.memory_space<vmem>>, vector<1x128x128xbf16>
    %100 = vector.shape_cast %99 : vector<1x128x128xbf16> to vector<128x128xbf16>
    %cst_40 = arith.constant dense<0.000000e+00> : vector<64x128xf32>
    %101 = tpu.matmul %98, %100, %cst_40 {dimension_numbers = #tpu.dot_dimension_numbers<[1], [0], [0], [1], [0, 0, 1, 1], [], []>} : vector<64x128xbf16>, vector<128x128xbf16>, vector<64x128xf32> -> vector<64x128xf32>
    %102 = arith.addf %96, %101 : vector<64x128xf32>
    %c0_41 = arith.constant 0 : index
    %c0_42 = arith.constant 0 : index
    %103 = vector.load %arg6[%c0_41, %c0_42] : memref<1x128xf32, #tpu.memory_space<vmem>>, vector<1x128xf32>
    %104 = vector.broadcast %103 : vector<1x128xf32> to vector<64x128xf32>
    %105 = arith.mulf %102, %104 : vector<64x128xf32>
    %c0_43 = arith.constant 0 : index
    %c0_44 = arith.constant 0 : index
    %106 = vector.load %arg7[%c0_43, %c0_44] : memref<1x128xf32, #tpu.memory_space<vmem>>, vector<1x128xf32>
    %107 = vector.broadcast %106 : vector<1x128xf32> to vector<64x128xf32>
    %108 = arith.addf %105, %107 : vector<64x128xf32>
    %cst_45 = arith.constant 0.000000e+00 : f32
    %109 = vector.broadcast %cst_45 : f32 to vector<64x128xf32>
    %110 = arith.maximumf %108, %109 : vector<64x128xf32>
    %111 = arith.truncf %110 : vector<64x128xf32> to vector<64x128xbf16>
    %c0_46 = arith.constant 0 : index
    %c0_47 = arith.constant 0 : index
    %112 = vector.load %arg8[%c0_46, %c0_47] : memref<128x128xbf16, #tpu.memory_space<vmem>>, vector<128x128xbf16>
    %cst_48 = arith.constant dense<0.000000e+00> : vector<64x128xf32>
    %113 = tpu.matmul %111, %112, %cst_48 {dimension_numbers = #tpu.dot_dimension_numbers<[1], [0], [0], [1], [0, 0, 1, 1], [], []>} : vector<64x128xbf16>, vector<128x128xbf16>, vector<64x128xf32> -> vector<64x128xf32>
    %c0_49 = arith.constant 0 : index
    %c0_50 = arith.constant 0 : index
    %114 = vector.load %arg9[%c0_49, %c0_50] : memref<1x128xf32, #tpu.memory_space<vmem>>, vector<1x128xf32>
    %115 = vector.broadcast %114 : vector<1x128xf32> to vector<64x128xf32>
    %116 = arith.mulf %113, %115 : vector<64x128xf32>
    %c0_51 = arith.constant 0 : index
    %c0_52 = arith.constant 0 : index
    %117 = vector.load %arg10[%c0_51, %c0_52] : memref<1x128xf32, #tpu.memory_space<vmem>>, vector<1x128xf32>
    %118 = vector.broadcast %117 : vector<1x128xf32> to vector<64x128xf32>
    %119 = arith.addf %116, %118 : vector<64x128xf32>
    %120 = vector.shape_cast %1 : vector<16x16x16xbf16> to vector<8x2x16x16xbf16>
    %121 = vector.extract_strided_slice %120 {offsets = [0, 0, 0, 0], sizes = [8, 1, 16, 16], strides = [1, 1, 1, 1]} : vector<8x2x16x16xbf16> to vector<8x1x16x16xbf16>
    %122 = vector.shape_cast %121 : vector<8x1x16x16xbf16> to vector<8x16x16xbf16>
    %123 = vector.shape_cast %122 : vector<8x16x16xbf16> to vector<8x8x2x16xbf16>
    %124 = vector.extract_strided_slice %123 {offsets = [0, 0, 0, 0], sizes = [8, 8, 1, 16], strides = [1, 1, 1, 1]} : vector<8x8x2x16xbf16> to vector<8x8x1x16xbf16>
    %125 = vector.shape_cast %124 : vector<8x8x1x16xbf16> to vector<8x8x16xbf16>
    %126 = vector.shape_cast %125 : vector<8x8x16xbf16> to vector<64x16xbf16>
    %c0_53 = arith.constant 0 : index
    %c0_54 = arith.constant 0 : index
    %127 = vector.load %arg11[%c0_53, %c0_54] : memref<16x128xbf16, #tpu.memory_space<vmem>>, vector<16x128xbf16>
    %cst_55 = arith.constant dense<0.000000e+00> : vector<64x128xf32>
    %128 = tpu.matmul %126, %127, %cst_55 {dimension_numbers = #tpu.dot_dimension_numbers<[1], [0], [0], [1], [0, 0, 1, 1], [], []>} : vector<64x16xbf16>, vector<16x128xbf16>, vector<64x128xf32> -> vector<64x128xf32>
    %c0_56 = arith.constant 0 : index
    %c0_57 = arith.constant 0 : index
    %129 = vector.load %arg12[%c0_56, %c0_57] : memref<1x128xf32, #tpu.memory_space<vmem>>, vector<1x128xf32>
    %130 = vector.broadcast %129 : vector<1x128xf32> to vector<64x128xf32>
    %131 = arith.mulf %128, %130 : vector<64x128xf32>
    %c0_58 = arith.constant 0 : index
    %c0_59 = arith.constant 0 : index
    %132 = vector.load %arg13[%c0_58, %c0_59] : memref<1x128xf32, #tpu.memory_space<vmem>>, vector<1x128xf32>
    %133 = vector.broadcast %132 : vector<1x128xf32> to vector<64x128xf32>
    %134 = arith.addf %131, %133 : vector<64x128xf32>
    %135 = arith.addf %119, %134 : vector<64x128xf32>
    %cst_60 = arith.constant 0.000000e+00 : f32
    %136 = vector.broadcast %cst_60 : f32 to vector<64x128xf32>
    %137 = arith.maximumf %135, %136 : vector<64x128xf32>
    %138 = vector.shape_cast %137 : vector<64x128xf32> to vector<8x8x128xf32>
    %c0_61 = arith.constant 0 : index
    %c0_62 = arith.constant 0 : index
    %c0_63 = arith.constant 0 : index
    %c0_64 = arith.constant 0 : index
    %139 = vector.load %arg14[%c0_61, %c0_62, %c0_63, %c0_64] : memref<1x8x8x128xf32, #tpu.memory_space<vmem>>, vector<1x8x8x128xf32>
    %140 = vector.shape_cast %139 : vector<1x8x8x128xf32> to vector<8x8x128xf32>
    %141 = vector.shape_cast %138 : vector<8x8x128xf32> to vector<1x8x8x128xf32>
    tpu.vector_store %arg14[%c0_61, %c0_62, %c0_63, %c0_64], %141 {strides = array<i32>} : memref<1x8x8x128xf32, #tpu.memory_space<vmem>>, vector<1x8x8x128xf32>,
    return
  }
  func.func @transform_0(%arg0: i32) -> (i32, i32, i32, i32) {
    %c0_i32 = arith.constant 0 : i32
    %c0_i32_0 = arith.constant 0 : i32
    %c0_i32_1 = arith.constant 0 : i32
    %c0_i32_2 = arith.constant 0 : i32
    return %arg0, %c0_i32, %c0_i32_0, %c0_i32_1 : i32, i32, i32, i32
  }
  func.func @transform_1(%arg0: i32) -> (i32, i32) {
    %c0_i32 = arith.constant 0 : i32
    %c0_i32_0 = arith.constant 0 : i32
    %c0_i32_1 = arith.constant 0 : i32
    return %c0_i32, %c0_i32_0 : i32, i32
  }
  func.func @transform_2(%arg0: i32) -> (i32, i32) {
    %c0_i32 = arith.constant 0 : i32
    %c0_i32_0 = arith.constant 0 : i32
    %c0_i32_1 = arith.constant 0 : i32
    return %c0_i32, %c0_i32_0 : i32, i32
  }
  func.func @transform_3(%arg0: i32) -> (i32, i32) {
    %c0_i32 = arith.constant 0 : i32
    %c0_i32_0 = arith.constant 0 : i32
    %c0_i32_1 = arith.constant 0 : i32
    return %c0_i32, %c0_i32_0 : i32, i32
  }
  func.func @transform_4(%arg0: i32) -> (i32, i32, i32) {
    %c0_i32 = arith.constant 0 : i32
    %c0_i32_0 = arith.constant 0 : i32
    %c0_i32_1 = arith.constant 0 : i32
    %c0_i32_2 = arith.constant 0 : i32
    return %c0_i32, %c0_i32_0, %c0_i32_1 : i32, i32, i32
  }
  func.func @transform_5(%arg0: i32) -> (i32, i32) {
    %c0_i32 = arith.constant 0 : i32
    %c0_i32_0 = arith.constant 0 : i32
    %c0_i32_1 = arith.constant 0 : i32
    return %c0_i32, %c0_i32_0 : i32, i32
  }
  func.func @transform_6(%arg0: i32) -> (i32, i32) {
    %c0_i32 = arith.constant 0 : i32
    %c0_i32_0 = arith.constant 0 : i32
    %c0_i32_1 = arith.constant 0 : i32
    return %c0_i32, %c0_i32_0 : i32, i32
  }
  func.func @transform_7(%arg0: i32) -> (i32, i32) {
    %c0_i32 = arith.constant 0 : i32
    %c0_i32_0 = arith.constant 0 : i32
    %c0_i32_1 = arith.constant 0 : i32
    return %c0_i32, %c0_i32_0 : i32, i32
  }
  func.func @transform_8(%arg0: i32) -> (i32, i32) {
    %c0_i32 = arith.constant 0 : i32
    %c0_i32_0 = arith.constant 0 : i32
    %c0_i32_1 = arith.constant 0 : i32
    return %c0_i32, %c0_i32_0 : i32, i32
  }
  func.func @transform_9(%arg0: i32) -> (i32, i32) {
    %c0_i32 = arith.constant 0 : i32
    %c0_i32_0 = arith.constant 0 : i32
    %c0_i32_1 = arith.constant 0 : i32
    return %c0_i32, %c0_i32_0 : i32, i32
  }
  func.func @transform_10(%arg0: i32) -> (i32, i32) {
    %c0_i32 = arith.constant 0 : i32
    %c0_i32_0 = arith.constant 0 : i32
    %c0_i32_1 = arith.constant 0 : i32
    return %c0_i32, %c0_i32_0 : i32, i32
  }
  func.func @transform_11(%arg0: i32) -> (i32, i32) {
    %c0_i32 = arith.constant 0 : i32
    %c0_i32_0 = arith.constant 0 : i32
    %c0_i32_1 = arith.constant 0 : i32
    return %c0_i32, %c0_i32_0 : i32, i32
  }
  func.func @transform_12(%arg0: i32) -> (i32, i32) {
    %c0_i32 = arith.constant 0 : i32
    %c0_i32_0 = arith.constant 0 : i32
    %c0_i32_1 = arith.constant 0 : i32
    return %c0_i32, %c0_i32_0 : i32, i32
  }
  func.func @transform_13(%arg0: i32) -> (i32, i32, i32, i32) {
    %c0_i32 = arith.constant 0 : i32
    %c0_i32_0 = arith.constant 0 : i32
    %c0_i32_1 = arith.constant 0 : i32
    %c0_i32_2 = arith.constant 0 : i32
    return %arg0, %c0_i32, %c0_i32_0, %c0_i32_1 : i32, i32, i32, i32
  }
}

</mosaic_0001>

<llo_original>
// kernel: tpu_custom_call.1
$region0: #{tpu_custom_call.1}
  #allocation0 [shape = 'u32[]', space=smem, size = 0x4, offset = 0x4, fixed_abs, tag = 'smem constant byte address 0x4 - core index']
  #allocation1 [shape = 'u32[144,128]{1,0:T(1,128)}', space=vmem, size = 0x12000, scoped, tag = 'internal scratch']
  %s0 = inlined_call_operand.hbm [shape: bf16[2,16,16,16], index: 0, kind: input, shape index: {}]
  %s1 = inlined_call_operand.hbm [shape: bf16[16,128], index: 1, kind: input, shape index: {}]
  %s2 = inlined_call_operand.vmem [shape: f32[1,128], index: 2, kind: input, shape index: {}]
  %s3 = inlined_call_operand.vmem [shape: f32[1,128], index: 3, kind: input, shape index: {}]
  %s4 = inlined_call_operand.hbm [shape: bf16[9,128,128], index: 4, kind: input, shape index: {}]
  %s5 = inlined_call_operand.vmem [shape: f32[1,128], index: 5, kind: input, shape index: {}]
  %s6 = inlined_call_operand.vmem [shape: f32[1,128], index: 6, kind: input, shape index: {}]
  %s7 = inlined_call_operand.hbm [shape: bf16[128,128], index: 7, kind: input, shape index: {}]
  %s8 = inlined_call_operand.vmem [shape: f32[1,128], index: 8, kind: input, shape index: {}]
  %s9 = inlined_call_operand.vmem [shape: f32[1,128], index: 9, kind: input, shape index: {}]
  %s10 = inlined_call_operand.vmem [shape: bf16[16,128], index: 10, kind: input, shape index: {}]
  %s11 = inlined_call_operand.vmem [shape: f32[1,128], index: 11, kind: input, shape index: {}]
  %s12 = inlined_call_operand.vmem [shape: f32[1,128], index: 12, kind: input, shape index: {}]
  %s13 = inlined_call_operand.hbm [shape: f32[2,8,8,128], index: 13, kind: output, shape index: {}]
  %s14 = sld [smem:[#allocation0]]
  $region101: #{tpu_custom_call.1} parent=0
    _
  %s16 = ssub.s32 1, %s14
  %s17 = scalar_select 0, %s16, %s14
  $region1: #{tpu_custom_call.1} parent=0
    #allocation2 [shape = 'u8[131072]{0}', space=vmem, size = 0x20000, scoped, tag = 'input window, operand 0']
    #allocation3 [shape = 's32[2]{0}', space=sflag, size = 0x8, scoped, tag = 'scoped memory for tpu_custom_call.1']
    #allocation4 [shape = 's32[2]{0}', space=sflag, size = 0x8, scoped, tag = 'scoped memory for tpu_custom_call.1']
    #allocation5 [shape = 'u8[4096]{0}', space=vmem, size = 0x1000, scoped, tag = 'input window, operand 1, single buffered']
    #allocation6 [shape = 's32[1]{0}', space=sflag, size = 0x4, scoped, tag = 'scoped memory for tpu_custom_call.1']
    #allocation7 [shape = 'u8[294912]{0}', space=vmem, size = 0x48000, scoped, tag = 'input window, operand 4, single buffered']
    #allocation8 [shape = 'u8[32768]{0}', space=vmem, size = 0x8000, scoped, tag = 'input window, operand 7, single buffered']
    #allocation9 [shape = 's32[1]{0}', space=sflag, size = 0x4, scoped, tag = 'scoped memory for tpu_custom_call.1']
    #allocation10 [shape = 'u8[65536]{0}', space=vmem, size = 0x10000, scoped, tag = 'output window, operand 0']
    %18 = vsyncpa [#allocation3], 0
    %s19 = scalar_lea.sflag [#allocation3], 1
    %20 = vsyncpa %s19, 0
    %21 = vsyncpa [#allocation6], 0
    %22 = vsyncpa [#allocation9], 0
    %23 = vsyncpa [#allocation4], 0
    %s24 = scalar_lea.sflag [#allocation4], 1
    %25 = vsyncpa %s24, 0
    loop: start=0, step=1, limit=4
    $region2: #{tpu_custom_call.1} parent=1 // loop_pre_header
      _
    $region3: #{tpu_custom_call.1} parent=1 // loop_header
      %s27 = sphi 0, %s31
      %p28 = scmp.ge.s32.totalorder %s27, 4
      %s37 = sphi 0, %s39
      %s40 = sphi 0, %s37
      %s41 = sphi 0, %s40
      %s57 = sphi 0, %s41
      %s61 = sphi 0, %s61
      %s63 = sphi 0, %s61
      %s64 = sphi 0, %s63
      %s78 = sphi 0, %s64
      %s82 = sphi 0, %s82
      %s84 = sphi 0, %s82
      %s85 = sphi 0, %s84
      %s99 = sphi 0, %s85
      %s103 = sphi 0, %s103
      %s105 = sphi 0, %s103
      %s106 = sphi 0, %s105
      %s120 = sphi 0, %s106
      %s124 = sphi 0, %s124
      %s126 = sphi 0, %s124
      %s127 = sphi 0, %s126
      %s141 = sphi 0, %s127
      %s145 = sphi 0, %s145
      %s147 = sphi 0, %s145
      %s148 = sphi 0, %s147
      %s162 = sphi 0, %s148
      %s166 = sphi 0, %s166
      %s168 = sphi 0, %s166
      %s169 = sphi 0, %s168
      %s183 = sphi 0, %s169
      %s187 = sphi 0, %s187
      %s189 = sphi 0, %s187
      %s190 = sphi 0, %s189
      %s204 = sphi 0, %s190
      %s208 = sphi 0, %s208
      %s210 = sphi 0, %s208
      %s211 = sphi 0, %s210
      %s225 = sphi 0, %s211
      %s229 = sphi 0, %s229
      %s231 = sphi 0, %s229
      %s232 = sphi 0, %s231
      %s246 = sphi 0, %s232
      %s250 = sphi 0, %s250
      %s252 = sphi 0, %s250
      %s253 = sphi 0, %s252
      %s267 = sphi 0, %s253
      %s271 = sphi 0, %s271
      %s273 = sphi 0, %s271
      %s274 = sphi 0, %s273
      %s288 = sphi 0, %s274
      %s292 = sphi 0, %s292
      %s294 = sphi 0, %s292
      %s295 = sphi 0, %s294
      %s309 = sphi 0, %s295
      %s315 = sphi 0, %s317
      %s318 = sphi 0, %s315
      %s319 = sphi 0, %s318
      %s335 = sphi 0, %s319
    $region4: #{tpu_custom_call.1} parent=1 // loop_header_branch
      %30 = sbr.rel (%p28) target = $region8
    $region5: #{tpu_custom_call.1} parent=1 // loop_body
      %s32 = ssub.s32 %s27, 1
      %s33 = ssub.s32 %s27, 2
      %s34 = sadd.s32 %s27, 1
      %s35 = ssub.s32 %s27, %s34
      %p36 = scmp.eq.s32.totalorder %s35, 0
      %s38 = sadd.s32 %s37, 1
      %s39 = scalar_select %p36, %s37, %s38
      %p42 = pneg %p36
      %p43 = scmp.eq.s32.totalorder %s27, 1
      %p44 = por %p42, %p43
      %p45 = scmp.ne.s32.totalorder %s37, %s40
      %p46 = scmp.eq.s32.totalorder %s27, 0
      %p47 = por %p45, %p46
      %p48 = scmp.ne.s32.totalorder %s37, %s40
      %p49 = scmp.eq.s32.totalorder %s32, 1
      %p50 = por %p48, %p49
      %p51 = scmp.ne.s32.totalorder %s40, %s41
      %p52 = scmp.eq.s32.totalorder %s32, 0
      %p53 = por %p51, %p52
      %p54 = scmp.ne.s32.totalorder %s40, %s41
      %p55 = scmp.eq.s32.totalorder %s33, 1
      %p56 = por %p54, %p55
      %p58 = scmp.ne.s32.totalorder %s41, %s57
      %p59 = scmp.eq.s32.totalorder %s33, 0
      %p60 = por %p58, %p59
      %s62 = sadd.s32 %s61, 1
      %p65 = scmp.eq.s32.totalorder %s27, 1
      %p66 = scmp.ne.s32.totalorder %s61, %s63
      %p67 = scmp.eq.s32.totalorder %s27, 0
      %p68 = por %p66, %p67
      %p69 = scmp.ne.s32.totalorder %s61, %s63
      %p70 = scmp.eq.s32.totalorder %s32, 1
      %p71 = por %p69, %p70
      %p72 = scmp.ne.s32.totalorder %s63, %s64
      %p73 = scmp.eq.s32.totalorder %s32, 0
      %p74 = por %p72, %p73
      %p75 = scmp.ne.s32.totalorder %s63, %s64
      %p76 = scmp.eq.s32.totalorder %s33, 1
      %p77 = por %p75, %p76
      %p79 = scmp.ne.s32.totalorder %s64, %s78
      %p80 = scmp.eq.s32.totalorder %s33, 0
      %p81 = por %p79, %p80
      %s83 = sadd.s32 %s82, 1
      %p86 = scmp.eq.s32.totalorder %s27, 1
      %p87 = scmp.ne.s32.totalorder %s82, %s84
      %p88 = scmp.eq.s32.totalorder %s27, 0
      %p89 = por %p87, %p88
      %p90 = scmp.ne.s32.totalorder %s82, %s84
      %p91 = scmp.eq.s32.totalorder %s32, 1
      %p92 = por %p90, %p91
      %p93 = scmp.ne.s32.totalorder %s84, %s85
      %p94 = scmp.eq.s32.totalorder %s32, 0
      %p95 = por %p93, %p94
      %p96 = scmp.ne.s32.totalorder %s84, %s85
      %p97 = scmp.eq.s32.totalorder %s33, 1
      %p98 = por %p96, %p97
      %p100 = scmp.ne.s32.totalorder %s85, %s99
      %p101 = scmp.eq.s32.totalorder %s33, 0
      %p102 = por %p100, %p101
      %s104 = sadd.s32 %s103, 1
      %p107 = scmp.eq.s32.totalorder %s27, 1
      %p108 = scmp.ne.s32.totalorder %s103, %s105
      %p109 = scmp.eq.s32.totalorder %s27, 0
      %p110 = por %p108, %p109
      %p111 = scmp.ne.s32.totalorder %s103, %s105
      %p112 = scmp.eq.s32.totalorder %s32, 1
      %p113 = por %p111, %p112
      %p114 = scmp.ne.s32.totalorder %s105, %s106
      %p115 = scmp.eq.s32.totalorder %s32, 0
      %p116 = por %p114, %p115
      %p117 = scmp.ne.s32.totalorder %s105, %s106
      %p118 = scmp.eq.s32.totalorder %s33, 1
      %p119 = por %p117, %p118
      %p121 = scmp.ne.s32.totalorder %s106, %s120
      %p122 = scmp.eq.s32.totalorder %s33, 0
      %p123 = por %p121, %p122
      %s125 = sadd.s32 %s124, 1
      %p128 = scmp.eq.s32.totalorder %s27, 1
      %p129 = scmp.ne.s32.totalorder %s124, %s126
      %p130 = scmp.eq.s32.totalorder %s27, 0
      %p131 = por %p129, %p130
      %p132 = scmp.ne.s32.totalorder %s124, %s126
      %p133 = scmp.eq.s32.totalorder %s32, 1
      %p134 = por %p132, %p133
      %p135 = scmp.ne.s32.totalorder %s126, %s127
      %p136 = scmp.eq.s32.totalorder %s32, 0
      %p137 = por %p135, %p136
      %p138 = scmp.ne.s32.totalorder %s126, %s127
      %p139 = scmp.eq.s32.totalorder %s33, 1
      %p140 = por %p138, %p139
      %p142 = scmp.ne.s32.totalorder %s127, %s141
      %p143 = scmp.eq.s32.totalorder %s33, 0
      %p144 = por %p142, %p143
      %s146 = sadd.s32 %s145, 1
      %p149 = scmp.eq.s32.totalorder %s27, 1
      %p150 = scmp.ne.s32.totalorder %s145, %s147
      %p151 = scmp.eq.s32.totalorder %s27, 0
      %p152 = por %p150, %p151
      %p153 = scmp.ne.s32.totalorder %s145, %s147
      %p154 = scmp.eq.s32.totalorder %s32, 1
      %p155 = por %p153, %p154
      %p156 = scmp.ne.s32.totalorder %s147, %s148
      %p157 = scmp.eq.s32.totalorder %s32, 0
      %p158 = por %p156, %p157
      %p159 = scmp.ne.s32.totalorder %s147, %s148
      %p160 = scmp.eq.s32.totalorder %s33, 1
      %p161 = por %p159, %p160
      %p163 = scmp.ne.s32.totalorder %s148, %s162
      %p164 = scmp.eq.s32.totalorder %s33, 0
      %p165 = por %p163, %p164
      %s167 = sadd.s32 %s166, 1
      %p170 = scmp.eq.s32.totalorder %s27, 1
      %p171 = scmp.ne.s32.totalorder %s166, %s168
      %p172 = scmp.eq.s32.totalorder %s27, 0
      %p173 = por %p171, %p172
      %p174 = scmp.ne.s32.totalorder %s166, %s168
      %p175 = scmp.eq.s32.totalorder %s32, 1
      %p176 = por %p174, %p175
      %p177 = scmp.ne.s32.totalorder %s168, %s169
      %p178 = scmp.eq.s32.totalorder %s32, 0
      %p179 = por %p177, %p178
      %p180 = scmp.ne.s32.totalorder %s168, %s169
      %p181 = scmp.eq.s32.totalorder %s33, 1
      %p182 = por %p180, %p181
      %p184 = scmp.ne.s32.totalorder %s169, %s183
      %p185 = scmp.eq.s32.totalorder %s33, 0
      %p186 = por %p184, %p185
      %s188 = sadd.s32 %s187, 1
      %p191 = scmp.eq.s32.totalorder %s27, 1
      %p192 = scmp.ne.s32.totalorder %s187, %s189
      %p193 = scmp.eq.s32.totalorder %s27, 0
      %p194 = por %p192, %p193
      %p195 = scmp.ne.s32.totalorder %s187, %s189
      %p196 = scmp.eq.s32.totalorder %s32, 1
      %p197 = por %p195, %p196
      %p198 = scmp.ne.s32.totalorder %s189, %s190
      %p199 = scmp.eq.s32.totalorder %s32, 0
      %p200 = por %p198, %p199
      %p201 = scmp.ne.s32.totalorder %s189, %s190
      %p202 = scmp.eq.s32.totalorder %s33, 1
      %p203 = por %p201, %p202
      %p205 = scmp.ne.s32.totalorder %s190, %s204
      %p206 = scmp.eq.s32.totalorder %s33, 0
      %p207 = por %p205, %p206
      %s209 = sadd.s32 %s208, 1
      %p212 = scmp.eq.s32.totalorder %s27, 1
      %p213 = scmp.ne.s32.totalorder %s208, %s210
      %p214 = scmp.eq.s32.totalorder %s27, 0
      %p215 = por %p213, %p214
      %p216 = scmp.ne.s32.totalorder %s208, %s210
      %p217 = scmp.eq.s32.totalorder %s32, 1
      %p218 = por %p216, %p217
      %p219 = scmp.ne.s32.totalorder %s210, %s211
      %p220 = scmp.eq.s32.totalorder %s32, 0
      %p221 = por %p219, %p220
      %p222 = scmp.ne.s32.totalorder %s210, %s211
      %p223 = scmp.eq.s32.totalorder %s33, 1
      %p224 = por %p222, %p223
      %p226 = scmp.ne.s32.totalorder %s211, %s225
      %p227 = scmp.eq.s32.totalorder %s33, 0
      %p228 = por %p226, %p227
      %s230 = sadd.s32 %s229, 1
      %p233 = scmp.eq.s32.totalorder %s27, 1
      %p234 = scmp.ne.s32.totalorder %s229, %s231
      %p235 = scmp.eq.s32.totalorder %s27, 0
      %p236 = por %p234, %p235
      %p237 = scmp.ne.s32.totalorder %s229, %s231
      %p238 = scmp.eq.s32.totalorder %s32, 1
      %p239 = por %p237, %p238
      %p240 = scmp.ne.s32.totalorder %s231, %s232
      %p241 = scmp.eq.s32.totalorder %s32, 0
      %p242 = por %p240, %p241
      %p243 = scmp.ne.s32.totalorder %s231, %s232
      %p244 = scmp.eq.s32.totalorder %s33, 1
      %p245 = por %p243, %p244
      %p247 = scmp.ne.s32.totalorder %s232, %s246
      %p248 = scmp.eq.s32.totalorder %s33, 0
      %p249 = por %p247, %p248
      %s251 = sadd.s32 %s250, 1
      %p254 = scmp.eq.s32.totalorder %s27, 1
      %p255 = scmp.ne.s32.totalorder %s250, %s252
      %p256 = scmp.eq.s32.totalorder %s27, 0
      %p257 = por %p255, %p256
      %p258 = scmp.ne.s32.totalorder %s250, %s252
      %p259 = scmp.eq.s32.totalorder %s32, 1
      %p260 = por %p258, %p259
      %p261 = scmp.ne.s32.totalorder %s252, %s253
      %p262 = scmp.eq.s32.totalorder %s32, 0
      %p263 = por %p261, %p262
      %p264 = scmp.ne.s32.totalorder %s252, %s253
      %p265 = scmp.eq.s32.totalorder %s33, 1
      %p266 = por %p264, %p265
      %p268 = scmp.ne.s32.totalorder %s253, %s267
      %p269 = scmp.eq.s32.totalorder %s33, 0
      %p270 = por %p268, %p269
      %s272 = sadd.s32 %s271, 1
      %p275 = scmp.eq.s32.totalorder %s27, 1
      %p276 = scmp.ne.s32.totalorder %s271, %s273
      %p277 = scmp.eq.s32.totalorder %s27, 0
      %p278 = por %p276, %p277
      %p279 = scmp.ne.s32.totalorder %s271, %s273
      %p280 = scmp.eq.s32.totalorder %s32, 1
      %p281 = por %p279, %p280
      %p282 = scmp.ne.s32.totalorder %s273, %s274
      %p283 = scmp.eq.s32.totalorder %s32, 0
      %p284 = por %p282, %p283
      %p285 = scmp.ne.s32.totalorder %s273, %s274
      %p286 = scmp.eq.s32.totalorder %s33, 1
      %p287 = por %p285, %p286
      %p289 = scmp.ne.s32.totalorder %s274, %s288
      %p290 = scmp.eq.s32.totalorder %s33, 0
      %p291 = por %p289, %p290
      %s293 = sadd.s32 %s292, 1
      %p296 = scmp.eq.s32.totalorder %s27, 1
      %p297 = scmp.ne.s32.totalorder %s292, %s294
      %p298 = scmp.eq.s32.totalorder %s27, 0
      %p299 = por %p297, %p298
      %p300 = scmp.ne.s32.totalorder %s292, %s294
      %p301 = scmp.eq.s32.totalorder %s32, 1
      %p302 = por %p300, %p301
      %p303 = scmp.ne.s32.totalorder %s294, %s295
      %p304 = scmp.eq.s32.totalorder %s32, 0
      %p305 = por %p303, %p304
      %p306 = scmp.ne.s32.totalorder %s294, %s295
      %p307 = scmp.eq.s32.totalorder %s33, 1
      %p308 = por %p306, %p307
      %p310 = scmp.ne.s32.totalorder %s295, %s309
      %p311 = scmp.eq.s32.totalorder %s33, 0
      %p312 = por %p310, %p311
      %s313 = ssub.s32 %s27, %s34
      %p314 = scmp.eq.s32.totalorder %s313, 0
      %s316 = sadd.s32 %s315, 1
      %s317 = scalar_select %p314, %s315, %s316
      %p320 = pneg %p314
      %p321 = scmp.eq.s32.totalorder %s27, 1
      %p322 = por %p320, %p321
      %p323 = scmp.ne.s32.totalorder %s315, %s318
      %p324 = scmp.eq.s32.totalorder %s27, 0
      %p325 = por %p323, %p324
      %p326 = scmp.ne.s32.totalorder %s315, %s318
      %p327 = scmp.eq.s32.totalorder %s32, 1
      %p328 = por %p326, %p327
      %p329 = scmp.ne.s32.totalorder %s318, %s319
      %p330 = scmp.eq.s32.totalorder %s32, 0
      %p331 = por %p329, %p330
      %p332 = scmp.ne.s32.totalorder %s318, %s319
      %p333 = scmp.eq.s32.totalorder %s33, 1
      %p334 = por %p332, %p333
      %p336 = scmp.ne.s32.totalorder %s319, %s335
      %p337 = scmp.eq.s32.totalorder %s33, 0
      %p338 = por %p336, %p337
      %p339 = scmp.le.s32.totalorder 1, %s27
      %p340 = scmp.lt.s32.totalorder %s27, 3
      %p341 = pnand %p339, %p340
      %p342 = pneg %p341
      // Predicated region
      $region9: #{tpu_custom_call.1} parent=5 // pred_check
        _
      $region10: #{tpu_custom_call.1} parent=5 // pred_check_branch
        %344 = sbr.rel (%p341) target = $region12
      $region11: #{tpu_custom_call.1} parent=5 // pred_region
        %s345 = ssub.s32 %s27, 1
        // Predicated region
        $region13: #{tpu_custom_call.1} parent=11 // pred_check
          %p346 = pneg %p74
        $region14: #{tpu_custom_call.1} parent=11 // pred_check_branch
          %348 = sbr.rel (%p346) target = $region16
        $region15: #{tpu_custom_call.1} parent=11 // pred_region
          %s350 = ssub.s32 128, 128
          %351 = vsyncadd [#allocation6], %s350
          %s352 = sshll.u32 [#allocation5], 4
          %s353 = int_to_ptr.vmem [resolvable:$true] %s352
          %358 = dma.hbm_to_vmem [thread:$0]  %s1, 128, %s353, [#allocation6], 64, 64, 4
        $region16: #{tpu_custom_call.1} parent=11 // pred_fallthru
          _
        // Predicated region
        $region17: #{tpu_custom_call.1} parent=11 // pred_check
          %p359 = pneg %p95
        $region18: #{tpu_custom_call.1} parent=11 // pred_check_branch
          %361 = sbr.rel (%p359) target = $region20
        $region19: #{tpu_custom_call.1} parent=11 // pred_region
          _
        $region20: #{tpu_custom_call.1} parent=11 // pred_fallthru
          _
        // Predicated region
        $region21: #{tpu_custom_call.1} parent=11 // pred_check
          %p362 = pneg %p116
        $region22: #{tpu_custom_call.1} parent=11 // pred_check_branch
          %364 = sbr.rel (%p362) target = $region24
        $region23: #{tpu_custom_call.1} parent=11 // pred_region
          _
        $region24: #{tpu_custom_call.1} parent=11 // pred_fallthru
          _
        // Predicated region
        $region25: #{tpu_custom_call.1} parent=11 // pred_check
          %p365 = pneg %p137
        $region26: #{tpu_custom_call.1} parent=11 // pred_check_branch
          %367 = sbr.rel (%p365) target = $region28
        $region27: #{tpu_custom_call.1} parent=11 // pred_region
          %s369 = ssub.s32 9216, 9216
          %370 = vsyncadd [#allocation6], %s369
          %s371 = sshll.u32 [#allocation7], 4
          %s372 = int_to_ptr.vmem [resolvable:$true] %s371
          %377 = dma.hbm_to_vmem [thread:$0]  %s4, 9216, %s372, [#allocation6], 64, 64, 4
        $region28: #{tpu_custom_call.1} parent=11 // pred_fallthru
          _
        // Predicated region
        $region29: #{tpu_custom_call.1} parent=11 // pred_check
          %p378 = pneg %p158
        $region30: #{tpu_custom_call.1} parent=11 // pred_check_branch
          %380 = sbr.rel (%p378) target = $region32
        $region31: #{tpu_custom_call.1} parent=11 // pred_region
          _
        $region32: #{tpu_custom_call.1} parent=11 // pred_fallthru
          _
        // Predicated region
        $region33: #{tpu_custom_call.1} parent=11 // pred_check
          %p381 = pneg %p179
        $region34: #{tpu_custom_call.1} parent=11 // pred_check_branch
          %383 = sbr.rel (%p381) target = $region36
        $region35: #{tpu_custom_call.1} parent=11 // pred_region
          _
        $region36: #{tpu_custom_call.1} parent=11 // pred_fallthru
          _
        // Predicated region
        $region37: #{tpu_custom_call.1} parent=11 // pred_check
          %p384 = pneg %p200
        $region38: #{tpu_custom_call.1} parent=11 // pred_check_branch
          %386 = sbr.rel (%p384) target = $region40
        $region39: #{tpu_custom_call.1} parent=11 // pred_region
          %s388 = ssub.s32 1024, 1024
          %389 = vsyncadd [#allocation9], %s388
          %s390 = sshll.u32 [#allocation8], 4
          %s391 = int_to_ptr.vmem [resolvable:$true] %s390
          %396 = dma.hbm_to_vmem [thread:$0]  %s7, 1024, %s391, [#allocation9], 64, 64, 4
        $region40: #{tpu_custom_call.1} parent=11 // pred_fallthru
          _
        // Predicated region
        $region41: #{tpu_custom_call.1} parent=11 // pred_check
          %p397 = pneg %p221
        $region42: #{tpu_custom_call.1} parent=11 // pred_check_branch
          %399 = sbr.rel (%p397) target = $region44
        $region43: #{tpu_custom_call.1} parent=11 // pred_region
          _
        $region44: #{tpu_custom_call.1} parent=11 // pred_fallthru
          _
        // Predicated region
        $region45: #{tpu_custom_call.1} parent=11 // pred_check
          %p400 = pneg %p242
        $region46: #{tpu_custom_call.1} parent=11 // pred_check_branch
          %402 = sbr.rel (%p400) target = $region48
        $region47: #{tpu_custom_call.1} parent=11 // pred_region
          _
        $region48: #{tpu_custom_call.1} parent=11 // pred_fallthru
          _
        // Predicated region
        $region49: #{tpu_custom_call.1} parent=11 // pred_check
          %p403 = pneg %p263
        $region50: #{tpu_custom_call.1} parent=11 // pred_check_branch
          %405 = sbr.rel (%p403) target = $region52
        $region51: #{tpu_custom_call.1} parent=11 // pred_region
          _
        $region52: #{tpu_custom_call.1} parent=11 // pred_fallthru
          _
        // Predicated region
        $region53: #{tpu_custom_call.1} parent=11 // pred_check
          %p406 = pneg %p284
        $region54: #{tpu_custom_call.1} parent=11 // pred_check_branch
          %408 = sbr.rel (%p406) target = $region56
        $region55: #{tpu_custom_call.1} parent=11 // pred_region
          _
        $region56: #{tpu_custom_call.1} parent=11 // pred_fallthru
          _
        // Predicated region
        $region57: #{tpu_custom_call.1} parent=11 // pred_check
          %p409 = pneg %p305
        $region58: #{tpu_custom_call.1} parent=11 // pred_check_branch
          %411 = sbr.rel (%p409) target = $region60
        $region59: #{tpu_custom_call.1} parent=11 // pred_region
          _
        $region60: #{tpu_custom_call.1} parent=11 // pred_fallthru
          _
      $region12: #{tpu_custom_call.1} parent=5 // pred_fallthru
        _
      %p412 = scmp.lt.s32.totalorder %s27, 2
      // Predicated region
      $region61: #{tpu_custom_call.1} parent=5 // pred_check
        %p413 = pneg %p412
      $region62: #{tpu_custom_call.1} parent=5 // pred_check_branch
        %415 = sbr.rel (%p413) target = $region64
      $region63: #{tpu_custom_call.1} parent=5 // pred_region
        // Predicated region
        $region65: #{tpu_custom_call.1} parent=63 // pred_check
          %p416 = pneg %p47
        $region66: #{tpu_custom_call.1} parent=63 // pred_check_branch
          %418 = sbr.rel (%p416) target = $region68
        $region67: #{tpu_custom_call.1} parent=63 // pred_region
          %s419 = sand.u32 %s37, 1
          %s420 = scalar_lea.sflag [#allocation3], %s419
          %s421 = sand.u32 %s37, 1
          %s422 = smul.addr %s421, 128
          %s423 = scalar_lea.vmem [#allocation2], %s422
          %s425 = ssub.s32 2048, 2048
          %426 = vsyncadd %s420, %s425
          %s427 = smul.addr %s27, 32
          %s428 = smul.addr %s427, 64
          %s429 = scalar_lea.hbm %s0, %s428
          %s430 = sshll.u32 %s423, 4
          %s431 = int_to_ptr.vmem [resolvable:$true] %s430
          %436 = dma.hbm_to_vmem [thread:$0]  %s429, 2048, %s431, %s420, 64, 64, 4
        $region68: #{tpu_custom_call.1} parent=63 // pred_fallthru
          _
      $region64: #{tpu_custom_call.1} parent=5 // pred_fallthru
        _
      %p437 = scmp.le.s32.totalorder 1, %s27
      %p438 = scmp.lt.s32.totalorder %s27, 3
      %p439 = pnand %p437, %p438
      %p440 = pneg %p439
      // Predicated region
      $region69: #{tpu_custom_call.1} parent=5 // pred_check
        _
      $region70: #{tpu_custom_call.1} parent=5 // pred_check_branch
        %442 = sbr.rel (%p439) target = $region72
      $region71: #{tpu_custom_call.1} parent=5 // pred_region
        %s443 = ssub.s32 %s27, 1
        %s444 = sand.u32 %s40, 1
        %s445 = scalar_lea.sflag [#allocation3], %s444
        %s446 = sand.u32 %s40, 1
        %s447 = smul.addr %s446, 128
        %s448 = scalar_lea.vmem [#allocation2], %s447
        // Predicated region
        $region73: #{tpu_custom_call.1} parent=71 // pred_check
          %p449 = pneg %p53
        $region74: #{tpu_custom_call.1} parent=71 // pred_check_branch
          %451 = sbr.rel (%p449) target = $region76
        $region75: #{tpu_custom_call.1} parent=71 // pred_region
          %452 = dma.done %s445, 2048
        $region76: #{tpu_custom_call.1} parent=71 // pred_fallthru
          _
        // Predicated region
        $region77: #{tpu_custom_call.1} parent=71 // pred_check
          %p453 = pneg %p74
        $region78: #{tpu_custom_call.1} parent=71 // pred_check_branch
          %455 = sbr.rel (%p453) target = $region80
        $region79: #{tpu_custom_call.1} parent=71 // pred_region
          %456 = dma.done [#allocation6], 128
        $region80: #{tpu_custom_call.1} parent=71 // pred_fallthru
          _
        // Predicated region
        $region81: #{tpu_custom_call.1} parent=71 // pred_check
          %p457 = pneg %p137
        $region82: #{tpu_custom_call.1} parent=71 // pred_check_branch
          %459 = sbr.rel (%p457) target = $region84
        $region83: #{tpu_custom_call.1} parent=71 // pred_region
          %460 = dma.done [#allocation6], 9216
        $region84: #{tpu_custom_call.1} parent=71 // pred_fallthru
          _
        // Predicated region
        $region85: #{tpu_custom_call.1} parent=71 // pred_check
          %p461 = pneg %p200
        $region86: #{tpu_custom_call.1} parent=71 // pred_check_branch
          %463 = sbr.rel (%p461) target = $region88
        $region87: #{tpu_custom_call.1} parent=71 // pred_region
          %464 = dma.done [#allocation9], 1024
        $region88: #{tpu_custom_call.1} parent=71 // pred_fallthru
          _
        %s465 = sand.u32 %s40, 1
        %s466 = scalar_lea.sflag [#allocation3], %s465
        %s467 = sand.u32 %s40, 1
        %s468 = smul.addr %s467, 128
        %s469 = scalar_lea.vmem [#allocation2], %s468
        %p470 = pneg %p53
        %p471 = pneg %p50
        %p472 = pneg %p74
        %p473 = pneg %p71
        %p474 = pneg %p95
        %p475 = pneg %p92
        %p476 = pneg %p116
        %p477 = pneg %p113
        %p478 = pneg %p137
        %p479 = pneg %p134
        %p480 = pneg %p158
        %p481 = pneg %p155
        %p482 = pneg %p179
        %p483 = pneg %p176
        %p484 = pneg %p200
        %p485 = pneg %p197
        %p486 = pneg %p221
        %p487 = pneg %p218
        %p488 = pneg %p242
        %p489 = pneg %p239
        %p490 = pneg %p263
        %p491 = pneg %p260
        %p492 = pneg %p284
        %p493 = pneg %p281
        %p494 = pneg %p305
        %p495 = pneg %p302
        %p496 = pneg %p331
        %p497 = pneg %p328
        %s498 = sand.u32 %s318, 1
        %s499 = scalar_lea.sflag [#allocation4], %s498
        %s500 = sand.u32 %s318, 1
        %s501 = smul.addr %s500, 64
        %s502 = scalar_lea.vmem [#allocation10], %s501
        %v504 = vld [vmem:[%s448] sm:$0xf]
        %v505 = vld [vmem:[%s448 + $0x4] sm:$0xf]
        %v506 = vld [vmem:[%s448 + $0x8] sm:$0xf]
        %v507 = vld [vmem:[%s448 + $0xc] sm:$0xf]
        %v508 = vld [vmem:[%s448 + $0x10] sm:$0xf]
        %v509 = vld [vmem:[%s448 + $0x14] sm:$0xf]
        %v510 = vld [vmem:[%s448 + $0x18] sm:$0xf]
        %v511 = vld [vmem:[%s448 + $0x1c] sm:$0xf]
        %v512 = vld [vmem:[%s448 + $0x20] sm:$0xf]
        %v513 = vld [vmem:[%s448 + $0x24] sm:$0xf]
        %v514 = vld [vmem:[%s448 + $0x28] sm:$0xf]
        %v515 = vld [vmem:[%s448 + $0x2c] sm:$0xf]
        %v516 = vld [vmem:[%s448 + $0x30] sm:$0xf]
        %v517 = vld [vmem:[%s448 + $0x34] sm:$0xf]
        %v518 = vld [vmem:[%s448 + $0x38] sm:$0xf]
        %v519 = vld [vmem:[%s448 + $0x3c] sm:$0xf]
        %v520 = vld [vmem:[%s448 + $0x40] sm:$0xf]
        %v521 = vld [vmem:[%s448 + $0x44] sm:$0xf]
        %v522 = vld [vmem:[%s448 + $0x48] sm:$0xf]
        %v523 = vld [vmem:[%s448 + $0x4c] sm:$0xf]
        %v524 = vld [vmem:[%s448 + $0x50] sm:$0xf]
        %v525 = vld [vmem:[%s448 + $0x54] sm:$0xf]
        %v526 = vld [vmem:[%s448 + $0x58] sm:$0xf]
        %v527 = vld [vmem:[%s448 + $0x5c] sm:$0xf]
        %v528 = vld [vmem:[%s448 + $0x60] sm:$0xf]
        %v529 = vld [vmem:[%s448 + $0x64] sm:$0xf]
        %v530 = vld [vmem:[%s448 + $0x68] sm:$0xf]
        %v531 = vld [vmem:[%s448 + $0x6c] sm:$0xf]
        %v532 = vld [vmem:[%s448 + $0x70] sm:$0xf]
        %v533 = vld [vmem:[%s448 + $0x74] sm:$0xf]
        %v534 = vld [vmem:[%s448 + $0x78] sm:$0xf]
        %v535 = vld [vmem:[%s448 + $0x7c] sm:$0xf]
        %v536 = vld [vmem:[#allocation5] sm:$0xf]
        %v537 = vld [vmem:[#allocation5 + $0x4] sm:$0xf]
        %v570 = vunpack.c.l.b16 %v504
        %v571 = vunpack.c.l.b16 %v505
        %v572 = vunpack.c.l.b16 %v506
        %v573 = vunpack.c.l.b16 %v507
        %v574 = vunpack.c.l.b16 %v508
        %v575 = vunpack.c.l.b16 %v509
        %v576 = vunpack.c.l.b16 %v510
        %v577 = vunpack.c.l.b16 %v511
        %v578 = vunpack.c.l.b16 %v512
        %v579 = vunpack.c.l.b16 %v513
        %v580 = vunpack.c.l.b16 %v514
        %v581 = vunpack.c.l.b16 %v515
        %v582 = vunpack.c.l.b16 %v516
        %v583 = vunpack.c.l.b16 %v517
        %v584 = vunpack.c.l.b16 %v518
        %v585 = vunpack.c.l.b16 %v519
        %v586 = vunpack.c.l.b16 %v520
        %v587 = vunpack.c.l.b16 %v521
        %v588 = vunpack.c.l.b16 %v522
        %v589 = vunpack.c.l.b16 %v523
        %v590 = vunpack.c.l.b16 %v524
        %v591 = vunpack.c.l.b16 %v525
        %v592 = vunpack.c.l.b16 %v526
        %v593 = vunpack.c.l.b16 %v527
        %v594 = vunpack.c.l.b16 %v528
        %v595 = vunpack.c.l.b16 %v529
        %v596 = vunpack.c.l.b16 %v530
        %v597 = vunpack.c.l.b16 %v531
        %v598 = vunpack.c.l.b16 %v532
        %v599 = vunpack.c.l.b16 %v533
        %v600 = vunpack.c.l.b16 %v534
        %v601 = vunpack.c.l.b16 %v535
        %v602 = vpack.c.b16 %v571, %v570
        %v603 = vpack.c.b16 %v573, %v572
        %v604 = vpack.c.b16 %v575, %v574
        %v605 = vpack.c.b16 %v577, %v576
        %v606 = vpack.c.b16 %v579, %v578
        %v607 = vpack.c.b16 %v581, %v580
        %v608 = vpack.c.b16 %v583, %v582
        %v609 = vpack.c.b16 %v585, %v584
        %v610 = vpack.c.b16 %v587, %v586
        %v611 = vpack.c.b16 %v589, %v588
        %v612 = vpack.c.b16 %v591, %v590
        %v613 = vpack.c.b16 %v593, %v592
        %v614 = vpack.c.b16 %v595, %v594
        %v615 = vpack.c.b16 %v597, %v596
        %v616 = vpack.c.b16 %v599, %v598
        %v617 = vpack.c.b16 %v601, %v600
        %v620 = vunpack.c.l.b16 %v536
        %v621 = vunpack.c.l.b16 %v537
        %v622 = vpack.c.b16 %v621, %v620
        %vm624 = vcmask 130048
        %v626 = vsel %vm624, %v602, 0
        %v629 = vsel %vm624, %v603, 0
        %v632 = vsel %vm624, %v604, 0
        %v635 = vsel %vm624, %v605, 0
        %v638 = vsel %vm624, %v606, 0
        %v641 = vsel %vm624, %v607, 0
        %v644 = vsel %vm624, %v608, 0
        %v647 = vsel %vm624, %v609, 0
        %v650 = vsel %vm624, %v610, 0
        %v653 = vsel %vm624, %v611, 0
        %v656 = vsel %vm624, %v612, 0
        %v659 = vsel %vm624, %v613, 0
        %v662 = vsel %vm624, %v614, 0
        %v665 = vsel %vm624, %v615, 0
        %v668 = vsel %vm624, %v616, 0
        %v671 = vsel %vm624, %v617, 0
        %673 = vmatprep.subr.bf16.mxu0 0
        %674 = vmatpush1.bf16.msra.mxu0 0
        %675 = vmatprep.subr.bf16.mxu0 0
        %676 = vmatpush1.bf16.msra.mxu0 0
        %677 = vmatprep.subr.bf16.mxu0 0
        %678 = vmatpush1.bf16.msra.mxu0 0
        %679 = vmatprep.subr.bf16.mxu0 0
        %680 = vmatpush1.bf16.msra.mxu0 0
        %681 = vmatprep.subr.bf16.mxu0 0
        %682 = vmatpush1.bf16.msra.mxu0 0
        %683 = vmatprep.subr.bf16.mxu0 0
        %684 = vmatpush1.bf16.msra.mxu0 0
        %685 = vmatprep.subr.bf16.mxu0 0
        %686 = vmatpush1.bf16.msra.mxu0 0
        %687 = vmatprep.subr.bf16.mxu0 0
        %688 = vmatpush1.bf16.msra.mxu0 %v622
        %689 = vmatprep.subr.bf16.mxu0 0
        %690 = vmatpush2.bf16.msra.mxu0 0
        %691 = vmatprep.subr.bf16.mxu0 0
        %692 = vmatpush2.bf16.msra.mxu0 0
        %693 = vmatprep.subr.bf16.mxu0 0
        %694 = vmatpush2.bf16.msra.mxu0 0
        %695 = vmatprep.subr.bf16.mxu0 0
        %696 = vmatpush2.bf16.msra.mxu0 0
        %697 = vmatprep.subr.bf16.mxu0 0
        %698 = vmatpush2.bf16.msra.mxu0 0
        %699 = vmatprep.subr.bf16.mxu0 0
        %700 = vmatpush2.bf16.msra.mxu0 0
        %701 = vmatprep.subr.bf16.mxu0 0
        %702 = vmatpush2.bf16.msra.mxu0 0
        %703 = vmatprep.subr.bf16.mxu0 0
        %704 = vmatpush2.bf16.msra.mxu0 0
        %705 = vmatprep.mubr.bf16.mxu0 0
        %706 = vmatmul.mubr.bf16.gmra.mxu0 %v626
        %v707 = vpop.f32.mrf.mxu0
        %v708 = vadd.f32 0.0, %v707
        %v709 = vpop.f32.mrf.mxu0
        %v710 = vpop.f32.mrf.mxu0
        %v711 = vadd.f32 0.0, %v710
        %v712 = vpop.f32.mrf.mxu0
        %713 = vmatprep.mubr.bf16.mxu0 0
        %714 = vmatmul.mubr.bf16.gmra.mxu0 %v629
        %v715 = vpop.f32.mrf.mxu0
        %v716 = vadd.f32 0.0, %v715
        %v717 = vpop.f32.mrf.mxu0
        %v718 = vpop.f32.mrf.mxu0
        %v719 = vadd.f32 0.0, %v718
        %v720 = vpop.f32.mrf.mxu0
        %721 = vmatprep.mubr.bf16.mxu0 0
        %722 = vmatmul.mubr.bf16.gmra.mxu0 %v632
        %v723 = vpop.f32.mrf.mxu0
        %v724 = vadd.f32 0.0, %v723
        %v725 = vpop.f32.mrf.mxu0
        %v726 = vpop.f32.mrf.mxu0
        %v727 = vadd.f32 0.0, %v726
        %v728 = vpop.f32.mrf.mxu0
        %729 = vmatprep.mubr.bf16.mxu0 0
        %730 = vmatmul.mubr.bf16.gmra.mxu0 %v635
        %v731 = vpop.f32.mrf.mxu0
        %v732 = vadd.f32 0.0, %v731
        %v733 = vpop.f32.mrf.mxu0
        %v734 = vpop.f32.mrf.mxu0
        %v735 = vadd.f32 0.0, %v734
        %v736 = vpop.f32.mrf.mxu0
        %737 = vmatprep.mubr.bf16.mxu0 0
        %738 = vmatmul.mubr.bf16.gmra.mxu0 %v638
        %v739 = vpop.f32.mrf.mxu0
        %v740 = vadd.f32 0.0, %v739
        %v741 = vpop.f32.mrf.mxu0
        %v742 = vpop.f32.mrf.mxu0
        %v743 = vadd.f32 0.0, %v742
        %v744 = vpop.f32.mrf.mxu0
        %745 = vmatprep.mubr.bf16.mxu0 0
        %746 = vmatmul.mubr.bf16.gmra.mxu0 %v641
        %v747 = vpop.f32.mrf.mxu0
        %v748 = vadd.f32 0.0, %v747
        %v749 = vpop.f32.mrf.mxu0
        %v750 = vpop.f32.mrf.mxu0
        %v751 = vadd.f32 0.0, %v750
        %v752 = vpop.f32.mrf.mxu0
        %753 = vmatprep.mubr.bf16.mxu0 0
        %754 = vmatmul.mubr.bf16.gmra.mxu0 %v644
        %v755 = vpop.f32.mrf.mxu0
        %v756 = vadd.f32 0.0, %v755
        %v757 = vpop.f32.mrf.mxu0
        %v758 = vpop.f32.mrf.mxu0
        %v759 = vadd.f32 0.0, %v758
        %v760 = vpop.f32.mrf.mxu0
        %761 = vmatprep.mubr.bf16.mxu0 0
        %762 = vmatmul.mubr.bf16.gmra.mxu0 %v647
        %v763 = vpop.f32.mrf.mxu0
        %v764 = vadd.f32 0.0, %v763
        %v765 = vpop.f32.mrf.mxu0
        %v766 = vpop.f32.mrf.mxu0
        %v767 = vadd.f32 0.0, %v766
        %v768 = vpop.f32.mrf.mxu0
        %769 = vmatprep.mubr.bf16.mxu0 0
        %770 = vmatmul.mubr.bf16.gmra.mxu0 %v650
        %v771 = vpop.f32.mrf.mxu0
        %v772 = vadd.f32 0.0, %v771
        %v773 = vpop.f32.mrf.mxu0
        %v774 = vpop.f32.mrf.mxu0
        %v775 = vadd.f32 0.0, %v774
        %v776 = vpop.f32.mrf.mxu0
        %777 = vmatprep.mubr.bf16.mxu0 0
        %778 = vmatmul.mubr.bf16.gmra.mxu0 %v653
        %v779 = vpop.f32.mrf.mxu0
        %v780 = vadd.f32 0.0, %v779
        %v781 = vpop.f32.mrf.mxu0
        %v782 = vpop.f32.mrf.mxu0
        %v783 = vadd.f32 0.0, %v782
        %v784 = vpop.f32.mrf.mxu0
        %785 = vmatprep.mubr.bf16.mxu0 0
        %786 = vmatmul.mubr.bf16.gmra.mxu0 %v656
        %v787 = vpop.f32.mrf.mxu0
        %v788 = vadd.f32 0.0, %v787
        %v789 = vpop.f32.mrf.mxu0
        %v790 = vpop.f32.mrf.mxu0
        %v791 = vadd.f32 0.0, %v790
        %v792 = vpop.f32.mrf.mxu0
        %793 = vmatprep.mubr.bf16.mxu0 0
        %794 = vmatmul.mubr.bf16.gmra.mxu0 %v659
        %v795 = vpop.f32.mrf.mxu0
        %v796 = vadd.f32 0.0, %v795
        %v797 = vpop.f32.mrf.mxu0
        %v798 = vpop.f32.mrf.mxu0
        %v799 = vadd.f32 0.0, %v798
        %v800 = vpop.f32.mrf.mxu0
        %801 = vmatprep.mubr.bf16.mxu0 0
        %802 = vmatmul.mubr.bf16.gmra.mxu0 %v662
        %v803 = vpop.f32.mrf.mxu0
        %v804 = vadd.f32 0.0, %v803
        %v805 = vpop.f32.mrf.mxu0
        %v806 = vpop.f32.mrf.mxu0
        %v807 = vadd.f32 0.0, %v806
        %v808 = vpop.f32.mrf.mxu0
        %809 = vmatprep.mubr.bf16.mxu0 0
        %810 = vmatmul.mubr.bf16.gmra.mxu0 %v665
        %v811 = vpop.f32.mrf.mxu0
        %v812 = vadd.f32 0.0, %v811
        %v813 = vpop.f32.mrf.mxu0
        %v814 = vpop.f32.mrf.mxu0
        %v815 = vadd.f32 0.0, %v814
        %v816 = vpop.f32.mrf.mxu0
        %817 = vmatprep.mubr.bf16.mxu0 0
        %818 = vmatmul.mubr.bf16.gmra.mxu0 %v668
        %v819 = vpop.f32.mrf.mxu0
        %v820 = vadd.f32 0.0, %v819
        %v821 = vpop.f32.mrf.mxu0
        %v822 = vpop.f32.mrf.mxu0
        %v823 = vadd.f32 0.0, %v822
        %v824 = vpop.f32.mrf.mxu0
        %825 = vmatprep.mubr.bf16.mxu0 0
        %826 = vmatmul.mubr.bf16.gmra.mxu0 %v671
        %v827 = vpop.f32.mrf.mxu0
        %v828 = vadd.f32 0.0, %v827
        %v829 = vpop.f32.mrf.mxu0
        %v830 = vpop.f32.mrf.mxu0
        %v831 = vadd.f32 0.0, %v830
        %v832 = vpop.f32.mrf.mxu0
        %833 = vdwg.mxu0
        %v834 = vld [vmem:[%s2] sm:$0x1]
        %v836 = vlaneseq
        %v837 = vshrl.u32 %v836, 7
        %v838 = vsub.s32 0, %v837
        %v839 = vrot.slane %v834, %v838
        %v841 = vmul.f32 %v708, %v839
        %v842 = vmul.f32 %v711, %v839
        %v843 = vmul.f32 %v716, %v839
        %v844 = vmul.f32 %v719, %v839
        %v845 = vmul.f32 %v724, %v839
        %v846 = vmul.f32 %v727, %v839
        %v847 = vmul.f32 %v732, %v839
        %v848 = vmul.f32 %v735, %v839
        %v849 = vmul.f32 %v740, %v839
        %v850 = vmul.f32 %v743, %v839
        %v851 = vmul.f32 %v748, %v839
        %v852 = vmul.f32 %v751, %v839
        %v853 = vmul.f32 %v756, %v839
        %v854 = vmul.f32 %v759, %v839
        %v855 = vmul.f32 %v764, %v839
        %v856 = vmul.f32 %v767, %v839
        %v857 = vmul.f32 %v772, %v839
        %v858 = vmul.f32 %v775, %v839
        %v859 = vmul.f32 %v780, %v839
        %v860 = vmul.f32 %v783, %v839
        %v861 = vmul.f32 %v788, %v839
        %v862 = vmul.f32 %v791, %v839
        %v863 = vmul.f32 %v796, %v839
        %v864 = vmul.f32 %v799, %v839
        %v865 = vmul.f32 %v804, %v839
        %v866 = vmul.f32 %v807, %v839
        %v867 = vmul.f32 %v812, %v839
        %v868 = vmul.f32 %v815, %v839
        %v869 = vmul.f32 %v820, %v839
        %v870 = vmul.f32 %v823, %v839
        %v871 = vmul.f32 %v828, %v839
        %v872 = vmul.f32 %v831, %v839
        %v873 = vld [vmem:[%s3] sm:$0x1]
        %v875 = vlaneseq
        %v876 = vshrl.u32 %v875, 7
        %v877 = vsub.s32 0, %v876
        %v878 = vrot.slane %v873, %v877
        %v880 = vadd.f32 %v841, %v878
        %v881 = vadd.f32 %v842, %v878
        %v882 = vadd.f32 %v843, %v878
        %v883 = vadd.f32 %v844, %v878
        %v884 = vadd.f32 %v845, %v878
        %v885 = vadd.f32 %v846, %v878
        %v886 = vadd.f32 %v847, %v878
        %v887 = vadd.f32 %v848, %v878
        %v888 = vadd.f32 %v849, %v878
        %v889 = vadd.f32 %v850, %v878
        %v890 = vadd.f32 %v851, %v878
        %v891 = vadd.f32 %v852, %v878
        %v892 = vadd.f32 %v853, %v878
        %v893 = vadd.f32 %v854, %v878
        %v894 = vadd.f32 %v855, %v878
        %v895 = vadd.f32 %v856, %v878
        %v896 = vadd.f32 %v857, %v878
        %v897 = vadd.f32 %v858, %v878
        %v898 = vadd.f32 %v859, %v878
        %v899 = vadd.f32 %v860, %v878
        %v900 = vadd.f32 %v861, %v878
        %v901 = vadd.f32 %v862, %v878
        %v902 = vadd.f32 %v863, %v878
        %v903 = vadd.f32 %v864, %v878
        %v904 = vadd.f32 %v865, %v878
        %v905 = vadd.f32 %v866, %v878
        %v906 = vadd.f32 %v867, %v878
        %v907 = vadd.f32 %v868, %v878
        %v908 = vadd.f32 %v869, %v878
        %v909 = vadd.f32 %v870, %v878
        %v910 = vadd.f32 %v871, %v878
        %v911 = vadd.f32 %v872, %v878
        %v912 = vmax.f32 %v880, 0.0
        %v913 = vmax.f32 %v881, 0.0
        %v914 = vmax.f32 %v882, 0.0
        %v915 = vmax.f32 %v883, 0.0
        %v916 = vmax.f32 %v884, 0.0
        %v917 = vmax.f32 %v885, 0.0
        %v918 = vmax.f32 %v886, 0.0
        %v919 = vmax.f32 %v887, 0.0
        %v920 = vmax.f32 %v888, 0.0
        %v921 = vmax.f32 %v889, 0.0
        %v922 = vmax.f32 %v890, 0.0
        %v923 = vmax.f32 %v891, 0.0
        %v924 = vmax.f32 %v892, 0.0
        %v925 = vmax.f32 %v893, 0.0
        %v926 = vmax.f32 %v894, 0.0
        %v927 = vmax.f32 %v895, 0.0
        %v928 = vmax.f32 %v896, 0.0
        %v929 = vmax.f32 %v897, 0.0
        %v930 = vmax.f32 %v898, 0.0
        %v931 = vmax.f32 %v899, 0.0
        %v932 = vmax.f32 %v900, 0.0
        %v933 = vmax.f32 %v901, 0.0
        %v934 = vmax.f32 %v902, 0.0
        %v935 = vmax.f32 %v903, 0.0
        %v936 = vmax.f32 %v904, 0.0
        %v937 = vmax.f32 %v905, 0.0
        %v938 = vmax.f32 %v906, 0.0
        %v939 = vmax.f32 %v907, 0.0
        %v940 = vmax.f32 %v908, 0.0
        %v941 = vmax.f32 %v909, 0.0
        %v942 = vmax.f32 %v910, 0.0
        %v943 = vmax.f32 %v911, 0.0
        %v944 = vpack.c.bf16 %v913, %v912
        %v945 = vpack.c.bf16 %v915, %v914
        %v946 = vpack.c.bf16 %v917, %v916
        %v947 = vpack.c.bf16 %v919, %v918
        %v948 = vpack.c.bf16 %v921, %v920
        %v949 = vpack.c.bf16 %v923, %v922
        %v950 = vpack.c.bf16 %v925, %v924
        %v951 = vpack.c.bf16 %v927, %v926
        %v952 = vpack.c.bf16 %v929, %v928
        %v953 = vpack.c.bf16 %v931, %v930
        %v954 = vpack.c.bf16 %v933, %v932
        %v955 = vpack.c.bf16 %v935, %v934
        %v956 = vpack.c.bf16 %v937, %v936
        %v957 = vpack.c.bf16 %v939, %v938
        %v958 = vpack.c.bf16 %v941, %v940
        %v959 = vpack.c.bf16 %v943, %v942
        %v968 = vcombine.high %v944, %v944
        %v970 = vunpack.c.l.s4 1966171168
        %v971 = vunpack.c.0.s8 %v970
        %v972 = vlaneseq
        %v973 = vshrl.u32 %v972, 7
        %v974 = vsub.s32 %v971, %v973
        %v975 = vrot.slane %v944, %v974
        %v977 = vunpack.c.l.s4 1966171168
        %v978 = vunpack.c.0.s8 %v977
        %v979 = vlaneseq
        %v980 = vshrl.u32 %v979, 7
        %v981 = vsub.s32 %v978, %v980
        %v982 = vrot.slane %v968, %v981
        %v983 = vcombine.high %v975, %v975
        %v984 = vcombine.high %v982, %v982
        %v986 = vunpack.c.l.s4 1966171168
        %v987 = vunpack.c.0.s8 %v986
        %v988 = vlaneseq
        %v989 = vshrl.u32 %v988, 7
        %v990 = vsub.s32 %v987, %v989
        %v991 = vrot.slane %v975, %v990
        %v993 = vunpack.c.l.s4 1966171168
        %v994 = vunpack.c.0.s8 %v993
        %v995 = vlaneseq
        %v996 = vshrl.u32 %v995, 7
        %v997 = vsub.s32 %v994, %v996
        %v998 = vrot.slane %v982, %v997
        %v1000 = vunpack.c.l.s4 1966171168
        %v1001 = vunpack.c.0.s8 %v1000
        %v1002 = vlaneseq
        %v1003 = vshrl.u32 %v1002, 7
        %v1004 = vsub.s32 %v1001, %v1003
        %v1005 = vrot.slane %v983, %v1004
        %v1007 = vunpack.c.l.s4 1966171168
        %v1008 = vunpack.c.0.s8 %v1007
        %v1009 = vlaneseq
        %v1010 = vshrl.u32 %v1009, 7
        %v1011 = vsub.s32 %v1008, %v1010
        %v1012 = vrot.slane %v984, %v1011
        %v1013 = vcombine.high %v991, %v991
        %v1014 = vcombine.high %v998, %v998
        %v1015 = vcombine.high %v1005, %v1005
        %v1016 = vcombine.high %v1012, %v1012
        %v1017 = vcombine.high %v946, %v946
        %v1019 = vunpack.c.l.s4 1966171168
        %v1020 = vunpack.c.0.s8 %v1019
        %v1021 = vlaneseq
        %v1022 = vshrl.u32 %v1021, 7
        %v1023 = vsub.s32 %v1020, %v1022
        %v1024 = vrot.slane %v946, %v1023
        %v1026 = vunpack.c.l.s4 1966171168
        %v1027 = vunpack.c.0.s8 %v1026
        %v1028 = vlaneseq
        %v1029 = vshrl.u32 %v1028, 7
        %v1030 = vsub.s32 %v1027, %v1029
        %v1031 = vrot.slane %v1017, %v1030
        %v1032 = vcombine.high %v1024, %v1024
        %v1033 = vcombine.high %v1031, %v1031
        %v1035 = vunpack.c.l.s4 1966171168
        %v1036 = vunpack.c.0.s8 %v1035
        %v1037 = vlaneseq
        %v1038 = vshrl.u32 %v1037, 7
        %v1039 = vsub.s32 %v1036, %v1038
        %v1040 = vrot.slane %v1024, %v1039
        %v1042 = vunpack.c.l.s4 1966171168
        %v1043 = vunpack.c.0.s8 %v1042
        %v1044 = vlaneseq
        %v1045 = vshrl.u32 %v1044, 7
        %v1046 = vsub.s32 %v1043, %v1045
        %v1047 = vrot.slane %v1031, %v1046
        %v1049 = vunpack.c.l.s4 1966171168
        %v1050 = vunpack.c.0.s8 %v1049
        %v1051 = vlaneseq
        %v1052 = vshrl.u32 %v1051, 7
        %v1053 = vsub.s32 %v1050, %v1052
        %v1054 = vrot.slane %v1032, %v1053
        %v1056 = vunpack.c.l.s4 1966171168
        %v1057 = vunpack.c.0.s8 %v1056
        %v1058 = vlaneseq
        %v1059 = vshrl.u32 %v1058, 7
        %v1060 = vsub.s32 %v1057, %v1059
        %v1061 = vrot.slane %v1033, %v1060
        %v1062 = vcombine.high %v1040, %v1040
        %v1063 = vcombine.high %v1047, %v1047
        %v1064 = vcombine.high %v1054, %v1054
        %v1065 = vcombine.high %v1061, %v1061
        %v1066 = vcombine.high %v948, %v948
        %v1068 = vunpack.c.l.s4 1966171168
        %v1069 = vunpack.c.0.s8 %v1068
        %v1070 = vlaneseq
        %v1071 = vshrl.u32 %v1070, 7
        %v1072 = vsub.s32 %v1069, %v1071
        %v1073 = vrot.slane %v948, %v1072
        %v1075 = vunpack.c.l.s4 1966171168
        %v1076 = vunpack.c.0.s8 %v1075
        %v1077 = vlaneseq
        %v1078 = vshrl.u32 %v1077, 7
        %v1079 = vsub.s32 %v1076, %v1078
        %v1080 = vrot.slane %v1066, %v1079
        %v1081 = vcombine.high %v1073, %v1073
        %v1082 = vcombine.high %v1080, %v1080
        %v1084 = vunpack.c.l.s4 1966171168
        %v1085 = vunpack.c.0.s8 %v1084
        %v1086 = vlaneseq
        %v1087 = vshrl.u32 %v1086, 7
        %v1088 = vsub.s32 %v1085, %v1087
        %v1089 = vrot.slane %v1073, %v1088
        %v1091 = vunpack.c.l.s4 1966171168
        %v1092 = vunpack.c.0.s8 %v1091
        %v1093 = vlaneseq
        %v1094 = vshrl.u32 %v1093, 7
        %v1095 = vsub.s32 %v1092, %v1094
        %v1096 = vrot.slane %v1080, %v1095
        %v1098 = vunpack.c.l.s4 1966171168
        %v1099 = vunpack.c.0.s8 %v1098
        %v1100 = vlaneseq
        %v1101 = vshrl.u32 %v1100, 7
        %v1102 = vsub.s32 %v1099, %v1101
        %v1103 = vrot.slane %v1081, %v1102
        %v1105 = vunpack.c.l.s4 1966171168
        %v1106 = vunpack.c.0.s8 %v1105
        %v1107 = vlaneseq
        %v1108 = vshrl.u32 %v1107, 7
        %v1109 = vsub.s32 %v1106, %v1108
        %v1110 = vrot.slane %v1082, %v1109
        %v1111 = vcombine.high %v1089, %v1089
        %v1112 = vcombine.high %v1096, %v1096
        %v1113 = vcombine.high %v1103, %v1103
        %v1114 = vcombine.high %v1110, %v1110
        %v1115 = vcombine.high %v950, %v950
        %v1117 = vunpack.c.l.s4 1966171168
        %v1118 = vunpack.c.0.s8 %v1117
        %v1119 = vlaneseq
        %v1120 = vshrl.u32 %v1119, 7
        %v1121 = vsub.s32 %v1118, %v1120
        %v1122 = vrot.slane %v950, %v1121
        %v1124 = vunpack.c.l.s4 1966171168
        %v1125 = vunpack.c.0.s8 %v1124
        %v1126 = vlaneseq
        %v1127 = vshrl.u32 %v1126, 7
        %v1128 = vsub.s32 %v1125, %v1127
        %v1129 = vrot.slane %v1115, %v1128
        %v1130 = vcombine.high %v1122, %v1122
        %v1131 = vcombine.high %v1129, %v1129
        %v1133 = vunpack.c.l.s4 1966171168
        %v1134 = vunpack.c.0.s8 %v1133
        %v1135 = vlaneseq
        %v1136 = vshrl.u32 %v1135, 7
        %v1137 = vsub.s32 %v1134, %v1136
        %v1138 = vrot.slane %v1122, %v1137
        %v1140 = vunpack.c.l.s4 1966171168
        %v1141 = vunpack.c.0.s8 %v1140
        %v1142 = vlaneseq
        %v1143 = vshrl.u32 %v1142, 7
        %v1144 = vsub.s32 %v1141, %v1143
        %v1145 = vrot.slane %v1129, %v1144
        %v1147 = vunpack.c.l.s4 1966171168
        %v1148 = vunpack.c.0.s8 %v1147
        %v1149 = vlaneseq
        %v1150 = vshrl.u32 %v1149, 7
        %v1151 = vsub.s32 %v1148, %v1150
        %v1152 = vrot.slane %v1130, %v1151
        %v1154 = vunpack.c.l.s4 1966171168
        %v1155 = vunpack.c.0.s8 %v1154
        %v1156 = vlaneseq
        %v1157 = vshrl.u32 %v1156, 7
        %v1158 = vsub.s32 %v1155, %v1157
        %v1159 = vrot.slane %v1131, %v1158
        %v1160 = vcombine.high %v1138, %v1138
        %v1161 = vcombine.high %v1145, %v1145
        %v1162 = vcombine.high %v1152, %v1152
        %v1163 = vcombine.high %v1159, %v1159
        %v1164 = vcombine.high %v952, %v952
        %v1166 = vunpack.c.l.s4 1966171168
        %v1167 = vunpack.c.0.s8 %v1166
        %v1168 = vlaneseq
        %v1169 = vshrl.u32 %v1168, 7
        %v1170 = vsub.s32 %v1167, %v1169
        %v1171 = vrot.slane %v952, %v1170
        %v1173 = vunpack.c.l.s4 1966171168
        %v1174 = vunpack.c.0.s8 %v1173
        %v1175 = vlaneseq
        %v1176 = vshrl.u32 %v1175, 7
        %v1177 = vsub.s32 %v1174, %v1176
        %v1178 = vrot.slane %v1164, %v1177
        %v1179 = vcombine.high %v1171, %v1171
        %v1180 = vcombine.high %v1178, %v1178
        %v1182 = vunpack.c.l.s4 1966171168
        %v1183 = vunpack.c.0.s8 %v1182
        %v1184 = vlaneseq
        %v1185 = vshrl.u32 %v1184, 7
        %v1186 = vsub.s32 %v1183, %v1185
        %v1187 = vrot.slane %v1171, %v1186
        %v1189 = vunpack.c.l.s4 1966171168
        %v1190 = vunpack.c.0.s8 %v1189
        %v1191 = vlaneseq
        %v1192 = vshrl.u32 %v1191, 7
        %v1193 = vsub.s32 %v1190, %v1192
        %v1194 = vrot.slane %v1178, %v1193
        %v1196 = vunpack.c.l.s4 1966171168
        %v1197 = vunpack.c.0.s8 %v1196
        %v1198 = vlaneseq
        %v1199 = vshrl.u32 %v1198, 7
        %v1200 = vsub.s32 %v1197, %v1199
        %v1201 = vrot.slane %v1179, %v1200
        %v1203 = vunpack.c.l.s4 1966171168
        %v1204 = vunpack.c.0.s8 %v1203
        %v1205 = vlaneseq
        %v1206 = vshrl.u32 %v1205, 7
        %v1207 = vsub.s32 %v1204, %v1206
        %v1208 = vrot.slane %v1180, %v1207
        %v1209 = vcombine.high %v1187, %v1187
        %v1210 = vcombine.high %v1194, %v1194
        %v1211 = vcombine.high %v1201, %v1201
        %v1212 = vcombine.high %v1208, %v1208
        %v1213 = vcombine.high %v954, %v954
        %v1215 = vunpack.c.l.s4 1966171168
        %v1216 = vunpack.c.0.s8 %v1215
        %v1217 = vlaneseq
        %v1218 = vshrl.u32 %v1217, 7
        %v1219 = vsub.s32 %v1216, %v1218
        %v1220 = vrot.slane %v954, %v1219
        %v1222 = vunpack.c.l.s4 1966171168
        %v1223 = vunpack.c.0.s8 %v1222
        %v1224 = vlaneseq
        %v1225 = vshrl.u32 %v1224, 7
        %v1226 = vsub.s32 %v1223, %v1225
        %v1227 = vrot.slane %v1213, %v1226
        %v1228 = vcombine.high %v1220, %v1220
        %v1229 = vcombine.high %v1227, %v1227
        %v1231 = vunpack.c.l.s4 1966171168
        %v1232 = vunpack.c.0.s8 %v1231
        %v1233 = vlaneseq
        %v1234 = vshrl.u32 %v1233, 7
        %v1235 = vsub.s32 %v1232, %v1234
        %v1236 = vrot.slane %v1220, %v1235
        %v1238 = vunpack.c.l.s4 1966171168
        %v1239 = vunpack.c.0.s8 %v1238
        %v1240 = vlaneseq
        %v1241 = vshrl.u32 %v1240, 7
        %v1242 = vsub.s32 %v1239, %v1241
        %v1243 = vrot.slane %v1227, %v1242
        %v1245 = vunpack.c.l.s4 1966171168
        %v1246 = vunpack.c.0.s8 %v1245
        %v1247 = vlaneseq
        %v1248 = vshrl.u32 %v1247, 7
        %v1249 = vsub.s32 %v1246, %v1248
        %v1250 = vrot.slane %v1228, %v1249
        %v1252 = vunpack.c.l.s4 1966171168
        %v1253 = vunpack.c.0.s8 %v1252
        %v1254 = vlaneseq
        %v1255 = vshrl.u32 %v1254, 7
        %v1256 = vsub.s32 %v1253, %v1255
        %v1257 = vrot.slane %v1229, %v1256
        %v1258 = vcombine.high %v1236, %v1236
        %v1259 = vcombine.high %v1243, %v1243
        %v1260 = vcombine.high %v1250, %v1250
        %v1261 = vcombine.high %v1257, %v1257
        %v1262 = vcombine.high %v956, %v956
        %v1264 = vunpack.c.l.s4 1966171168
        %v1265 = vunpack.c.0.s8 %v1264
        %v1266 = vlaneseq
        %v1267 = vshrl.u32 %v1266, 7
        %v1268 = vsub.s32 %v1265, %v1267
        %v1269 = vrot.slane %v956, %v1268
        %v1271 = vunpack.c.l.s4 1966171168
        %v1272 = vunpack.c.0.s8 %v1271
        %v1273 = vlaneseq
        %v1274 = vshrl.u32 %v1273, 7
        %v1275 = vsub.s32 %v1272, %v1274
        %v1276 = vrot.slane %v1262, %v1275
        %v1277 = vcombine.high %v1269, %v1269
        %v1278 = vcombine.high %v1276, %v1276
        %v1280 = vunpack.c.l.s4 1966171168
        %v1281 = vunpack.c.0.s8 %v1280
        %v1282 = vlaneseq
        %v1283 = vshrl.u32 %v1282, 7
        %v1284 = vsub.s32 %v1281, %v1283
        %v1285 = vrot.slane %v1269, %v1284
        %v1287 = vunpack.c.l.s4 1966171168
        %v1288 = vunpack.c.0.s8 %v1287
        %v1289 = vlaneseq
        %v1290 = vshrl.u32 %v1289, 7
        %v1291 = vsub.s32 %v1288, %v1290
        %v1292 = vrot.slane %v1276, %v1291
        %v1294 = vunpack.c.l.s4 1966171168
        %v1295 = vunpack.c.0.s8 %v1294
        %v1296 = vlaneseq
        %v1297 = vshrl.u32 %v1296, 7
        %v1298 = vsub.s32 %v1295, %v1297
        %v1299 = vrot.slane %v1277, %v1298
        %v1301 = vunpack.c.l.s4 1966171168
        %v1302 = vunpack.c.0.s8 %v1301
        %v1303 = vlaneseq
        %v1304 = vshrl.u32 %v1303, 7
        %v1305 = vsub.s32 %v1302, %v1304
        %v1306 = vrot.slane %v1278, %v1305
        %v1307 = vcombine.high %v1285, %v1285
        %v1308 = vcombine.high %v1292, %v1292
        %v1309 = vcombine.high %v1299, %v1299
        %v1310 = vcombine.high %v1306, %v1306
        %v1311 = vcombine.high %v958, %v958
        %v1313 = vunpack.c.l.s4 1966171168
        %v1314 = vunpack.c.0.s8 %v1313
        %v1315 = vlaneseq
        %v1316 = vshrl.u32 %v1315, 7
        %v1317 = vsub.s32 %v1314, %v1316
        %v1318 = vrot.slane %v958, %v1317
        %v1320 = vunpack.c.l.s4 1966171168
        %v1321 = vunpack.c.0.s8 %v1320
        %v1322 = vlaneseq
        %v1323 = vshrl.u32 %v1322, 7
        %v1324 = vsub.s32 %v1321, %v1323
        %v1325 = vrot.slane %v1311, %v1324
        %v1326 = vcombine.high %v1318, %v1318
        %v1327 = vcombine.high %v1325, %v1325
        %v1329 = vunpack.c.l.s4 1966171168
        %v1330 = vunpack.c.0.s8 %v1329
        %v1331 = vlaneseq
        %v1332 = vshrl.u32 %v1331, 7
        %v1333 = vsub.s32 %v1330, %v1332
        %v1334 = vrot.slane %v1318, %v1333
        %v1336 = vunpack.c.l.s4 1966171168
        %v1337 = vunpack.c.0.s8 %v1336
        %v1338 = vlaneseq
        %v1339 = vshrl.u32 %v1338, 7
        %v1340 = vsub.s32 %v1337, %v1339
        %v1341 = vrot.slane %v1325, %v1340
        %v1343 = vunpack.c.l.s4 1966171168
        %v1344 = vunpack.c.0.s8 %v1343
        %v1345 = vlaneseq
        %v1346 = vshrl.u32 %v1345, 7
        %v1347 = vsub.s32 %v1344, %v1346
        %v1348 = vrot.slane %v1326, %v1347
        %v1350 = vunpack.c.l.s4 1966171168
        %v1351 = vunpack.c.0.s8 %v1350
        %v1352 = vlaneseq
        %v1353 = vshrl.u32 %v1352, 7
        %v1354 = vsub.s32 %v1351, %v1353
        %v1355 = vrot.slane %v1327, %v1354
        %v1356 = vcombine.high %v1334, %v1334
        %v1357 = vcombine.high %v1341, %v1341
        %v1358 = vcombine.high %v1348, %v1348
        %v1359 = vcombine.high %v1355, %v1355
        %v1368 = vcombine.high %v945, %v945
        %v1370 = vunpack.c.l.s4 1966171168
        %v1371 = vunpack.c.0.s8 %v1370
        %v1372 = vlaneseq
        %v1373 = vshrl.u32 %v1372, 7
        %v1374 = vsub.s32 %v1371, %v1373
        %v1375 = vrot.slane %v945, %v1374
        %v1377 = vunpack.c.l.s4 1966171168
        %v1378 = vunpack.c.0.s8 %v1377
        %v1379 = vlaneseq
        %v1380 = vshrl.u32 %v1379, 7
        %v1381 = vsub.s32 %v1378, %v1380
        %v1382 = vrot.slane %v1368, %v1381
        %v1383 = vcombine.high %v1375, %v1375
        %v1384 = vcombine.high %v1382, %v1382
        %v1386 = vunpack.c.l.s4 1966171168
        %v1387 = vunpack.c.0.s8 %v1386
        %v1388 = vlaneseq
        %v1389 = vshrl.u32 %v1388, 7
        %v1390 = vsub.s32 %v1387, %v1389
        %v1391 = vrot.slane %v1375, %v1390
        %v1393 = vunpack.c.l.s4 1966171168
        %v1394 = vunpack.c.0.s8 %v1393
        %v1395 = vlaneseq
        %v1396 = vshrl.u32 %v1395, 7
        %v1397 = vsub.s32 %v1394, %v1396
        %v1398 = vrot.slane %v1382, %v1397
        %v1400 = vunpack.c.l.s4 1966171168
        %v1401 = vunpack.c.0.s8 %v1400
        %v1402 = vlaneseq
        %v1403 = vshrl.u32 %v1402, 7
        %v1404 = vsub.s32 %v1401, %v1403
        %v1405 = vrot.slane %v1383, %v1404
        %v1407 = vunpack.c.l.s4 1966171168
        %v1408 = vunpack.c.0.s8 %v1407
        %v1409 = vlaneseq
        %v1410 = vshrl.u32 %v1409, 7
        %v1411 = vsub.s32 %v1408, %v1410
        %v1412 = vrot.slane %v1384, %v1411
        %v1413 = vcombine.high %v1391, %v1391
        %v1414 = vcombine.high %v1398, %v1398
        %v1415 = vcombine.high %v1405, %v1405
        %v1416 = vcombine.high %v1412, %v1412
        %v1417 = vcombine.high %v947, %v947
        %v1419 = vunpack.c.l.s4 1966171168
        %v1420 = vunpack.c.0.s8 %v1419
        %v1421 = vlaneseq
        %v1422 = vshrl.u32 %v1421, 7
        %v1423 = vsub.s32 %v1420, %v1422
        %v1424 = vrot.slane %v947, %v1423
        %v1426 = vunpack.c.l.s4 1966171168
        %v1427 = vunpack.c.0.s8 %v1426
        %v1428 = vlaneseq
        %v1429 = vshrl.u32 %v1428, 7
        %v1430 = vsub.s32 %v1427, %v1429
        %v1431 = vrot.slane %v1417, %v1430
        %v1432 = vcombine.high %v1424, %v1424
        %v1433 = vcombine.high %v1431, %v1431
        %v1435 = vunpack.c.l.s4 1966171168
        %v1436 = vunpack.c.0.s8 %v1435
        %v1437 = vlaneseq
        %v1438 = vshrl.u32 %v1437, 7
        %v1439 = vsub.s32 %v1436, %v1438
        %v1440 = vrot.slane %v1424, %v1439
        %v1442 = vunpack.c.l.s4 1966171168
        %v1443 = vunpack.c.0.s8 %v1442
        %v1444 = vlaneseq
        %v1445 = vshrl.u32 %v1444, 7
        %v1446 = vsub.s32 %v1443, %v1445
        %v1447 = vrot.slane %v1431, %v1446
        %v1449 = vunpack.c.l.s4 1966171168
        %v1450 = vunpack.c.0.s8 %v1449
        %v1451 = vlaneseq
        %v1452 = vshrl.u32 %v1451, 7
        %v1453 = vsub.s32 %v1450, %v1452
        %v1454 = vrot.slane %v1432, %v1453
        %v1456 = vunpack.c.l.s4 1966171168
        %v1457 = vunpack.c.0.s8 %v1456
        %v1458 = vlaneseq
        %v1459 = vshrl.u32 %v1458, 7
        %v1460 = vsub.s32 %v1457, %v1459
        %v1461 = vrot.slane %v1433, %v1460
        %v1462 = vcombine.high %v1440, %v1440
        %v1463 = vcombine.high %v1447, %v1447
        %v1464 = vcombine.high %v1454, %v1454
        %v1465 = vcombine.high %v1461, %v1461
        %v1466 = vcombine.high %v949, %v949
        %v1468 = vunpack.c.l.s4 1966171168
        %v1469 = vunpack.c.0.s8 %v1468
        %v1470 = vlaneseq
        %v1471 = vshrl.u32 %v1470, 7
        %v1472 = vsub.s32 %v1469, %v1471
        %v1473 = vrot.slane %v949, %v1472
        %v1475 = vunpack.c.l.s4 1966171168
        %v1476 = vunpack.c.0.s8 %v1475
        %v1477 = vlaneseq
        %v1478 = vshrl.u32 %v1477, 7
        %v1479 = vsub.s32 %v1476, %v1478
        %v1480 = vrot.slane %v1466, %v1479
        %v1481 = vcombine.high %v1473, %v1473
        %v1482 = vcombine.high %v1480, %v1480
        %v1484 = vunpack.c.l.s4 1966171168
        %v1485 = vunpack.c.0.s8 %v1484
        %v1486 = vlaneseq
        %v1487 = vshrl.u32 %v1486, 7
        %v1488 = vsub.s32 %v1485, %v1487
        %v1489 = vrot.slane %v1473, %v1488
        %v1491 = vunpack.c.l.s4 1966171168
        %v1492 = vunpack.c.0.s8 %v1491
        %v1493 = vlaneseq
        %v1494 = vshrl.u32 %v1493, 7
        %v1495 = vsub.s32 %v1492, %v1494
        %v1496 = vrot.slane %v1480, %v1495
        %v1498 = vunpack.c.l.s4 1966171168
        %v1499 = vunpack.c.0.s8 %v1498
        %v1500 = vlaneseq
        %v1501 = vshrl.u32 %v1500, 7
        %v1502 = vsub.s32 %v1499, %v1501
        %v1503 = vrot.slane %v1481, %v1502
        %v1505 = vunpack.c.l.s4 1966171168
        %v1506 = vunpack.c.0.s8 %v1505
        %v1507 = vlaneseq
        %v1508 = vshrl.u32 %v1507, 7
        %v1509 = vsub.s32 %v1506, %v1508
        %v1510 = vrot.slane %v1482, %v1509
        %v1511 = vcombine.high %v1489, %v1489
        %v1512 = vcombine.high %v1496, %v1496
        %v1513 = vcombine.high %v1503, %v1503
        %v1514 = vcombine.high %v1510, %v1510
        %v1515 = vcombine.high %v951, %v951
        %v1517 = vunpack.c.l.s4 1966171168
        %v1518 = vunpack.c.0.s8 %v1517
        %v1519 = vlaneseq
        %v1520 = vshrl.u32 %v1519, 7
        %v1521 = vsub.s32 %v1518, %v1520
        %v1522 = vrot.slane %v951, %v1521
        %v1524 = vunpack.c.l.s4 1966171168
        %v1525 = vunpack.c.0.s8 %v1524
        %v1526 = vlaneseq
        %v1527 = vshrl.u32 %v1526, 7
        %v1528 = vsub.s32 %v1525, %v1527
        %v1529 = vrot.slane %v1515, %v1528
        %v1530 = vcombine.high %v1522, %v1522
        %v1531 = vcombine.high %v1529, %v1529
        %v1533 = vunpack.c.l.s4 1966171168
        %v1534 = vunpack.c.0.s8 %v1533
        %v1535 = vlaneseq
        %v1536 = vshrl.u32 %v1535, 7
        %v1537 = vsub.s32 %v1534, %v1536
        %v1538 = vrot.slane %v1522, %v1537
        %v1540 = vunpack.c.l.s4 1966171168
        %v1541 = vunpack.c.0.s8 %v1540
        %v1542 = vlaneseq
        %v1543 = vshrl.u32 %v1542, 7
        %v1544 = vsub.s32 %v1541, %v1543
        %v1545 = vrot.slane %v1529, %v1544
        %v1547 = vunpack.c.l.s4 1966171168
        %v1548 = vunpack.c.0.s8 %v1547
        %v1549 = vlaneseq
        %v1550 = vshrl.u32 %v1549, 7
        %v1551 = vsub.s32 %v1548, %v1550
        %v1552 = vrot.slane %v1530, %v1551
        %v1554 = vunpack.c.l.s4 1966171168
        %v1555 = vunpack.c.0.s8 %v1554
        %v1556 = vlaneseq
        %v1557 = vshrl.u32 %v1556, 7
        %v1558 = vsub.s32 %v1555, %v1557
        %v1559 = vrot.slane %v1531, %v1558
        %v1560 = vcombine.high %v1538, %v1538
        %v1561 = vcombine.high %v1545, %v1545
        %v1562 = vcombine.high %v1552, %v1552
        %v1563 = vcombine.high %v1559, %v1559
        %v1564 = vcombine.high %v953, %v953
        %v1566 = vunpack.c.l.s4 1966171168
        %v1567 = vunpack.c.0.s8 %v1566
        %v1568 = vlaneseq
        %v1569 = vshrl.u32 %v1568, 7
        %v1570 = vsub.s32 %v1567, %v1569
        %v1571 = vrot.slane %v953, %v1570
        %v1573 = vunpack.c.l.s4 1966171168
        %v1574 = vunpack.c.0.s8 %v1573
        %v1575 = vlaneseq
        %v1576 = vshrl.u32 %v1575, 7
        %v1577 = vsub.s32 %v1574, %v1576
        %v1578 = vrot.slane %v1564, %v1577
        %v1579 = vcombine.high %v1571, %v1571
        %v1580 = vcombine.high %v1578, %v1578
        %v1582 = vunpack.c.l.s4 1966171168
        %v1583 = vunpack.c.0.s8 %v1582
        %v1584 = vlaneseq
        %v1585 = vshrl.u32 %v1584, 7
        %v1586 = vsub.s32 %v1583, %v1585
        %v1587 = vrot.slane %v1571, %v1586
        %v1589 = vunpack.c.l.s4 1966171168
        %v1590 = vunpack.c.0.s8 %v1589
        %v1591 = vlaneseq
        %v1592 = vshrl.u32 %v1591, 7
        %v1593 = vsub.s32 %v1590, %v1592
        %v1594 = vrot.slane %v1578, %v1593
        %v1596 = vunpack.c.l.s4 1966171168
        %v1597 = vunpack.c.0.s8 %v1596
        %v1598 = vlaneseq
        %v1599 = vshrl.u32 %v1598, 7
        %v1600 = vsub.s32 %v1597, %v1599
        %v1601 = vrot.slane %v1579, %v1600
        %v1603 = vunpack.c.l.s4 1966171168
        %v1604 = vunpack.c.0.s8 %v1603
        %v1605 = vlaneseq
        %v1606 = vshrl.u32 %v1605, 7
        %v1607 = vsub.s32 %v1604, %v1606
        %v1608 = vrot.slane %v1580, %v1607
        %v1609 = vcombine.high %v1587, %v1587
        %v1610 = vcombine.high %v1594, %v1594
        %v1611 = vcombine.high %v1601, %v1601
        %v1612 = vcombine.high %v1608, %v1608
        %v1613 = vcombine.high %v955, %v955
        %v1615 = vunpack.c.l.s4 1966171168
        %v1616 = vunpack.c.0.s8 %v1615
        %v1617 = vlaneseq
        %v1618 = vshrl.u32 %v1617, 7
        %v1619 = vsub.s32 %v1616, %v1618
        %v1620 = vrot.slane %v955, %v1619
        %v1622 = vunpack.c.l.s4 1966171168
        %v1623 = vunpack.c.0.s8 %v1622
        %v1624 = vlaneseq
        %v1625 = vshrl.u32 %v1624, 7
        %v1626 = vsub.s32 %v1623, %v1625
        %v1627 = vrot.slane %v1613, %v1626
        %v1628 = vcombine.high %v1620, %v1620
        %v1629 = vcombine.high %v1627, %v1627
        %v1631 = vunpack.c.l.s4 1966171168
        %v1632 = vunpack.c.0.s8 %v1631
        %v1633 = vlaneseq
        %v1634 = vshrl.u32 %v1633, 7
        %v1635 = vsub.s32 %v1632, %v1634
        %v1636 = vrot.slane %v1620, %v1635
        %v1638 = vunpack.c.l.s4 1966171168
        %v1639 = vunpack.c.0.s8 %v1638
        %v1640 = vlaneseq
        %v1641 = vshrl.u32 %v1640, 7
        %v1642 = vsub.s32 %v1639, %v1641
        %v1643 = vrot.slane %v1627, %v1642
        %v1645 = vunpack.c.l.s4 1966171168
        %v1646 = vunpack.c.0.s8 %v1645
        %v1647 = vlaneseq
        %v1648 = vshrl.u32 %v1647, 7
        %v1649 = vsub.s32 %v1646, %v1648
        %v1650 = vrot.slane %v1628, %v1649
        %v1652 = vunpack.c.l.s4 1966171168
        %v1653 = vunpack.c.0.s8 %v1652
        %v1654 = vlaneseq
        %v1655 = vshrl.u32 %v1654, 7
        %v1656 = vsub.s32 %v1653, %v1655
        %v1657 = vrot.slane %v1629, %v1656
        %v1658 = vcombine.high %v1636, %v1636
        %v1659 = vcombine.high %v1643, %v1643
        %v1660 = vcombine.high %v1650, %v1650
        %v1661 = vcombine.high %v1657, %v1657
        %v1662 = vcombine.high %v957, %v957
        %v1664 = vunpack.c.l.s4 1966171168
        %v1665 = vunpack.c.0.s8 %v1664
        %v1666 = vlaneseq
        %v1667 = vshrl.u32 %v1666, 7
        %v1668 = vsub.s32 %v1665, %v1667
        %v1669 = vrot.slane %v957, %v1668
        %v1671 = vunpack.c.l.s4 1966171168
        %v1672 = vunpack.c.0.s8 %v1671
        %v1673 = vlaneseq
        %v1674 = vshrl.u32 %v1673, 7
        %v1675 = vsub.s32 %v1672, %v1674
        %v1676 = vrot.slane %v1662, %v1675
        %v1677 = vcombine.high %v1669, %v1669
        %v1678 = vcombine.high %v1676, %v1676
        %v1680 = vunpack.c.l.s4 1966171168
        %v1681 = vunpack.c.0.s8 %v1680
        %v1682 = vlaneseq
        %v1683 = vshrl.u32 %v1682, 7
        %v1684 = vsub.s32 %v1681, %v1683
        %v1685 = vrot.slane %v1669, %v1684
        %v1687 = vunpack.c.l.s4 1966171168
        %v1688 = vunpack.c.0.s8 %v1687
        %v1689 = vlaneseq
        %v1690 = vshrl.u32 %v1689, 7
        %v1691 = vsub.s32 %v1688, %v1690
        %v1692 = vrot.slane %v1676, %v1691
        %v1694 = vunpack.c.l.s4 1966171168
        %v1695 = vunpack.c.0.s8 %v1694
        %v1696 = vlaneseq
        %v1697 = vshrl.u32 %v1696, 7
        %v1698 = vsub.s32 %v1695, %v1697
        %v1699 = vrot.slane %v1677, %v1698
        %v1701 = vunpack.c.l.s4 1966171168
        %v1702 = vunpack.c.0.s8 %v1701
        %v1703 = vlaneseq
        %v1704 = vshrl.u32 %v1703, 7
        %v1705 = vsub.s32 %v1702, %v1704
        %v1706 = vrot.slane %v1678, %v1705
        %v1707 = vcombine.high %v1685, %v1685
        %v1708 = vcombine.high %v1692, %v1692
        %v1709 = vcombine.high %v1699, %v1699
        %v1710 = vcombine.high %v1706, %v1706
        %v1711 = vcombine.high %v959, %v959
        %v1713 = vunpack.c.l.s4 1966171168
        %v1714 = vunpack.c.0.s8 %v1713
        %v1715 = vlaneseq
        %v1716 = vshrl.u32 %v1715, 7
        %v1717 = vsub.s32 %v1714, %v1716
        %v1718 = vrot.slane %v959, %v1717
        %v1720 = vunpack.c.l.s4 1966171168
        %v1721 = vunpack.c.0.s8 %v1720
        %v1722 = vlaneseq
        %v1723 = vshrl.u32 %v1722, 7
        %v1724 = vsub.s32 %v1721, %v1723
        %v1725 = vrot.slane %v1711, %v1724
        %v1726 = vcombine.high %v1718, %v1718
        %v1727 = vcombine.high %v1725, %v1725
        %v1729 = vunpack.c.l.s4 1966171168
        %v1730 = vunpack.c.0.s8 %v1729
        %v1731 = vlaneseq
        %v1732 = vshrl.u32 %v1731, 7
        %v1733 = vsub.s32 %v1730, %v1732
        %v1734 = vrot.slane %v1718, %v1733
        %v1736 = vunpack.c.l.s4 1966171168
        %v1737 = vunpack.c.0.s8 %v1736
        %v1738 = vlaneseq
        %v1739 = vshrl.u32 %v1738, 7
        %v1740 = vsub.s32 %v1737, %v1739
        %v1741 = vrot.slane %v1725, %v1740
        %v1743 = vunpack.c.l.s4 1966171168
        %v1744 = vunpack.c.0.s8 %v1743
        %v1745 = vlaneseq
        %v1746 = vshrl.u32 %v1745, 7
        %v1747 = vsub.s32 %v1744, %v1746
        %v1748 = vrot.slane %v1726, %v1747
        %v1750 = vunpack.c.l.s4 1966171168
        %v1751 = vunpack.c.0.s8 %v1750
        %v1752 = vlaneseq
        %v1753 = vshrl.u32 %v1752, 7
        %v1754 = vsub.s32 %v1751, %v1753
        %v1755 = vrot.slane %v1727, %v1754
        %v1756 = vcombine.high %v1734, %v1734
        %v1757 = vcombine.high %v1741, %v1741
        %v1758 = vcombine.high %v1748, %v1748
        %v1759 = vcombine.high %v1755, %v1755
        %v1761 = vunpack.c.l.s4 1966171168
        %v1762 = vunpack.c.0.s8 %v1761
        %v1763 = vlaneseq
        %v1764 = vshrl.u32 %v1763, 7
        %v1765 = vsub.s32 %v1762, %v1764
        %v1766 = vrot.slane %v1391, %v1765
        %v1768 = vunpack.c.l.s4 1966171168
        %v1769 = vunpack.c.0.s8 %v1768
        %v1770 = vlaneseq
        %v1771 = vshrl.u32 %v1770, 7
        %v1772 = vsub.s32 %v1769, %v1771
        %v1773 = vrot.slane %v1766, %v1772
        %v1775 = vunpack.c.l.s4 1966171168
        %v1776 = vunpack.c.0.s8 %v1775
        %v1777 = vlaneseq
        %v1778 = vshrl.u32 %v1777, 7
        %v1779 = vsub.s32 %v1776, %v1778
        %v1780 = vrot.slane %v1405, %v1779
        %v1782 = vunpack.c.l.s4 1966171168
        %v1783 = vunpack.c.0.s8 %v1782
        %v1784 = vlaneseq
        %v1785 = vshrl.u32 %v1784, 7
        %v1786 = vsub.s32 %v1783, %v1785
        %v1787 = vrot.slane %v1780, %v1786
        %v1789 = vunpack.c.l.s4 1966171168
        %v1790 = vunpack.c.0.s8 %v1789
        %v1791 = vlaneseq
        %v1792 = vshrl.u32 %v1791, 7
        %v1793 = vsub.s32 %v1790, %v1792
        %v1794 = vrot.slane %v1413, %v1793
        %v1796 = vunpack.c.l.s4 1966171168
        %v1797 = vunpack.c.0.s8 %v1796
        %v1798 = vlaneseq
        %v1799 = vshrl.u32 %v1798, 7
        %v1800 = vsub.s32 %v1797, %v1799
        %v1801 = vrot.slane %v1794, %v1800
        %v1803 = vunpack.c.l.s4 1966171168
        %v1804 = vunpack.c.0.s8 %v1803
        %v1805 = vlaneseq
        %v1806 = vshrl.u32 %v1805, 7
        %v1807 = vsub.s32 %v1804, %v1806
        %v1808 = vrot.slane %v1415, %v1807
        %v1810 = vunpack.c.l.s4 1966171168
        %v1811 = vunpack.c.0.s8 %v1810
        %v1812 = vlaneseq
        %v1813 = vshrl.u32 %v1812, 7
        %v1814 = vsub.s32 %v1811, %v1813
        %v1815 = vrot.slane %v1808, %v1814
        %v1817 = vunpack.c.l.s4 1966171168
        %v1818 = vunpack.c.0.s8 %v1817
        %v1819 = vlaneseq
        %v1820 = vshrl.u32 %v1819, 7
        %v1821 = vsub.s32 %v1818, %v1820
        %v1822 = vrot.slane %v1398, %v1821
        %v1824 = vunpack.c.l.s4 1966171168
        %v1825 = vunpack.c.0.s8 %v1824
        %v1826 = vlaneseq
        %v1827 = vshrl.u32 %v1826, 7
        %v1828 = vsub.s32 %v1825, %v1827
        %v1829 = vrot.slane %v1822, %v1828
        %v1831 = vunpack.c.l.s4 1966171168
        %v1832 = vunpack.c.0.s8 %v1831
        %v1833 = vlaneseq
        %v1834 = vshrl.u32 %v1833, 7
        %v1835 = vsub.s32 %v1832, %v1834
        %v1836 = vrot.slane %v1412, %v1835
        %v1838 = vunpack.c.l.s4 1966171168
        %v1839 = vunpack.c.0.s8 %v1838
        %v1840 = vlaneseq
        %v1841 = vshrl.u32 %v1840, 7
        %v1842 = vsub.s32 %v1839, %v1841
        %v1843 = vrot.slane %v1836, %v1842
        %v1845 = vunpack.c.l.s4 1966171168
        %v1846 = vunpack.c.0.s8 %v1845
        %v1847 = vlaneseq
        %v1848 = vshrl.u32 %v1847, 7
        %v1849 = vsub.s32 %v1846, %v1848
        %v1850 = vrot.slane %v1414, %v1849
        %v1852 = vunpack.c.l.s4 1966171168
        %v1853 = vunpack.c.0.s8 %v1852
        %v1854 = vlaneseq
        %v1855 = vshrl.u32 %v1854, 7
        %v1856 = vsub.s32 %v1853, %v1855
        %v1857 = vrot.slane %v1850, %v1856
        %v1859 = vunpack.c.l.s4 1966171168
        %v1860 = vunpack.c.0.s8 %v1859
        %v1861 = vlaneseq
        %v1862 = vshrl.u32 %v1861, 7
        %v1863 = vsub.s32 %v1860, %v1862
        %v1864 = vrot.slane %v1416, %v1863
        %v1866 = vunpack.c.l.s4 1966171168
        %v1867 = vunpack.c.0.s8 %v1866
        %v1868 = vlaneseq
        %v1869 = vshrl.u32 %v1868, 7
        %v1870 = vsub.s32 %v1867, %v1869
        %v1871 = vrot.slane %v1864, %v1870
        %v1873 = vunpack.c.l.s4 1966171168
        %v1874 = vunpack.c.0.s8 %v1873
        %v1875 = vlaneseq
        %v1876 = vshrl.u32 %v1875, 7
        %v1877 = vsub.s32 %v1874, %v1876
        %v1878 = vrot.slane %v1440, %v1877
        %v1880 = vunpack.c.l.s4 1966171168
        %v1881 = vunpack.c.0.s8 %v1880
        %v1882 = vlaneseq
        %v1883 = vshrl.u32 %v1882, 7
        %v1884 = vsub.s32 %v1881, %v1883
        %v1885 = vrot.slane %v1878, %v1884
        %v1887 = vunpack.c.l.s4 1966171168
        %v1888 = vunpack.c.0.s8 %v1887
        %v1889 = vlaneseq
        %v1890 = vshrl.u32 %v1889, 7
        %v1891 = vsub.s32 %v1888, %v1890
        %v1892 = vrot.slane %v1454, %v1891
        %v1894 = vunpack.c.l.s4 1966171168
        %v1895 = vunpack.c.0.s8 %v1894
        %v1896 = vlaneseq
        %v1897 = vshrl.u32 %v1896, 7
        %v1898 = vsub.s32 %v1895, %v1897
        %v1899 = vrot.slane %v1892, %v1898
        %v1901 = vunpack.c.l.s4 1966171168
        %v1902 = vunpack.c.0.s8 %v1901
        %v1903 = vlaneseq
        %v1904 = vshrl.u32 %v1903, 7
        %v1905 = vsub.s32 %v1902, %v1904
        %v1906 = vrot.slane %v1462, %v1905
        %v1908 = vunpack.c.l.s4 1966171168
        %v1909 = vunpack.c.0.s8 %v1908
        %v1910 = vlaneseq
        %v1911 = vshrl.u32 %v1910, 7
        %v1912 = vsub.s32 %v1909, %v1911
        %v1913 = vrot.slane %v1906, %v1912
        %v1915 = vunpack.c.l.s4 1966171168
        %v1916 = vunpack.c.0.s8 %v1915
        %v1917 = vlaneseq
        %v1918 = vshrl.u32 %v1917, 7
        %v1919 = vsub.s32 %v1916, %v1918
        %v1920 = vrot.slane %v1464, %v1919
        %v1922 = vunpack.c.l.s4 1966171168
        %v1923 = vunpack.c.0.s8 %v1922
        %v1924 = vlaneseq
        %v1925 = vshrl.u32 %v1924, 7
        %v1926 = vsub.s32 %v1923, %v1925
        %v1927 = vrot.slane %v1920, %v1926
        %v1929 = vunpack.c.l.s4 1966171168
        %v1930 = vunpack.c.0.s8 %v1929
        %v1931 = vlaneseq
        %v1932 = vshrl.u32 %v1931, 7
        %v1933 = vsub.s32 %v1930, %v1932
        %v1934 = vrot.slane %v1447, %v1933
        %v1936 = vunpack.c.l.s4 1966171168
        %v1937 = vunpack.c.0.s8 %v1936
        %v1938 = vlaneseq
        %v1939 = vshrl.u32 %v1938, 7
        %v1940 = vsub.s32 %v1937, %v1939
        %v1941 = vrot.slane %v1934, %v1940
        %v1943 = vunpack.c.l.s4 1966171168
        %v1944 = vunpack.c.0.s8 %v1943
        %v1945 = vlaneseq
        %v1946 = vshrl.u32 %v1945, 7
        %v1947 = vsub.s32 %v1944, %v1946
        %v1948 = vrot.slane %v1461, %v1947
        %v1950 = vunpack.c.l.s4 1966171168
        %v1951 = vunpack.c.0.s8 %v1950
        %v1952 = vlaneseq
        %v1953 = vshrl.u32 %v1952, 7
        %v1954 = vsub.s32 %v1951, %v1953
        %v1955 = vrot.slane %v1948, %v1954
        %v1957 = vunpack.c.l.s4 1966171168
        %v1958 = vunpack.c.0.s8 %v1957
        %v1959 = vlaneseq
        %v1960 = vshrl.u32 %v1959, 7
        %v1961 = vsub.s32 %v1958, %v1960
        %v1962 = vrot.slane %v1463, %v1961
        %v1964 = vunpack.c.l.s4 1966171168
        %v1965 = vunpack.c.0.s8 %v1964
        %v1966 = vlaneseq
        %v1967 = vshrl.u32 %v1966, 7
        %v1968 = vsub.s32 %v1965, %v1967
        %v1969 = vrot.slane %v1962, %v1968
        %v1971 = vunpack.c.l.s4 1966171168
        %v1972 = vunpack.c.0.s8 %v1971
        %v1973 = vlaneseq
        %v1974 = vshrl.u32 %v1973, 7
        %v1975 = vsub.s32 %v1972, %v1974
        %v1976 = vrot.slane %v1465, %v1975
        %v1978 = vunpack.c.l.s4 1966171168
        %v1979 = vunpack.c.0.s8 %v1978
        %v1980 = vlaneseq
        %v1981 = vshrl.u32 %v1980, 7
        %v1982 = vsub.s32 %v1979, %v1981
        %v1983 = vrot.slane %v1976, %v1982
        %v1985 = vunpack.c.l.s4 1966171168
        %v1986 = vunpack.c.0.s8 %v1985
        %v1987 = vlaneseq
        %v1988 = vshrl.u32 %v1987, 7
        %v1989 = vsub.s32 %v1986, %v1988
        %v1990 = vrot.slane %v1489, %v1989
        %v1992 = vunpack.c.l.s4 1966171168
        %v1993 = vunpack.c.0.s8 %v1992
        %v1994 = vlaneseq
        %v1995 = vshrl.u32 %v1994, 7
        %v1996 = vsub.s32 %v1993, %v1995
        %v1997 = vrot.slane %v1990, %v1996
        %v1999 = vunpack.c.l.s4 1966171168
        %v2000 = vunpack.c.0.s8 %v1999
        %v2001 = vlaneseq
        %v2002 = vshrl.u32 %v2001, 7
        %v2003 = vsub.s32 %v2000, %v2002
        %v2004 = vrot.slane %v1503, %v2003
        %v2006 = vunpack.c.l.s4 1966171168
        %v2007 = vunpack.c.0.s8 %v2006
        %v2008 = vlaneseq
        %v2009 = vshrl.u32 %v2008, 7
        %v2010 = vsub.s32 %v2007, %v2009
        %v2011 = vrot.slane %v2004, %v2010
        %v2013 = vunpack.c.l.s4 1966171168
        %v2014 = vunpack.c.0.s8 %v2013
        %v2015 = vlaneseq
        %v2016 = vshrl.u32 %v2015, 7
        %v2017 = vsub.s32 %v2014, %v2016
        %v2018 = vrot.slane %v1511, %v2017
        %v2020 = vunpack.c.l.s4 1966171168
        %v2021 = vunpack.c.0.s8 %v2020
        %v2022 = vlaneseq
        %v2023 = vshrl.u32 %v2022, 7
        %v2024 = vsub.s32 %v2021, %v2023
        %v2025 = vrot.slane %v2018, %v2024
        %v2027 = vunpack.c.l.s4 1966171168
        %v2028 = vunpack.c.0.s8 %v2027
        %v2029 = vlaneseq
        %v2030 = vshrl.u32 %v2029, 7
        %v2031 = vsub.s32 %v2028, %v2030
        %v2032 = vrot.slane %v1513, %v2031
        %v2034 = vunpack.c.l.s4 1966171168
        %v2035 = vunpack.c.0.s8 %v2034
        %v2036 = vlaneseq
        %v2037 = vshrl.u32 %v2036, 7
        %v2038 = vsub.s32 %v2035, %v2037
        %v2039 = vrot.slane %v2032, %v2038
        %v2041 = vunpack.c.l.s4 1966171168
        %v2042 = vunpack.c.0.s8 %v2041
        %v2043 = vlaneseq
        %v2044 = vshrl.u32 %v2043, 7
        %v2045 = vsub.s32 %v2042, %v2044
        %v2046 = vrot.slane %v1496, %v2045
        %v2048 = vunpack.c.l.s4 1966171168
        %v2049 = vunpack.c.0.s8 %v2048
        %v2050 = vlaneseq
        %v2051 = vshrl.u32 %v2050, 7
        %v2052 = vsub.s32 %v2049, %v2051
        %v2053 = vrot.slane %v2046, %v2052
        %v2055 = vunpack.c.l.s4 1966171168
        %v2056 = vunpack.c.0.s8 %v2055
        %v2057 = vlaneseq
        %v2058 = vshrl.u32 %v2057, 7
        %v2059 = vsub.s32 %v2056, %v2058
        %v2060 = vrot.slane %v1510, %v2059
        %v2062 = vunpack.c.l.s4 1966171168
        %v2063 = vunpack.c.0.s8 %v2062
        %v2064 = vlaneseq
        %v2065 = vshrl.u32 %v2064, 7
        %v2066 = vsub.s32 %v2063, %v2065
        %v2067 = vrot.slane %v2060, %v2066
        %v2069 = vunpack.c.l.s4 1966171168
        %v2070 = vunpack.c.0.s8 %v2069
        %v2071 = vlaneseq
        %v2072 = vshrl.u32 %v2071, 7
        %v2073 = vsub.s32 %v2070, %v2072
        %v2074 = vrot.slane %v1512, %v2073
        %v2076 = vunpack.c.l.s4 1966171168
        %v2077 = vunpack.c.0.s8 %v2076
        %v2078 = vlaneseq
        %v2079 = vshrl.u32 %v2078, 7
        %v2080 = vsub.s32 %v2077, %v2079
        %v2081 = vrot.slane %v2074, %v2080
        %v2083 = vunpack.c.l.s4 1966171168
        %v2084 = vunpack.c.0.s8 %v2083
        %v2085 = vlaneseq
        %v2086 = vshrl.u32 %v2085, 7
        %v2087 = vsub.s32 %v2084, %v2086
        %v2088 = vrot.slane %v1514, %v2087
        %v2090 = vunpack.c.l.s4 1966171168
        %v2091 = vunpack.c.0.s8 %v2090
        %v2092 = vlaneseq
        %v2093 = vshrl.u32 %v2092, 7
        %v2094 = vsub.s32 %v2091, %v2093
        %v2095 = vrot.slane %v2088, %v2094
        %v2097 = vunpack.c.l.s4 1966171168
        %v2098 = vunpack.c.0.s8 %v2097
        %v2099 = vlaneseq
        %v2100 = vshrl.u32 %v2099, 7
        %v2101 = vsub.s32 %v2098, %v2100
        %v2102 = vrot.slane %v1538, %v2101
        %v2104 = vunpack.c.l.s4 1966171168
        %v2105 = vunpack.c.0.s8 %v2104
        %v2106 = vlaneseq
        %v2107 = vshrl.u32 %v2106, 7
        %v2108 = vsub.s32 %v2105, %v2107
        %v2109 = vrot.slane %v2102, %v2108
        %v2111 = vunpack.c.l.s4 1966171168
        %v2112 = vunpack.c.0.s8 %v2111
        %v2113 = vlaneseq
        %v2114 = vshrl.u32 %v2113, 7
        %v2115 = vsub.s32 %v2112, %v2114
        %v2116 = vrot.slane %v1552, %v2115
        %v2118 = vunpack.c.l.s4 1966171168
        %v2119 = vunpack.c.0.s8 %v2118
        %v2120 = vlaneseq
        %v2121 = vshrl.u32 %v2120, 7
        %v2122 = vsub.s32 %v2119, %v2121
        %v2123 = vrot.slane %v2116, %v2122
        %v2125 = vunpack.c.l.s4 1966171168
        %v2126 = vunpack.c.0.s8 %v2125
        %v2127 = vlaneseq
        %v2128 = vshrl.u32 %v2127, 7
        %v2129 = vsub.s32 %v2126, %v2128
        %v2130 = vrot.slane %v1560, %v2129
        %v2132 = vunpack.c.l.s4 1966171168
        %v2133 = vunpack.c.0.s8 %v2132
        %v2134 = vlaneseq
        %v2135 = vshrl.u32 %v2134, 7
        %v2136 = vsub.s32 %v2133, %v2135
        %v2137 = vrot.slane %v2130, %v2136
        %v2139 = vunpack.c.l.s4 1966171168
        %v2140 = vunpack.c.0.s8 %v2139
        %v2141 = vlaneseq
        %v2142 = vshrl.u32 %v2141, 7
        %v2143 = vsub.s32 %v2140, %v2142
        %v2144 = vrot.slane %v1562, %v2143
        %v2146 = vunpack.c.l.s4 1966171168
        %v2147 = vunpack.c.0.s8 %v2146
        %v2148 = vlaneseq
        %v2149 = vshrl.u32 %v2148, 7
        %v2150 = vsub.s32 %v2147, %v2149
        %v2151 = vrot.slane %v2144, %v2150
        %v2153 = vunpack.c.l.s4 1966171168
        %v2154 = vunpack.c.0.s8 %v2153
        %v2155 = vlaneseq
        %v2156 = vshrl.u32 %v2155, 7
        %v2157 = vsub.s32 %v2154, %v2156
        %v2158 = vrot.slane %v1545, %v2157
        %v2160 = vunpack.c.l.s4 1966171168
        %v2161 = vunpack.c.0.s8 %v2160
        %v2162 = vlaneseq
        %v2163 = vshrl.u32 %v2162, 7
        %v2164 = vsub.s32 %v2161, %v2163
        %v2165 = vrot.slane %v2158, %v2164
        %v2167 = vunpack.c.l.s4 1966171168
        %v2168 = vunpack.c.0.s8 %v2167
        %v2169 = vlaneseq
        %v2170 = vshrl.u32 %v2169, 7
        %v2171 = vsub.s32 %v2168, %v2170
        %v2172 = vrot.slane %v1559, %v2171
        %v2174 = vunpack.c.l.s4 1966171168
        %v2175 = vunpack.c.0.s8 %v2174
        %v2176 = vlaneseq
        %v2177 = vshrl.u32 %v2176, 7
        %v2178 = vsub.s32 %v2175, %v2177
        %v2179 = vrot.slane %v2172, %v2178
        %v2181 = vunpack.c.l.s4 1966171168
        %v2182 = vunpack.c.0.s8 %v2181
        %v2183 = vlaneseq
        %v2184 = vshrl.u32 %v2183, 7
        %v2185 = vsub.s32 %v2182, %v2184
        %v2186 = vrot.slane %v1561, %v2185
        %v2188 = vunpack.c.l.s4 1966171168
        %v2189 = vunpack.c.0.s8 %v2188
        %v2190 = vlaneseq
        %v2191 = vshrl.u32 %v2190, 7
        %v2192 = vsub.s32 %v2189, %v2191
        %v2193 = vrot.slane %v2186, %v2192
        %v2195 = vunpack.c.l.s4 1966171168
        %v2196 = vunpack.c.0.s8 %v2195
        %v2197 = vlaneseq
        %v2198 = vshrl.u32 %v2197, 7
        %v2199 = vsub.s32 %v2196, %v2198
        %v2200 = vrot.slane %v1563, %v2199
        %v2202 = vunpack.c.l.s4 1966171168
        %v2203 = vunpack.c.0.s8 %v2202
        %v2204 = vlaneseq
        %v2205 = vshrl.u32 %v2204, 7
        %v2206 = vsub.s32 %v2203, %v2205
        %v2207 = vrot.slane %v2200, %v2206
        %v2209 = vunpack.c.l.s4 1966171168
        %v2210 = vunpack.c.0.s8 %v2209
        %v2211 = vlaneseq
        %v2212 = vshrl.u32 %v2211, 7
        %v2213 = vsub.s32 %v2210, %v2212
        %v2214 = vrot.slane %v1587, %v2213
        %v2216 = vunpack.c.l.s4 1966171168
        %v2217 = vunpack.c.0.s8 %v2216
        %v2218 = vlaneseq
        %v2219 = vshrl.u32 %v2218, 7
        %v2220 = vsub.s32 %v2217, %v2219
        %v2221 = vrot.slane %v2214, %v2220
        %v2223 = vunpack.c.l.s4 1966171168
        %v2224 = vunpack.c.0.s8 %v2223
        %v2225 = vlaneseq
        %v2226 = vshrl.u32 %v2225, 7
        %v2227 = vsub.s32 %v2224, %v2226
        %v2228 = vrot.slane %v1601, %v2227
        %v2230 = vunpack.c.l.s4 1966171168
        %v2231 = vunpack.c.0.s8 %v2230
        %v2232 = vlaneseq
        %v2233 = vshrl.u32 %v2232, 7
        %v2234 = vsub.s32 %v2231, %v2233
        %v2235 = vrot.slane %v2228, %v2234
        %v2237 = vunpack.c.l.s4 1966171168
        %v2238 = vunpack.c.0.s8 %v2237
        %v2239 = vlaneseq
        %v2240 = vshrl.u32 %v2239, 7
        %v2241 = vsub.s32 %v2238, %v2240
        %v2242 = vrot.slane %v1609, %v2241
        %v2244 = vunpack.c.l.s4 1966171168
        %v2245 = vunpack.c.0.s8 %v2244
        %v2246 = vlaneseq
        %v2247 = vshrl.u32 %v2246, 7
        %v2248 = vsub.s32 %v2245, %v2247
        %v2249 = vrot.slane %v2242, %v2248
        %v2251 = vunpack.c.l.s4 1966171168
        %v2252 = vunpack.c.0.s8 %v2251
        %v2253 = vlaneseq
        %v2254 = vshrl.u32 %v2253, 7
        %v2255 = vsub.s32 %v2252, %v2254
        %v2256 = vrot.slane %v1611, %v2255
        %v2258 = vunpack.c.l.s4 1966171168
        %v2259 = vunpack.c.0.s8 %v2258
        %v2260 = vlaneseq
        %v2261 = vshrl.u32 %v2260, 7
        %v2262 = vsub.s32 %v2259, %v2261
        %v2263 = vrot.slane %v2256, %v2262
        %v2265 = vunpack.c.l.s4 1966171168
        %v2266 = vunpack.c.0.s8 %v2265
        %v2267 = vlaneseq
        %v2268 = vshrl.u32 %v2267, 7
        %v2269 = vsub.s32 %v2266, %v2268
        %v2270 = vrot.slane %v1594, %v2269
        %v2272 = vunpack.c.l.s4 1966171168
        %v2273 = vunpack.c.0.s8 %v2272
        %v2274 = vlaneseq
        %v2275 = vshrl.u32 %v2274, 7
        %v2276 = vsub.s32 %v2273, %v2275
        %v2277 = vrot.slane %v2270, %v2276
        %v2279 = vunpack.c.l.s4 1966171168
        %v2280 = vunpack.c.0.s8 %v2279
        %v2281 = vlaneseq
        %v2282 = vshrl.u32 %v2281, 7
        %v2283 = vsub.s32 %v2280, %v2282
        %v2284 = vrot.slane %v1608, %v2283
        %v2286 = vunpack.c.l.s4 1966171168
        %v2287 = vunpack.c.0.s8 %v2286
        %v2288 = vlaneseq
        %v2289 = vshrl.u32 %v2288, 7
        %v2290 = vsub.s32 %v2287, %v2289
        %v2291 = vrot.slane %v2284, %v2290
        %v2293 = vunpack.c.l.s4 1966171168
        %v2294 = vunpack.c.0.s8 %v2293
        %v2295 = vlaneseq
        %v2296 = vshrl.u32 %v2295, 7
        %v2297 = vsub.s32 %v2294, %v2296
        %v2298 = vrot.slane %v1610, %v2297
        %v2300 = vunpack.c.l.s4 1966171168
        %v2301 = vunpack.c.0.s8 %v2300
        %v2302 = vlaneseq
        %v2303 = vshrl.u32 %v2302, 7
        %v2304 = vsub.s32 %v2301, %v2303
        %v2305 = vrot.slane %v2298, %v2304
        %v2307 = vunpack.c.l.s4 1966171168
        %v2308 = vunpack.c.0.s8 %v2307
        %v2309 = vlaneseq
        %v2310 = vshrl.u32 %v2309, 7
        %v2311 = vsub.s32 %v2308, %v2310
        %v2312 = vrot.slane %v1612, %v2311
        %v2314 = vunpack.c.l.s4 1966171168
        %v2315 = vunpack.c.0.s8 %v2314
        %v2316 = vlaneseq
        %v2317 = vshrl.u32 %v2316, 7
        %v2318 = vsub.s32 %v2315, %v2317
        %v2319 = vrot.slane %v2312, %v2318
        %v2321 = vunpack.c.l.s4 1966171168
        %v2322 = vunpack.c.0.s8 %v2321
        %v2323 = vlaneseq
        %v2324 = vshrl.u32 %v2323, 7
        %v2325 = vsub.s32 %v2322, %v2324
        %v2326 = vrot.slane %v1636, %v2325
        %v2328 = vunpack.c.l.s4 1966171168
        %v2329 = vunpack.c.0.s8 %v2328
        %v2330 = vlaneseq
        %v2331 = vshrl.u32 %v2330, 7
        %v2332 = vsub.s32 %v2329, %v2331
        %v2333 = vrot.slane %v2326, %v2332
        %v2335 = vunpack.c.l.s4 1966171168
        %v2336 = vunpack.c.0.s8 %v2335
        %v2337 = vlaneseq
        %v2338 = vshrl.u32 %v2337, 7
        %v2339 = vsub.s32 %v2336, %v2338
        %v2340 = vrot.slane %v1650, %v2339
        %v2342 = vunpack.c.l.s4 1966171168
        %v2343 = vunpack.c.0.s8 %v2342
        %v2344 = vlaneseq
        %v2345 = vshrl.u32 %v2344, 7
        %v2346 = vsub.s32 %v2343, %v2345
        %v2347 = vrot.slane %v2340, %v2346
        %v2349 = vunpack.c.l.s4 1966171168
        %v2350 = vunpack.c.0.s8 %v2349
        %v2351 = vlaneseq
        %v2352 = vshrl.u32 %v2351, 7
        %v2353 = vsub.s32 %v2350, %v2352
        %v2354 = vrot.slane %v1658, %v2353
        %v2356 = vunpack.c.l.s4 1966171168
        %v2357 = vunpack.c.0.s8 %v2356
        %v2358 = vlaneseq
        %v2359 = vshrl.u32 %v2358, 7
        %v2360 = vsub.s32 %v2357, %v2359
        %v2361 = vrot.slane %v2354, %v2360
        %v2363 = vunpack.c.l.s4 1966171168
        %v2364 = vunpack.c.0.s8 %v2363
        %v2365 = vlaneseq
        %v2366 = vshrl.u32 %v2365, 7
        %v2367 = vsub.s32 %v2364, %v2366
        %v2368 = vrot.slane %v1660, %v2367
        %v2370 = vunpack.c.l.s4 1966171168
        %v2371 = vunpack.c.0.s8 %v2370
        %v2372 = vlaneseq
        %v2373 = vshrl.u32 %v2372, 7
        %v2374 = vsub.s32 %v2371, %v2373
        %v2375 = vrot.slane %v2368, %v2374
        %v2377 = vunpack.c.l.s4 1966171168
        %v2378 = vunpack.c.0.s8 %v2377
        %v2379 = vlaneseq
        %v2380 = vshrl.u32 %v2379, 7
        %v2381 = vsub.s32 %v2378, %v2380
        %v2382 = vrot.slane %v1643, %v2381
        %v2384 = vunpack.c.l.s4 1966171168
        %v2385 = vunpack.c.0.s8 %v2384
        %v2386 = vlaneseq
        %v2387 = vshrl.u32 %v2386, 7
        %v2388 = vsub.s32 %v2385, %v2387
        %v2389 = vrot.slane %v2382, %v2388
        %v2391 = vunpack.c.l.s4 1966171168
        %v2392 = vunpack.c.0.s8 %v2391
        %v2393 = vlaneseq
        %v2394 = vshrl.u32 %v2393, 7
        %v2395 = vsub.s32 %v2392, %v2394
        %v2396 = vrot.slane %v1657, %v2395
        %v2398 = vunpack.c.l.s4 1966171168
        %v2399 = vunpack.c.0.s8 %v2398
        %v2400 = vlaneseq
        %v2401 = vshrl.u32 %v2400, 7
        %v2402 = vsub.s32 %v2399, %v2401
        %v2403 = vrot.slane %v2396, %v2402
        %v2405 = vunpack.c.l.s4 1966171168
        %v2406 = vunpack.c.0.s8 %v2405
        %v2407 = vlaneseq
        %v2408 = vshrl.u32 %v2407, 7
        %v2409 = vsub.s32 %v2406, %v2408
        %v2410 = vrot.slane %v1659, %v2409
        %v2412 = vunpack.c.l.s4 1966171168
        %v2413 = vunpack.c.0.s8 %v2412
        %v2414 = vlaneseq
        %v2415 = vshrl.u32 %v2414, 7
        %v2416 = vsub.s32 %v2413, %v2415
        %v2417 = vrot.slane %v2410, %v2416
        %v2419 = vunpack.c.l.s4 1966171168
        %v2420 = vunpack.c.0.s8 %v2419
        %v2421 = vlaneseq
        %v2422 = vshrl.u32 %v2421, 7
        %v2423 = vsub.s32 %v2420, %v2422
        %v2424 = vrot.slane %v1661, %v2423
        %v2426 = vunpack.c.l.s4 1966171168
        %v2427 = vunpack.c.0.s8 %v2426
        %v2428 = vlaneseq
        %v2429 = vshrl.u32 %v2428, 7
        %v2430 = vsub.s32 %v2427, %v2429
        %v2431 = vrot.slane %v2424, %v2430
        %v2433 = vunpack.c.l.s4 1966171168
        %v2434 = vunpack.c.0.s8 %v2433
        %v2435 = vlaneseq
        %v2436 = vshrl.u32 %v2435, 7
        %v2437 = vsub.s32 %v2434, %v2436
        %v2438 = vrot.slane %v1685, %v2437
        %v2440 = vunpack.c.l.s4 1966171168
        %v2441 = vunpack.c.0.s8 %v2440
        %v2442 = vlaneseq
        %v2443 = vshrl.u32 %v2442, 7
        %v2444 = vsub.s32 %v2441, %v2443
        %v2445 = vrot.slane %v2438, %v2444
        %v2447 = vunpack.c.l.s4 1966171168
        %v2448 = vunpack.c.0.s8 %v2447
        %v2449 = vlaneseq
        %v2450 = vshrl.u32 %v2449, 7
        %v2451 = vsub.s32 %v2448, %v2450
        %v2452 = vrot.slane %v1699, %v2451
        %v2454 = vunpack.c.l.s4 1966171168
        %v2455 = vunpack.c.0.s8 %v2454
        %v2456 = vlaneseq
        %v2457 = vshrl.u32 %v2456, 7
        %v2458 = vsub.s32 %v2455, %v2457
        %v2459 = vrot.slane %v2452, %v2458
        %v2461 = vunpack.c.l.s4 1966171168
        %v2462 = vunpack.c.0.s8 %v2461
        %v2463 = vlaneseq
        %v2464 = vshrl.u32 %v2463, 7
        %v2465 = vsub.s32 %v2462, %v2464
        %v2466 = vrot.slane %v1707, %v2465
        %v2468 = vunpack.c.l.s4 1966171168
        %v2469 = vunpack.c.0.s8 %v2468
        %v2470 = vlaneseq
        %v2471 = vshrl.u32 %v2470, 7
        %v2472 = vsub.s32 %v2469, %v2471
        %v2473 = vrot.slane %v2466, %v2472
        %v2475 = vunpack.c.l.s4 1966171168
        %v2476 = vunpack.c.0.s8 %v2475
        %v2477 = vlaneseq
        %v2478 = vshrl.u32 %v2477, 7
        %v2479 = vsub.s32 %v2476, %v2478
        %v2480 = vrot.slane %v1709, %v2479
        %v2482 = vunpack.c.l.s4 1966171168
        %v2483 = vunpack.c.0.s8 %v2482
        %v2484 = vlaneseq
        %v2485 = vshrl.u32 %v2484, 7
        %v2486 = vsub.s32 %v2483, %v2485
        %v2487 = vrot.slane %v2480, %v2486
        %v2489 = vunpack.c.l.s4 1966171168
        %v2490 = vunpack.c.0.s8 %v2489
        %v2491 = vlaneseq
        %v2492 = vshrl.u32 %v2491, 7
        %v2493 = vsub.s32 %v2490, %v2492
        %v2494 = vrot.slane %v1692, %v2493
        %v2496 = vunpack.c.l.s4 1966171168
        %v2497 = vunpack.c.0.s8 %v2496
        %v2498 = vlaneseq
        %v2499 = vshrl.u32 %v2498, 7
        %v2500 = vsub.s32 %v2497, %v2499
        %v2501 = vrot.slane %v2494, %v2500
        %v2503 = vunpack.c.l.s4 1966171168
        %v2504 = vunpack.c.0.s8 %v2503
        %v2505 = vlaneseq
        %v2506 = vshrl.u32 %v2505, 7
        %v2507 = vsub.s32 %v2504, %v2506
        %v2508 = vrot.slane %v1706, %v2507
        %v2510 = vunpack.c.l.s4 1966171168
        %v2511 = vunpack.c.0.s8 %v2510
        %v2512 = vlaneseq
        %v2513 = vshrl.u32 %v2512, 7
        %v2514 = vsub.s32 %v2511, %v2513
        %v2515 = vrot.slane %v2508, %v2514
        %v2517 = vunpack.c.l.s4 1966171168
        %v2518 = vunpack.c.0.s8 %v2517
        %v2519 = vlaneseq
        %v2520 = vshrl.u32 %v2519, 7
        %v2521 = vsub.s32 %v2518, %v2520
        %v2522 = vrot.slane %v1708, %v2521
        %v2524 = vunpack.c.l.s4 1966171168
        %v2525 = vunpack.c.0.s8 %v2524
        %v2526 = vlaneseq
        %v2527 = vshrl.u32 %v2526, 7
        %v2528 = vsub.s32 %v2525, %v2527
        %v2529 = vrot.slane %v2522, %v2528
        %v2531 = vunpack.c.l.s4 1966171168
        %v2532 = vunpack.c.0.s8 %v2531
        %v2533 = vlaneseq
        %v2534 = vshrl.u32 %v2533, 7
        %v2535 = vsub.s32 %v2532, %v2534
        %v2536 = vrot.slane %v1710, %v2535
        %v2538 = vunpack.c.l.s4 1966171168
        %v2539 = vunpack.c.0.s8 %v2538
        %v2540 = vlaneseq
        %v2541 = vshrl.u32 %v2540, 7
        %v2542 = vsub.s32 %v2539, %v2541
        %v2543 = vrot.slane %v2536, %v2542
        %v2545 = vunpack.c.l.s4 1966171168
        %v2546 = vunpack.c.0.s8 %v2545
        %v2547 = vlaneseq
        %v2548 = vshrl.u32 %v2547, 7
        %v2549 = vsub.s32 %v2546, %v2548
        %v2550 = vrot.slane %v1734, %v2549
        %v2552 = vunpack.c.l.s4 1966171168
        %v2553 = vunpack.c.0.s8 %v2552
        %v2554 = vlaneseq
        %v2555 = vshrl.u32 %v2554, 7
        %v2556 = vsub.s32 %v2553, %v2555
        %v2557 = vrot.slane %v2550, %v2556
        %v2559 = vunpack.c.l.s4 1966171168
        %v2560 = vunpack.c.0.s8 %v2559
        %v2561 = vlaneseq
        %v2562 = vshrl.u32 %v2561, 7
        %v2563 = vsub.s32 %v2560, %v2562
        %v2564 = vrot.slane %v1748, %v2563
        %v2566 = vunpack.c.l.s4 1966171168
        %v2567 = vunpack.c.0.s8 %v2566
        %v2568 = vlaneseq
        %v2569 = vshrl.u32 %v2568, 7
        %v2570 = vsub.s32 %v2567, %v2569
        %v2571 = vrot.slane %v2564, %v2570
        %v2573 = vunpack.c.l.s4 1966171168
        %v2574 = vunpack.c.0.s8 %v2573
        %v2575 = vlaneseq
        %v2576 = vshrl.u32 %v2575, 7
        %v2577 = vsub.s32 %v2574, %v2576
        %v2578 = vrot.slane %v1756, %v2577
        %v2580 = vunpack.c.l.s4 1966171168
        %v2581 = vunpack.c.0.s8 %v2580
        %v2582 = vlaneseq
        %v2583 = vshrl.u32 %v2582, 7
        %v2584 = vsub.s32 %v2581, %v2583
        %v2585 = vrot.slane %v2578, %v2584
        %v2587 = vunpack.c.l.s4 1966171168
        %v2588 = vunpack.c.0.s8 %v2587
        %v2589 = vlaneseq
        %v2590 = vshrl.u32 %v2589, 7
        %v2591 = vsub.s32 %v2588, %v2590
        %v2592 = vrot.slane %v1758, %v2591
        %v2594 = vunpack.c.l.s4 1966171168
        %v2595 = vunpack.c.0.s8 %v2594
        %v2596 = vlaneseq
        %v2597 = vshrl.u32 %v2596, 7
        %v2598 = vsub.s32 %v2595, %v2597
        %v2599 = vrot.slane %v2592, %v2598
        %v2601 = vunpack.c.l.s4 1966171168
        %v2602 = vunpack.c.0.s8 %v2601
        %v2603 = vlaneseq
        %v2604 = vshrl.u32 %v2603, 7
        %v2605 = vsub.s32 %v2602, %v2604
        %v2606 = vrot.slane %v1741, %v2605
        %v2608 = vunpack.c.l.s4 1966171168
        %v2609 = vunpack.c.0.s8 %v2608
        %v2610 = vlaneseq
        %v2611 = vshrl.u32 %v2610, 7
        %v2612 = vsub.s32 %v2609, %v2611
        %v2613 = vrot.slane %v2606, %v2612
        %v2615 = vunpack.c.l.s4 1966171168
        %v2616 = vunpack.c.0.s8 %v2615
        %v2617 = vlaneseq
        %v2618 = vshrl.u32 %v2617, 7
        %v2619 = vsub.s32 %v2616, %v2618
        %v2620 = vrot.slane %v1755, %v2619
        %v2622 = vunpack.c.l.s4 1966171168
        %v2623 = vunpack.c.0.s8 %v2622
        %v2624 = vlaneseq
        %v2625 = vshrl.u32 %v2624, 7
        %v2626 = vsub.s32 %v2623, %v2625
        %v2627 = vrot.slane %v2620, %v2626
        %v2629 = vunpack.c.l.s4 1966171168
        %v2630 = vunpack.c.0.s8 %v2629
        %v2631 = vlaneseq
        %v2632 = vshrl.u32 %v2631, 7
        %v2633 = vsub.s32 %v2630, %v2632
        %v2634 = vrot.slane %v1757, %v2633
        %v2636 = vunpack.c.l.s4 1966171168
        %v2637 = vunpack.c.0.s8 %v2636
        %v2638 = vlaneseq
        %v2639 = vshrl.u32 %v2638, 7
        %v2640 = vsub.s32 %v2637, %v2639
        %v2641 = vrot.slane %v2634, %v2640
        %v2643 = vunpack.c.l.s4 1966171168
        %v2644 = vunpack.c.0.s8 %v2643
        %v2645 = vlaneseq
        %v2646 = vshrl.u32 %v2645, 7
        %v2647 = vsub.s32 %v2644, %v2646
        %v2648 = vrot.slane %v1759, %v2647
        %v2650 = vunpack.c.l.s4 1966171168
        %v2651 = vunpack.c.0.s8 %v2650
        %v2652 = vlaneseq
        %v2653 = vshrl.u32 %v2652, 7
        %v2654 = vsub.s32 %v2651, %v2653
        %v2655 = vrot.slane %v2648, %v2654
        %v2656 = vunpack.c.l.b16 %v1773
        %v2657 = vunpack.c.l.b16 %v1787
        %v2658 = vunpack.c.l.b16 %v1801
        %v2659 = vunpack.c.l.b16 %v1815
        %v2660 = vunpack.c.l.b16 %v1829
        %v2661 = vunpack.c.l.b16 %v1843
        %v2662 = vunpack.c.l.b16 %v1857
        %v2663 = vunpack.c.l.b16 %v1871
        %v2664 = vunpack.c.l.b16 %v1885
        %v2665 = vunpack.c.l.b16 %v1899
        %v2666 = vunpack.c.l.b16 %v1913
        %v2667 = vunpack.c.l.b16 %v1927
        %v2668 = vunpack.c.l.b16 %v1941
        %v2669 = vunpack.c.l.b16 %v1955
        %v2670 = vunpack.c.l.b16 %v1969
        %v2671 = vunpack.c.l.b16 %v1983
        %v2672 = vunpack.c.l.b16 %v1997
        %v2673 = vunpack.c.l.b16 %v2011
        %v2674 = vunpack.c.l.b16 %v2025
        %v2675 = vunpack.c.l.b16 %v2039
        %v2676 = vunpack.c.l.b16 %v2053
        %v2677 = vunpack.c.l.b16 %v2067
        %v2678 = vunpack.c.l.b16 %v2081
        %v2679 = vunpack.c.l.b16 %v2095
        %v2680 = vunpack.c.l.b16 %v2109
        %v2681 = vunpack.c.l.b16 %v2123
        %v2682 = vunpack.c.l.b16 %v2137
        %v2683 = vunpack.c.l.b16 %v2151
        %v2684 = vunpack.c.l.b16 %v2165
        %v2685 = vunpack.c.l.b16 %v2179
        %v2686 = vunpack.c.l.b16 %v2193
        %v2687 = vunpack.c.l.b16 %v2207
        %v2688 = vunpack.c.l.b16 %v2221
        %v2689 = vunpack.c.l.b16 %v2235
        %v2690 = vunpack.c.l.b16 %v2249
        %v2691 = vunpack.c.l.b16 %v2263
        %v2692 = vunpack.c.l.b16 %v2277
        %v2693 = vunpack.c.l.b16 %v2291
        %v2694 = vunpack.c.l.b16 %v2305
        %v2695 = vunpack.c.l.b16 %v2319
        %v2696 = vunpack.c.l.b16 %v2333
        %v2697 = vunpack.c.l.b16 %v2347
        %v2698 = vunpack.c.l.b16 %v2361
        %v2699 = vunpack.c.l.b16 %v2375
        %v2700 = vunpack.c.l.b16 %v2389
        %v2701 = vunpack.c.l.b16 %v2403
        %v2702 = vunpack.c.l.b16 %v2417
        %v2703 = vunpack.c.l.b16 %v2431
        %v2704 = vunpack.c.l.b16 %v2445
        %v2705 = vunpack.c.l.b16 %v2459
        %v2706 = vunpack.c.l.b16 %v2473
        %v2707 = vunpack.c.l.b16 %v2487
        %v2708 = vunpack.c.l.b16 %v2501
        %v2709 = vunpack.c.l.b16 %v2515
        %v2710 = vunpack.c.l.b16 %v2529
        %v2711 = vunpack.c.l.b16 %v2543
        %v2712 = vunpack.c.l.b16 %v2557
        %v2713 = vunpack.c.l.b16 %v2571
        %v2714 = vunpack.c.l.b16 %v2585
        %v2715 = vunpack.c.l.b16 %v2599
        %v2716 = vunpack.c.l.b16 %v2613
        %v2717 = vunpack.c.l.b16 %v2627
        %v2718 = vunpack.c.l.b16 %v2641
        %v2719 = vunpack.c.l.b16 %v2655
        %v2720 = vrot.slane %v2656, 1
        %vm2721 = vcmask 1041409
        %v2722 = vsel %vm2721, %v2657, %v2720
        %v2723 = vrot.slane %v2658, 7
        %vm2724 = vcmask 1042434
        %v2725 = vsel %vm2724, %v2723, %v2722
        %v2726 = vrot.slane %v2659, 6
        %vm2727 = vcmask 1043459
        %v2728 = vsel %vm2727, %v2726, %v2725
        %v2729 = vrot.slane %v2660, 5
        %vm2730 = vcmask 1044484
        %v2731 = vsel %vm2730, %v2729, %v2728
        %v2732 = vrot.slane %v2661, 4
        %vm2733 = vcmask 1045509
        %v2734 = vsel %vm2733, %v2732, %v2731
        %v2735 = vrot.slane %v2662, 3
        %vm2736 = vcmask 1046534
        %v2737 = vsel %vm2736, %v2735, %v2734
        %v2738 = vrot.slane %v2663, 2
        %vm2739 = vcmask 1047559
        %v2740 = vsel %vm2739, %v2738, %v2737
        %v2741 = vrot.slane %v2664, 1
        %v2742 = vsel %vm2721, %v2665, %v2741
        %v2743 = vrot.slane %v2666, 7
        %v2744 = vsel %vm2724, %v2743, %v2742
        %v2745 = vrot.slane %v2667, 6
        %v2746 = vsel %vm2727, %v2745, %v2744
        %v2747 = vrot.slane %v2668, 5
        %v2748 = vsel %vm2730, %v2747, %v2746
        %v2749 = vrot.slane %v2669, 4
        %v2750 = vsel %vm2733, %v2749, %v2748
        %v2751 = vrot.slane %v2670, 3
        %v2752 = vsel %vm2736, %v2751, %v2750
        %v2753 = vrot.slane %v2671, 2
        %v2754 = vsel %vm2739, %v2753, %v2752
        %v2755 = vrot.slane %v2672, 1
        %v2756 = vsel %vm2721, %v2673, %v2755
        %v2757 = vrot.slane %v2674, 7
        %v2758 = vsel %vm2724, %v2757, %v2756
        %v2759 = vrot.slane %v2675, 6
        %v2760 = vsel %vm2727, %v2759, %v2758
        %v2761 = vrot.slane %v2676, 5
        %v2762 = vsel %vm2730, %v2761, %v2760
        %v2763 = vrot.slane %v2677, 4
        %v2764 = vsel %vm2733, %v2763, %v2762
        %v2765 = vrot.slane %v2678, 3
        %v2766 = vsel %vm2736, %v2765, %v2764
        %v2767 = vrot.slane %v2679, 2
        %v2768 = vsel %vm2739, %v2767, %v2766
        %v2769 = vrot.slane %v2680, 1
        %v2770 = vsel %vm2721, %v2681, %v2769
        %v2771 = vrot.slane %v2682, 7
        %v2772 = vsel %vm2724, %v2771, %v2770
        %v2773 = vrot.slane %v2683, 6
        %v2774 = vsel %vm2727, %v2773, %v2772
        %v2775 = vrot.slane %v2684, 5
        %v2776 = vsel %vm2730, %v2775, %v2774
        %v2777 = vrot.slane %v2685, 4
        %v2778 = vsel %vm2733, %v2777, %v2776
        %v2779 = vrot.slane %v2686, 3
        %v2780 = vsel %vm2736, %v2779, %v2778
        %v2781 = vrot.slane %v2687, 2
        %v2782 = vsel %vm2739, %v2781, %v2780
        %v2783 = vrot.slane %v2688, 1
        %v2784 = vsel %vm2721, %v2689, %v2783
        %v2785 = vrot.slane %v2690, 7
        %v2786 = vsel %vm2724, %v2785, %v2784
        %v2787 = vrot.slane %v2691, 6
        %v2788 = vsel %vm2727, %v2787, %v2786
        %v2789 = vrot.slane %v2692, 5
        %v2790 = vsel %vm2730, %v2789, %v2788
        %v2791 = vrot.slane %v2693, 4
        %v2792 = vsel %vm2733, %v2791, %v2790
        %v2793 = vrot.slane %v2694, 3
        %v2794 = vsel %vm2736, %v2793, %v2792
        %v2795 = vrot.slane %v2695, 2
        %v2796 = vsel %vm2739, %v2795, %v2794
        %v2797 = vrot.slane %v2696, 1
        %v2798 = vsel %vm2721, %v2697, %v2797
        %v2799 = vrot.slane %v2698, 7
        %v2800 = vsel %vm2724, %v2799, %v2798
        %v2801 = vrot.slane %v2699, 6
        %v2802 = vsel %vm2727, %v2801, %v2800
        %v2803 = vrot.slane %v2700, 5
        %v2804 = vsel %vm2730, %v2803, %v2802
        %v2805 = vrot.slane %v2701, 4
        %v2806 = vsel %vm2733, %v2805, %v2804
        %v2807 = vrot.slane %v2702, 3
        %v2808 = vsel %vm2736, %v2807, %v2806
        %v2809 = vrot.slane %v2703, 2
        %v2810 = vsel %vm2739, %v2809, %v2808
        %v2811 = vrot.slane %v2704, 1
        %v2812 = vsel %vm2721, %v2705, %v2811
        %v2813 = vrot.slane %v2706, 7
        %v2814 = vsel %vm2724, %v2813, %v2812
        %v2815 = vrot.slane %v2707, 6
        %v2816 = vsel %vm2727, %v2815, %v2814
        %v2817 = vrot.slane %v2708, 5
        %v2818 = vsel %vm2730, %v2817, %v2816
        %v2819 = vrot.slane %v2709, 4
        %v2820 = vsel %vm2733, %v2819, %v2818
        %v2821 = vrot.slane %v2710, 3
        %v2822 = vsel %vm2736, %v2821, %v2820
        %v2823 = vrot.slane %v2711, 2
        %v2824 = vsel %vm2739, %v2823, %v2822
        %v2825 = vrot.slane %v2712, 1
        %v2826 = vsel %vm2721, %v2713, %v2825
        %v2827 = vrot.slane %v2714, 7
        %v2828 = vsel %vm2724, %v2827, %v2826
        %v2829 = vrot.slane %v2715, 6
        %v2830 = vsel %vm2727, %v2829, %v2828
        %v2831 = vrot.slane %v2716, 5
        %v2832 = vsel %vm2730, %v2831, %v2830
        %v2833 = vrot.slane %v2717, 4
        %v2834 = vsel %vm2733, %v2833, %v2832
        %v2835 = vrot.slane %v2718, 3
        %v2836 = vsel %vm2736, %v2835, %v2834
        %v2837 = vrot.slane %v2719, 2
        %v2838 = vsel %vm2739, %v2837, %v2836
        %v2839 = vpack.c.b16 %v2740, %v2740
        %v2840 = vpack.c.b16 %v2754, %v2754
        %v2841 = vpack.c.b16 %v2768, %v2768
        %v2842 = vpack.c.b16 %v2782, %v2782
        %v2843 = vpack.c.b16 %v2796, %v2796
        %v2844 = vpack.c.b16 %v2810, %v2810
        %v2845 = vpack.c.b16 %v2824, %v2824
        %v2846 = vpack.c.b16 %v2838, %v2838
        %v2848 = vshrl.u32 0, 16
        %v2850 = vrot.slane %v2848, 7
        %v2851 = vshll.u32 0, 16
        %v2853 = vor.u32 %v2850, %v2851
        %v2855 = vshrl.u32 %v2839, 16
        %v2857 = vrot.slane %v2855, 7
        %v2858 = vshll.u32 %v2839, 16
        %v2860 = vor.u32 %v2857, %v2858
        %v2862 = vshrl.u32 %v2840, 16
        %v2864 = vrot.slane %v2862, 7
        %v2865 = vshll.u32 %v2840, 16
        %v2867 = vor.u32 %v2864, %v2865
        %v2869 = vshrl.u32 %v2841, 16
        %v2871 = vrot.slane %v2869, 7
        %v2872 = vshll.u32 %v2841, 16
        %v2874 = vor.u32 %v2871, %v2872
        %v2876 = vshrl.u32 %v2842, 16
        %v2878 = vrot.slane %v2876, 7
        %v2879 = vshll.u32 %v2842, 16
        %v2881 = vor.u32 %v2878, %v2879
        %v2883 = vshrl.u32 %v2843, 16
        %v2885 = vrot.slane %v2883, 7
        %v2886 = vshll.u32 %v2843, 16
        %v2888 = vor.u32 %v2885, %v2886
        %v2890 = vshrl.u32 %v2844, 16
        %v2892 = vrot.slane %v2890, 7
        %v2893 = vshll.u32 %v2844, 16
        %v2895 = vor.u32 %v2892, %v2893
        %v2897 = vshrl.u32 %v2845, 16
        %v2899 = vrot.slane %v2897, 7
        %v2900 = vshll.u32 %v2845, 16
        %v2902 = vor.u32 %v2899, %v2900
        %v2904 = vshrl.u32 %v2846, 16
        %v2906 = vrot.slane %v2904, 7
        %v2907 = vshll.u32 %v2846, 16
        %v2909 = vor.u32 %v2906, %v2907
        %vm2919 = vcmask 1040384
        %vm2920 = vsmask.f32 256
        %vm2921 = vmand %vm2919, %vm2920
        %v2922 = vsel %vm2921, 0, %v2853
        %v2923 = vsel %vm2921, 0, %v2860
        %v2924 = vsel %vm2921, 0, %v2867
        %v2925 = vsel %vm2921, 0, %v2874
        %v2926 = vsel %vm2921, 0, %v2881
        %v2927 = vsel %vm2921, 0, %v2888
        %v2928 = vsel %vm2921, 0, %v2895
        %v2929 = vsel %vm2921, 0, %v2902
        %v2930 = vsel %vm2921, 0, %v2909
        %v2931 = vrot.slane %v2657, 7
        %v2932 = vsel %vm2721, %v2931, %v2656
        %v2933 = vrot.slane %v2658, 6
        %v2934 = vsel %vm2724, %v2933, %v2932
        %v2935 = vrot.slane %v2659, 5
        %v2936 = vsel %vm2727, %v2935, %v2934
        %v2937 = vrot.slane %v2660, 4
        %v2938 = vsel %vm2730, %v2937, %v2936
        %v2939 = vrot.slane %v2661, 3
        %v2940 = vsel %vm2733, %v2939, %v2938
        %v2941 = vrot.slane %v2662, 2
        %v2942 = vsel %vm2736, %v2941, %v2940
        %v2943 = vrot.slane %v2663, 1
        %v2944 = vsel %vm2739, %v2943, %v2942
        %v2945 = vrot.slane %v2665, 7
        %v2946 = vsel %vm2721, %v2945, %v2664
        %v2947 = vrot.slane %v2666, 6
        %v2948 = vsel %vm2724, %v2947, %v2946
        %v2949 = vrot.slane %v2667, 5
        %v2950 = vsel %vm2727, %v2949, %v2948
        %v2951 = vrot.slane %v2668, 4
        %v2952 = vsel %vm2730, %v2951, %v2950
        %v2953 = vrot.slane %v2669, 3
        %v2954 = vsel %vm2733, %v2953, %v2952
        %v2955 = vrot.slane %v2670, 2
        %v2956 = vsel %vm2736, %v2955, %v2954
        %v2957 = vrot.slane %v2671, 1
        %v2958 = vsel %vm2739, %v2957, %v2956
        %v2959 = vrot.slane %v2673, 7
        %v2960 = vsel %vm2721, %v2959, %v2672
        %v2961 = vrot.slane %v2674, 6
        %v2962 = vsel %vm2724, %v2961, %v2960
        %v2963 = vrot.slane %v2675, 5
        %v2964 = vsel %vm2727, %v2963, %v2962
        %v2965 = vrot.slane %v2676, 4
        %v2966 = vsel %vm2730, %v2965, %v2964
        %v2967 = vrot.slane %v2677, 3
        %v2968 = vsel %vm2733, %v2967, %v2966
        %v2969 = vrot.slane %v2678, 2
        %v2970 = vsel %vm2736, %v2969, %v2968
        %v2971 = vrot.slane %v2679, 1
        %v2972 = vsel %vm2739, %v2971, %v2970
        %v2973 = vrot.slane %v2681, 7
        %v2974 = vsel %vm2721, %v2973, %v2680
        %v2975 = vrot.slane %v2682, 6
        %v2976 = vsel %vm2724, %v2975, %v2974
        %v2977 = vrot.slane %v2683, 5
        %v2978 = vsel %vm2727, %v2977, %v2976
        %v2979 = vrot.slane %v2684, 4
        %v2980 = vsel %vm2730, %v2979, %v2978
        %v2981 = vrot.slane %v2685, 3
        %v2982 = vsel %vm2733, %v2981, %v2980
        %v2983 = vrot.slane %v2686, 2
        %v2984 = vsel %vm2736, %v2983, %v2982
        %v2985 = vrot.slane %v2687, 1
        %v2986 = vsel %vm2739, %v2985, %v2984
        %v2987 = vrot.slane %v2689, 7
        %v2988 = vsel %vm2721, %v2987, %v2688
        %v2989 = vrot.slane %v2690, 6
        %v2990 = vsel %vm2724, %v2989, %v2988
        %v2991 = vrot.slane %v2691, 5
        %v2992 = vsel %vm2727, %v2991, %v2990
        %v2993 = vrot.slane %v2692, 4
        %v2994 = vsel %vm2730, %v2993, %v2992
        %v2995 = vrot.slane %v2693, 3
        %v2996 = vsel %vm2733, %v2995, %v2994
        %v2997 = vrot.slane %v2694, 2
        %v2998 = vsel %vm2736, %v2997, %v2996
        %v2999 = vrot.slane %v2695, 1
        %v3000 = vsel %vm2739, %v2999, %v2998
        %v3001 = vrot.slane %v2697, 7
        %v3002 = vsel %vm2721, %v3001, %v2696
        %v3003 = vrot.slane %v2698, 6
        %v3004 = vsel %vm2724, %v3003, %v3002
        %v3005 = vrot.slane %v2699, 5
        %v3006 = vsel %vm2727, %v3005, %v3004
        %v3007 = vrot.slane %v2700, 4
        %v3008 = vsel %vm2730, %v3007, %v3006
        %v3009 = vrot.slane %v2701, 3
        %v3010 = vsel %vm2733, %v3009, %v3008
        %v3011 = vrot.slane %v2702, 2
        %v3012 = vsel %vm2736, %v3011, %v3010
        %v3013 = vrot.slane %v2703, 1
        %v3014 = vsel %vm2739, %v3013, %v3012
        %v3015 = vrot.slane %v2705, 7
        %v3016 = vsel %vm2721, %v3015, %v2704
        %v3017 = vrot.slane %v2706, 6
        %v3018 = vsel %vm2724, %v3017, %v3016
        %v3019 = vrot.slane %v2707, 5
        %v3020 = vsel %vm2727, %v3019, %v3018
        %v3021 = vrot.slane %v2708, 4
        %v3022 = vsel %vm2730, %v3021, %v3020
        %v3023 = vrot.slane %v2709, 3
        %v3024 = vsel %vm2733, %v3023, %v3022
        %v3025 = vrot.slane %v2710, 2
        %v3026 = vsel %vm2736, %v3025, %v3024
        %v3027 = vrot.slane %v2711, 1
        %v3028 = vsel %vm2739, %v3027, %v3026
        %v3029 = vrot.slane %v2713, 7
        %v3030 = vsel %vm2721, %v3029, %v2712
        %v3031 = vrot.slane %v2714, 6
        %v3032 = vsel %vm2724, %v3031, %v3030
        %v3033 = vrot.slane %v2715, 5
        %v3034 = vsel %vm2727, %v3033, %v3032
        %v3035 = vrot.slane %v2716, 4
        %v3036 = vsel %vm2730, %v3035, %v3034
        %v3037 = vrot.slane %v2717, 3
        %v3038 = vsel %vm2733, %v3037, %v3036
        %v3039 = vrot.slane %v2718, 2
        %v3040 = vsel %vm2736, %v3039, %v3038
        %v3041 = vrot.slane %v2719, 1
        %v3042 = vsel %vm2739, %v3041, %v3040
        %v3043 = vpack.c.b16 %v2944, %v2944
        %v3044 = vpack.c.b16 %v2958, %v2958
        %v3045 = vpack.c.b16 %v2972, %v2972
        %v3046 = vpack.c.b16 %v2986, %v2986
        %v3047 = vpack.c.b16 %v3000, %v3000
        %v3048 = vpack.c.b16 %v3014, %v3014
        %v3049 = vpack.c.b16 %v3028, %v3028
        %v3050 = vpack.c.b16 %v3042, %v3042
        %vm3051 = vcmask 1043456
        %v3053 = vsel %vm3051, %v3043, 0
        %v3055 = vsel %vm3051, %v3044, 0
        %v3057 = vsel %vm3051, %v3045, 0
        %v3059 = vsel %vm3051, %v3046, 0
        %v3061 = vsel %vm3051, %v3047, 0
        %v3063 = vsel %vm3051, %v3048, 0
        %v3065 = vsel %vm3051, %v3049, 0
        %v3067 = vsel %vm3051, %v3050, 0
        %v3069 = vunpack.c.l.s4 1966171168
        %v3070 = vunpack.c.0.s8 %v3069
        %v3071 = vlaneseq
        %v3072 = vshrl.u32 %v3071, 7
        %v3073 = vsub.s32 %v3070, %v3072
        %v3074 = vrot.slane %v991, %v3073
        %v3076 = vunpack.c.l.s4 1966171168
        %v3077 = vunpack.c.0.s8 %v3076
        %v3078 = vlaneseq
        %v3079 = vshrl.u32 %v3078, 7
        %v3080 = vsub.s32 %v3077, %v3079
        %v3081 = vrot.slane %v3074, %v3080
        %v3083 = vunpack.c.l.s4 1966171168
        %v3084 = vunpack.c.0.s8 %v3083
        %v3085 = vlaneseq
        %v3086 = vshrl.u32 %v3085, 7
        %v3087 = vsub.s32 %v3084, %v3086
        %v3088 = vrot.slane %v1005, %v3087
        %v3090 = vunpack.c.l.s4 1966171168
        %v3091 = vunpack.c.0.s8 %v3090
        %v3092 = vlaneseq
        %v3093 = vshrl.u32 %v3092, 7
        %v3094 = vsub.s32 %v3091, %v3093
        %v3095 = vrot.slane %v3088, %v3094
        %v3097 = vunpack.c.l.s4 1966171168
        %v3098 = vunpack.c.0.s8 %v3097
        %v3099 = vlaneseq
        %v3100 = vshrl.u32 %v3099, 7
        %v3101 = vsub.s32 %v3098, %v3100
        %v3102 = vrot.slane %v1013, %v3101
        %v3104 = vunpack.c.l.s4 1966171168
        %v3105 = vunpack.c.0.s8 %v3104
        %v3106 = vlaneseq
        %v3107 = vshrl.u32 %v3106, 7
        %v3108 = vsub.s32 %v3105, %v3107
        %v3109 = vrot.slane %v3102, %v3108
        %v3111 = vunpack.c.l.s4 1966171168
        %v3112 = vunpack.c.0.s8 %v3111
        %v3113 = vlaneseq
        %v3114 = vshrl.u32 %v3113, 7
        %v3115 = vsub.s32 %v3112, %v3114
        %v3116 = vrot.slane %v1015, %v3115
        %v3118 = vunpack.c.l.s4 1966171168
        %v3119 = vunpack.c.0.s8 %v3118
        %v3120 = vlaneseq
        %v3121 = vshrl.u32 %v3120, 7
        %v3122 = vsub.s32 %v3119, %v3121
        %v3123 = vrot.slane %v3116, %v3122
        %v3125 = vunpack.c.l.s4 1966171168
        %v3126 = vunpack.c.0.s8 %v3125
        %v3127 = vlaneseq
        %v3128 = vshrl.u32 %v3127, 7
        %v3129 = vsub.s32 %v3126, %v3128
        %v3130 = vrot.slane %v998, %v3129
        %v3132 = vunpack.c.l.s4 1966171168
        %v3133 = vunpack.c.0.s8 %v3132
        %v3134 = vlaneseq
        %v3135 = vshrl.u32 %v3134, 7
        %v3136 = vsub.s32 %v3133, %v3135
        %v3137 = vrot.slane %v3130, %v3136
        %v3139 = vunpack.c.l.s4 1966171168
        %v3140 = vunpack.c.0.s8 %v3139
        %v3141 = vlaneseq
        %v3142 = vshrl.u32 %v3141, 7
        %v3143 = vsub.s32 %v3140, %v3142
        %v3144 = vrot.slane %v1012, %v3143
        %v3146 = vunpack.c.l.s4 1966171168
        %v3147 = vunpack.c.0.s8 %v3146
        %v3148 = vlaneseq
        %v3149 = vshrl.u32 %v3148, 7
        %v3150 = vsub.s32 %v3147, %v3149
        %v3151 = vrot.slane %v3144, %v3150
        %v3153 = vunpack.c.l.s4 1966171168
        %v3154 = vunpack.c.0.s8 %v3153
        %v3155 = vlaneseq
        %v3156 = vshrl.u32 %v3155, 7
        %v3157 = vsub.s32 %v3154, %v3156
        %v3158 = vrot.slane %v1014, %v3157
        %v3160 = vunpack.c.l.s4 1966171168
        %v3161 = vunpack.c.0.s8 %v3160
        %v3162 = vlaneseq
        %v3163 = vshrl.u32 %v3162, 7
        %v3164 = vsub.s32 %v3161, %v3163
        %v3165 = vrot.slane %v3158, %v3164
        %v3167 = vunpack.c.l.s4 1966171168
        %v3168 = vunpack.c.0.s8 %v3167
        %v3169 = vlaneseq
        %v3170 = vshrl.u32 %v3169, 7
        %v3171 = vsub.s32 %v3168, %v3170
        %v3172 = vrot.slane %v1016, %v3171
        %v3174 = vunpack.c.l.s4 1966171168
        %v3175 = vunpack.c.0.s8 %v3174
        %v3176 = vlaneseq
        %v3177 = vshrl.u32 %v3176, 7
        %v3178 = vsub.s32 %v3175, %v3177
        %v3179 = vrot.slane %v3172, %v3178
        %v3181 = vunpack.c.l.s4 1966171168
        %v3182 = vunpack.c.0.s8 %v3181
        %v3183 = vlaneseq
        %v3184 = vshrl.u32 %v3183, 7
        %v3185 = vsub.s32 %v3182, %v3184
        %v3186 = vrot.slane %v1040, %v3185
        %v3188 = vunpack.c.l.s4 1966171168
        %v3189 = vunpack.c.0.s8 %v3188
        %v3190 = vlaneseq
        %v3191 = vshrl.u32 %v3190, 7
        %v3192 = vsub.s32 %v3189, %v3191
        %v3193 = vrot.slane %v3186, %v3192
        %v3195 = vunpack.c.l.s4 1966171168
        %v3196 = vunpack.c.0.s8 %v3195
        %v3197 = vlaneseq
        %v3198 = vshrl.u32 %v3197, 7
        %v3199 = vsub.s32 %v3196, %v3198
        %v3200 = vrot.slane %v1054, %v3199
        %v3202 = vunpack.c.l.s4 1966171168
        %v3203 = vunpack.c.0.s8 %v3202
        %v3204 = vlaneseq
        %v3205 = vshrl.u32 %v3204, 7
        %v3206 = vsub.s32 %v3203, %v3205
        %v3207 = vrot.slane %v3200, %v3206
        %v3209 = vunpack.c.l.s4 1966171168
        %v3210 = vunpack.c.0.s8 %v3209
        %v3211 = vlaneseq
        %v3212 = vshrl.u32 %v3211, 7
        %v3213 = vsub.s32 %v3210, %v3212
        %v3214 = vrot.slane %v1062, %v3213
        %v3216 = vunpack.c.l.s4 1966171168
        %v3217 = vunpack.c.0.s8 %v3216
        %v3218 = vlaneseq
        %v3219 = vshrl.u32 %v3218, 7
        %v3220 = vsub.s32 %v3217, %v3219
        %v3221 = vrot.slane %v3214, %v3220
        %v3223 = vunpack.c.l.s4 1966171168
        %v3224 = vunpack.c.0.s8 %v3223
        %v3225 = vlaneseq
        %v3226 = vshrl.u32 %v3225, 7
        %v3227 = vsub.s32 %v3224, %v3226
        %v3228 = vrot.slane %v1064, %v3227
        %v3230 = vunpack.c.l.s4 1966171168
        %v3231 = vunpack.c.0.s8 %v3230
        %v3232 = vlaneseq
        %v3233 = vshrl.u32 %v3232, 7
        %v3234 = vsub.s32 %v3231, %v3233
        %v3235 = vrot.slane %v3228, %v3234
        %v3237 = vunpack.c.l.s4 1966171168
        %v3238 = vunpack.c.0.s8 %v3237
        %v3239 = vlaneseq
        %v3240 = vshrl.u32 %v3239, 7
        %v3241 = vsub.s32 %v3238, %v3240
        %v3242 = vrot.slane %v1047, %v3241
        %v3244 = vunpack.c.l.s4 1966171168
        %v3245 = vunpack.c.0.s8 %v3244
        %v3246 = vlaneseq
        %v3247 = vshrl.u32 %v3246, 7
        %v3248 = vsub.s32 %v3245, %v3247
        %v3249 = vrot.slane %v3242, %v3248
        %v3251 = vunpack.c.l.s4 1966171168
        %v3252 = vunpack.c.0.s8 %v3251
        %v3253 = vlaneseq
        %v3254 = vshrl.u32 %v3253, 7
        %v3255 = vsub.s32 %v3252, %v3254
        %v3256 = vrot.slane %v1061, %v3255
        %v3258 = vunpack.c.l.s4 1966171168
        %v3259 = vunpack.c.0.s8 %v3258
        %v3260 = vlaneseq
        %v3261 = vshrl.u32 %v3260, 7
        %v3262 = vsub.s32 %v3259, %v3261
        %v3263 = vrot.slane %v3256, %v3262
        %v3265 = vunpack.c.l.s4 1966171168
        %v3266 = vunpack.c.0.s8 %v3265
        %v3267 = vlaneseq
        %v3268 = vshrl.u32 %v3267, 7
        %v3269 = vsub.s32 %v3266, %v3268
        %v3270 = vrot.slane %v1063, %v3269
        %v3272 = vunpack.c.l.s4 1966171168
        %v3273 = vunpack.c.0.s8 %v3272
        %v3274 = vlaneseq
        %v3275 = vshrl.u32 %v3274, 7
        %v3276 = vsub.s32 %v3273, %v3275
        %v3277 = vrot.slane %v3270, %v3276
        %v3279 = vunpack.c.l.s4 1966171168
        %v3280 = vunpack.c.0.s8 %v3279
        %v3281 = vlaneseq
        %v3282 = vshrl.u32 %v3281, 7
        %v3283 = vsub.s32 %v3280, %v3282
        %v3284 = vrot.slane %v1065, %v3283
        %v3286 = vunpack.c.l.s4 1966171168
        %v3287 = vunpack.c.0.s8 %v3286
        %v3288 = vlaneseq
        %v3289 = vshrl.u32 %v3288, 7
        %v3290 = vsub.s32 %v3287, %v3289
        %v3291 = vrot.slane %v3284, %v3290
        %v3293 = vunpack.c.l.s4 1966171168
        %v3294 = vunpack.c.0.s8 %v3293
        %v3295 = vlaneseq
        %v3296 = vshrl.u32 %v3295, 7
        %v3297 = vsub.s32 %v3294, %v3296
        %v3298 = vrot.slane %v1089, %v3297
        %v3300 = vunpack.c.l.s4 1966171168
        %v3301 = vunpack.c.0.s8 %v3300
        %v3302 = vlaneseq
        %v3303 = vshrl.u32 %v3302, 7
        %v3304 = vsub.s32 %v3301, %v3303
        %v3305 = vrot.slane %v3298, %v3304
        %v3307 = vunpack.c.l.s4 1966171168
        %v3308 = vunpack.c.0.s8 %v3307
        %v3309 = vlaneseq
        %v3310 = vshrl.u32 %v3309, 7
        %v3311 = vsub.s32 %v3308, %v3310
        %v3312 = vrot.slane %v1103, %v3311
        %v3314 = vunpack.c.l.s4 1966171168
        %v3315 = vunpack.c.0.s8 %v3314
        %v3316 = vlaneseq
        %v3317 = vshrl.u32 %v3316, 7
        %v3318 = vsub.s32 %v3315, %v3317
        %v3319 = vrot.slane %v3312, %v3318
        %v3321 = vunpack.c.l.s4 1966171168
        %v3322 = vunpack.c.0.s8 %v3321
        %v3323 = vlaneseq
        %v3324 = vshrl.u32 %v3323, 7
        %v3325 = vsub.s32 %v3322, %v3324
        %v3326 = vrot.slane %v1111, %v3325
        %v3328 = vunpack.c.l.s4 1966171168
        %v3329 = vunpack.c.0.s8 %v3328
        %v3330 = vlaneseq
        %v3331 = vshrl.u32 %v3330, 7
        %v3332 = vsub.s32 %v3329, %v3331
        %v3333 = vrot.slane %v3326, %v3332
        %v3335 = vunpack.c.l.s4 1966171168
        %v3336 = vunpack.c.0.s8 %v3335
        %v3337 = vlaneseq
        %v3338 = vshrl.u32 %v3337, 7
        %v3339 = vsub.s32 %v3336, %v3338
        %v3340 = vrot.slane %v1113, %v3339
        %v3342 = vunpack.c.l.s4 1966171168
        %v3343 = vunpack.c.0.s8 %v3342
        %v3344 = vlaneseq
        %v3345 = vshrl.u32 %v3344, 7
        %v3346 = vsub.s32 %v3343, %v3345
        %v3347 = vrot.slane %v3340, %v3346
        %v3349 = vunpack.c.l.s4 1966171168
        %v3350 = vunpack.c.0.s8 %v3349
        %v3351 = vlaneseq
        %v3352 = vshrl.u32 %v3351, 7
        %v3353 = vsub.s32 %v3350, %v3352
        %v3354 = vrot.slane %v1096, %v3353
        %v3356 = vunpack.c.l.s4 1966171168
        %v3357 = vunpack.c.0.s8 %v3356
        %v3358 = vlaneseq
        %v3359 = vshrl.u32 %v3358, 7
        %v3360 = vsub.s32 %v3357, %v3359
        %v3361 = vrot.slane %v3354, %v3360
        %v3363 = vunpack.c.l.s4 1966171168
        %v3364 = vunpack.c.0.s8 %v3363
        %v3365 = vlaneseq
        %v3366 = vshrl.u32 %v3365, 7
        %v3367 = vsub.s32 %v3364, %v3366
        %v3368 = vrot.slane %v1110, %v3367
        %v3370 = vunpack.c.l.s4 1966171168
        %v3371 = vunpack.c.0.s8 %v3370
        %v3372 = vlaneseq
        %v3373 = vshrl.u32 %v3372, 7
        %v3374 = vsub.s32 %v3371, %v3373
        %v3375 = vrot.slane %v3368, %v3374
        %v3377 = vunpack.c.l.s4 1966171168
        %v3378 = vunpack.c.0.s8 %v3377
        %v3379 = vlaneseq
        %v3380 = vshrl.u32 %v3379, 7
        %v3381 = vsub.s32 %v3378, %v3380
        %v3382 = vrot.slane %v1112, %v3381
        %v3384 = vunpack.c.l.s4 1966171168
        %v3385 = vunpack.c.0.s8 %v3384
        %v3386 = vlaneseq
        %v3387 = vshrl.u32 %v3386, 7
        %v3388 = vsub.s32 %v3385, %v3387
        %v3389 = vrot.slane %v3382, %v3388
        %v3391 = vunpack.c.l.s4 1966171168
        %v3392 = vunpack.c.0.s8 %v3391
        %v3393 = vlaneseq
        %v3394 = vshrl.u32 %v3393, 7
        %v3395 = vsub.s32 %v3392, %v3394
        %v3396 = vrot.slane %v1114, %v3395
        %v3398 = vunpack.c.l.s4 1966171168
        %v3399 = vunpack.c.0.s8 %v3398
        %v3400 = vlaneseq
        %v3401 = vshrl.u32 %v3400, 7
        %v3402 = vsub.s32 %v3399, %v3401
        %v3403 = vrot.slane %v3396, %v3402
        %v3405 = vunpack.c.l.s4 1966171168
        %v3406 = vunpack.c.0.s8 %v3405
        %v3407 = vlaneseq
        %v3408 = vshrl.u32 %v3407, 7
        %v3409 = vsub.s32 %v3406, %v3408
        %v3410 = vrot.slane %v1138, %v3409
        %v3412 = vunpack.c.l.s4 1966171168
        %v3413 = vunpack.c.0.s8 %v3412
        %v3414 = vlaneseq
        %v3415 = vshrl.u32 %v3414, 7
        %v3416 = vsub.s32 %v3413, %v3415
        %v3417 = vrot.slane %v3410, %v3416
        %v3419 = vunpack.c.l.s4 1966171168
        %v3420 = vunpack.c.0.s8 %v3419
        %v3421 = vlaneseq
        %v3422 = vshrl.u32 %v3421, 7
        %v3423 = vsub.s32 %v3420, %v3422
        %v3424 = vrot.slane %v1152, %v3423
        %v3426 = vunpack.c.l.s4 1966171168
        %v3427 = vunpack.c.0.s8 %v3426
        %v3428 = vlaneseq
        %v3429 = vshrl.u32 %v3428, 7
        %v3430 = vsub.s32 %v3427, %v3429
        %v3431 = vrot.slane %v3424, %v3430
        %v3433 = vunpack.c.l.s4 1966171168
        %v3434 = vunpack.c.0.s8 %v3433
        %v3435 = vlaneseq
        %v3436 = vshrl.u32 %v3435, 7
        %v3437 = vsub.s32 %v3434, %v3436
        %v3438 = vrot.slane %v1160, %v3437
        %v3440 = vunpack.c.l.s4 1966171168
        %v3441 = vunpack.c.0.s8 %v3440
        %v3442 = vlaneseq
        %v3443 = vshrl.u32 %v3442, 7
        %v3444 = vsub.s32 %v3441, %v3443
        %v3445 = vrot.slane %v3438, %v3444
        %v3447 = vunpack.c.l.s4 1966171168
        %v3448 = vunpack.c.0.s8 %v3447
        %v3449 = vlaneseq
        %v3450 = vshrl.u32 %v3449, 7
        %v3451 = vsub.s32 %v3448, %v3450
        %v3452 = vrot.slane %v1162, %v3451
        %v3454 = vunpack.c.l.s4 1966171168
        %v3455 = vunpack.c.0.s8 %v3454
        %v3456 = vlaneseq
        %v3457 = vshrl.u32 %v3456, 7
        %v3458 = vsub.s32 %v3455, %v3457
        %v3459 = vrot.slane %v3452, %v3458
        %v3461 = vunpack.c.l.s4 1966171168
        %v3462 = vunpack.c.0.s8 %v3461
        %v3463 = vlaneseq
        %v3464 = vshrl.u32 %v3463, 7
        %v3465 = vsub.s32 %v3462, %v3464
        %v3466 = vrot.slane %v1145, %v3465
        %v3468 = vunpack.c.l.s4 1966171168
        %v3469 = vunpack.c.0.s8 %v3468
        %v3470 = vlaneseq
        %v3471 = vshrl.u32 %v3470, 7
        %v3472 = vsub.s32 %v3469, %v3471
        %v3473 = vrot.slane %v3466, %v3472
        %v3475 = vunpack.c.l.s4 1966171168
        %v3476 = vunpack.c.0.s8 %v3475
        %v3477 = vlaneseq
        %v3478 = vshrl.u32 %v3477, 7
        %v3479 = vsub.s32 %v3476, %v3478
        %v3480 = vrot.slane %v1159, %v3479
        %v3482 = vunpack.c.l.s4 1966171168
        %v3483 = vunpack.c.0.s8 %v3482
        %v3484 = vlaneseq
        %v3485 = vshrl.u32 %v3484, 7
        %v3486 = vsub.s32 %v3483, %v3485
        %v3487 = vrot.slane %v3480, %v3486
        %v3489 = vunpack.c.l.s4 1966171168
        %v3490 = vunpack.c.0.s8 %v3489
        %v3491 = vlaneseq
        %v3492 = vshrl.u32 %v3491, 7
        %v3493 = vsub.s32 %v3490, %v3492
        %v3494 = vrot.slane %v1161, %v3493
        %v3496 = vunpack.c.l.s4 1966171168
        %v3497 = vunpack.c.0.s8 %v3496
        %v3498 = vlaneseq
        %v3499 = vshrl.u32 %v3498, 7
        %v3500 = vsub.s32 %v3497, %v3499
        %v3501 = vrot.slane %v3494, %v3500
        %v3503 = vunpack.c.l.s4 1966171168
        %v3504 = vunpack.c.0.s8 %v3503
        %v3505 = vlaneseq
        %v3506 = vshrl.u32 %v3505, 7
        %v3507 = vsub.s32 %v3504, %v3506
        %v3508 = vrot.slane %v1163, %v3507
        %v3510 = vunpack.c.l.s4 1966171168
        %v3511 = vunpack.c.0.s8 %v3510
        %v3512 = vlaneseq
        %v3513 = vshrl.u32 %v3512, 7
        %v3514 = vsub.s32 %v3511, %v3513
        %v3515 = vrot.slane %v3508, %v3514
        %v3517 = vunpack.c.l.s4 1966171168
        %v3518 = vunpack.c.0.s8 %v3517
        %v3519 = vlaneseq
        %v3520 = vshrl.u32 %v3519, 7
        %v3521 = vsub.s32 %v3518, %v3520
        %v3522 = vrot.slane %v1187, %v3521
        %v3524 = vunpack.c.l.s4 1966171168
        %v3525 = vunpack.c.0.s8 %v3524
        %v3526 = vlaneseq
        %v3527 = vshrl.u32 %v3526, 7
        %v3528 = vsub.s32 %v3525, %v3527
        %v3529 = vrot.slane %v3522, %v3528
        %v3531 = vunpack.c.l.s4 1966171168
        %v3532 = vunpack.c.0.s8 %v3531
        %v3533 = vlaneseq
        %v3534 = vshrl.u32 %v3533, 7
        %v3535 = vsub.s32 %v3532, %v3534
        %v3536 = vrot.slane %v1201, %v3535
        %v3538 = vunpack.c.l.s4 1966171168
        %v3539 = vunpack.c.0.s8 %v3538
        %v3540 = vlaneseq
        %v3541 = vshrl.u32 %v3540, 7
        %v3542 = vsub.s32 %v3539, %v3541
        %v3543 = vrot.slane %v3536, %v3542
        %v3545 = vunpack.c.l.s4 1966171168
        %v3546 = vunpack.c.0.s8 %v3545
        %v3547 = vlaneseq
        %v3548 = vshrl.u32 %v3547, 7
        %v3549 = vsub.s32 %v3546, %v3548
        %v3550 = vrot.slane %v1209, %v3549
        %v3552 = vunpack.c.l.s4 1966171168
        %v3553 = vunpack.c.0.s8 %v3552
        %v3554 = vlaneseq
        %v3555 = vshrl.u32 %v3554, 7
        %v3556 = vsub.s32 %v3553, %v3555
        %v3557 = vrot.slane %v3550, %v3556
        %v3559 = vunpack.c.l.s4 1966171168
        %v3560 = vunpack.c.0.s8 %v3559
        %v3561 = vlaneseq
        %v3562 = vshrl.u32 %v3561, 7
        %v3563 = vsub.s32 %v3560, %v3562
        %v3564 = vrot.slane %v1211, %v3563
        %v3566 = vunpack.c.l.s4 1966171168
        %v3567 = vunpack.c.0.s8 %v3566
        %v3568 = vlaneseq
        %v3569 = vshrl.u32 %v3568, 7
        %v3570 = vsub.s32 %v3567, %v3569
        %v3571 = vrot.slane %v3564, %v3570
        %v3573 = vunpack.c.l.s4 1966171168
        %v3574 = vunpack.c.0.s8 %v3573
        %v3575 = vlaneseq
        %v3576 = vshrl.u32 %v3575, 7
        %v3577 = vsub.s32 %v3574, %v3576
        %v3578 = vrot.slane %v1194, %v3577
        %v3580 = vunpack.c.l.s4 1966171168
        %v3581 = vunpack.c.0.s8 %v3580
        %v3582 = vlaneseq
        %v3583 = vshrl.u32 %v3582, 7
        %v3584 = vsub.s32 %v3581, %v3583
        %v3585 = vrot.slane %v3578, %v3584
        %v3587 = vunpack.c.l.s4 1966171168
        %v3588 = vunpack.c.0.s8 %v3587
        %v3589 = vlaneseq
        %v3590 = vshrl.u32 %v3589, 7
        %v3591 = vsub.s32 %v3588, %v3590
        %v3592 = vrot.slane %v1208, %v3591
        %v3594 = vunpack.c.l.s4 1966171168
        %v3595 = vunpack.c.0.s8 %v3594
        %v3596 = vlaneseq
        %v3597 = vshrl.u32 %v3596, 7
        %v3598 = vsub.s32 %v3595, %v3597
        %v3599 = vrot.slane %v3592, %v3598
        %v3601 = vunpack.c.l.s4 1966171168
        %v3602 = vunpack.c.0.s8 %v3601
        %v3603 = vlaneseq
        %v3604 = vshrl.u32 %v3603, 7
        %v3605 = vsub.s32 %v3602, %v3604
        %v3606 = vrot.slane %v1210, %v3605
        %v3608 = vunpack.c.l.s4 1966171168
        %v3609 = vunpack.c.0.s8 %v3608
        %v3610 = vlaneseq
        %v3611 = vshrl.u32 %v3610, 7
        %v3612 = vsub.s32 %v3609, %v3611
        %v3613 = vrot.slane %v3606, %v3612
        %v3615 = vunpack.c.l.s4 1966171168
        %v3616 = vunpack.c.0.s8 %v3615
        %v3617 = vlaneseq
        %v3618 = vshrl.u32 %v3617, 7
        %v3619 = vsub.s32 %v3616, %v3618
        %v3620 = vrot.slane %v1212, %v3619
        %v3622 = vunpack.c.l.s4 1966171168
        %v3623 = vunpack.c.0.s8 %v3622
        %v3624 = vlaneseq
        %v3625 = vshrl.u32 %v3624, 7
        %v3626 = vsub.s32 %v3623, %v3625
        %v3627 = vrot.slane %v3620, %v3626
        %v3629 = vunpack.c.l.s4 1966171168
        %v3630 = vunpack.c.0.s8 %v3629
        %v3631 = vlaneseq
        %v3632 = vshrl.u32 %v3631, 7
        %v3633 = vsub.s32 %v3630, %v3632
        %v3634 = vrot.slane %v1236, %v3633
        %v3636 = vunpack.c.l.s4 1966171168
        %v3637 = vunpack.c.0.s8 %v3636
        %v3638 = vlaneseq
        %v3639 = vshrl.u32 %v3638, 7
        %v3640 = vsub.s32 %v3637, %v3639
        %v3641 = vrot.slane %v3634, %v3640
        %v3643 = vunpack.c.l.s4 1966171168
        %v3644 = vunpack.c.0.s8 %v3643
        %v3645 = vlaneseq
        %v3646 = vshrl.u32 %v3645, 7
        %v3647 = vsub.s32 %v3644, %v3646
        %v3648 = vrot.slane %v1250, %v3647
        %v3650 = vunpack.c.l.s4 1966171168
        %v3651 = vunpack.c.0.s8 %v3650
        %v3652 = vlaneseq
        %v3653 = vshrl.u32 %v3652, 7
        %v3654 = vsub.s32 %v3651, %v3653
        %v3655 = vrot.slane %v3648, %v3654
        %v3657 = vunpack.c.l.s4 1966171168
        %v3658 = vunpack.c.0.s8 %v3657
        %v3659 = vlaneseq
        %v3660 = vshrl.u32 %v3659, 7
        %v3661 = vsub.s32 %v3658, %v3660
        %v3662 = vrot.slane %v1258, %v3661
        %v3664 = vunpack.c.l.s4 1966171168
        %v3665 = vunpack.c.0.s8 %v3664
        %v3666 = vlaneseq
        %v3667 = vshrl.u32 %v3666, 7
        %v3668 = vsub.s32 %v3665, %v3667
        %v3669 = vrot.slane %v3662, %v3668
        %v3671 = vunpack.c.l.s4 1966171168
        %v3672 = vunpack.c.0.s8 %v3671
        %v3673 = vlaneseq
        %v3674 = vshrl.u32 %v3673, 7
        %v3675 = vsub.s32 %v3672, %v3674
        %v3676 = vrot.slane %v1260, %v3675
        %v3678 = vunpack.c.l.s4 1966171168
        %v3679 = vunpack.c.0.s8 %v3678
        %v3680 = vlaneseq
        %v3681 = vshrl.u32 %v3680, 7
        %v3682 = vsub.s32 %v3679, %v3681
        %v3683 = vrot.slane %v3676, %v3682
        %v3685 = vunpack.c.l.s4 1966171168
        %v3686 = vunpack.c.0.s8 %v3685
        %v3687 = vlaneseq
        %v3688 = vshrl.u32 %v3687, 7
        %v3689 = vsub.s32 %v3686, %v3688
        %v3690 = vrot.slane %v1243, %v3689
        %v3692 = vunpack.c.l.s4 1966171168
        %v3693 = vunpack.c.0.s8 %v3692
        %v3694 = vlaneseq
        %v3695 = vshrl.u32 %v3694, 7
        %v3696 = vsub.s32 %v3693, %v3695
        %v3697 = vrot.slane %v3690, %v3696
        %v3699 = vunpack.c.l.s4 1966171168
        %v3700 = vunpack.c.0.s8 %v3699
        %v3701 = vlaneseq
        %v3702 = vshrl.u32 %v3701, 7
        %v3703 = vsub.s32 %v3700, %v3702
        %v3704 = vrot.slane %v1257, %v3703
        %v3706 = vunpack.c.l.s4 1966171168
        %v3707 = vunpack.c.0.s8 %v3706
        %v3708 = vlaneseq
        %v3709 = vshrl.u32 %v3708, 7
        %v3710 = vsub.s32 %v3707, %v3709
        %v3711 = vrot.slane %v3704, %v3710
        %v3713 = vunpack.c.l.s4 1966171168
        %v3714 = vunpack.c.0.s8 %v3713
        %v3715 = vlaneseq
        %v3716 = vshrl.u32 %v3715, 7
        %v3717 = vsub.s32 %v3714, %v3716
        %v3718 = vrot.slane %v1259, %v3717
        %v3720 = vunpack.c.l.s4 1966171168
        %v3721 = vunpack.c.0.s8 %v3720
        %v3722 = vlaneseq
        %v3723 = vshrl.u32 %v3722, 7
        %v3724 = vsub.s32 %v3721, %v3723
        %v3725 = vrot.slane %v3718, %v3724
        %v3727 = vunpack.c.l.s4 1966171168
        %v3728 = vunpack.c.0.s8 %v3727
        %v3729 = vlaneseq
        %v3730 = vshrl.u32 %v3729, 7
        %v3731 = vsub.s32 %v3728, %v3730
        %v3732 = vrot.slane %v1261, %v3731
        %v3734 = vunpack.c.l.s4 1966171168
        %v3735 = vunpack.c.0.s8 %v3734
        %v3736 = vlaneseq
        %v3737 = vshrl.u32 %v3736, 7
        %v3738 = vsub.s32 %v3735, %v3737
        %v3739 = vrot.slane %v3732, %v3738
        %v3741 = vunpack.c.l.s4 1966171168
        %v3742 = vunpack.c.0.s8 %v3741
        %v3743 = vlaneseq
        %v3744 = vshrl.u32 %v3743, 7
        %v3745 = vsub.s32 %v3742, %v3744
        %v3746 = vrot.slane %v1285, %v3745
        %v3748 = vunpack.c.l.s4 1966171168
        %v3749 = vunpack.c.0.s8 %v3748
        %v3750 = vlaneseq
        %v3751 = vshrl.u32 %v3750, 7
        %v3752 = vsub.s32 %v3749, %v3751
        %v3753 = vrot.slane %v3746, %v3752
        %v3755 = vunpack.c.l.s4 1966171168
        %v3756 = vunpack.c.0.s8 %v3755
        %v3757 = vlaneseq
        %v3758 = vshrl.u32 %v3757, 7
        %v3759 = vsub.s32 %v3756, %v3758
        %v3760 = vrot.slane %v1299, %v3759
        %v3762 = vunpack.c.l.s4 1966171168
        %v3763 = vunpack.c.0.s8 %v3762
        %v3764 = vlaneseq
        %v3765 = vshrl.u32 %v3764, 7
        %v3766 = vsub.s32 %v3763, %v3765
        %v3767 = vrot.slane %v3760, %v3766
        %v3769 = vunpack.c.l.s4 1966171168
        %v3770 = vunpack.c.0.s8 %v3769
        %v3771 = vlaneseq
        %v3772 = vshrl.u32 %v3771, 7
        %v3773 = vsub.s32 %v3770, %v3772
        %v3774 = vrot.slane %v1307, %v3773
        %v3776 = vunpack.c.l.s4 1966171168
        %v3777 = vunpack.c.0.s8 %v3776
        %v3778 = vlaneseq
        %v3779 = vshrl.u32 %v3778, 7
        %v3780 = vsub.s32 %v3777, %v3779
        %v3781 = vrot.slane %v3774, %v3780
        %v3783 = vunpack.c.l.s4 1966171168
        %v3784 = vunpack.c.0.s8 %v3783
        %v3785 = vlaneseq
        %v3786 = vshrl.u32 %v3785, 7
        %v3787 = vsub.s32 %v3784, %v3786
        %v3788 = vrot.slane %v1309, %v3787
        %v3790 = vunpack.c.l.s4 1966171168
        %v3791 = vunpack.c.0.s8 %v3790
        %v3792 = vlaneseq
        %v3793 = vshrl.u32 %v3792, 7
        %v3794 = vsub.s32 %v3791, %v3793
        %v3795 = vrot.slane %v3788, %v3794
        %v3797 = vunpack.c.l.s4 1966171168
        %v3798 = vunpack.c.0.s8 %v3797
        %v3799 = vlaneseq
        %v3800 = vshrl.u32 %v3799, 7
        %v3801 = vsub.s32 %v3798, %v3800
        %v3802 = vrot.slane %v1292, %v3801
        %v3804 = vunpack.c.l.s4 1966171168
        %v3805 = vunpack.c.0.s8 %v3804
        %v3806 = vlaneseq
        %v3807 = vshrl.u32 %v3806, 7
        %v3808 = vsub.s32 %v3805, %v3807
        %v3809 = vrot.slane %v3802, %v3808
        %v3811 = vunpack.c.l.s4 1966171168
        %v3812 = vunpack.c.0.s8 %v3811
        %v3813 = vlaneseq
        %v3814 = vshrl.u32 %v3813, 7
        %v3815 = vsub.s32 %v3812, %v3814
        %v3816 = vrot.slane %v1306, %v3815
        %v3818 = vunpack.c.l.s4 1966171168
        %v3819 = vunpack.c.0.s8 %v3818
        %v3820 = vlaneseq
        %v3821 = vshrl.u32 %v3820, 7
        %v3822 = vsub.s32 %v3819, %v3821
        %v3823 = vrot.slane %v3816, %v3822
        %v3825 = vunpack.c.l.s4 1966171168
        %v3826 = vunpack.c.0.s8 %v3825
        %v3827 = vlaneseq
        %v3828 = vshrl.u32 %v3827, 7
        %v3829 = vsub.s32 %v3826, %v3828
        %v3830 = vrot.slane %v1308, %v3829
        %v3832 = vunpack.c.l.s4 1966171168
        %v3833 = vunpack.c.0.s8 %v3832
        %v3834 = vlaneseq
        %v3835 = vshrl.u32 %v3834, 7
        %v3836 = vsub.s32 %v3833, %v3835
        %v3837 = vrot.slane %v3830, %v3836
        %v3839 = vunpack.c.l.s4 1966171168
        %v3840 = vunpack.c.0.s8 %v3839
        %v3841 = vlaneseq
        %v3842 = vshrl.u32 %v3841, 7
        %v3843 = vsub.s32 %v3840, %v3842
        %v3844 = vrot.slane %v1310, %v3843
        %v3846 = vunpack.c.l.s4 1966171168
        %v3847 = vunpack.c.0.s8 %v3846
        %v3848 = vlaneseq
        %v3849 = vshrl.u32 %v3848, 7
        %v3850 = vsub.s32 %v3847, %v3849
        %v3851 = vrot.slane %v3844, %v3850
        %v3853 = vunpack.c.l.s4 1966171168
        %v3854 = vunpack.c.0.s8 %v3853
        %v3855 = vlaneseq
        %v3856 = vshrl.u32 %v3855, 7
        %v3857 = vsub.s32 %v3854, %v3856
        %v3858 = vrot.slane %v1334, %v3857
        %v3860 = vunpack.c.l.s4 1966171168
        %v3861 = vunpack.c.0.s8 %v3860
        %v3862 = vlaneseq
        %v3863 = vshrl.u32 %v3862, 7
        %v3864 = vsub.s32 %v3861, %v3863
        %v3865 = vrot.slane %v3858, %v3864
        %v3867 = vunpack.c.l.s4 1966171168
        %v3868 = vunpack.c.0.s8 %v3867
        %v3869 = vlaneseq
        %v3870 = vshrl.u32 %v3869, 7
        %v3871 = vsub.s32 %v3868, %v3870
        %v3872 = vrot.slane %v1348, %v3871
        %v3874 = vunpack.c.l.s4 1966171168
        %v3875 = vunpack.c.0.s8 %v3874
        %v3876 = vlaneseq
        %v3877 = vshrl.u32 %v3876, 7
        %v3878 = vsub.s32 %v3875, %v3877
        %v3879 = vrot.slane %v3872, %v3878
        %v3881 = vunpack.c.l.s4 1966171168
        %v3882 = vunpack.c.0.s8 %v3881
        %v3883 = vlaneseq
        %v3884 = vshrl.u32 %v3883, 7
        %v3885 = vsub.s32 %v3882, %v3884
        %v3886 = vrot.slane %v1356, %v3885
        %v3888 = vunpack.c.l.s4 1966171168
        %v3889 = vunpack.c.0.s8 %v3888
        %v3890 = vlaneseq
        %v3891 = vshrl.u32 %v3890, 7
        %v3892 = vsub.s32 %v3889, %v3891
        %v3893 = vrot.slane %v3886, %v3892
        %v3895 = vunpack.c.l.s4 1966171168
        %v3896 = vunpack.c.0.s8 %v3895
        %v3897 = vlaneseq
        %v3898 = vshrl.u32 %v3897, 7
        %v3899 = vsub.s32 %v3896, %v3898
        %v3900 = vrot.slane %v1358, %v3899
        %v3902 = vunpack.c.l.s4 1966171168
        %v3903 = vunpack.c.0.s8 %v3902
        %v3904 = vlaneseq
        %v3905 = vshrl.u32 %v3904, 7
        %v3906 = vsub.s32 %v3903, %v3905
        %v3907 = vrot.slane %v3900, %v3906
        %v3909 = vunpack.c.l.s4 1966171168
        %v3910 = vunpack.c.0.s8 %v3909
        %v3911 = vlaneseq
        %v3912 = vshrl.u32 %v3911, 7
        %v3913 = vsub.s32 %v3910, %v3912
        %v3914 = vrot.slane %v1341, %v3913
        %v3916 = vunpack.c.l.s4 1966171168
        %v3917 = vunpack.c.0.s8 %v3916
        %v3918 = vlaneseq
        %v3919 = vshrl.u32 %v3918, 7
        %v3920 = vsub.s32 %v3917, %v3919
        %v3921 = vrot.slane %v3914, %v3920
        %v3923 = vunpack.c.l.s4 1966171168
        %v3924 = vunpack.c.0.s8 %v3923
        %v3925 = vlaneseq
        %v3926 = vshrl.u32 %v3925, 7
        %v3927 = vsub.s32 %v3924, %v3926
        %v3928 = vrot.slane %v1355, %v3927
        %v3930 = vunpack.c.l.s4 1966171168
        %v3931 = vunpack.c.0.s8 %v3930
        %v3932 = vlaneseq
        %v3933 = vshrl.u32 %v3932, 7
        %v3934 = vsub.s32 %v3931, %v3933
        %v3935 = vrot.slane %v3928, %v3934
        %v3937 = vunpack.c.l.s4 1966171168
        %v3938 = vunpack.c.0.s8 %v3937
        %v3939 = vlaneseq
        %v3940 = vshrl.u32 %v3939, 7
        %v3941 = vsub.s32 %v3938, %v3940
        %v3942 = vrot.slane %v1357, %v3941
        %v3944 = vunpack.c.l.s4 1966171168
        %v3945 = vunpack.c.0.s8 %v3944
        %v3946 = vlaneseq
        %v3947 = vshrl.u32 %v3946, 7
        %v3948 = vsub.s32 %v3945, %v3947
        %v3949 = vrot.slane %v3942, %v3948
        %v3951 = vunpack.c.l.s4 1966171168
        %v3952 = vunpack.c.0.s8 %v3951
        %v3953 = vlaneseq
        %v3954 = vshrl.u32 %v3953, 7
        %v3955 = vsub.s32 %v3952, %v3954
        %v3956 = vrot.slane %v1359, %v3955
        %v3958 = vunpack.c.l.s4 1966171168
        %v3959 = vunpack.c.0.s8 %v3958
        %v3960 = vlaneseq
        %v3961 = vshrl.u32 %v3960, 7
        %v3962 = vsub.s32 %v3959, %v3961
        %v3963 = vrot.slane %v3956, %v3962
        %v3964 = vunpack.c.l.b16 %v3081
        %v3965 = vunpack.c.l.b16 %v3095
        %v3966 = vunpack.c.l.b16 %v3109
        %v3967 = vunpack.c.l.b16 %v3123
        %v3968 = vunpack.c.l.b16 %v3137
        %v3969 = vunpack.c.l.b16 %v3151
        %v3970 = vunpack.c.l.b16 %v3165
        %v3971 = vunpack.c.l.b16 %v3179
        %v3972 = vunpack.c.l.b16 %v3193
        %v3973 = vunpack.c.l.b16 %v3207
        %v3974 = vunpack.c.l.b16 %v3221
        %v3975 = vunpack.c.l.b16 %v3235
        %v3976 = vunpack.c.l.b16 %v3249
        %v3977 = vunpack.c.l.b16 %v3263
        %v3978 = vunpack.c.l.b16 %v3277
        %v3979 = vunpack.c.l.b16 %v3291
        %v3980 = vunpack.c.l.b16 %v3305
        %v3981 = vunpack.c.l.b16 %v3319
        %v3982 = vunpack.c.l.b16 %v3333
        %v3983 = vunpack.c.l.b16 %v3347
        %v3984 = vunpack.c.l.b16 %v3361
        %v3985 = vunpack.c.l.b16 %v3375
        %v3986 = vunpack.c.l.b16 %v3389
        %v3987 = vunpack.c.l.b16 %v3403
        %v3988 = vunpack.c.l.b16 %v3417
        %v3989 = vunpack.c.l.b16 %v3431
        %v3990 = vunpack.c.l.b16 %v3445
        %v3991 = vunpack.c.l.b16 %v3459
        %v3992 = vunpack.c.l.b16 %v3473
        %v3993 = vunpack.c.l.b16 %v3487
        %v3994 = vunpack.c.l.b16 %v3501
        %v3995 = vunpack.c.l.b16 %v3515
        %v3996 = vunpack.c.l.b16 %v3529
        %v3997 = vunpack.c.l.b16 %v3543
        %v3998 = vunpack.c.l.b16 %v3557
        %v3999 = vunpack.c.l.b16 %v3571
        %v4000 = vunpack.c.l.b16 %v3585
        %v4001 = vunpack.c.l.b16 %v3599
        %v4002 = vunpack.c.l.b16 %v3613
        %v4003 = vunpack.c.l.b16 %v3627
        %v4004 = vunpack.c.l.b16 %v3641
        %v4005 = vunpack.c.l.b16 %v3655
        %v4006 = vunpack.c.l.b16 %v3669
        %v4007 = vunpack.c.l.b16 %v3683
        %v4008 = vunpack.c.l.b16 %v3697
        %v4009 = vunpack.c.l.b16 %v3711
        %v4010 = vunpack.c.l.b16 %v3725
        %v4011 = vunpack.c.l.b16 %v3739
        %v4012 = vunpack.c.l.b16 %v3753
        %v4013 = vunpack.c.l.b16 %v3767
        %v4014 = vunpack.c.l.b16 %v3781
        %v4015 = vunpack.c.l.b16 %v3795
        %v4016 = vunpack.c.l.b16 %v3809
        %v4017 = vunpack.c.l.b16 %v3823
        %v4018 = vunpack.c.l.b16 %v3837
        %v4019 = vunpack.c.l.b16 %v3851
        %v4020 = vunpack.c.l.b16 %v3865
        %v4021 = vunpack.c.l.b16 %v3879
        %v4022 = vunpack.c.l.b16 %v3893
        %v4023 = vunpack.c.l.b16 %v3907
        %v4024 = vunpack.c.l.b16 %v3921
        %v4025 = vunpack.c.l.b16 %v3935
        %v4026 = vunpack.c.l.b16 %v3949
        %v4027 = vunpack.c.l.b16 %v3963
        %v4028 = vrot.slane %v3965, 7
        %v4029 = vsel %vm2724, %v4028, %v3964
        %v4030 = vrot.slane %v3966, 6
        %v4031 = vsel %vm2727, %v4030, %v4029
        %v4032 = vrot.slane %v3967, 5
        %v4033 = vsel %vm2730, %v4032, %v4031
        %v4034 = vrot.slane %v3968, 4
        %v4035 = vsel %vm2733, %v4034, %v4033
        %v4036 = vrot.slane %v3969, 3
        %v4037 = vsel %vm2736, %v4036, %v4035
        %v4038 = vrot.slane %v3970, 2
        %v4039 = vsel %vm2739, %v4038, %v4037
        %v4040 = vrot.slane %v3971, 1
        %v4041 = vrot.slane %v3973, 7
        %v4042 = vsel %vm2724, %v4041, %v3972
        %v4043 = vrot.slane %v3974, 6
        %v4044 = vsel %vm2727, %v4043, %v4042
        %v4045 = vrot.slane %v3975, 5
        %v4046 = vsel %vm2730, %v4045, %v4044
        %v4047 = vrot.slane %v3976, 4
        %v4048 = vsel %vm2733, %v4047, %v4046
        %v4049 = vrot.slane %v3977, 3
        %v4050 = vsel %vm2736, %v4049, %v4048
        %v4051 = vrot.slane %v3978, 2
        %v4052 = vsel %vm2739, %v4051, %v4050
        %v4053 = vrot.slane %v3979, 1
        %v4054 = vrot.slane %v3981, 7
        %v4055 = vsel %vm2724, %v4054, %v3980
        %v4056 = vrot.slane %v3982, 6
        %v4057 = vsel %vm2727, %v4056, %v4055
        %v4058 = vrot.slane %v3983, 5
        %v4059 = vsel %vm2730, %v4058, %v4057
        %v4060 = vrot.slane %v3984, 4
        %v4061 = vsel %vm2733, %v4060, %v4059
        %v4062 = vrot.slane %v3985, 3
        %v4063 = vsel %vm2736, %v4062, %v4061
        %v4064 = vrot.slane %v3986, 2
        %v4065 = vsel %vm2739, %v4064, %v4063
        %v4066 = vrot.slane %v3987, 1
        %v4067 = vrot.slane %v3989, 7
        %v4068 = vsel %vm2724, %v4067, %v3988
        %v4069 = vrot.slane %v3990, 6
        %v4070 = vsel %vm2727, %v4069, %v4068
        %v4071 = vrot.slane %v3991, 5
        %v4072 = vsel %vm2730, %v4071, %v4070
        %v4073 = vrot.slane %v3992, 4
        %v4074 = vsel %vm2733, %v4073, %v4072
        %v4075 = vrot.slane %v3993, 3
        %v4076 = vsel %vm2736, %v4075, %v4074
        %v4077 = vrot.slane %v3994, 2
        %v4078 = vsel %vm2739, %v4077, %v4076
        %v4079 = vrot.slane %v3995, 1
        %v4080 = vrot.slane %v3997, 7
        %v4081 = vsel %vm2724, %v4080, %v3996
        %v4082 = vrot.slane %v3998, 6
        %v4083 = vsel %vm2727, %v4082, %v4081
        %v4084 = vrot.slane %v3999, 5
        %v4085 = vsel %vm2730, %v4084, %v4083
        %v4086 = vrot.slane %v4000, 4
        %v4087 = vsel %vm2733, %v4086, %v4085
        %v4088 = vrot.slane %v4001, 3
        %v4089 = vsel %vm2736, %v4088, %v4087
        %v4090 = vrot.slane %v4002, 2
        %v4091 = vsel %vm2739, %v4090, %v4089
        %v4092 = vrot.slane %v4003, 1
        %v4093 = vrot.slane %v4005, 7
        %v4094 = vsel %vm2724, %v4093, %v4004
        %v4095 = vrot.slane %v4006, 6
        %v4096 = vsel %vm2727, %v4095, %v4094
        %v4097 = vrot.slane %v4007, 5
        %v4098 = vsel %vm2730, %v4097, %v4096
        %v4099 = vrot.slane %v4008, 4
        %v4100 = vsel %vm2733, %v4099, %v4098
        %v4101 = vrot.slane %v4009, 3
        %v4102 = vsel %vm2736, %v4101, %v4100
        %v4103 = vrot.slane %v4010, 2
        %v4104 = vsel %vm2739, %v4103, %v4102
        %v4105 = vrot.slane %v4011, 1
        %v4106 = vrot.slane %v4013, 7
        %v4107 = vsel %vm2724, %v4106, %v4012
        %v4108 = vrot.slane %v4014, 6
        %v4109 = vsel %vm2727, %v4108, %v4107
        %v4110 = vrot.slane %v4015, 5
        %v4111 = vsel %vm2730, %v4110, %v4109
        %v4112 = vrot.slane %v4016, 4
        %v4113 = vsel %vm2733, %v4112, %v4111
        %v4114 = vrot.slane %v4017, 3
        %v4115 = vsel %vm2736, %v4114, %v4113
        %v4116 = vrot.slane %v4018, 2
        %v4117 = vsel %vm2739, %v4116, %v4115
        %v4118 = vrot.slane %v4019, 1
        %v4119 = vrot.slane %v4021, 7
        %v4120 = vsel %vm2724, %v4119, %v4020
        %v4121 = vrot.slane %v4022, 6
        %v4122 = vsel %vm2727, %v4121, %v4120
        %v4123 = vrot.slane %v4023, 5
        %v4124 = vsel %vm2730, %v4123, %v4122
        %v4125 = vrot.slane %v4024, 4
        %v4126 = vsel %vm2733, %v4125, %v4124
        %v4127 = vrot.slane %v4025, 3
        %v4128 = vsel %vm2736, %v4127, %v4126
        %v4129 = vrot.slane %v4026, 2
        %v4130 = vsel %vm2739, %v4129, %v4128
        %v4131 = vrot.slane %v4027, 1
        %v4132 = vpack.c.b16 %v4040, %v4039
        %v4133 = vpack.c.b16 %v4053, %v4052
        %v4134 = vpack.c.b16 %v4066, %v4065
        %v4135 = vpack.c.b16 %v4079, %v4078
        %v4136 = vpack.c.b16 %v4092, %v4091
        %v4137 = vpack.c.b16 %v4105, %v4104
        %v4138 = vpack.c.b16 %v4118, %v4117
        %v4139 = vpack.c.b16 %v4131, %v4130
        %v4148 = vsel %vm2921, 0, %v4132
        %v4149 = vsel %vm2921, 0, %v4133
        %v4150 = vsel %vm2921, 0, %v4134
        %v4151 = vsel %vm2921, 0, %v4135
        %v4152 = vsel %vm2921, 0, %v4136
        %v4153 = vsel %vm2921, 0, %v4137
        %v4154 = vsel %vm2921, 0, %v4138
        %v4155 = vsel %vm2921, 0, %v4139
        %v4156 = vsel %vm2721, %v4028, %v3964
        %v4157 = vsel %vm2724, %v4030, %v4156
        %v4158 = vsel %vm2727, %v4032, %v4157
        %v4159 = vsel %vm2730, %v4034, %v4158
        %v4160 = vsel %vm2733, %v4036, %v4159
        %v4161 = vsel %vm2736, %v4038, %v4160
        %v4162 = vsel %vm2739, %v4040, %v4161
        %v4163 = vsel %vm2721, %v4041, %v3972
        %v4164 = vsel %vm2724, %v4043, %v4163
        %v4165 = vsel %vm2727, %v4045, %v4164
        %v4166 = vsel %vm2730, %v4047, %v4165
        %v4167 = vsel %vm2733, %v4049, %v4166
        %v4168 = vsel %vm2736, %v4051, %v4167
        %v4169 = vsel %vm2739, %v4053, %v4168
        %v4170 = vsel %vm2721, %v4054, %v3980
        %v4171 = vsel %vm2724, %v4056, %v4170
        %v4172 = vsel %vm2727, %v4058, %v4171
        %v4173 = vsel %vm2730, %v4060, %v4172
        %v4174 = vsel %vm2733, %v4062, %v4173
        %v4175 = vsel %vm2736, %v4064, %v4174
        %v4176 = vsel %vm2739, %v4066, %v4175
        %v4177 = vsel %vm2721, %v4067, %v3988
        %v4178 = vsel %vm2724, %v4069, %v4177
        %v4179 = vsel %vm2727, %v4071, %v4178
        %v4180 = vsel %vm2730, %v4073, %v4179
        %v4181 = vsel %vm2733, %v4075, %v4180
        %v4182 = vsel %vm2736, %v4077, %v4181
        %v4183 = vsel %vm2739, %v4079, %v4182
        %v4184 = vsel %vm2721, %v4080, %v3996
        %v4185 = vsel %vm2724, %v4082, %v4184
        %v4186 = vsel %vm2727, %v4084, %v4185
        %v4187 = vsel %vm2730, %v4086, %v4186
        %v4188 = vsel %vm2733, %v4088, %v4187
        %v4189 = vsel %vm2736, %v4090, %v4188
        %v4190 = vsel %vm2739, %v4092, %v4189
        %v4191 = vsel %vm2721, %v4093, %v4004
        %v4192 = vsel %vm2724, %v4095, %v4191
        %v4193 = vsel %vm2727, %v4097, %v4192
        %v4194 = vsel %vm2730, %v4099, %v4193
        %v4195 = vsel %vm2733, %v4101, %v4194
        %v4196 = vsel %vm2736, %v4103, %v4195
        %v4197 = vsel %vm2739, %v4105, %v4196
        %v4198 = vsel %vm2721, %v4106, %v4012
        %v4199 = vsel %vm2724, %v4108, %v4198
        %v4200 = vsel %vm2727, %v4110, %v4199
        %v4201 = vsel %vm2730, %v4112, %v4200
        %v4202 = vsel %vm2733, %v4114, %v4201
        %v4203 = vsel %vm2736, %v4116, %v4202
        %v4204 = vsel %vm2739, %v4118, %v4203
        %v4205 = vsel %vm2721, %v4119, %v4020
        %v4206 = vsel %vm2724, %v4121, %v4205
        %v4207 = vsel %vm2727, %v4123, %v4206
        %v4208 = vsel %vm2730, %v4125, %v4207
        %v4209 = vsel %vm2733, %v4127, %v4208
        %v4210 = vsel %vm2736, %v4129, %v4209
        %v4211 = vsel %vm2739, %v4131, %v4210
        %v4212 = vpack.c.b16 %v4162, %v4162
        %v4213 = vpack.c.b16 %v4169, %v4169
        %v4214 = vpack.c.b16 %v4176, %v4176
        %v4215 = vpack.c.b16 %v4183, %v4183
        %v4216 = vpack.c.b16 %v4190, %v4190
        %v4217 = vpack.c.b16 %v4197, %v4197
        %v4218 = vpack.c.b16 %v4204, %v4204
        %v4219 = vpack.c.b16 %v4211, %v4211
        %v4221 = vsel %vm3051, %v4212, 0
        %v4223 = vsel %vm3051, %v4213, 0
        %v4225 = vsel %vm3051, %v4214, 0
        %v4227 = vsel %vm3051, %v4215, 0
        %v4229 = vsel %vm3051, %v4216, 0
        %v4231 = vsel %vm3051, %v4217, 0
        %v4233 = vsel %vm3051, %v4218, 0
        %v4235 = vsel %vm3051, %v4219, 0
        %v4236 = vld [vmem:[#allocation7] sm:$0xf]
        %v4237 = vld [vmem:[#allocation7 + $0x4] sm:$0xf]
        %v4238 = vld [vmem:[#allocation7 + $0x8] sm:$0xf]
        %v4239 = vld [vmem:[#allocation7 + $0xc] sm:$0xf]
        %v4240 = vld [vmem:[#allocation7 + $0x10] sm:$0xf]
        %v4241 = vld [vmem:[#allocation7 + $0x14] sm:$0xf]
        %v4242 = vld [vmem:[#allocation7 + $0x18] sm:$0xf]
        %v4243 = vld [vmem:[#allocation7 + $0x1c] sm:$0xf]
        %v4244 = vld [vmem:[#allocation7 + $0x20] sm:$0xf]
        %v4245 = vld [vmem:[#allocation7 + $0x24] sm:$0xf]
        %v4246 = vld [vmem:[#allocation7 + $0x28] sm:$0xf]
        %v4247 = vld [vmem:[#allocation7 + $0x2c] sm:$0xf]
        %v4248 = vld [vmem:[#allocation7 + $0x30] sm:$0xf]
        %v4249 = vld [vmem:[#allocation7 + $0x34] sm:$0xf]
        %v4250 = vld [vmem:[#allocation7 + $0x38] sm:$0xf]
        %v4251 = vld [vmem:[#allocation7 + $0x3c] sm:$0xf]
        %s4252 = scalar_lea.vmem [#allocation7], 64
        %v4253 = vld [vmem:[%s4252] sm:$0xf]
        %v4254 = vld [vmem:[%s4252 + $0x4] sm:$0xf]
        %v4255 = vld [vmem:[%s4252 + $0x8] sm:$0xf]
        %v4256 = vld [vmem:[%s4252 + $0xc] sm:$0xf]
        %v4257 = vld [vmem:[%s4252 + $0x10] sm:$0xf]
        %v4258 = vld [vmem:[%s4252 + $0x14] sm:$0xf]
        %v4259 = vld [vmem:[%s4252 + $0x18] sm:$0xf]
        %v4260 = vld [vmem:[%s4252 + $0x1c] sm:$0xf]
        %v4261 = vld [vmem:[%s4252 + $0x20] sm:$0xf]
        %v4262 = vld [vmem:[%s4252 + $0x24] sm:$0xf]
        %v4263 = vld [vmem:[%s4252 + $0x28] sm:$0xf]
        %v4264 = vld [vmem:[%s4252 + $0x2c] sm:$0xf]
        %v4265 = vld [vmem:[%s4252 + $0x30] sm:$0xf]
        %v4266 = vld [vmem:[%s4252 + $0x34] sm:$0xf]
        %v4267 = vld [vmem:[%s4252 + $0x38] sm:$0xf]
        %v4268 = vld [vmem:[%s4252 + $0x3c] sm:$0xf]
        %v4277 = vunpack.c.l.b16 0
        %v4278 = vunpack.c.l.b16 %v3053
        %v4279 = vunpack.c.l.b16 %v3055
        %v4280 = vunpack.c.l.b16 %v3057
        %v4281 = vunpack.c.l.b16 %v3059
        %v4282 = vunpack.c.l.b16 %v3061
        %v4283 = vunpack.c.l.b16 %v3063
        %v4284 = vunpack.c.l.b16 %v3065
        %v4285 = vpack.c.b16 %v4278, %v4277
        %v4286 = vpack.c.b16 %v4280, %v4279
        %v4287 = vpack.c.b16 %v4282, %v4281
        %v4288 = vpack.c.b16 %v4284, %v4283
        %v4309 = vunpack.c.l.b16 %v4253
        %v4310 = vunpack.c.l.b16 %v4254
        %v4311 = vunpack.c.l.b16 %v4255
        %v4312 = vunpack.c.l.b16 %v4256
        %v4313 = vunpack.c.l.b16 %v4257
        %v4314 = vunpack.c.l.b16 %v4258
        %v4315 = vunpack.c.l.b16 %v4259
        %v4316 = vunpack.c.l.b16 %v4260
        %v4317 = vunpack.c.l.b16 %v4261
        %v4318 = vunpack.c.l.b16 %v4262
        %v4319 = vunpack.c.l.b16 %v4263
        %v4320 = vunpack.c.l.b16 %v4264
        %v4321 = vunpack.c.l.b16 %v4265
        %v4322 = vunpack.c.l.b16 %v4266
        %v4323 = vunpack.c.l.b16 %v4267
        %v4324 = vunpack.c.l.b16 %v4268
        %v4325 = vpack.c.b16 %v4310, %v4309
        %v4326 = vpack.c.b16 %v4312, %v4311
        %v4327 = vpack.c.b16 %v4314, %v4313
        %v4328 = vpack.c.b16 %v4316, %v4315
        %v4329 = vpack.c.b16 %v4318, %v4317
        %v4330 = vpack.c.b16 %v4320, %v4319
        %v4331 = vpack.c.b16 %v4322, %v4321
        %v4332 = vpack.c.b16 %v4324, %v4323
        %4341 = vmatprep.subr.bf16.mxu0 0
        %4342 = vmatpush1.bf16.msra.mxu0 %v4332
        %4343 = vmatprep.subr.bf16.mxu0 0
        %4344 = vmatpush1.bf16.msra.mxu0 %v4331
        %4345 = vmatprep.subr.bf16.mxu0 0
        %4346 = vmatpush1.bf16.msra.mxu0 %v4330
        %4347 = vmatprep.subr.bf16.mxu0 0
        %4348 = vmatpush1.bf16.msra.mxu0 %v4329
        %4349 = vmatprep.subr.bf16.mxu0 0
        %4350 = vmatpush1.bf16.msra.mxu0 %v4328
        %4351 = vmatprep.subr.bf16.mxu0 0
        %4352 = vmatpush1.bf16.msra.mxu0 %v4327
        %4353 = vmatprep.subr.bf16.mxu0 0
        %4354 = vmatpush1.bf16.msra.mxu0 %v4326
        %4355 = vmatprep.subr.bf16.mxu0 0
        %4356 = vmatpush1.bf16.msra.mxu0 %v4325
        %4357 = vmatprep.subr.bf16.mxu0 0
        %4358 = vmatpush2.bf16.msra.mxu0 0
        %4359 = vmatprep.subr.bf16.mxu0 0
        %4360 = vmatpush2.bf16.msra.mxu0 0
        %4361 = vmatprep.subr.bf16.mxu0 0
        %4362 = vmatpush2.bf16.msra.mxu0 0
        %4363 = vmatprep.subr.bf16.mxu0 0
        %4364 = vmatpush2.bf16.msra.mxu0 0
        %4365 = vmatprep.subr.bf16.mxu0 0
        %4366 = vmatpush2.bf16.msra.mxu0 0
        %4367 = vmatprep.subr.bf16.mxu0 0
        %4368 = vmatpush2.bf16.msra.mxu0 0
        %4369 = vmatprep.subr.bf16.mxu0 0
        %4370 = vmatpush2.bf16.msra.mxu0 0
        %4371 = vmatprep.subr.bf16.mxu0 0
        %4372 = vmatpush2.bf16.msra.mxu0 0
        %4373 = vmatprep.mubr.bf16.mxu0 0
        %4374 = vmatmul.mubr.bf16.gmra.mxu0 %v4285
        %v4375 = vpop.f32.mrf.mxu0
        %v4376 = vadd.f32 0.0, %v4375
        %v4377 = vpop.f32.mrf.mxu0
        %v4378 = vpop.f32.mrf.mxu0
        %v4379 = vadd.f32 0.0, %v4378
        %v4380 = vpop.f32.mrf.mxu0
        %4381 = vmatprep.mubr.bf16.mxu0 0
        %4382 = vmatmul.mubr.bf16.gmra.mxu0 %v4286
        %v4383 = vpop.f32.mrf.mxu0
        %v4384 = vadd.f32 0.0, %v4383
        %v4385 = vpop.f32.mrf.mxu0
        %v4386 = vpop.f32.mrf.mxu0
        %v4387 = vadd.f32 0.0, %v4386
        %v4388 = vpop.f32.mrf.mxu0
        %4389 = vmatprep.mubr.bf16.mxu0 0
        %4390 = vmatmul.mubr.bf16.gmra.mxu0 %v4287
        %v4391 = vpop.f32.mrf.mxu0
        %v4392 = vadd.f32 0.0, %v4391
        %v4393 = vpop.f32.mrf.mxu0
        %v4394 = vpop.f32.mrf.mxu0
        %v4395 = vadd.f32 0.0, %v4394
        %v4396 = vpop.f32.mrf.mxu0
        %4397 = vmatprep.mubr.bf16.mxu0 0
        %4398 = vmatmul.mubr.bf16.gmra.mxu0 %v4288
        %v4399 = vpop.f32.mrf.mxu0
        %v4400 = vadd.f32 0.0, %v4399
        %v4401 = vpop.f32.mrf.mxu0
        %v4402 = vpop.f32.mrf.mxu0
        %v4403 = vadd.f32 0.0, %v4402
        %v4404 = vpop.f32.mrf.mxu0
        %4405 = vdwg.mxu0
        %v4414 = vunpack.c.l.b16 %v2922
        %v4415 = vunpack.c.l.b16 %v2923
        %v4416 = vunpack.c.l.b16 %v2924
        %v4417 = vunpack.c.l.b16 %v2925
        %v4418 = vunpack.c.l.b16 %v2926
        %v4419 = vunpack.c.l.b16 %v2927
        %v4420 = vunpack.c.l.b16 %v2928
        %v4421 = vunpack.c.l.b16 %v2929
        %v4422 = vpack.c.b16 %v4415, %v4414
        %v4423 = vpack.c.b16 %v4417, %v4416
        %v4424 = vpack.c.b16 %v4419, %v4418
        %v4425 = vpack.c.b16 %v4421, %v4420
        %v4446 = vunpack.c.l.b16 %v4236
        %v4447 = vunpack.c.l.b16 %v4237
        %v4448 = vunpack.c.l.b16 %v4238
        %v4449 = vunpack.c.l.b16 %v4239
        %v4450 = vunpack.c.l.b16 %v4240
        %v4451 = vunpack.c.l.b16 %v4241
        %v4452 = vunpack.c.l.b16 %v4242
        %v4453 = vunpack.c.l.b16 %v4243
        %v4454 = vunpack.c.l.b16 %v4244
        %v4455 = vunpack.c.l.b16 %v4245
        %v4456 = vunpack.c.l.b16 %v4246
        %v4457 = vunpack.c.l.b16 %v4247
        %v4458 = vunpack.c.l.b16 %v4248
        %v4459 = vunpack.c.l.b16 %v4249
        %v4460 = vunpack.c.l.b16 %v4250
        %v4461 = vunpack.c.l.b16 %v4251
        %v4462 = vpack.c.b16 %v4447, %v4446
        %v4463 = vpack.c.b16 %v4449, %v4448
        %v4464 = vpack.c.b16 %v4451, %v4450
        %v4465 = vpack.c.b16 %v4453, %v4452
        %v4466 = vpack.c.b16 %v4455, %v4454
        %v4467 = vpack.c.b16 %v4457, %v4456
        %v4468 = vpack.c.b16 %v4459, %v4458
        %v4469 = vpack.c.b16 %v4461, %v4460
        %4478 = vmatprep.subr.bf16.mxu0 0
        %4479 = vmatpush1.bf16.msra.mxu0 %v4469
        %4480 = vmatprep.subr.bf16.mxu0 0
        %4481 = vmatpush1.bf16.msra.mxu0 %v4468
        %4482 = vmatprep.subr.bf16.mxu0 0
        %4483 = vmatpush1.bf16.msra.mxu0 %v4467
        %4484 = vmatprep.subr.bf16.mxu0 0
        %4485 = vmatpush1.bf16.msra.mxu0 %v4466
        %4486 = vmatprep.subr.bf16.mxu0 0
        %4487 = vmatpush1.bf16.msra.mxu0 %v4465
        %4488 = vmatprep.subr.bf16.mxu0 0
        %4489 = vmatpush1.bf16.msra.mxu0 %v4464
        %4490 = vmatprep.subr.bf16.mxu0 0
        %4491 = vmatpush1.bf16.msra.mxu0 %v4463
        %4492 = vmatprep.subr.bf16.mxu0 0
        %4493 = vmatpush1.bf16.msra.mxu0 %v4462
        %4494 = vmatprep.subr.bf16.mxu0 0
        %4495 = vmatpush2.bf16.msra.mxu0 0
        %4496 = vmatprep.subr.bf16.mxu0 0
        %4497 = vmatpush2.bf16.msra.mxu0 0
        %4498 = vmatprep.subr.bf16.mxu0 0
        %4499 = vmatpush2.bf16.msra.mxu0 0
        %4500 = vmatprep.subr.bf16.mxu0 0
        %4501 = vmatpush2.bf16.msra.mxu0 0
        %4502 = vmatprep.subr.bf16.mxu0 0
        %4503 = vmatpush2.bf16.msra.mxu0 0
        %4504 = vmatprep.subr.bf16.mxu0 0
        %4505 = vmatpush2.bf16.msra.mxu0 0
        %4506 = vmatprep.subr.bf16.mxu0 0
        %4507 = vmatpush2.bf16.msra.mxu0 0
        %4508 = vmatprep.subr.bf16.mxu0 0
        %4509 = vmatpush2.bf16.msra.mxu0 0
        %4510 = vmatprep.mubr.bf16.mxu0 0
        %4511 = vmatmul.mubr.bf16.gmra.mxu0 %v4422
        %v4512 = vpop.f32.mrf.mxu0
        %v4513 = vadd.f32 %v4376, %v4512
        %v4514 = vpop.f32.mrf.mxu0
        %v4515 = vpop.f32.mrf.mxu0
        %v4516 = vadd.f32 %v4379, %v4515
        %v4517 = vpop.f32.mrf.mxu0
        %4518 = vmatprep.mubr.bf16.mxu0 0
        %4519 = vmatmul.mubr.bf16.gmra.mxu0 %v4423
        %v4520 = vpop.f32.mrf.mxu0
        %v4521 = vadd.f32 %v4384, %v4520
        %v4522 = vpop.f32.mrf.mxu0
        %v4523 = vpop.f32.mrf.mxu0
        %v4524 = vadd.f32 %v4387, %v4523
        %v4525 = vpop.f32.mrf.mxu0
        %4526 = vmatprep.mubr.bf16.mxu0 0
        %4527 = vmatmul.mubr.bf16.gmra.mxu0 %v4424
        %v4528 = vpop.f32.mrf.mxu0
        %v4529 = vadd.f32 %v4392, %v4528
        %v4530 = vpop.f32.mrf.mxu0
        %v4531 = vpop.f32.mrf.mxu0
        %v4532 = vadd.f32 %v4395, %v4531
        %v4533 = vpop.f32.mrf.mxu0
        %4534 = vmatprep.mubr.bf16.mxu0 0
        %4535 = vmatmul.mubr.bf16.gmra.mxu0 %v4425
        %v4536 = vpop.f32.mrf.mxu0
        %v4537 = vadd.f32 %v4400, %v4536
        %v4538 = vpop.f32.mrf.mxu0
        %v4539 = vpop.f32.mrf.mxu0
        %v4540 = vadd.f32 %v4403, %v4539
        %v4541 = vpop.f32.mrf.mxu0
        %4542 = vdwg.mxu0
        %v4543 = vunpack.c.h.b16 %v2922
        %v4544 = vunpack.c.h.b16 %v2923
        %v4545 = vunpack.c.h.b16 %v2924
        %v4546 = vunpack.c.h.b16 %v2925
        %v4547 = vunpack.c.h.b16 %v2926
        %v4548 = vunpack.c.h.b16 %v2927
        %v4549 = vunpack.c.h.b16 %v2928
        %v4550 = vunpack.c.h.b16 %v2929
        %v4551 = vpack.c.b16 %v4414, %v4414
        %v4552 = vpack.c.b16 %v4543, %v4543
        %v4553 = vpack.c.b16 %v4415, %v4415
        %v4554 = vpack.c.b16 %v4544, %v4544
        %v4555 = vpack.c.b16 %v4416, %v4416
        %v4556 = vpack.c.b16 %v4545, %v4545
        %v4557 = vpack.c.b16 %v4417, %v4417
        %v4558 = vpack.c.b16 %v4546, %v4546
        %v4559 = vpack.c.b16 %v4418, %v4418
        %v4560 = vpack.c.b16 %v4547, %v4547
        %v4561 = vpack.c.b16 %v4419, %v4419
        %v4562 = vpack.c.b16 %v4548, %v4548
        %v4563 = vpack.c.b16 %v4420, %v4420
        %v4564 = vpack.c.b16 %v4549, %v4549
        %v4565 = vpack.c.b16 %v4421, %v4421
        %v4566 = vpack.c.b16 %v4550, %v4550
        %vm4567 = vsmask.f32 3328
        %vm4568 = vsmask.f32 7440
        %vm4569 = vmor %vm4567, %vm4568
        %v4571 = vshrl.u32 %v4551, 16
        %v4573 = vrot.slane %v4571, 4
        %v4574 = vshll.u32 %v4551, 16
        %v4576 = vrot.slane %v4574, 5
        %v4577 = vor.u32 %v4573, %v4576
        %v4578 = vrot.slane %v4577, 4
        %v4580 = vshll.u32 %v4552, 16
        %v4582 = vrot.slane %v4580, 5
        %v4583 = vsel %vm4569, %v4578, %v4582
        %v4585 = vshrl.u32 %v4553, 16
        %v4587 = vrot.slane %v4585, 4
        %v4588 = vshll.u32 %v4553, 16
        %v4590 = vrot.slane %v4588, 5
        %v4591 = vor.u32 %v4587, %v4590
        %v4592 = vrot.slane %v4591, 4
        %v4594 = vshll.u32 %v4554, 16
        %v4596 = vrot.slane %v4594, 5
        %v4597 = vsel %vm4569, %v4592, %v4596
        %v4599 = vshrl.u32 %v4555, 16
        %v4601 = vrot.slane %v4599, 4
        %v4602 = vshll.u32 %v4555, 16
        %v4604 = vrot.slane %v4602, 5
        %v4605 = vor.u32 %v4601, %v4604
        %v4606 = vrot.slane %v4605, 4
        %v4608 = vshll.u32 %v4556, 16
        %v4610 = vrot.slane %v4608, 5
        %v4611 = vsel %vm4569, %v4606, %v4610
        %v4613 = vshrl.u32 %v4557, 16
        %v4615 = vrot.slane %v4613, 4
        %v4616 = vshll.u32 %v4557, 16
        %v4618 = vrot.slane %v4616, 5
        %v4619 = vor.u32 %v4615, %v4618
        %v4620 = vrot.slane %v4619, 4
        %v4622 = vshll.u32 %v4558, 16
        %v4624 = vrot.slane %v4622, 5
        %v4625 = vsel %vm4569, %v4620, %v4624
        %v4627 = vshrl.u32 %v4559, 16
        %v4629 = vrot.slane %v4627, 4
        %v4630 = vshll.u32 %v4559, 16
        %v4632 = vrot.slane %v4630, 5
        %v4633 = vor.u32 %v4629, %v4632
        %v4634 = vrot.slane %v4633, 4
        %v4636 = vshll.u32 %v4560, 16
        %v4638 = vrot.slane %v4636, 5
        %v4639 = vsel %vm4569, %v4634, %v4638
        %v4641 = vshrl.u32 %v4561, 16
        %v4643 = vrot.slane %v4641, 4
        %v4644 = vshll.u32 %v4561, 16
        %v4646 = vrot.slane %v4644, 5
        %v4647 = vor.u32 %v4643, %v4646
        %v4648 = vrot.slane %v4647, 4
        %v4650 = vshll.u32 %v4562, 16
        %v4652 = vrot.slane %v4650, 5
        %v4653 = vsel %vm4569, %v4648, %v4652
        %v4655 = vshrl.u32 %v4563, 16
        %v4657 = vrot.slane %v4655, 4
        %v4658 = vshll.u32 %v4563, 16
        %v4660 = vrot.slane %v4658, 5
        %v4661 = vor.u32 %v4657, %v4660
        %v4662 = vrot.slane %v4661, 4
        %v4664 = vshll.u32 %v4564, 16
        %v4666 = vrot.slane %v4664, 5
        %v4667 = vsel %vm4569, %v4662, %v4666
        %v4669 = vshrl.u32 %v4565, 16
        %v4671 = vrot.slane %v4669, 4
        %v4672 = vshll.u32 %v4565, 16
        %v4674 = vrot.slane %v4672, 5
        %v4675 = vor.u32 %v4671, %v4674
        %v4676 = vrot.slane %v4675, 4
        %v4678 = vshll.u32 %v4566, 16
        %v4680 = vrot.slane %v4678, 5
        %v4681 = vsel %vm4569, %v4676, %v4680
        %s4682 = scalar_lea.vmem [#allocation7], 128
        %v4683 = vld [vmem:[%s4682] sm:$0xf]
        %v4684 = vld [vmem:[%s4682 + $0x4] sm:$0xf]
        %v4685 = vld [vmem:[%s4682 + $0x8] sm:$0xf]
        %v4686 = vld [vmem:[%s4682 + $0xc] sm:$0xf]
        %v4687 = vld [vmem:[%s4682 + $0x10] sm:$0xf]
        %v4688 = vld [vmem:[%s4682 + $0x14] sm:$0xf]
        %v4689 = vld [vmem:[%s4682 + $0x18] sm:$0xf]
        %v4690 = vld [vmem:[%s4682 + $0x1c] sm:$0xf]
        %v4691 = vld [vmem:[%s4682 + $0x20] sm:$0xf]
        %v4692 = vld [vmem:[%s4682 + $0x24] sm:$0xf]
        %v4693 = vld [vmem:[%s4682 + $0x28] sm:$0xf]
        %v4694 = vld [vmem:[%s4682 + $0x2c] sm:$0xf]
        %v4695 = vld [vmem:[%s4682 + $0x30] sm:$0xf]
        %v4696 = vld [vmem:[%s4682 + $0x34] sm:$0xf]
        %v4697 = vld [vmem:[%s4682 + $0x38] sm:$0xf]
        %v4698 = vld [vmem:[%s4682 + $0x3c] sm:$0xf]
        %v4699 = vunpack.c.l.b16 %v4583
        %v4700 = vunpack.c.l.b16 %v4597
        %v4701 = vunpack.c.l.b16 %v4611
        %v4702 = vunpack.c.l.b16 %v4625
        %v4703 = vunpack.c.l.b16 %v4639
        %v4704 = vunpack.c.l.b16 %v4653
        %v4705 = vunpack.c.l.b16 %v4667
        %v4706 = vunpack.c.l.b16 %v4681
        %v4707 = vpack.c.b16 %v4700, %v4699
        %v4708 = vpack.c.b16 %v4702, %v4701
        %v4709 = vpack.c.b16 %v4704, %v4703
        %v4710 = vpack.c.b16 %v4706, %v4705
        %v4731 = vunpack.c.l.b16 %v4683
        %v4732 = vunpack.c.l.b16 %v4684
        %v4733 = vunpack.c.l.b16 %v4685
        %v4734 = vunpack.c.l.b16 %v4686
        %v4735 = vunpack.c.l.b16 %v4687
        %v4736 = vunpack.c.l.b16 %v4688
        %v4737 = vunpack.c.l.b16 %v4689
        %v4738 = vunpack.c.l.b16 %v4690
        %v4739 = vunpack.c.l.b16 %v4691
        %v4740 = vunpack.c.l.b16 %v4692
        %v4741 = vunpack.c.l.b16 %v4693
        %v4742 = vunpack.c.l.b16 %v4694
        %v4743 = vunpack.c.l.b16 %v4695
        %v4744 = vunpack.c.l.b16 %v4696
        %v4745 = vunpack.c.l.b16 %v4697
        %v4746 = vunpack.c.l.b16 %v4698
        %v4747 = vpack.c.b16 %v4732, %v4731
        %v4748 = vpack.c.b16 %v4734, %v4733
        %v4749 = vpack.c.b16 %v4736, %v4735
        %v4750 = vpack.c.b16 %v4738, %v4737
        %v4751 = vpack.c.b16 %v4740, %v4739
        %v4752 = vpack.c.b16 %v4742, %v4741
        %v4753 = vpack.c.b16 %v4744, %v4743
        %v4754 = vpack.c.b16 %v4746, %v4745
        %4763 = vmatprep.subr.bf16.mxu0 0
        %4764 = vmatpush1.bf16.msra.mxu0 %v4754
        %4765 = vmatprep.subr.bf16.mxu0 0
        %4766 = vmatpush1.bf16.msra.mxu0 %v4753
        %4767 = vmatprep.subr.bf16.mxu0 0
        %4768 = vmatpush1.bf16.msra.mxu0 %v4752
        %4769 = vmatprep.subr.bf16.mxu0 0
        %4770 = vmatpush1.bf16.msra.mxu0 %v4751
        %4771 = vmatprep.subr.bf16.mxu0 0
        %4772 = vmatpush1.bf16.msra.mxu0 %v4750
        %4773 = vmatprep.subr.bf16.mxu0 0
        %4774 = vmatpush1.bf16.msra.mxu0 %v4749
        %4775 = vmatprep.subr.bf16.mxu0 0
        %4776 = vmatpush1.bf16.msra.mxu0 %v4748
        %4777 = vmatprep.subr.bf16.mxu0 0
        %4778 = vmatpush1.bf16.msra.mxu0 %v4747
        %4779 = vmatprep.subr.bf16.mxu0 0
        %4780 = vmatpush2.bf16.msra.mxu0 0
        %4781 = vmatprep.subr.bf16.mxu0 0
        %4782 = vmatpush2.bf16.msra.mxu0 0
        %4783 = vmatprep.subr.bf16.mxu0 0
        %4784 = vmatpush2.bf16.msra.mxu0 0
        %4785 = vmatprep.subr.bf16.mxu0 0
        %4786 = vmatpush2.bf16.msra.mxu0 0
        %4787 = vmatprep.subr.bf16.mxu0 0
        %4788 = vmatpush2.bf16.msra.mxu0 0
        %4789 = vmatprep.subr.bf16.mxu0 0
        %4790 = vmatpush2.bf16.msra.mxu0 0
        %4791 = vmatprep.subr.bf16.mxu0 0
        %4792 = vmatpush2.bf16.msra.mxu0 0
        %4793 = vmatprep.subr.bf16.mxu0 0
        %4794 = vmatpush2.bf16.msra.mxu0 0
        %4795 = vmatprep.mubr.bf16.mxu0 0
        %4796 = vmatmul.mubr.bf16.gmra.mxu0 %v4707
        %v4797 = vpop.f32.mrf.mxu0
        %v4798 = vadd.f32 0.0, %v4797
        %v4799 = vpop.f32.mrf.mxu0
        %v4800 = vpop.f32.mrf.mxu0
        %v4801 = vadd.f32 0.0, %v4800
        %v4802 = vpop.f32.mrf.mxu0
        %4803 = vmatprep.mubr.bf16.mxu0 0
        %4804 = vmatmul.mubr.bf16.gmra.mxu0 %v4708
        %v4805 = vpop.f32.mrf.mxu0
        %v4806 = vadd.f32 0.0, %v4805
        %v4807 = vpop.f32.mrf.mxu0
        %v4808 = vpop.f32.mrf.mxu0
        %v4809 = vadd.f32 0.0, %v4808
        %v4810 = vpop.f32.mrf.mxu0
        %4811 = vmatprep.mubr.bf16.mxu0 0
        %4812 = vmatmul.mubr.bf16.gmra.mxu0 %v4709
        %v4813 = vpop.f32.mrf.mxu0
        %v4814 = vadd.f32 0.0, %v4813
        %v4815 = vpop.f32.mrf.mxu0
        %v4816 = vpop.f32.mrf.mxu0
        %v4817 = vadd.f32 0.0, %v4816
        %v4818 = vpop.f32.mrf.mxu0
        %4819 = vmatprep.mubr.bf16.mxu0 0
        %4820 = vmatmul.mubr.bf16.gmra.mxu0 %v4710
        %v4821 = vpop.f32.mrf.mxu0
        %v4822 = vadd.f32 0.0, %v4821
        %v4823 = vpop.f32.mrf.mxu0
        %v4824 = vpop.f32.mrf.mxu0
        %v4825 = vadd.f32 0.0, %v4824
        %v4826 = vpop.f32.mrf.mxu0
        %4827 = vdwg.mxu0
        %v4828 = vadd.f32 %v4513, %v4798
        %v4829 = vadd.f32 %v4516, %v4801
        %v4830 = vadd.f32 %v4521, %v4806
        %v4831 = vadd.f32 %v4524, %v4809
        %v4832 = vadd.f32 %v4529, %v4814
        %v4833 = vadd.f32 %v4532, %v4817
        %v4834 = vadd.f32 %v4537, %v4822
        %v4835 = vadd.f32 %v4540, %v4825
        %s4836 = scalar_lea.vmem [#allocation7], 192
        %v4837 = vld [vmem:[%s4836] sm:$0xf]
        %v4838 = vld [vmem:[%s4836 + $0x4] sm:$0xf]
        %v4839 = vld [vmem:[%s4836 + $0x8] sm:$0xf]
        %v4840 = vld [vmem:[%s4836 + $0xc] sm:$0xf]
        %v4841 = vld [vmem:[%s4836 + $0x10] sm:$0xf]
        %v4842 = vld [vmem:[%s4836 + $0x14] sm:$0xf]
        %v4843 = vld [vmem:[%s4836 + $0x18] sm:$0xf]
        %v4844 = vld [vmem:[%s4836 + $0x1c] sm:$0xf]
        %v4845 = vld [vmem:[%s4836 + $0x20] sm:$0xf]
        %v4846 = vld [vmem:[%s4836 + $0x24] sm:$0xf]
        %v4847 = vld [vmem:[%s4836 + $0x28] sm:$0xf]
        %v4848 = vld [vmem:[%s4836 + $0x2c] sm:$0xf]
        %v4849 = vld [vmem:[%s4836 + $0x30] sm:$0xf]
        %v4850 = vld [vmem:[%s4836 + $0x34] sm:$0xf]
        %v4851 = vld [vmem:[%s4836 + $0x38] sm:$0xf]
        %v4852 = vld [vmem:[%s4836 + $0x3c] sm:$0xf]
        %v4861 = vunpack.c.l.b16 %v4148
        %v4862 = vunpack.c.l.b16 %v4149
        %v4863 = vunpack.c.l.b16 %v4150
        %v4864 = vunpack.c.l.b16 %v4151
        %v4865 = vunpack.c.l.b16 %v4152
        %v4866 = vunpack.c.l.b16 %v4153
        %v4867 = vunpack.c.l.b16 %v4154
        %v4868 = vunpack.c.l.b16 %v4155
        %v4869 = vpack.c.b16 %v4862, %v4861
        %v4870 = vpack.c.b16 %v4864, %v4863
        %v4871 = vpack.c.b16 %v4866, %v4865
        %v4872 = vpack.c.b16 %v4868, %v4867
        %v4893 = vunpack.c.l.b16 %v4837
        %v4894 = vunpack.c.l.b16 %v4838
        %v4895 = vunpack.c.l.b16 %v4839
        %v4896 = vunpack.c.l.b16 %v4840
        %v4897 = vunpack.c.l.b16 %v4841
        %v4898 = vunpack.c.l.b16 %v4842
        %v4899 = vunpack.c.l.b16 %v4843
        %v4900 = vunpack.c.l.b16 %v4844
        %v4901 = vunpack.c.l.b16 %v4845
        %v4902 = vunpack.c.l.b16 %v4846
        %v4903 = vunpack.c.l.b16 %v4847
        %v4904 = vunpack.c.l.b16 %v4848
        %v4905 = vunpack.c.l.b16 %v4849
        %v4906 = vunpack.c.l.b16 %v4850
        %v4907 = vunpack.c.l.b16 %v4851
        %v4908 = vunpack.c.l.b16 %v4852
        %v4909 = vpack.c.b16 %v4894, %v4893
        %v4910 = vpack.c.b16 %v4896, %v4895
        %v4911 = vpack.c.b16 %v4898, %v4897
        %v4912 = vpack.c.b16 %v4900, %v4899
        %v4913 = vpack.c.b16 %v4902, %v4901
        %v4914 = vpack.c.b16 %v4904, %v4903
        %v4915 = vpack.c.b16 %v4906, %v4905
        %v4916 = vpack.c.b16 %v4908, %v4907
        %4925 = vmatprep.subr.bf16.mxu0 0
        %4926 = vmatpush1.bf16.msra.mxu0 %v4916
        %4927 = vmatprep.subr.bf16.mxu0 0
        %4928 = vmatpush1.bf16.msra.mxu0 %v4915
        %4929 = vmatprep.subr.bf16.mxu0 0
        %4930 = vmatpush1.bf16.msra.mxu0 %v4914
        %4931 = vmatprep.subr.bf16.mxu0 0
        %4932 = vmatpush1.bf16.msra.mxu0 %v4913
        %4933 = vmatprep.subr.bf16.mxu0 0
        %4934 = vmatpush1.bf16.msra.mxu0 %v4912
        %4935 = vmatprep.subr.bf16.mxu0 0
        %4936 = vmatpush1.bf16.msra.mxu0 %v4911
        %4937 = vmatprep.subr.bf16.mxu0 0
        %4938 = vmatpush1.bf16.msra.mxu0 %v4910
        %4939 = vmatprep.subr.bf16.mxu0 0
        %4940 = vmatpush1.bf16.msra.mxu0 %v4909
        %4941 = vmatprep.subr.bf16.mxu0 0
        %4942 = vmatpush2.bf16.msra.mxu0 0
        %4943 = vmatprep.subr.bf16.mxu0 0
        %4944 = vmatpush2.bf16.msra.mxu0 0
        %4945 = vmatprep.subr.bf16.mxu0 0
        %4946 = vmatpush2.bf16.msra.mxu0 0
        %4947 = vmatprep.subr.bf16.mxu0 0
        %4948 = vmatpush2.bf16.msra.mxu0 0
        %4949 = vmatprep.subr.bf16.mxu0 0
        %4950 = vmatpush2.bf16.msra.mxu0 0
        %4951 = vmatprep.subr.bf16.mxu0 0
        %4952 = vmatpush2.bf16.msra.mxu0 0
        %4953 = vmatprep.subr.bf16.mxu0 0
        %4954 = vmatpush2.bf16.msra.mxu0 0
        %4955 = vmatprep.subr.bf16.mxu0 0
        %4956 = vmatpush2.bf16.msra.mxu0 0
        %4957 = vmatprep.mubr.bf16.mxu0 0
        %4958 = vmatmul.mubr.bf16.gmra.mxu0 %v4869
        %v4959 = vpop.f32.mrf.mxu0
        %v4960 = vadd.f32 0.0, %v4959
        %v4961 = vpop.f32.mrf.mxu0
        %v4962 = vpop.f32.mrf.mxu0
        %v4963 = vadd.f32 0.0, %v4962
        %v4964 = vpop.f32.mrf.mxu0
        %4965 = vmatprep.mubr.bf16.mxu0 0
        %4966 = vmatmul.mubr.bf16.gmra.mxu0 %v4870
        %v4967 = vpop.f32.mrf.mxu0
        %v4968 = vadd.f32 0.0, %v4967
        %v4969 = vpop.f32.mrf.mxu0
        %v4970 = vpop.f32.mrf.mxu0
        %v4971 = vadd.f32 0.0, %v4970
        %v4972 = vpop.f32.mrf.mxu0
        %4973 = vmatprep.mubr.bf16.mxu0 0
        %4974 = vmatmul.mubr.bf16.gmra.mxu0 %v4871
        %v4975 = vpop.f32.mrf.mxu0
        %v4976 = vadd.f32 0.0, %v4975
        %v4977 = vpop.f32.mrf.mxu0
        %v4978 = vpop.f32.mrf.mxu0
        %v4979 = vadd.f32 0.0, %v4978
        %v4980 = vpop.f32.mrf.mxu0
        %4981 = vmatprep.mubr.bf16.mxu0 0
        %4982 = vmatmul.mubr.bf16.gmra.mxu0 %v4872
        %v4983 = vpop.f32.mrf.mxu0
        %v4984 = vadd.f32 0.0, %v4983
        %v4985 = vpop.f32.mrf.mxu0
        %v4986 = vpop.f32.mrf.mxu0
        %v4987 = vadd.f32 0.0, %v4986
        %v4988 = vpop.f32.mrf.mxu0
        %4989 = vdwg.mxu0
        %v4990 = vadd.f32 %v4828, %v4960
        %v4991 = vadd.f32 %v4829, %v4963
        %v4992 = vadd.f32 %v4830, %v4968
        %v4993 = vadd.f32 %v4831, %v4971
        %v4994 = vadd.f32 %v4832, %v4976
        %v4995 = vadd.f32 %v4833, %v4979
        %v4996 = vadd.f32 %v4834, %v4984
        %v4997 = vadd.f32 %v4835, %v4987
        %s4998 = scalar_lea.vmem [#allocation7], 256
        %v4999 = vld [vmem:[%s4998] sm:$0xf]
        %v5000 = vld [vmem:[%s4998 + $0x4] sm:$0xf]
        %v5001 = vld [vmem:[%s4998 + $0x8] sm:$0xf]
        %v5002 = vld [vmem:[%s4998 + $0xc] sm:$0xf]
        %v5003 = vld [vmem:[%s4998 + $0x10] sm:$0xf]
        %v5004 = vld [vmem:[%s4998 + $0x14] sm:$0xf]
        %v5005 = vld [vmem:[%s4998 + $0x18] sm:$0xf]
        %v5006 = vld [vmem:[%s4998 + $0x1c] sm:$0xf]
        %v5007 = vld [vmem:[%s4998 + $0x20] sm:$0xf]
        %v5008 = vld [vmem:[%s4998 + $0x24] sm:$0xf]
        %v5009 = vld [vmem:[%s4998 + $0x28] sm:$0xf]
        %v5010 = vld [vmem:[%s4998 + $0x2c] sm:$0xf]
        %v5011 = vld [vmem:[%s4998 + $0x30] sm:$0xf]
        %v5012 = vld [vmem:[%s4998 + $0x34] sm:$0xf]
        %v5013 = vld [vmem:[%s4998 + $0x38] sm:$0xf]
        %v5014 = vld [vmem:[%s4998 + $0x3c] sm:$0xf]
        %v5023 = vunpack.c.l.b16 %v4221
        %v5024 = vunpack.c.l.b16 %v4223
        %v5025 = vunpack.c.l.b16 %v4225
        %v5026 = vunpack.c.l.b16 %v4227
        %v5027 = vunpack.c.l.b16 %v4229
        %v5028 = vunpack.c.l.b16 %v4231
        %v5029 = vunpack.c.l.b16 %v4233
        %v5030 = vunpack.c.l.b16 %v4235
        %v5031 = vpack.c.b16 %v5024, %v5023
        %v5032 = vpack.c.b16 %v5026, %v5025
        %v5033 = vpack.c.b16 %v5028, %v5027
        %v5034 = vpack.c.b16 %v5030, %v5029
        %v5055 = vunpack.c.l.b16 %v4999
        %v5056 = vunpack.c.l.b16 %v5000
        %v5057 = vunpack.c.l.b16 %v5001
        %v5058 = vunpack.c.l.b16 %v5002
        %v5059 = vunpack.c.l.b16 %v5003
        %v5060 = vunpack.c.l.b16 %v5004
        %v5061 = vunpack.c.l.b16 %v5005
        %v5062 = vunpack.c.l.b16 %v5006
        %v5063 = vunpack.c.l.b16 %v5007
        %v5064 = vunpack.c.l.b16 %v5008
        %v5065 = vunpack.c.l.b16 %v5009
        %v5066 = vunpack.c.l.b16 %v5010
        %v5067 = vunpack.c.l.b16 %v5011
        %v5068 = vunpack.c.l.b16 %v5012
        %v5069 = vunpack.c.l.b16 %v5013
        %v5070 = vunpack.c.l.b16 %v5014
        %v5071 = vpack.c.b16 %v5056, %v5055
        %v5072 = vpack.c.b16 %v5058, %v5057
        %v5073 = vpack.c.b16 %v5060, %v5059
        %v5074 = vpack.c.b16 %v5062, %v5061
        %v5075 = vpack.c.b16 %v5064, %v5063
        %v5076 = vpack.c.b16 %v5066, %v5065
        %v5077 = vpack.c.b16 %v5068, %v5067
        %v5078 = vpack.c.b16 %v5070, %v5069
        %5087 = vmatprep.subr.bf16.mxu0 0
        %5088 = vmatpush1.bf16.msra.mxu0 %v5078
        %5089 = vmatprep.subr.bf16.mxu0 0
        %5090 = vmatpush1.bf16.msra.mxu0 %v5077
        %5091 = vmatprep.subr.bf16.mxu0 0
        %5092 = vmatpush1.bf16.msra.mxu0 %v5076
        %5093 = vmatprep.subr.bf16.mxu0 0
        %5094 = vmatpush1.bf16.msra.mxu0 %v5075
        %5095 = vmatprep.subr.bf16.mxu0 0
        %5096 = vmatpush1.bf16.msra.mxu0 %v5074
        %5097 = vmatprep.subr.bf16.mxu0 0
        %5098 = vmatpush1.bf16.msra.mxu0 %v5073
        %5099 = vmatprep.subr.bf16.mxu0 0
        %5100 = vmatpush1.bf16.msra.mxu0 %v5072
        %5101 = vmatprep.subr.bf16.mxu0 0
        %5102 = vmatpush1.bf16.msra.mxu0 %v5071
        %5103 = vmatprep.subr.bf16.mxu0 0
        %5104 = vmatpush2.bf16.msra.mxu0 0
        %5105 = vmatprep.subr.bf16.mxu0 0
        %5106 = vmatpush2.bf16.msra.mxu0 0
        %5107 = vmatprep.subr.bf16.mxu0 0
        %5108 = vmatpush2.bf16.msra.mxu0 0
        %5109 = vmatprep.subr.bf16.mxu0 0
        %5110 = vmatpush2.bf16.msra.mxu0 0
        %5111 = vmatprep.subr.bf16.mxu0 0
        %5112 = vmatpush2.bf16.msra.mxu0 0
        %5113 = vmatprep.subr.bf16.mxu0 0
        %5114 = vmatpush2.bf16.msra.mxu0 0
        %5115 = vmatprep.subr.bf16.mxu0 0
        %5116 = vmatpush2.bf16.msra.mxu0 0
        %5117 = vmatprep.subr.bf16.mxu0 0
        %5118 = vmatpush2.bf16.msra.mxu0 0
        %5119 = vmatprep.mubr.bf16.mxu0 0
        %5120 = vmatmul.mubr.bf16.gmra.mxu0 %v5031
        %v5121 = vpop.f32.mrf.mxu0
        %v5122 = vadd.f32 0.0, %v5121
        %v5123 = vpop.f32.mrf.mxu0
        %v5124 = vpop.f32.mrf.mxu0
        %v5125 = vadd.f32 0.0, %v5124
        %v5126 = vpop.f32.mrf.mxu0
        %5127 = vmatprep.mubr.bf16.mxu0 0
        %5128 = vmatmul.mubr.bf16.gmra.mxu0 %v5032
        %v5129 = vpop.f32.mrf.mxu0
        %v5130 = vadd.f32 0.0, %v5129
        %v5131 = vpop.f32.mrf.mxu0
        %v5132 = vpop.f32.mrf.mxu0
        %v5133 = vadd.f32 0.0, %v5132
        %v5134 = vpop.f32.mrf.mxu0
        %5135 = vmatprep.mubr.bf16.mxu0 0
        %5136 = vmatmul.mubr.bf16.gmra.mxu0 %v5033
        %v5137 = vpop.f32.mrf.mxu0
        %v5138 = vadd.f32 0.0, %v5137
        %v5139 = vpop.f32.mrf.mxu0
        %v5140 = vpop.f32.mrf.mxu0
        %v5141 = vadd.f32 0.0, %v5140
        %v5142 = vpop.f32.mrf.mxu0
        %5143 = vmatprep.mubr.bf16.mxu0 0
        %5144 = vmatmul.mubr.bf16.gmra.mxu0 %v5034
        %v5145 = vpop.f32.mrf.mxu0
        %v5146 = vadd.f32 0.0, %v5145
        %v5147 = vpop.f32.mrf.mxu0
        %v5148 = vpop.f32.mrf.mxu0
        %v5149 = vadd.f32 0.0, %v5148
        %v5150 = vpop.f32.mrf.mxu0
        %5151 = vdwg.mxu0
        %v5152 = vadd.f32 %v4990, %v5122
        %v5153 = vadd.f32 %v4991, %v5125
        %v5154 = vadd.f32 %v4992, %v5130
        %v5155 = vadd.f32 %v4993, %v5133
        %v5156 = vadd.f32 %v4994, %v5138
        %v5157 = vadd.f32 %v4995, %v5141
        %v5158 = vadd.f32 %v4996, %v5146
        %v5159 = vadd.f32 %v4997, %v5149
        %v5160 = vunpack.c.h.b16 %v4148
        %v5161 = vunpack.c.h.b16 %v4149
        %v5162 = vunpack.c.h.b16 %v4150
        %v5163 = vunpack.c.h.b16 %v4151
        %v5164 = vunpack.c.h.b16 %v4152
        %v5165 = vunpack.c.h.b16 %v4153
        %v5166 = vunpack.c.h.b16 %v4154
        %v5167 = vunpack.c.h.b16 %v4155
        %v5168 = vpack.c.b16 %v4861, %v4861
        %v5169 = vpack.c.b16 %v5160, %v5160
        %v5170 = vpack.c.b16 %v4862, %v4862
        %v5171 = vpack.c.b16 %v5161, %v5161
        %v5172 = vpack.c.b16 %v4863, %v4863
        %v5173 = vpack.c.b16 %v5162, %v5162
        %v5174 = vpack.c.b16 %v4864, %v4864
        %v5175 = vpack.c.b16 %v5163, %v5163
        %v5176 = vpack.c.b16 %v4865, %v4865
        %v5177 = vpack.c.b16 %v5164, %v5164
        %v5178 = vpack.c.b16 %v4866, %v4866
        %v5179 = vpack.c.b16 %v5165, %v5165
        %v5180 = vpack.c.b16 %v4867, %v4867
        %v5181 = vpack.c.b16 %v5166, %v5166
        %v5182 = vpack.c.b16 %v4868, %v4868
        %v5183 = vpack.c.b16 %v5167, %v5167
        %v5185 = vshrl.u32 %v5168, 16
        %v5187 = vrot.slane %v5185, 4
        %v5188 = vshll.u32 %v5168, 16
        %v5190 = vrot.slane %v5188, 5
        %v5191 = vor.u32 %v5187, %v5190
        %v5192 = vrot.slane %v5191, 4
        %v5194 = vshll.u32 %v5169, 16
        %v5196 = vrot.slane %v5194, 5
        %v5197 = vsel %vm4569, %v5192, %v5196
        %v5199 = vshrl.u32 %v5170, 16
        %v5201 = vrot.slane %v5199, 4
        %v5202 = vshll.u32 %v5170, 16
        %v5204 = vrot.slane %v5202, 5
        %v5205 = vor.u32 %v5201, %v5204
        %v5206 = vrot.slane %v5205, 4
        %v5208 = vshll.u32 %v5171, 16
        %v5210 = vrot.slane %v5208, 5
        %v5211 = vsel %vm4569, %v5206, %v5210
        %v5213 = vshrl.u32 %v5172, 16
        %v5215 = vrot.slane %v5213, 4
        %v5216 = vshll.u32 %v5172, 16
        %v5218 = vrot.slane %v5216, 5
        %v5219 = vor.u32 %v5215, %v5218
        %v5220 = vrot.slane %v5219, 4
        %v5222 = vshll.u32 %v5173, 16
        %v5224 = vrot.slane %v5222, 5
        %v5225 = vsel %vm4569, %v5220, %v5224
        %v5227 = vshrl.u32 %v5174, 16
        %v5229 = vrot.slane %v5227, 4
        %v5230 = vshll.u32 %v5174, 16
        %v5232 = vrot.slane %v5230, 5
        %v5233 = vor.u32 %v5229, %v5232
        %v5234 = vrot.slane %v5233, 4
        %v5236 = vshll.u32 %v5175, 16
        %v5238 = vrot.slane %v5236, 5
        %v5239 = vsel %vm4569, %v5234, %v5238
        %v5241 = vshrl.u32 %v5176, 16
        %v5243 = vrot.slane %v5241, 4
        %v5244 = vshll.u32 %v5176, 16
        %v5246 = vrot.slane %v5244, 5
        %v5247 = vor.u32 %v5243, %v5246
        %v5248 = vrot.slane %v5247, 4
        %v5250 = vshll.u32 %v5177, 16
        %v5252 = vrot.slane %v5250, 5
        %v5253 = vsel %vm4569, %v5248, %v5252
        %v5255 = vshrl.u32 %v5178, 16
        %v5257 = vrot.slane %v5255, 4
        %v5258 = vshll.u32 %v5178, 16
        %v5260 = vrot.slane %v5258, 5
        %v5261 = vor.u32 %v5257, %v5260
        %v5262 = vrot.slane %v5261, 4
        %v5264 = vshll.u32 %v5179, 16
        %v5266 = vrot.slane %v5264, 5
        %v5267 = vsel %vm4569, %v5262, %v5266
        %v5269 = vshrl.u32 %v5180, 16
        %v5271 = vrot.slane %v5269, 4
        %v5272 = vshll.u32 %v5180, 16
        %v5274 = vrot.slane %v5272, 5
        %v5275 = vor.u32 %v5271, %v5274
        %v5276 = vrot.slane %v5275, 4
        %v5278 = vshll.u32 %v5181, 16
        %v5280 = vrot.slane %v5278, 5
        %v5281 = vsel %vm4569, %v5276, %v5280
        %v5283 = vshrl.u32 %v5182, 16
        %v5285 = vrot.slane %v5283, 4
        %v5286 = vshll.u32 %v5182, 16
        %v5288 = vrot.slane %v5286, 5
        %v5289 = vor.u32 %v5285, %v5288
        %v5290 = vrot.slane %v5289, 4
        %v5292 = vshll.u32 %v5183, 16
        %v5294 = vrot.slane %v5292, 5
        %v5295 = vsel %vm4569, %v5290, %v5294
        %s5296 = scalar_lea.vmem [#allocation7], 320
        %v5297 = vld [vmem:[%s5296] sm:$0xf]
        %v5298 = vld [vmem:[%s5296 + $0x4] sm:$0xf]
        %v5299 = vld [vmem:[%s5296 + $0x8] sm:$0xf]
        %v5300 = vld [vmem:[%s5296 + $0xc] sm:$0xf]
        %v5301 = vld [vmem:[%s5296 + $0x10] sm:$0xf]
        %v5302 = vld [vmem:[%s5296 + $0x14] sm:$0xf]
        %v5303 = vld [vmem:[%s5296 + $0x18] sm:$0xf]
        %v5304 = vld [vmem:[%s5296 + $0x1c] sm:$0xf]
        %v5305 = vld [vmem:[%s5296 + $0x20] sm:$0xf]
        %v5306 = vld [vmem:[%s5296 + $0x24] sm:$0xf]
        %v5307 = vld [vmem:[%s5296 + $0x28] sm:$0xf]
        %v5308 = vld [vmem:[%s5296 + $0x2c] sm:$0xf]
        %v5309 = vld [vmem:[%s5296 + $0x30] sm:$0xf]
        %v5310 = vld [vmem:[%s5296 + $0x34] sm:$0xf]
        %v5311 = vld [vmem:[%s5296 + $0x38] sm:$0xf]
        %v5312 = vld [vmem:[%s5296 + $0x3c] sm:$0xf]
        %v5313 = vunpack.c.l.b16 %v5197
        %v5314 = vunpack.c.l.b16 %v5211
        %v5315 = vunpack.c.l.b16 %v5225
        %v5316 = vunpack.c.l.b16 %v5239
        %v5317 = vunpack.c.l.b16 %v5253
        %v5318 = vunpack.c.l.b16 %v5267
        %v5319 = vunpack.c.l.b16 %v5281
        %v5320 = vunpack.c.l.b16 %v5295
        %v5321 = vpack.c.b16 %v5314, %v5313
        %v5322 = vpack.c.b16 %v5316, %v5315
        %v5323 = vpack.c.b16 %v5318, %v5317
        %v5324 = vpack.c.b16 %v5320, %v5319
        %v5345 = vunpack.c.l.b16 %v5297
        %v5346 = vunpack.c.l.b16 %v5298
        %v5347 = vunpack.c.l.b16 %v5299
        %v5348 = vunpack.c.l.b16 %v5300
        %v5349 = vunpack.c.l.b16 %v5301
        %v5350 = vunpack.c.l.b16 %v5302
        %v5351 = vunpack.c.l.b16 %v5303
        %v5352 = vunpack.c.l.b16 %v5304
        %v5353 = vunpack.c.l.b16 %v5305
        %v5354 = vunpack.c.l.b16 %v5306
        %v5355 = vunpack.c.l.b16 %v5307
        %v5356 = vunpack.c.l.b16 %v5308
        %v5357 = vunpack.c.l.b16 %v5309
        %v5358 = vunpack.c.l.b16 %v5310
        %v5359 = vunpack.c.l.b16 %v5311
        %v5360 = vunpack.c.l.b16 %v5312
        %v5361 = vpack.c.b16 %v5346, %v5345
        %v5362 = vpack.c.b16 %v5348, %v5347
        %v5363 = vpack.c.b16 %v5350, %v5349
        %v5364 = vpack.c.b16 %v5352, %v5351
        %v5365 = vpack.c.b16 %v5354, %v5353
        %v5366 = vpack.c.b16 %v5356, %v5355
        %v5367 = vpack.c.b16 %v5358, %v5357
        %v5368 = vpack.c.b16 %v5360, %v5359
        %5377 = vmatprep.subr.bf16.mxu0 0
        %5378 = vmatpush1.bf16.msra.mxu0 %v5368
        %5379 = vmatprep.subr.bf16.mxu0 0
        %5380 = vmatpush1.bf16.msra.mxu0 %v5367
        %5381 = vmatprep.subr.bf16.mxu0 0
        %5382 = vmatpush1.bf16.msra.mxu0 %v5366
        %5383 = vmatprep.subr.bf16.mxu0 0
        %5384 = vmatpush1.bf16.msra.mxu0 %v5365
        %5385 = vmatprep.subr.bf16.mxu0 0
        %5386 = vmatpush1.bf16.msra.mxu0 %v5364
        %5387 = vmatprep.subr.bf16.mxu0 0
        %5388 = vmatpush1.bf16.msra.mxu0 %v5363
        %5389 = vmatprep.subr.bf16.mxu0 0
        %5390 = vmatpush1.bf16.msra.mxu0 %v5362
        %5391 = vmatprep.subr.bf16.mxu0 0
        %5392 = vmatpush1.bf16.msra.mxu0 %v5361
        %5393 = vmatprep.subr.bf16.mxu0 0
        %5394 = vmatpush2.bf16.msra.mxu0 0
        %5395 = vmatprep.subr.bf16.mxu0 0
        %5396 = vmatpush2.bf16.msra.mxu0 0
        %5397 = vmatprep.subr.bf16.mxu0 0
        %5398 = vmatpush2.bf16.msra.mxu0 0
        %5399 = vmatprep.subr.bf16.mxu0 0
        %5400 = vmatpush2.bf16.msra.mxu0 0
        %5401 = vmatprep.subr.bf16.mxu0 0
        %5402 = vmatpush2.bf16.msra.mxu0 0
        %5403 = vmatprep.subr.bf16.mxu0 0
        %5404 = vmatpush2.bf16.msra.mxu0 0
        %5405 = vmatprep.subr.bf16.mxu0 0
        %5406 = vmatpush2.bf16.msra.mxu0 0
        %5407 = vmatprep.subr.bf16.mxu0 0
        %5408 = vmatpush2.bf16.msra.mxu0 0
        %5409 = vmatprep.mubr.bf16.mxu0 0
        %5410 = vmatmul.mubr.bf16.gmra.mxu0 %v5321
        %v5411 = vpop.f32.mrf.mxu0
        %v5412 = vadd.f32 0.0, %v5411
        %v5413 = vpop.f32.mrf.mxu0
        %v5414 = vpop.f32.mrf.mxu0
        %v5415 = vadd.f32 0.0, %v5414
        %v5416 = vpop.f32.mrf.mxu0
        %5417 = vmatprep.mubr.bf16.mxu0 0
        %5418 = vmatmul.mubr.bf16.gmra.mxu0 %v5322
        %v5419 = vpop.f32.mrf.mxu0
        %v5420 = vadd.f32 0.0, %v5419
        %v5421 = vpop.f32.mrf.mxu0
        %v5422 = vpop.f32.mrf.mxu0
        %v5423 = vadd.f32 0.0, %v5422
        %v5424 = vpop.f32.mrf.mxu0
        %5425 = vmatprep.mubr.bf16.mxu0 0
        %5426 = vmatmul.mubr.bf16.gmra.mxu0 %v5323
        %v5427 = vpop.f32.mrf.mxu0
        %v5428 = vadd.f32 0.0, %v5427
        %v5429 = vpop.f32.mrf.mxu0
        %v5430 = vpop.f32.mrf.mxu0
        %v5431 = vadd.f32 0.0, %v5430
        %v5432 = vpop.f32.mrf.mxu0
        %5433 = vmatprep.mubr.bf16.mxu0 0
        %5434 = vmatmul.mubr.bf16.gmra.mxu0 %v5324
        %v5435 = vpop.f32.mrf.mxu0
        %v5436 = vadd.f32 0.0, %v5435
        %v5437 = vpop.f32.mrf.mxu0
        %v5438 = vpop.f32.mrf.mxu0
        %v5439 = vadd.f32 0.0, %v5438
        %v5440 = vpop.f32.mrf.mxu0
        %5441 = vdwg.mxu0
        %v5442 = vadd.f32 %v5152, %v5412
        %v5443 = vadd.f32 %v5153, %v5415
        %v5444 = vadd.f32 %v5154, %v5420
        %v5445 = vadd.f32 %v5155, %v5423
        %v5446 = vadd.f32 %v5156, %v5428
        %v5447 = vadd.f32 %v5157, %v5431
        %v5448 = vadd.f32 %v5158, %v5436
        %v5449 = vadd.f32 %v5159, %v5439
        %s5450 = scalar_lea.vmem [#allocation7], 384
        %v5451 = vld [vmem:[%s5450] sm:$0xf]
        %v5452 = vld [vmem:[%s5450 + $0x4] sm:$0xf]
        %v5453 = vld [vmem:[%s5450 + $0x8] sm:$0xf]
        %v5454 = vld [vmem:[%s5450 + $0xc] sm:$0xf]
        %v5455 = vld [vmem:[%s5450 + $0x10] sm:$0xf]
        %v5456 = vld [vmem:[%s5450 + $0x14] sm:$0xf]
        %v5457 = vld [vmem:[%s5450 + $0x18] sm:$0xf]
        %v5458 = vld [vmem:[%s5450 + $0x1c] sm:$0xf]
        %v5459 = vld [vmem:[%s5450 + $0x20] sm:$0xf]
        %v5460 = vld [vmem:[%s5450 + $0x24] sm:$0xf]
        %v5461 = vld [vmem:[%s5450 + $0x28] sm:$0xf]
        %v5462 = vld [vmem:[%s5450 + $0x2c] sm:$0xf]
        %v5463 = vld [vmem:[%s5450 + $0x30] sm:$0xf]
        %v5464 = vld [vmem:[%s5450 + $0x34] sm:$0xf]
        %v5465 = vld [vmem:[%s5450 + $0x38] sm:$0xf]
        %v5466 = vld [vmem:[%s5450 + $0x3c] sm:$0xf]
        %v5468 = vunpack.c.l.b16 %v2930
        %v5469 = vpack.c.b16 %v4416, %v4415
        %v5470 = vpack.c.b16 %v4418, %v4417
        %v5471 = vpack.c.b16 %v4420, %v4419
        %v5472 = vpack.c.b16 %v5468, %v4421
        %v5493 = vunpack.c.l.b16 %v5451
        %v5494 = vunpack.c.l.b16 %v5452
        %v5495 = vunpack.c.l.b16 %v5453
        %v5496 = vunpack.c.l.b16 %v5454
        %v5497 = vunpack.c.l.b16 %v5455
        %v5498 = vunpack.c.l.b16 %v5456
        %v5499 = vunpack.c.l.b16 %v5457
        %v5500 = vunpack.c.l.b16 %v5458
        %v5501 = vunpack.c.l.b16 %v5459
        %v5502 = vunpack.c.l.b16 %v5460
        %v5503 = vunpack.c.l.b16 %v5461
        %v5504 = vunpack.c.l.b16 %v5462
        %v5505 = vunpack.c.l.b16 %v5463
        %v5506 = vunpack.c.l.b16 %v5464
        %v5507 = vunpack.c.l.b16 %v5465
        %v5508 = vunpack.c.l.b16 %v5466
        %v5509 = vpack.c.b16 %v5494, %v5493
        %v5510 = vpack.c.b16 %v5496, %v5495
        %v5511 = vpack.c.b16 %v5498, %v5497
        %v5512 = vpack.c.b16 %v5500, %v5499
        %v5513 = vpack.c.b16 %v5502, %v5501
        %v5514 = vpack.c.b16 %v5504, %v5503
        %v5515 = vpack.c.b16 %v5506, %v5505
        %v5516 = vpack.c.b16 %v5508, %v5507
        %5525 = vmatprep.subr.bf16.mxu0 0
        %5526 = vmatpush1.bf16.msra.mxu0 %v5516
        %5527 = vmatprep.subr.bf16.mxu0 0
        %5528 = vmatpush1.bf16.msra.mxu0 %v5515
        %5529 = vmatprep.subr.bf16.mxu0 0
        %5530 = vmatpush1.bf16.msra.mxu0 %v5514
        %5531 = vmatprep.subr.bf16.mxu0 0
        %5532 = vmatpush1.bf16.msra.mxu0 %v5513
        %5533 = vmatprep.subr.bf16.mxu0 0
        %5534 = vmatpush1.bf16.msra.mxu0 %v5512
        %5535 = vmatprep.subr.bf16.mxu0 0
        %5536 = vmatpush1.bf16.msra.mxu0 %v5511
        %5537 = vmatprep.subr.bf16.mxu0 0
        %5538 = vmatpush1.bf16.msra.mxu0 %v5510
        %5539 = vmatprep.subr.bf16.mxu0 0
        %5540 = vmatpush1.bf16.msra.mxu0 %v5509
        %5541 = vmatprep.subr.bf16.mxu0 0
        %5542 = vmatpush2.bf16.msra.mxu0 0
        %5543 = vmatprep.subr.bf16.mxu0 0
        %5544 = vmatpush2.bf16.msra.mxu0 0
        %5545 = vmatprep.subr.bf16.mxu0 0
        %5546 = vmatpush2.bf16.msra.mxu0 0
        %5547 = vmatprep.subr.bf16.mxu0 0
        %5548 = vmatpush2.bf16.msra.mxu0 0
        %5549 = vmatprep.subr.bf16.mxu0 0
        %5550 = vmatpush2.bf16.msra.mxu0 0
        %5551 = vmatprep.subr.bf16.mxu0 0
        %5552 = vmatpush2.bf16.msra.mxu0 0
        %5553 = vmatprep.subr.bf16.mxu0 0
        %5554 = vmatpush2.bf16.msra.mxu0 0
        %5555 = vmatprep.subr.bf16.mxu0 0
        %5556 = vmatpush2.bf16.msra.mxu0 0
        %5557 = vmatprep.mubr.bf16.mxu0 0
        %5558 = vmatmul.mubr.bf16.gmra.mxu0 %v5469
        %v5559 = vpop.f32.mrf.mxu0
        %v5560 = vadd.f32 0.0, %v5559
        %v5561 = vpop.f32.mrf.mxu0
        %v5562 = vpop.f32.mrf.mxu0
        %v5563 = vadd.f32 0.0, %v5562
        %v5564 = vpop.f32.mrf.mxu0
        %5565 = vmatprep.mubr.bf16.mxu0 0
        %5566 = vmatmul.mubr.bf16.gmra.mxu0 %v5470
        %v5567 = vpop.f32.mrf.mxu0
        %v5568 = vadd.f32 0.0, %v5567
        %v5569 = vpop.f32.mrf.mxu0
        %v5570 = vpop.f32.mrf.mxu0
        %v5571 = vadd.f32 0.0, %v5570
        %v5572 = vpop.f32.mrf.mxu0
        %5573 = vmatprep.mubr.bf16.mxu0 0
        %5574 = vmatmul.mubr.bf16.gmra.mxu0 %v5471
        %v5575 = vpop.f32.mrf.mxu0
        %v5576 = vadd.f32 0.0, %v5575
        %v5577 = vpop.f32.mrf.mxu0
        %v5578 = vpop.f32.mrf.mxu0
        %v5579 = vadd.f32 0.0, %v5578
        %v5580 = vpop.f32.mrf.mxu0
        %5581 = vmatprep.mubr.bf16.mxu0 0
        %5582 = vmatmul.mubr.bf16.gmra.mxu0 %v5472
        %v5583 = vpop.f32.mrf.mxu0
        %v5584 = vadd.f32 0.0, %v5583
        %v5585 = vpop.f32.mrf.mxu0
        %v5586 = vpop.f32.mrf.mxu0
        %v5587 = vadd.f32 0.0, %v5586
        %v5588 = vpop.f32.mrf.mxu0
        %5589 = vdwg.mxu0
        %v5590 = vadd.f32 %v5442, %v5560
        %v5591 = vadd.f32 %v5443, %v5563
        %v5592 = vadd.f32 %v5444, %v5568
        %v5593 = vadd.f32 %v5445, %v5571
        %v5594 = vadd.f32 %v5446, %v5576
        %v5595 = vadd.f32 %v5447, %v5579
        %v5596 = vadd.f32 %v5448, %v5584
        %v5597 = vadd.f32 %v5449, %v5587
        %s5598 = scalar_lea.vmem [#allocation7], 448
        %v5599 = vld [vmem:[%s5598] sm:$0xf]
        %v5600 = vld [vmem:[%s5598 + $0x4] sm:$0xf]
        %v5601 = vld [vmem:[%s5598 + $0x8] sm:$0xf]
        %v5602 = vld [vmem:[%s5598 + $0xc] sm:$0xf]
        %v5603 = vld [vmem:[%s5598 + $0x10] sm:$0xf]
        %v5604 = vld [vmem:[%s5598 + $0x14] sm:$0xf]
        %v5605 = vld [vmem:[%s5598 + $0x18] sm:$0xf]
        %v5606 = vld [vmem:[%s5598 + $0x1c] sm:$0xf]
        %v5607 = vld [vmem:[%s5598 + $0x20] sm:$0xf]
        %v5608 = vld [vmem:[%s5598 + $0x24] sm:$0xf]
        %v5609 = vld [vmem:[%s5598 + $0x28] sm:$0xf]
        %v5610 = vld [vmem:[%s5598 + $0x2c] sm:$0xf]
        %v5611 = vld [vmem:[%s5598 + $0x30] sm:$0xf]
        %v5612 = vld [vmem:[%s5598 + $0x34] sm:$0xf]
        %v5613 = vld [vmem:[%s5598 + $0x38] sm:$0xf]
        %v5614 = vld [vmem:[%s5598 + $0x3c] sm:$0xf]
        %v5616 = vunpack.c.l.b16 %v3067
        %v5617 = vpack.c.b16 %v4279, %v4278
        %v5618 = vpack.c.b16 %v4281, %v4280
        %v5619 = vpack.c.b16 %v4283, %v4282
        %v5620 = vpack.c.b16 %v5616, %v4284
        %v5641 = vunpack.c.l.b16 %v5599
        %v5642 = vunpack.c.l.b16 %v5600
        %v5643 = vunpack.c.l.b16 %v5601
        %v5644 = vunpack.c.l.b16 %v5602
        %v5645 = vunpack.c.l.b16 %v5603
        %v5646 = vunpack.c.l.b16 %v5604
        %v5647 = vunpack.c.l.b16 %v5605
        %v5648 = vunpack.c.l.b16 %v5606
        %v5649 = vunpack.c.l.b16 %v5607
        %v5650 = vunpack.c.l.b16 %v5608
        %v5651 = vunpack.c.l.b16 %v5609
        %v5652 = vunpack.c.l.b16 %v5610
        %v5653 = vunpack.c.l.b16 %v5611
        %v5654 = vunpack.c.l.b16 %v5612
        %v5655 = vunpack.c.l.b16 %v5613
        %v5656 = vunpack.c.l.b16 %v5614
        %v5657 = vpack.c.b16 %v5642, %v5641
        %v5658 = vpack.c.b16 %v5644, %v5643
        %v5659 = vpack.c.b16 %v5646, %v5645
        %v5660 = vpack.c.b16 %v5648, %v5647
        %v5661 = vpack.c.b16 %v5650, %v5649
        %v5662 = vpack.c.b16 %v5652, %v5651
        %v5663 = vpack.c.b16 %v5654, %v5653
        %v5664 = vpack.c.b16 %v5656, %v5655
        %5673 = vmatprep.subr.bf16.mxu0 0
        %5674 = vmatpush1.bf16.msra.mxu0 %v5664
        %5675 = vmatprep.subr.bf16.mxu0 0
        %5676 = vmatpush1.bf16.msra.mxu0 %v5663
        %5677 = vmatprep.subr.bf16.mxu0 0
        %5678 = vmatpush1.bf16.msra.mxu0 %v5662
        %5679 = vmatprep.subr.bf16.mxu0 0
        %5680 = vmatpush1.bf16.msra.mxu0 %v5661
        %5681 = vmatprep.subr.bf16.mxu0 0
        %5682 = vmatpush1.bf16.msra.mxu0 %v5660
        %5683 = vmatprep.subr.bf16.mxu0 0
        %5684 = vmatpush1.bf16.msra.mxu0 %v5659
        %5685 = vmatprep.subr.bf16.mxu0 0
        %5686 = vmatpush1.bf16.msra.mxu0 %v5658
        %5687 = vmatprep.subr.bf16.mxu0 0
        %5688 = vmatpush1.bf16.msra.mxu0 %v5657
        %5689 = vmatprep.subr.bf16.mxu0 0
        %5690 = vmatpush2.bf16.msra.mxu0 0
        %5691 = vmatprep.subr.bf16.mxu0 0
        %5692 = vmatpush2.bf16.msra.mxu0 0
        %5693 = vmatprep.subr.bf16.mxu0 0
        %5694 = vmatpush2.bf16.msra.mxu0 0
        %5695 = vmatprep.subr.bf16.mxu0 0
        %5696 = vmatpush2.bf16.msra.mxu0 0
        %5697 = vmatprep.subr.bf16.mxu0 0
        %5698 = vmatpush2.bf16.msra.mxu0 0
        %5699 = vmatprep.subr.bf16.mxu0 0
        %5700 = vmatpush2.bf16.msra.mxu0 0
        %5701 = vmatprep.subr.bf16.mxu0 0
        %5702 = vmatpush2.bf16.msra.mxu0 0
        %5703 = vmatprep.subr.bf16.mxu0 0
        %5704 = vmatpush2.bf16.msra.mxu0 0
        %5705 = vmatprep.mubr.bf16.mxu0 0
        %5706 = vmatmul.mubr.bf16.gmra.mxu0 %v5617
        %v5707 = vpop.f32.mrf.mxu0
        %v5708 = vadd.f32 0.0, %v5707
        %v5709 = vpop.f32.mrf.mxu0
        %v5710 = vpop.f32.mrf.mxu0
        %v5711 = vadd.f32 0.0, %v5710
        %v5712 = vpop.f32.mrf.mxu0
        %5713 = vmatprep.mubr.bf16.mxu0 0
        %5714 = vmatmul.mubr.bf16.gmra.mxu0 %v5618
        %v5715 = vpop.f32.mrf.mxu0
        %v5716 = vadd.f32 0.0, %v5715
        %v5717 = vpop.f32.mrf.mxu0
        %v5718 = vpop.f32.mrf.mxu0
        %v5719 = vadd.f32 0.0, %v5718
        %v5720 = vpop.f32.mrf.mxu0
        %5721 = vmatprep.mubr.bf16.mxu0 0
        %5722 = vmatmul.mubr.bf16.gmra.mxu0 %v5619
        %v5723 = vpop.f32.mrf.mxu0
        %v5724 = vadd.f32 0.0, %v5723
        %v5725 = vpop.f32.mrf.mxu0
        %v5726 = vpop.f32.mrf.mxu0
        %v5727 = vadd.f32 0.0, %v5726
        %v5728 = vpop.f32.mrf.mxu0
        %5729 = vmatprep.mubr.bf16.mxu0 0
        %5730 = vmatmul.mubr.bf16.gmra.mxu0 %v5620
        %v5731 = vpop.f32.mrf.mxu0
        %v5732 = vadd.f32 0.0, %v5731
        %v5733 = vpop.f32.mrf.mxu0
        %v5734 = vpop.f32.mrf.mxu0
        %v5735 = vadd.f32 0.0, %v5734
        %v5736 = vpop.f32.mrf.mxu0
        %5737 = vdwg.mxu0
        %v5738 = vadd.f32 %v5590, %v5708
        %v5739 = vadd.f32 %v5591, %v5711
        %v5740 = vadd.f32 %v5592, %v5716
        %v5741 = vadd.f32 %v5593, %v5719
        %v5742 = vadd.f32 %v5594, %v5724
        %v5743 = vadd.f32 %v5595, %v5727
        %v5744 = vadd.f32 %v5596, %v5732
        %v5745 = vadd.f32 %v5597, %v5735
        %v5746 = vunpack.c.h.b16 %v2930
        %v5747 = vpack.c.b16 %v5468, %v5468
        %v5748 = vpack.c.b16 %v5746, %v5746
        %v5750 = vshrl.u32 %v5747, 16
        %v5752 = vrot.slane %v5750, 4
        %v5753 = vshll.u32 %v5747, 16
        %v5755 = vrot.slane %v5753, 5
        %v5756 = vor.u32 %v5752, %v5755
        %v5757 = vrot.slane %v5756, 4
        %v5759 = vshll.u32 %v5748, 16
        %v5761 = vrot.slane %v5759, 5
        %v5762 = vsel %vm4569, %v5757, %v5761
        %s5763 = scalar_lea.vmem [#allocation7], 512
        %v5764 = vld [vmem:[%s5763] sm:$0xf]
        %v5765 = vld [vmem:[%s5763 + $0x4] sm:$0xf]
        %v5766 = vld [vmem:[%s5763 + $0x8] sm:$0xf]
        %v5767 = vld [vmem:[%s5763 + $0xc] sm:$0xf]
        %v5768 = vld [vmem:[%s5763 + $0x10] sm:$0xf]
        %v5769 = vld [vmem:[%s5763 + $0x14] sm:$0xf]
        %v5770 = vld [vmem:[%s5763 + $0x18] sm:$0xf]
        %v5771 = vld [vmem:[%s5763 + $0x1c] sm:$0xf]
        %v5772 = vld [vmem:[%s5763 + $0x20] sm:$0xf]
        %v5773 = vld [vmem:[%s5763 + $0x24] sm:$0xf]
        %v5774 = vld [vmem:[%s5763 + $0x28] sm:$0xf]
        %v5775 = vld [vmem:[%s5763 + $0x2c] sm:$0xf]
        %v5776 = vld [vmem:[%s5763 + $0x30] sm:$0xf]
        %v5777 = vld [vmem:[%s5763 + $0x34] sm:$0xf]
        %v5778 = vld [vmem:[%s5763 + $0x38] sm:$0xf]
        %v5779 = vld [vmem:[%s5763 + $0x3c] sm:$0xf]
        %v5780 = vunpack.c.l.b16 %v5762
        %v5781 = vpack.c.b16 %v4701, %v4700
        %v5782 = vpack.c.b16 %v4703, %v4702
        %v5783 = vpack.c.b16 %v4705, %v4704
        %v5784 = vpack.c.b16 %v5780, %v4706
        %v5805 = vunpack.c.l.b16 %v5764
        %v5806 = vunpack.c.l.b16 %v5765
        %v5807 = vunpack.c.l.b16 %v5766
        %v5808 = vunpack.c.l.b16 %v5767
        %v5809 = vunpack.c.l.b16 %v5768
        %v5810 = vunpack.c.l.b16 %v5769
        %v5811 = vunpack.c.l.b16 %v5770
        %v5812 = vunpack.c.l.b16 %v5771
        %v5813 = vunpack.c.l.b16 %v5772
        %v5814 = vunpack.c.l.b16 %v5773
        %v5815 = vunpack.c.l.b16 %v5774
        %v5816 = vunpack.c.l.b16 %v5775
        %v5817 = vunpack.c.l.b16 %v5776
        %v5818 = vunpack.c.l.b16 %v5777
        %v5819 = vunpack.c.l.b16 %v5778
        %v5820 = vunpack.c.l.b16 %v5779
        %v5821 = vpack.c.b16 %v5806, %v5805
        %v5822 = vpack.c.b16 %v5808, %v5807
        %v5823 = vpack.c.b16 %v5810, %v5809
        %v5824 = vpack.c.b16 %v5812, %v5811
        %v5825 = vpack.c.b16 %v5814, %v5813
        %v5826 = vpack.c.b16 %v5816, %v5815
        %v5827 = vpack.c.b16 %v5818, %v5817
        %v5828 = vpack.c.b16 %v5820, %v5819
        %5837 = vmatprep.subr.bf16.mxu0 0
        %5838 = vmatpush1.bf16.msra.mxu0 %v5828
        %5839 = vmatprep.subr.bf16.mxu0 0
        %5840 = vmatpush1.bf16.msra.mxu0 %v5827
        %5841 = vmatprep.subr.bf16.mxu0 0
        %5842 = vmatpush1.bf16.msra.mxu0 %v5826
        %5843 = vmatprep.subr.bf16.mxu0 0
        %5844 = vmatpush1.bf16.msra.mxu0 %v5825
        %5845 = vmatprep.subr.bf16.mxu0 0
        %5846 = vmatpush1.bf16.msra.mxu0 %v5824
        %5847 = vmatprep.subr.bf16.mxu0 0
        %5848 = vmatpush1.bf16.msra.mxu0 %v5823
        %5849 = vmatprep.subr.bf16.mxu0 0
        %5850 = vmatpush1.bf16.msra.mxu0 %v5822
        %5851 = vmatprep.subr.bf16.mxu0 0
        %5852 = vmatpush1.bf16.msra.mxu0 %v5821
        %5853 = vmatprep.subr.bf16.mxu0 0
        %5854 = vmatpush2.bf16.msra.mxu0 0
        %5855 = vmatprep.subr.bf16.mxu0 0
        %5856 = vmatpush2.bf16.msra.mxu0 0
        %5857 = vmatprep.subr.bf16.mxu0 0
        %5858 = vmatpush2.bf16.msra.mxu0 0
        %5859 = vmatprep.subr.bf16.mxu0 0
        %5860 = vmatpush2.bf16.msra.mxu0 0
        %5861 = vmatprep.subr.bf16.mxu0 0
        %5862 = vmatpush2.bf16.msra.mxu0 0
        %5863 = vmatprep.subr.bf16.mxu0 0
        %5864 = vmatpush2.bf16.msra.mxu0 0
        %5865 = vmatprep.subr.bf16.mxu0 0
        %5866 = vmatpush2.bf16.msra.mxu0 0
        %5867 = vmatprep.subr.bf16.mxu0 0
        %5868 = vmatpush2.bf16.msra.mxu0 0
        %5869 = vmatprep.mubr.bf16.mxu0 0
        %5870 = vmatmul.mubr.bf16.gmra.mxu0 %v5781
        %v5871 = vpop.f32.mrf.mxu0
        %v5872 = vadd.f32 0.0, %v5871
        %v5873 = vpop.f32.mrf.mxu0
        %v5874 = vpop.f32.mrf.mxu0
        %v5875 = vadd.f32 0.0, %v5874
        %v5876 = vpop.f32.mrf.mxu0
        %5877 = vmatprep.mubr.bf16.mxu0 0
        %5878 = vmatmul.mubr.bf16.gmra.mxu0 %v5782
        %v5879 = vpop.f32.mrf.mxu0
        %v5880 = vadd.f32 0.0, %v5879
        %v5881 = vpop.f32.mrf.mxu0
        %v5882 = vpop.f32.mrf.mxu0
        %v5883 = vadd.f32 0.0, %v5882
        %v5884 = vpop.f32.mrf.mxu0
        %5885 = vmatprep.mubr.bf16.mxu0 0
        %5886 = vmatmul.mubr.bf16.gmra.mxu0 %v5783
        %v5887 = vpop.f32.mrf.mxu0
        %v5888 = vadd.f32 0.0, %v5887
        %v5889 = vpop.f32.mrf.mxu0
        %v5890 = vpop.f32.mrf.mxu0
        %v5891 = vadd.f32 0.0, %v5890
        %v5892 = vpop.f32.mrf.mxu0
        %5893 = vmatprep.mubr.bf16.mxu0 0
        %5894 = vmatmul.mubr.bf16.gmra.mxu0 %v5784
        %v5895 = vpop.f32.mrf.mxu0
        %v5896 = vadd.f32 0.0, %v5895
        %v5897 = vpop.f32.mrf.mxu0
        %v5898 = vpop.f32.mrf.mxu0
        %v5899 = vadd.f32 0.0, %v5898
        %v5900 = vpop.f32.mrf.mxu0
        %5901 = vdwg.mxu0
        %v5902 = vadd.f32 %v5738, %v5872
        %v5903 = vadd.f32 %v5739, %v5875
        %v5904 = vadd.f32 %v5740, %v5880
        %v5905 = vadd.f32 %v5741, %v5883
        %v5906 = vadd.f32 %v5742, %v5888
        %v5907 = vadd.f32 %v5743, %v5891
        %v5908 = vadd.f32 %v5744, %v5896
        %v5909 = vadd.f32 %v5745, %v5899
        %v5910 = vld [vmem:[%s5] sm:$0x1]
        %v5912 = vlaneseq
        %v5913 = vshrl.u32 %v5912, 7
        %v5914 = vsub.s32 0, %v5913
        %v5915 = vrot.slane %v5910, %v5914
        %v5917 = vmul.f32 %v5902, %v5915
        %v5918 = vmul.f32 %v5903, %v5915
        %v5919 = vmul.f32 %v5904, %v5915
        %v5920 = vmul.f32 %v5905, %v5915
        %v5921 = vmul.f32 %v5906, %v5915
        %v5922 = vmul.f32 %v5907, %v5915
        %v5923 = vmul.f32 %v5908, %v5915
        %v5924 = vmul.f32 %v5909, %v5915
        %v5925 = vld [vmem:[%s6] sm:$0x1]
        %v5927 = vlaneseq
        %v5928 = vshrl.u32 %v5927, 7
        %v5929 = vsub.s32 0, %v5928
        %v5930 = vrot.slane %v5925, %v5929
        %v5932 = vadd.f32 %v5917, %v5930
        %v5933 = vadd.f32 %v5918, %v5930
        %v5934 = vadd.f32 %v5919, %v5930
        %v5935 = vadd.f32 %v5920, %v5930
        %v5936 = vadd.f32 %v5921, %v5930
        %v5937 = vadd.f32 %v5922, %v5930
        %v5938 = vadd.f32 %v5923, %v5930
        %v5939 = vadd.f32 %v5924, %v5930
        %v5940 = vmax.f32 %v5932, 0.0
        %v5941 = vmax.f32 %v5933, 0.0
        %v5942 = vmax.f32 %v5934, 0.0
        %v5943 = vmax.f32 %v5935, 0.0
        %v5944 = vmax.f32 %v5936, 0.0
        %v5945 = vmax.f32 %v5937, 0.0
        %v5946 = vmax.f32 %v5938, 0.0
        %v5947 = vmax.f32 %v5939, 0.0
        %v5948 = vpack.c.bf16 %v5941, %v5940
        %v5949 = vpack.c.bf16 %v5943, %v5942
        %v5950 = vpack.c.bf16 %v5945, %v5944
        %v5951 = vpack.c.bf16 %v5947, %v5946
        %v5952 = vld [vmem:[#allocation8] sm:$0xf]
        %v5953 = vld [vmem:[#allocation8 + $0x4] sm:$0xf]
        %v5954 = vld [vmem:[#allocation8 + $0x8] sm:$0xf]
        %v5955 = vld [vmem:[#allocation8 + $0xc] sm:$0xf]
        %v5956 = vld [vmem:[#allocation8 + $0x10] sm:$0xf]
        %v5957 = vld [vmem:[#allocation8 + $0x14] sm:$0xf]
        %v5958 = vld [vmem:[#allocation8 + $0x18] sm:$0xf]
        %v5959 = vld [vmem:[#allocation8 + $0x1c] sm:$0xf]
        %v5960 = vld [vmem:[#allocation8 + $0x20] sm:$0xf]
        %v5961 = vld [vmem:[#allocation8 + $0x24] sm:$0xf]
        %v5962 = vld [vmem:[#allocation8 + $0x28] sm:$0xf]
        %v5963 = vld [vmem:[#allocation8 + $0x2c] sm:$0xf]
        %v5964 = vld [vmem:[#allocation8 + $0x30] sm:$0xf]
        %v5965 = vld [vmem:[#allocation8 + $0x34] sm:$0xf]
        %v5966 = vld [vmem:[#allocation8 + $0x38] sm:$0xf]
        %v5967 = vld [vmem:[#allocation8 + $0x3c] sm:$0xf]
        %v5984 = vunpack.c.l.b16 %v5952
        %v5985 = vunpack.c.l.b16 %v5953
        %v5986 = vunpack.c.l.b16 %v5954
        %v5987 = vunpack.c.l.b16 %v5955
        %v5988 = vunpack.c.l.b16 %v5956
        %v5989 = vunpack.c.l.b16 %v5957
        %v5990 = vunpack.c.l.b16 %v5958
        %v5991 = vunpack.c.l.b16 %v5959
        %v5992 = vunpack.c.l.b16 %v5960
        %v5993 = vunpack.c.l.b16 %v5961
        %v5994 = vunpack.c.l.b16 %v5962
        %v5995 = vunpack.c.l.b16 %v5963
        %v5996 = vunpack.c.l.b16 %v5964
        %v5997 = vunpack.c.l.b16 %v5965
        %v5998 = vunpack.c.l.b16 %v5966
        %v5999 = vunpack.c.l.b16 %v5967
        %v6000 = vpack.c.b16 %v5985, %v5984
        %v6001 = vpack.c.b16 %v5987, %v5986
        %v6002 = vpack.c.b16 %v5989, %v5988
        %v6003 = vpack.c.b16 %v5991, %v5990
        %v6004 = vpack.c.b16 %v5993, %v5992
        %v6005 = vpack.c.b16 %v5995, %v5994
        %v6006 = vpack.c.b16 %v5997, %v5996
        %v6007 = vpack.c.b16 %v5999, %v5998
        %6016 = vmatprep.subr.bf16.mxu0 0
        %6017 = vmatpush1.bf16.msra.mxu0 %v6007
        %6018 = vmatprep.subr.bf16.mxu0 0
        %6019 = vmatpush1.bf16.msra.mxu0 %v6006
        %6020 = vmatprep.subr.bf16.mxu0 0
        %6021 = vmatpush1.bf16.msra.mxu0 %v6005
        %6022 = vmatprep.subr.bf16.mxu0 0
        %6023 = vmatpush1.bf16.msra.mxu0 %v6004
        %6024 = vmatprep.subr.bf16.mxu0 0
        %6025 = vmatpush1.bf16.msra.mxu0 %v6003
        %6026 = vmatprep.subr.bf16.mxu0 0
        %6027 = vmatpush1.bf16.msra.mxu0 %v6002
        %6028 = vmatprep.subr.bf16.mxu0 0
        %6029 = vmatpush1.bf16.msra.mxu0 %v6001
        %6030 = vmatprep.subr.bf16.mxu0 0
        %6031 = vmatpush1.bf16.msra.mxu0 %v6000
        %6032 = vmatprep.subr.bf16.mxu0 0
        %6033 = vmatpush2.bf16.msra.mxu0 0
        %6034 = vmatprep.subr.bf16.mxu0 0
        %6035 = vmatpush2.bf16.msra.mxu0 0
        %6036 = vmatprep.subr.bf16.mxu0 0
        %6037 = vmatpush2.bf16.msra.mxu0 0
        %6038 = vmatprep.subr.bf16.mxu0 0
        %6039 = vmatpush2.bf16.msra.mxu0 0
        %6040 = vmatprep.subr.bf16.mxu0 0
        %6041 = vmatpush2.bf16.msra.mxu0 0
        %6042 = vmatprep.subr.bf16.mxu0 0
        %6043 = vmatpush2.bf16.msra.mxu0 0
        %6044 = vmatprep.subr.bf16.mxu0 0
        %6045 = vmatpush2.bf16.msra.mxu0 0
        %6046 = vmatprep.subr.bf16.mxu0 0
        %6047 = vmatpush2.bf16.msra.mxu0 0
        %6048 = vmatprep.mubr.bf16.mxu0 0
        %6049 = vmatmul.mubr.bf16.gmra.mxu0 %v5948
        %v6050 = vpop.f32.mrf.mxu0
        %v6051 = vadd.f32 0.0, %v6050
        %v6052 = vpop.f32.mrf.mxu0
        %v6053 = vpop.f32.mrf.mxu0
        %v6054 = vadd.f32 0.0, %v6053
        %v6055 = vpop.f32.mrf.mxu0
        %6056 = vmatprep.mubr.bf16.mxu0 0
        %6057 = vmatmul.mubr.bf16.gmra.mxu0 %v5949
        %v6058 = vpop.f32.mrf.mxu0
        %v6059 = vadd.f32 0.0, %v6058
        %v6060 = vpop.f32.mrf.mxu0
        %v6061 = vpop.f32.mrf.mxu0
        %v6062 = vadd.f32 0.0, %v6061
        %v6063 = vpop.f32.mrf.mxu0
        %6064 = vmatprep.mubr.bf16.mxu0 0
        %6065 = vmatmul.mubr.bf16.gmra.mxu0 %v5950
        %v6066 = vpop.f32.mrf.mxu0
        %v6067 = vadd.f32 0.0, %v6066
        %v6068 = vpop.f32.mrf.mxu0
        %v6069 = vpop.f32.mrf.mxu0
        %v6070 = vadd.f32 0.0, %v6069
        %v6071 = vpop.f32.mrf.mxu0
        %6072 = vmatprep.mubr.bf16.mxu0 0
        %6073 = vmatmul.mubr.bf16.gmra.mxu0 %v5951
        %v6074 = vpop.f32.mrf.mxu0
        %v6075 = vadd.f32 0.0, %v6074
        %v6076 = vpop.f32.mrf.mxu0
        %v6077 = vpop.f32.mrf.mxu0
        %v6078 = vadd.f32 0.0, %v6077
        %v6079 = vpop.f32.mrf.mxu0
        %6080 = vdwg.mxu0
        %v6081 = vld [vmem:[%s8] sm:$0x1]
        %v6083 = vlaneseq
        %v6084 = vshrl.u32 %v6083, 7
        %v6085 = vsub.s32 0, %v6084
        %v6086 = vrot.slane %v6081, %v6085
        %v6088 = vmul.f32 %v6051, %v6086
        %v6089 = vmul.f32 %v6054, %v6086
        %v6090 = vmul.f32 %v6059, %v6086
        %v6091 = vmul.f32 %v6062, %v6086
        %v6092 = vmul.f32 %v6067, %v6086
        %v6093 = vmul.f32 %v6070, %v6086
        %v6094 = vmul.f32 %v6075, %v6086
        %v6095 = vmul.f32 %v6078, %v6086
        %v6096 = vld [vmem:[%s9] sm:$0x1]
        %v6098 = vlaneseq
        %v6099 = vshrl.u32 %v6098, 7
        %v6100 = vsub.s32 0, %v6099
        %v6101 = vrot.slane %v6096, %v6100
        %v6103 = vadd.f32 %v6088, %v6101
        %v6104 = vadd.f32 %v6089, %v6101
        %v6105 = vadd.f32 %v6090, %v6101
        %v6106 = vadd.f32 %v6091, %v6101
        %v6107 = vadd.f32 %v6092, %v6101
        %v6108 = vadd.f32 %v6093, %v6101
        %v6109 = vadd.f32 %v6094, %v6101
        %v6110 = vadd.f32 %v6095, %v6101
        %v6112 = vunpack.c.l.s4 1966171168
        %v6113 = vunpack.c.0.s8 %v6112
        %v6114 = vlaneseq
        %v6115 = vshrl.u32 %v6114, 7
        %v6116 = vsub.s32 %v6113, %v6115
        %v6117 = vrot.slane %v504, %v6116
        %v6118 = vcombine.high %v6117, %v6117
        %v6120 = vunpack.c.l.s4 1966171168
        %v6121 = vunpack.c.0.s8 %v6120
        %v6122 = vlaneseq
        %v6123 = vshrl.u32 %v6122, 7
        %v6124 = vsub.s32 %v6121, %v6123
        %v6125 = vrot.slane %v6117, %v6124
        %v6127 = vunpack.c.l.s4 1966171168
        %v6128 = vunpack.c.0.s8 %v6127
        %v6129 = vlaneseq
        %v6130 = vshrl.u32 %v6129, 7
        %v6131 = vsub.s32 %v6128, %v6130
        %v6132 = vrot.slane %v6118, %v6131
        %v6133 = vcombine.high %v6125, %v6125
        %v6134 = vcombine.high %v6132, %v6132
        %v6136 = vunpack.c.l.s4 1966171168
        %v6137 = vunpack.c.0.s8 %v6136
        %v6138 = vlaneseq
        %v6139 = vshrl.u32 %v6138, 7
        %v6140 = vsub.s32 %v6137, %v6139
        %v6141 = vrot.slane %v505, %v6140
        %v6142 = vcombine.high %v6141, %v6141
        %v6144 = vunpack.c.l.s4 1966171168
        %v6145 = vunpack.c.0.s8 %v6144
        %v6146 = vlaneseq
        %v6147 = vshrl.u32 %v6146, 7
        %v6148 = vsub.s32 %v6145, %v6147
        %v6149 = vrot.slane %v6141, %v6148
        %v6151 = vunpack.c.l.s4 1966171168
        %v6152 = vunpack.c.0.s8 %v6151
        %v6153 = vlaneseq
        %v6154 = vshrl.u32 %v6153, 7
        %v6155 = vsub.s32 %v6152, %v6154
        %v6156 = vrot.slane %v6142, %v6155
        %v6157 = vcombine.high %v6149, %v6149
        %v6158 = vcombine.high %v6156, %v6156
        %v6160 = vunpack.c.l.s4 1966171168
        %v6161 = vunpack.c.0.s8 %v6160
        %v6162 = vlaneseq
        %v6163 = vshrl.u32 %v6162, 7
        %v6164 = vsub.s32 %v6161, %v6163
        %v6165 = vrot.slane %v508, %v6164
        %v6166 = vcombine.high %v6165, %v6165
        %v6168 = vunpack.c.l.s4 1966171168
        %v6169 = vunpack.c.0.s8 %v6168
        %v6170 = vlaneseq
        %v6171 = vshrl.u32 %v6170, 7
        %v6172 = vsub.s32 %v6169, %v6171
        %v6173 = vrot.slane %v6165, %v6172
        %v6175 = vunpack.c.l.s4 1966171168
        %v6176 = vunpack.c.0.s8 %v6175
        %v6177 = vlaneseq
        %v6178 = vshrl.u32 %v6177, 7
        %v6179 = vsub.s32 %v6176, %v6178
        %v6180 = vrot.slane %v6166, %v6179
        %v6181 = vcombine.high %v6173, %v6173
        %v6182 = vcombine.high %v6180, %v6180
        %v6184 = vunpack.c.l.s4 1966171168
        %v6185 = vunpack.c.0.s8 %v6184
        %v6186 = vlaneseq
        %v6187 = vshrl.u32 %v6186, 7
        %v6188 = vsub.s32 %v6185, %v6187
        %v6189 = vrot.slane %v509, %v6188
        %v6190 = vcombine.high %v6189, %v6189
        %v6192 = vunpack.c.l.s4 1966171168
        %v6193 = vunpack.c.0.s8 %v6192
        %v6194 = vlaneseq
        %v6195 = vshrl.u32 %v6194, 7
        %v6196 = vsub.s32 %v6193, %v6195
        %v6197 = vrot.slane %v6189, %v6196
        %v6199 = vunpack.c.l.s4 1966171168
        %v6200 = vunpack.c.0.s8 %v6199
        %v6201 = vlaneseq
        %v6202 = vshrl.u32 %v6201, 7
        %v6203 = vsub.s32 %v6200, %v6202
        %v6204 = vrot.slane %v6190, %v6203
        %v6205 = vcombine.high %v6197, %v6197
        %v6206 = vcombine.high %v6204, %v6204
        %v6208 = vunpack.c.l.s4 1966171168
        %v6209 = vunpack.c.0.s8 %v6208
        %v6210 = vlaneseq
        %v6211 = vshrl.u32 %v6210, 7
        %v6212 = vsub.s32 %v6209, %v6211
        %v6213 = vrot.slane %v512, %v6212
        %v6214 = vcombine.high %v6213, %v6213
        %v6216 = vunpack.c.l.s4 1966171168
        %v6217 = vunpack.c.0.s8 %v6216
        %v6218 = vlaneseq
        %v6219 = vshrl.u32 %v6218, 7
        %v6220 = vsub.s32 %v6217, %v6219
        %v6221 = vrot.slane %v6213, %v6220
        %v6223 = vunpack.c.l.s4 1966171168
        %v6224 = vunpack.c.0.s8 %v6223
        %v6225 = vlaneseq
        %v6226 = vshrl.u32 %v6225, 7
        %v6227 = vsub.s32 %v6224, %v6226
        %v6228 = vrot.slane %v6214, %v6227
        %v6229 = vcombine.high %v6221, %v6221
        %v6230 = vcombine.high %v6228, %v6228
        %v6232 = vunpack.c.l.s4 1966171168
        %v6233 = vunpack.c.0.s8 %v6232
        %v6234 = vlaneseq
        %v6235 = vshrl.u32 %v6234, 7
        %v6236 = vsub.s32 %v6233, %v6235
        %v6237 = vrot.slane %v513, %v6236
        %v6238 = vcombine.high %v6237, %v6237
        %v6240 = vunpack.c.l.s4 1966171168
        %v6241 = vunpack.c.0.s8 %v6240
        %v6242 = vlaneseq
        %v6243 = vshrl.u32 %v6242, 7
        %v6244 = vsub.s32 %v6241, %v6243
        %v6245 = vrot.slane %v6237, %v6244
        %v6247 = vunpack.c.l.s4 1966171168
        %v6248 = vunpack.c.0.s8 %v6247
        %v6249 = vlaneseq
        %v6250 = vshrl.u32 %v6249, 7
        %v6251 = vsub.s32 %v6248, %v6250
        %v6252 = vrot.slane %v6238, %v6251
        %v6253 = vcombine.high %v6245, %v6245
        %v6254 = vcombine.high %v6252, %v6252
        %v6256 = vunpack.c.l.s4 1966171168
        %v6257 = vunpack.c.0.s8 %v6256
        %v6258 = vlaneseq
        %v6259 = vshrl.u32 %v6258, 7
        %v6260 = vsub.s32 %v6257, %v6259
        %v6261 = vrot.slane %v516, %v6260
        %v6262 = vcombine.high %v6261, %v6261
        %v6264 = vunpack.c.l.s4 1966171168
        %v6265 = vunpack.c.0.s8 %v6264
        %v6266 = vlaneseq
        %v6267 = vshrl.u32 %v6266, 7
        %v6268 = vsub.s32 %v6265, %v6267
        %v6269 = vrot.slane %v6261, %v6268
        %v6271 = vunpack.c.l.s4 1966171168
        %v6272 = vunpack.c.0.s8 %v6271
        %v6273 = vlaneseq
        %v6274 = vshrl.u32 %v6273, 7
        %v6275 = vsub.s32 %v6272, %v6274
        %v6276 = vrot.slane %v6262, %v6275
        %v6277 = vcombine.high %v6269, %v6269
        %v6278 = vcombine.high %v6276, %v6276
        %v6280 = vunpack.c.l.s4 1966171168
        %v6281 = vunpack.c.0.s8 %v6280
        %v6282 = vlaneseq
        %v6283 = vshrl.u32 %v6282, 7
        %v6284 = vsub.s32 %v6281, %v6283
        %v6285 = vrot.slane %v517, %v6284
        %v6286 = vcombine.high %v6285, %v6285
        %v6288 = vunpack.c.l.s4 1966171168
        %v6289 = vunpack.c.0.s8 %v6288
        %v6290 = vlaneseq
        %v6291 = vshrl.u32 %v6290, 7
        %v6292 = vsub.s32 %v6289, %v6291
        %v6293 = vrot.slane %v6285, %v6292
        %v6295 = vunpack.c.l.s4 1966171168
        %v6296 = vunpack.c.0.s8 %v6295
        %v6297 = vlaneseq
        %v6298 = vshrl.u32 %v6297, 7
        %v6299 = vsub.s32 %v6296, %v6298
        %v6300 = vrot.slane %v6286, %v6299
        %v6301 = vcombine.high %v6293, %v6293
        %v6302 = vcombine.high %v6300, %v6300
        %v6304 = vunpack.c.l.s4 1966171168
        %v6305 = vunpack.c.0.s8 %v6304
        %v6306 = vlaneseq
        %v6307 = vshrl.u32 %v6306, 7
        %v6308 = vsub.s32 %v6305, %v6307
        %v6309 = vrot.slane %v520, %v6308
        %v6310 = vcombine.high %v6309, %v6309
        %v6312 = vunpack.c.l.s4 1966171168
        %v6313 = vunpack.c.0.s8 %v6312
        %v6314 = vlaneseq
        %v6315 = vshrl.u32 %v6314, 7
        %v6316 = vsub.s32 %v6313, %v6315
        %v6317 = vrot.slane %v6309, %v6316
        %v6319 = vunpack.c.l.s4 1966171168
        %v6320 = vunpack.c.0.s8 %v6319
        %v6321 = vlaneseq
        %v6322 = vshrl.u32 %v6321, 7
        %v6323 = vsub.s32 %v6320, %v6322
        %v6324 = vrot.slane %v6310, %v6323
        %v6325 = vcombine.high %v6317, %v6317
        %v6326 = vcombine.high %v6324, %v6324
        %v6328 = vunpack.c.l.s4 1966171168
        %v6329 = vunpack.c.0.s8 %v6328
        %v6330 = vlaneseq
        %v6331 = vshrl.u32 %v6330, 7
        %v6332 = vsub.s32 %v6329, %v6331
        %v6333 = vrot.slane %v521, %v6332
        %v6334 = vcombine.high %v6333, %v6333
        %v6336 = vunpack.c.l.s4 1966171168
        %v6337 = vunpack.c.0.s8 %v6336
        %v6338 = vlaneseq
        %v6339 = vshrl.u32 %v6338, 7
        %v6340 = vsub.s32 %v6337, %v6339
        %v6341 = vrot.slane %v6333, %v6340
        %v6343 = vunpack.c.l.s4 1966171168
        %v6344 = vunpack.c.0.s8 %v6343
        %v6345 = vlaneseq
        %v6346 = vshrl.u32 %v6345, 7
        %v6347 = vsub.s32 %v6344, %v6346
        %v6348 = vrot.slane %v6334, %v6347
        %v6349 = vcombine.high %v6341, %v6341
        %v6350 = vcombine.high %v6348, %v6348
        %v6352 = vunpack.c.l.s4 1966171168
        %v6353 = vunpack.c.0.s8 %v6352
        %v6354 = vlaneseq
        %v6355 = vshrl.u32 %v6354, 7
        %v6356 = vsub.s32 %v6353, %v6355
        %v6357 = vrot.slane %v524, %v6356
        %v6358 = vcombine.high %v6357, %v6357
        %v6360 = vunpack.c.l.s4 1966171168
        %v6361 = vunpack.c.0.s8 %v6360
        %v6362 = vlaneseq
        %v6363 = vshrl.u32 %v6362, 7
        %v6364 = vsub.s32 %v6361, %v6363
        %v6365 = vrot.slane %v6357, %v6364
        %v6367 = vunpack.c.l.s4 1966171168
        %v6368 = vunpack.c.0.s8 %v6367
        %v6369 = vlaneseq
        %v6370 = vshrl.u32 %v6369, 7
        %v6371 = vsub.s32 %v6368, %v6370
        %v6372 = vrot.slane %v6358, %v6371
        %v6373 = vcombine.high %v6365, %v6365
        %v6374 = vcombine.high %v6372, %v6372
        %v6376 = vunpack.c.l.s4 1966171168
        %v6377 = vunpack.c.0.s8 %v6376
        %v6378 = vlaneseq
        %v6379 = vshrl.u32 %v6378, 7
        %v6380 = vsub.s32 %v6377, %v6379
        %v6381 = vrot.slane %v525, %v6380
        %v6382 = vcombine.high %v6381, %v6381
        %v6384 = vunpack.c.l.s4 1966171168
        %v6385 = vunpack.c.0.s8 %v6384
        %v6386 = vlaneseq
        %v6387 = vshrl.u32 %v6386, 7
        %v6388 = vsub.s32 %v6385, %v6387
        %v6389 = vrot.slane %v6381, %v6388
        %v6391 = vunpack.c.l.s4 1966171168
        %v6392 = vunpack.c.0.s8 %v6391
        %v6393 = vlaneseq
        %v6394 = vshrl.u32 %v6393, 7
        %v6395 = vsub.s32 %v6392, %v6394
        %v6396 = vrot.slane %v6382, %v6395
        %v6397 = vcombine.high %v6389, %v6389
        %v6398 = vcombine.high %v6396, %v6396
        %v6400 = vunpack.c.l.s4 1966171168
        %v6401 = vunpack.c.0.s8 %v6400
        %v6402 = vlaneseq
        %v6403 = vshrl.u32 %v6402, 7
        %v6404 = vsub.s32 %v6401, %v6403
        %v6405 = vrot.slane %v528, %v6404
        %v6406 = vcombine.high %v6405, %v6405
        %v6408 = vunpack.c.l.s4 1966171168
        %v6409 = vunpack.c.0.s8 %v6408
        %v6410 = vlaneseq
        %v6411 = vshrl.u32 %v6410, 7
        %v6412 = vsub.s32 %v6409, %v6411
        %v6413 = vrot.slane %v6405, %v6412
        %v6415 = vunpack.c.l.s4 1966171168
        %v6416 = vunpack.c.0.s8 %v6415
        %v6417 = vlaneseq
        %v6418 = vshrl.u32 %v6417, 7
        %v6419 = vsub.s32 %v6416, %v6418
        %v6420 = vrot.slane %v6406, %v6419
        %v6421 = vcombine.high %v6413, %v6413
        %v6422 = vcombine.high %v6420, %v6420
        %v6424 = vunpack.c.l.s4 1966171168
        %v6425 = vunpack.c.0.s8 %v6424
        %v6426 = vlaneseq
        %v6427 = vshrl.u32 %v6426, 7
        %v6428 = vsub.s32 %v6425, %v6427
        %v6429 = vrot.slane %v529, %v6428
        %v6430 = vcombine.high %v6429, %v6429
        %v6432 = vunpack.c.l.s4 1966171168
        %v6433 = vunpack.c.0.s8 %v6432
        %v6434 = vlaneseq
        %v6435 = vshrl.u32 %v6434, 7
        %v6436 = vsub.s32 %v6433, %v6435
        %v6437 = vrot.slane %v6429, %v6436
        %v6439 = vunpack.c.l.s4 1966171168
        %v6440 = vunpack.c.0.s8 %v6439
        %v6441 = vlaneseq
        %v6442 = vshrl.u32 %v6441, 7
        %v6443 = vsub.s32 %v6440, %v6442
        %v6444 = vrot.slane %v6430, %v6443
        %v6445 = vcombine.high %v6437, %v6437
        %v6446 = vcombine.high %v6444, %v6444
        %v6448 = vunpack.c.l.s4 1966171168
        %v6449 = vunpack.c.0.s8 %v6448
        %v6450 = vlaneseq
        %v6451 = vshrl.u32 %v6450, 7
        %v6452 = vsub.s32 %v6449, %v6451
        %v6453 = vrot.slane %v532, %v6452
        %v6454 = vcombine.high %v6453, %v6453
        %v6456 = vunpack.c.l.s4 1966171168
        %v6457 = vunpack.c.0.s8 %v6456
        %v6458 = vlaneseq
        %v6459 = vshrl.u32 %v6458, 7
        %v6460 = vsub.s32 %v6457, %v6459
        %v6461 = vrot.slane %v6453, %v6460
        %v6463 = vunpack.c.l.s4 1966171168
        %v6464 = vunpack.c.0.s8 %v6463
        %v6465 = vlaneseq
        %v6466 = vshrl.u32 %v6465, 7
        %v6467 = vsub.s32 %v6464, %v6466
        %v6468 = vrot.slane %v6454, %v6467
        %v6469 = vcombine.high %v6461, %v6461
        %v6470 = vcombine.high %v6468, %v6468
        %v6472 = vunpack.c.l.s4 1966171168
        %v6473 = vunpack.c.0.s8 %v6472
        %v6474 = vlaneseq
        %v6475 = vshrl.u32 %v6474, 7
        %v6476 = vsub.s32 %v6473, %v6475
        %v6477 = vrot.slane %v533, %v6476
        %v6478 = vcombine.high %v6477, %v6477
        %v6480 = vunpack.c.l.s4 1966171168
        %v6481 = vunpack.c.0.s8 %v6480
        %v6482 = vlaneseq
        %v6483 = vshrl.u32 %v6482, 7
        %v6484 = vsub.s32 %v6481, %v6483
        %v6485 = vrot.slane %v6477, %v6484
        %v6487 = vunpack.c.l.s4 1966171168
        %v6488 = vunpack.c.0.s8 %v6487
        %v6489 = vlaneseq
        %v6490 = vshrl.u32 %v6489, 7
        %v6491 = vsub.s32 %v6488, %v6490
        %v6492 = vrot.slane %v6478, %v6491
        %v6493 = vcombine.high %v6485, %v6485
        %v6494 = vcombine.high %v6492, %v6492
        %v6495 = vld [vmem:[%s10] sm:$0xf]
        %v6496 = vld [vmem:[%s10 + $0x4] sm:$0xf]
        %v6498 = vunpack.c.l.s4 1966171168
        %v6499 = vunpack.c.0.s8 %v6498
        %v6500 = vlaneseq
        %v6501 = vshrl.u32 %v6500, 7
        %v6502 = vsub.s32 %v6499, %v6501
        %v6503 = vrot.slane %v6125, %v6502
        %v6505 = vunpack.c.l.s4 1966171168
        %v6506 = vunpack.c.0.s8 %v6505
        %v6507 = vlaneseq
        %v6508 = vshrl.u32 %v6507, 7
        %v6509 = vsub.s32 %v6506, %v6508
        %v6510 = vrot.slane %v6503, %v6509
        %v6512 = vunpack.c.l.s4 1966171168
        %v6513 = vunpack.c.0.s8 %v6512
        %v6514 = vlaneseq
        %v6515 = vshrl.u32 %v6514, 7
        %v6516 = vsub.s32 %v6513, %v6515
        %v6517 = vrot.slane %v6132, %v6516
        %v6519 = vunpack.c.l.s4 1966171168
        %v6520 = vunpack.c.0.s8 %v6519
        %v6521 = vlaneseq
        %v6522 = vshrl.u32 %v6521, 7
        %v6523 = vsub.s32 %v6520, %v6522
        %v6524 = vrot.slane %v6517, %v6523
        %v6526 = vunpack.c.l.s4 1966171168
        %v6527 = vunpack.c.0.s8 %v6526
        %v6528 = vlaneseq
        %v6529 = vshrl.u32 %v6528, 7
        %v6530 = vsub.s32 %v6527, %v6529
        %v6531 = vrot.slane %v6133, %v6530
        %v6533 = vunpack.c.l.s4 1966171168
        %v6534 = vunpack.c.0.s8 %v6533
        %v6535 = vlaneseq
        %v6536 = vshrl.u32 %v6535, 7
        %v6537 = vsub.s32 %v6534, %v6536
        %v6538 = vrot.slane %v6531, %v6537
        %v6540 = vunpack.c.l.s4 1966171168
        %v6541 = vunpack.c.0.s8 %v6540
        %v6542 = vlaneseq
        %v6543 = vshrl.u32 %v6542, 7
        %v6544 = vsub.s32 %v6541, %v6543
        %v6545 = vrot.slane %v6134, %v6544
        %v6547 = vunpack.c.l.s4 1966171168
        %v6548 = vunpack.c.0.s8 %v6547
        %v6549 = vlaneseq
        %v6550 = vshrl.u32 %v6549, 7
        %v6551 = vsub.s32 %v6548, %v6550
        %v6552 = vrot.slane %v6545, %v6551
        %v6554 = vunpack.c.l.s4 1966171168
        %v6555 = vunpack.c.0.s8 %v6554
        %v6556 = vlaneseq
        %v6557 = vshrl.u32 %v6556, 7
        %v6558 = vsub.s32 %v6555, %v6557
        %v6559 = vrot.slane %v6149, %v6558
        %v6561 = vunpack.c.l.s4 1966171168
        %v6562 = vunpack.c.0.s8 %v6561
        %v6563 = vlaneseq
        %v6564 = vshrl.u32 %v6563, 7
        %v6565 = vsub.s32 %v6562, %v6564
        %v6566 = vrot.slane %v6559, %v6565
        %v6568 = vunpack.c.l.s4 1966171168
        %v6569 = vunpack.c.0.s8 %v6568
        %v6570 = vlaneseq
        %v6571 = vshrl.u32 %v6570, 7
        %v6572 = vsub.s32 %v6569, %v6571
        %v6573 = vrot.slane %v6156, %v6572
        %v6575 = vunpack.c.l.s4 1966171168
        %v6576 = vunpack.c.0.s8 %v6575
        %v6577 = vlaneseq
        %v6578 = vshrl.u32 %v6577, 7
        %v6579 = vsub.s32 %v6576, %v6578
        %v6580 = vrot.slane %v6573, %v6579
        %v6582 = vunpack.c.l.s4 1966171168
        %v6583 = vunpack.c.0.s8 %v6582
        %v6584 = vlaneseq
        %v6585 = vshrl.u32 %v6584, 7
        %v6586 = vsub.s32 %v6583, %v6585
        %v6587 = vrot.slane %v6157, %v6586
        %v6589 = vunpack.c.l.s4 1966171168
        %v6590 = vunpack.c.0.s8 %v6589
        %v6591 = vlaneseq
        %v6592 = vshrl.u32 %v6591, 7
        %v6593 = vsub.s32 %v6590, %v6592
        %v6594 = vrot.slane %v6587, %v6593
        %v6596 = vunpack.c.l.s4 1966171168
        %v6597 = vunpack.c.0.s8 %v6596
        %v6598 = vlaneseq
        %v6599 = vshrl.u32 %v6598, 7
        %v6600 = vsub.s32 %v6597, %v6599
        %v6601 = vrot.slane %v6158, %v6600
        %v6603 = vunpack.c.l.s4 1966171168
        %v6604 = vunpack.c.0.s8 %v6603
        %v6605 = vlaneseq
        %v6606 = vshrl.u32 %v6605, 7
        %v6607 = vsub.s32 %v6604, %v6606
        %v6608 = vrot.slane %v6601, %v6607
        %v6610 = vunpack.c.l.s4 1966171168
        %v6611 = vunpack.c.0.s8 %v6610
        %v6612 = vlaneseq
        %v6613 = vshrl.u32 %v6612, 7
        %v6614 = vsub.s32 %v6611, %v6613
        %v6615 = vrot.slane %v6173, %v6614
        %v6617 = vunpack.c.l.s4 1966171168
        %v6618 = vunpack.c.0.s8 %v6617
        %v6619 = vlaneseq
        %v6620 = vshrl.u32 %v6619, 7
        %v6621 = vsub.s32 %v6618, %v6620
        %v6622 = vrot.slane %v6615, %v6621
        %v6624 = vunpack.c.l.s4 1966171168
        %v6625 = vunpack.c.0.s8 %v6624
        %v6626 = vlaneseq
        %v6627 = vshrl.u32 %v6626, 7
        %v6628 = vsub.s32 %v6625, %v6627
        %v6629 = vrot.slane %v6180, %v6628
        %v6631 = vunpack.c.l.s4 1966171168
        %v6632 = vunpack.c.0.s8 %v6631
        %v6633 = vlaneseq
        %v6634 = vshrl.u32 %v6633, 7
        %v6635 = vsub.s32 %v6632, %v6634
        %v6636 = vrot.slane %v6629, %v6635
        %v6638 = vunpack.c.l.s4 1966171168
        %v6639 = vunpack.c.0.s8 %v6638
        %v6640 = vlaneseq
        %v6641 = vshrl.u32 %v6640, 7
        %v6642 = vsub.s32 %v6639, %v6641
        %v6643 = vrot.slane %v6181, %v6642
        %v6645 = vunpack.c.l.s4 1966171168
        %v6646 = vunpack.c.0.s8 %v6645
        %v6647 = vlaneseq
        %v6648 = vshrl.u32 %v6647, 7
        %v6649 = vsub.s32 %v6646, %v6648
        %v6650 = vrot.slane %v6643, %v6649
        %v6652 = vunpack.c.l.s4 1966171168
        %v6653 = vunpack.c.0.s8 %v6652
        %v6654 = vlaneseq
        %v6655 = vshrl.u32 %v6654, 7
        %v6656 = vsub.s32 %v6653, %v6655
        %v6657 = vrot.slane %v6182, %v6656
        %v6659 = vunpack.c.l.s4 1966171168
        %v6660 = vunpack.c.0.s8 %v6659
        %v6661 = vlaneseq
        %v6662 = vshrl.u32 %v6661, 7
        %v6663 = vsub.s32 %v6660, %v6662
        %v6664 = vrot.slane %v6657, %v6663
        %v6666 = vunpack.c.l.s4 1966171168
        %v6667 = vunpack.c.0.s8 %v6666
        %v6668 = vlaneseq
        %v6669 = vshrl.u32 %v6668, 7
        %v6670 = vsub.s32 %v6667, %v6669
        %v6671 = vrot.slane %v6197, %v6670
        %v6673 = vunpack.c.l.s4 1966171168
        %v6674 = vunpack.c.0.s8 %v6673
        %v6675 = vlaneseq
        %v6676 = vshrl.u32 %v6675, 7
        %v6677 = vsub.s32 %v6674, %v6676
        %v6678 = vrot.slane %v6671, %v6677
        %v6680 = vunpack.c.l.s4 1966171168
        %v6681 = vunpack.c.0.s8 %v6680
        %v6682 = vlaneseq
        %v6683 = vshrl.u32 %v6682, 7
        %v6684 = vsub.s32 %v6681, %v6683
        %v6685 = vrot.slane %v6204, %v6684
        %v6687 = vunpack.c.l.s4 1966171168
        %v6688 = vunpack.c.0.s8 %v6687
        %v6689 = vlaneseq
        %v6690 = vshrl.u32 %v6689, 7
        %v6691 = vsub.s32 %v6688, %v6690
        %v6692 = vrot.slane %v6685, %v6691
        %v6694 = vunpack.c.l.s4 1966171168
        %v6695 = vunpack.c.0.s8 %v6694
        %v6696 = vlaneseq
        %v6697 = vshrl.u32 %v6696, 7
        %v6698 = vsub.s32 %v6695, %v6697
        %v6699 = vrot.slane %v6205, %v6698
        %v6701 = vunpack.c.l.s4 1966171168
        %v6702 = vunpack.c.0.s8 %v6701
        %v6703 = vlaneseq
        %v6704 = vshrl.u32 %v6703, 7
        %v6705 = vsub.s32 %v6702, %v6704
        %v6706 = vrot.slane %v6699, %v6705
        %v6708 = vunpack.c.l.s4 1966171168
        %v6709 = vunpack.c.0.s8 %v6708
        %v6710 = vlaneseq
        %v6711 = vshrl.u32 %v6710, 7
        %v6712 = vsub.s32 %v6709, %v6711
        %v6713 = vrot.slane %v6206, %v6712
        %v6715 = vunpack.c.l.s4 1966171168
        %v6716 = vunpack.c.0.s8 %v6715
        %v6717 = vlaneseq
        %v6718 = vshrl.u32 %v6717, 7
        %v6719 = vsub.s32 %v6716, %v6718
        %v6720 = vrot.slane %v6713, %v6719
        %v6722 = vunpack.c.l.s4 1966171168
        %v6723 = vunpack.c.0.s8 %v6722
        %v6724 = vlaneseq
        %v6725 = vshrl.u32 %v6724, 7
        %v6726 = vsub.s32 %v6723, %v6725
        %v6727 = vrot.slane %v6221, %v6726
        %v6729 = vunpack.c.l.s4 1966171168
        %v6730 = vunpack.c.0.s8 %v6729
        %v6731 = vlaneseq
        %v6732 = vshrl.u32 %v6731, 7
        %v6733 = vsub.s32 %v6730, %v6732
        %v6734 = vrot.slane %v6727, %v6733
        %v6736 = vunpack.c.l.s4 1966171168
        %v6737 = vunpack.c.0.s8 %v6736
        %v6738 = vlaneseq
        %v6739 = vshrl.u32 %v6738, 7
        %v6740 = vsub.s32 %v6737, %v6739
        %v6741 = vrot.slane %v6228, %v6740
        %v6743 = vunpack.c.l.s4 1966171168
        %v6744 = vunpack.c.0.s8 %v6743
        %v6745 = vlaneseq
        %v6746 = vshrl.u32 %v6745, 7
        %v6747 = vsub.s32 %v6744, %v6746
        %v6748 = vrot.slane %v6741, %v6747
        %v6750 = vunpack.c.l.s4 1966171168
        %v6751 = vunpack.c.0.s8 %v6750
        %v6752 = vlaneseq
        %v6753 = vshrl.u32 %v6752, 7
        %v6754 = vsub.s32 %v6751, %v6753
        %v6755 = vrot.slane %v6229, %v6754
        %v6757 = vunpack.c.l.s4 1966171168
        %v6758 = vunpack.c.0.s8 %v6757
        %v6759 = vlaneseq
        %v6760 = vshrl.u32 %v6759, 7
        %v6761 = vsub.s32 %v6758, %v6760
        %v6762 = vrot.slane %v6755, %v6761
        %v6764 = vunpack.c.l.s4 1966171168
        %v6765 = vunpack.c.0.s8 %v6764
        %v6766 = vlaneseq
        %v6767 = vshrl.u32 %v6766, 7
        %v6768 = vsub.s32 %v6765, %v6767
        %v6769 = vrot.slane %v6230, %v6768
        %v6771 = vunpack.c.l.s4 1966171168
        %v6772 = vunpack.c.0.s8 %v6771
        %v6773 = vlaneseq
        %v6774 = vshrl.u32 %v6773, 7
        %v6775 = vsub.s32 %v6772, %v6774
        %v6776 = vrot.slane %v6769, %v6775
        %v6778 = vunpack.c.l.s4 1966171168
        %v6779 = vunpack.c.0.s8 %v6778
        %v6780 = vlaneseq
        %v6781 = vshrl.u32 %v6780, 7
        %v6782 = vsub.s32 %v6779, %v6781
        %v6783 = vrot.slane %v6245, %v6782
        %v6785 = vunpack.c.l.s4 1966171168
        %v6786 = vunpack.c.0.s8 %v6785
        %v6787 = vlaneseq
        %v6788 = vshrl.u32 %v6787, 7
        %v6789 = vsub.s32 %v6786, %v6788
        %v6790 = vrot.slane %v6783, %v6789
        %v6792 = vunpack.c.l.s4 1966171168
        %v6793 = vunpack.c.0.s8 %v6792
        %v6794 = vlaneseq
        %v6795 = vshrl.u32 %v6794, 7
        %v6796 = vsub.s32 %v6793, %v6795
        %v6797 = vrot.slane %v6252, %v6796
        %v6799 = vunpack.c.l.s4 1966171168
        %v6800 = vunpack.c.0.s8 %v6799
        %v6801 = vlaneseq
        %v6802 = vshrl.u32 %v6801, 7
        %v6803 = vsub.s32 %v6800, %v6802
        %v6804 = vrot.slane %v6797, %v6803
        %v6806 = vunpack.c.l.s4 1966171168
        %v6807 = vunpack.c.0.s8 %v6806
        %v6808 = vlaneseq
        %v6809 = vshrl.u32 %v6808, 7
        %v6810 = vsub.s32 %v6807, %v6809
        %v6811 = vrot.slane %v6253, %v6810
        %v6813 = vunpack.c.l.s4 1966171168
        %v6814 = vunpack.c.0.s8 %v6813
        %v6815 = vlaneseq
        %v6816 = vshrl.u32 %v6815, 7
        %v6817 = vsub.s32 %v6814, %v6816
        %v6818 = vrot.slane %v6811, %v6817
        %v6820 = vunpack.c.l.s4 1966171168
        %v6821 = vunpack.c.0.s8 %v6820
        %v6822 = vlaneseq
        %v6823 = vshrl.u32 %v6822, 7
        %v6824 = vsub.s32 %v6821, %v6823
        %v6825 = vrot.slane %v6254, %v6824
        %v6827 = vunpack.c.l.s4 1966171168
        %v6828 = vunpack.c.0.s8 %v6827
        %v6829 = vlaneseq
        %v6830 = vshrl.u32 %v6829, 7
        %v6831 = vsub.s32 %v6828, %v6830
        %v6832 = vrot.slane %v6825, %v6831
        %v6834 = vunpack.c.l.s4 1966171168
        %v6835 = vunpack.c.0.s8 %v6834
        %v6836 = vlaneseq
        %v6837 = vshrl.u32 %v6836, 7
        %v6838 = vsub.s32 %v6835, %v6837
        %v6839 = vrot.slane %v6269, %v6838
        %v6841 = vunpack.c.l.s4 1966171168
        %v6842 = vunpack.c.0.s8 %v6841
        %v6843 = vlaneseq
        %v6844 = vshrl.u32 %v6843, 7
        %v6845 = vsub.s32 %v6842, %v6844
        %v6846 = vrot.slane %v6839, %v6845
        %v6848 = vunpack.c.l.s4 1966171168
        %v6849 = vunpack.c.0.s8 %v6848
        %v6850 = vlaneseq
        %v6851 = vshrl.u32 %v6850, 7
        %v6852 = vsub.s32 %v6849, %v6851
        %v6853 = vrot.slane %v6276, %v6852
        %v6855 = vunpack.c.l.s4 1966171168
        %v6856 = vunpack.c.0.s8 %v6855
        %v6857 = vlaneseq
        %v6858 = vshrl.u32 %v6857, 7
        %v6859 = vsub.s32 %v6856, %v6858
        %v6860 = vrot.slane %v6853, %v6859
        %v6862 = vunpack.c.l.s4 1966171168
        %v6863 = vunpack.c.0.s8 %v6862
        %v6864 = vlaneseq
        %v6865 = vshrl.u32 %v6864, 7
        %v6866 = vsub.s32 %v6863, %v6865
        %v6867 = vrot.slane %v6277, %v6866
        %v6869 = vunpack.c.l.s4 1966171168
        %v6870 = vunpack.c.0.s8 %v6869
        %v6871 = vlaneseq
        %v6872 = vshrl.u32 %v6871, 7
        %v6873 = vsub.s32 %v6870, %v6872
        %v6874 = vrot.slane %v6867, %v6873
        %v6876 = vunpack.c.l.s4 1966171168
        %v6877 = vunpack.c.0.s8 %v6876
        %v6878 = vlaneseq
        %v6879 = vshrl.u32 %v6878, 7
        %v6880 = vsub.s32 %v6877, %v6879
        %v6881 = vrot.slane %v6278, %v6880
        %v6883 = vunpack.c.l.s4 1966171168
        %v6884 = vunpack.c.0.s8 %v6883
        %v6885 = vlaneseq
        %v6886 = vshrl.u32 %v6885, 7
        %v6887 = vsub.s32 %v6884, %v6886
        %v6888 = vrot.slane %v6881, %v6887
        %v6890 = vunpack.c.l.s4 1966171168
        %v6891 = vunpack.c.0.s8 %v6890
        %v6892 = vlaneseq
        %v6893 = vshrl.u32 %v6892, 7
        %v6894 = vsub.s32 %v6891, %v6893
        %v6895 = vrot.slane %v6293, %v6894
        %v6897 = vunpack.c.l.s4 1966171168
        %v6898 = vunpack.c.0.s8 %v6897
        %v6899 = vlaneseq
        %v6900 = vshrl.u32 %v6899, 7
        %v6901 = vsub.s32 %v6898, %v6900
        %v6902 = vrot.slane %v6895, %v6901
        %v6904 = vunpack.c.l.s4 1966171168
        %v6905 = vunpack.c.0.s8 %v6904
        %v6906 = vlaneseq
        %v6907 = vshrl.u32 %v6906, 7
        %v6908 = vsub.s32 %v6905, %v6907
        %v6909 = vrot.slane %v6300, %v6908
        %v6911 = vunpack.c.l.s4 1966171168
        %v6912 = vunpack.c.0.s8 %v6911
        %v6913 = vlaneseq
        %v6914 = vshrl.u32 %v6913, 7
        %v6915 = vsub.s32 %v6912, %v6914
        %v6916 = vrot.slane %v6909, %v6915
        %v6918 = vunpack.c.l.s4 1966171168
        %v6919 = vunpack.c.0.s8 %v6918
        %v6920 = vlaneseq
        %v6921 = vshrl.u32 %v6920, 7
        %v6922 = vsub.s32 %v6919, %v6921
        %v6923 = vrot.slane %v6301, %v6922
        %v6925 = vunpack.c.l.s4 1966171168
        %v6926 = vunpack.c.0.s8 %v6925
        %v6927 = vlaneseq
        %v6928 = vshrl.u32 %v6927, 7
        %v6929 = vsub.s32 %v6926, %v6928
        %v6930 = vrot.slane %v6923, %v6929
        %v6932 = vunpack.c.l.s4 1966171168
        %v6933 = vunpack.c.0.s8 %v6932
        %v6934 = vlaneseq
        %v6935 = vshrl.u32 %v6934, 7
        %v6936 = vsub.s32 %v6933, %v6935
        %v6937 = vrot.slane %v6302, %v6936
        %v6939 = vunpack.c.l.s4 1966171168
        %v6940 = vunpack.c.0.s8 %v6939
        %v6941 = vlaneseq
        %v6942 = vshrl.u32 %v6941, 7
        %v6943 = vsub.s32 %v6940, %v6942
        %v6944 = vrot.slane %v6937, %v6943
        %v6946 = vunpack.c.l.s4 1966171168
        %v6947 = vunpack.c.0.s8 %v6946
        %v6948 = vlaneseq
        %v6949 = vshrl.u32 %v6948, 7
        %v6950 = vsub.s32 %v6947, %v6949
        %v6951 = vrot.slane %v6317, %v6950
        %v6953 = vunpack.c.l.s4 1966171168
        %v6954 = vunpack.c.0.s8 %v6953
        %v6955 = vlaneseq
        %v6956 = vshrl.u32 %v6955, 7
        %v6957 = vsub.s32 %v6954, %v6956
        %v6958 = vrot.slane %v6951, %v6957
        %v6960 = vunpack.c.l.s4 1966171168
        %v6961 = vunpack.c.0.s8 %v6960
        %v6962 = vlaneseq
        %v6963 = vshrl.u32 %v6962, 7
        %v6964 = vsub.s32 %v6961, %v6963
        %v6965 = vrot.slane %v6324, %v6964
        %v6967 = vunpack.c.l.s4 1966171168
        %v6968 = vunpack.c.0.s8 %v6967
        %v6969 = vlaneseq
        %v6970 = vshrl.u32 %v6969, 7
        %v6971 = vsub.s32 %v6968, %v6970
        %v6972 = vrot.slane %v6965, %v6971
        %v6974 = vunpack.c.l.s4 1966171168
        %v6975 = vunpack.c.0.s8 %v6974
        %v6976 = vlaneseq
        %v6977 = vshrl.u32 %v6976, 7
        %v6978 = vsub.s32 %v6975, %v6977
        %v6979 = vrot.slane %v6325, %v6978
        %v6981 = vunpack.c.l.s4 1966171168
        %v6982 = vunpack.c.0.s8 %v6981
        %v6983 = vlaneseq
        %v6984 = vshrl.u32 %v6983, 7
        %v6985 = vsub.s32 %v6982, %v6984
        %v6986 = vrot.slane %v6979, %v6985
        %v6988 = vunpack.c.l.s4 1966171168
        %v6989 = vunpack.c.0.s8 %v6988
        %v6990 = vlaneseq
        %v6991 = vshrl.u32 %v6990, 7
        %v6992 = vsub.s32 %v6989, %v6991
        %v6993 = vrot.slane %v6326, %v6992
        %v6995 = vunpack.c.l.s4 1966171168
        %v6996 = vunpack.c.0.s8 %v6995
        %v6997 = vlaneseq
        %v6998 = vshrl.u32 %v6997, 7
        %v6999 = vsub.s32 %v6996, %v6998
        %v7000 = vrot.slane %v6993, %v6999
        %v7002 = vunpack.c.l.s4 1966171168
        %v7003 = vunpack.c.0.s8 %v7002
        %v7004 = vlaneseq
        %v7005 = vshrl.u32 %v7004, 7
        %v7006 = vsub.s32 %v7003, %v7005
        %v7007 = vrot.slane %v6341, %v7006
        %v7009 = vunpack.c.l.s4 1966171168
        %v7010 = vunpack.c.0.s8 %v7009
        %v7011 = vlaneseq
        %v7012 = vshrl.u32 %v7011, 7
        %v7013 = vsub.s32 %v7010, %v7012
        %v7014 = vrot.slane %v7007, %v7013
        %v7016 = vunpack.c.l.s4 1966171168
        %v7017 = vunpack.c.0.s8 %v7016
        %v7018 = vlaneseq
        %v7019 = vshrl.u32 %v7018, 7
        %v7020 = vsub.s32 %v7017, %v7019
        %v7021 = vrot.slane %v6348, %v7020
        %v7023 = vunpack.c.l.s4 1966171168
        %v7024 = vunpack.c.0.s8 %v7023
        %v7025 = vlaneseq
        %v7026 = vshrl.u32 %v7025, 7
        %v7027 = vsub.s32 %v7024, %v7026
        %v7028 = vrot.slane %v7021, %v7027
        %v7030 = vunpack.c.l.s4 1966171168
        %v7031 = vunpack.c.0.s8 %v7030
        %v7032 = vlaneseq
        %v7033 = vshrl.u32 %v7032, 7
        %v7034 = vsub.s32 %v7031, %v7033
        %v7035 = vrot.slane %v6349, %v7034
        %v7037 = vunpack.c.l.s4 1966171168
        %v7038 = vunpack.c.0.s8 %v7037
        %v7039 = vlaneseq
        %v7040 = vshrl.u32 %v7039, 7
        %v7041 = vsub.s32 %v7038, %v7040
        %v7042 = vrot.slane %v7035, %v7041
        %v7044 = vunpack.c.l.s4 1966171168
        %v7045 = vunpack.c.0.s8 %v7044
        %v7046 = vlaneseq
        %v7047 = vshrl.u32 %v7046, 7
        %v7048 = vsub.s32 %v7045, %v7047
        %v7049 = vrot.slane %v6350, %v7048
        %v7051 = vunpack.c.l.s4 1966171168
        %v7052 = vunpack.c.0.s8 %v7051
        %v7053 = vlaneseq
        %v7054 = vshrl.u32 %v7053, 7
        %v7055 = vsub.s32 %v7052, %v7054
        %v7056 = vrot.slane %v7049, %v7055
        %v7058 = vunpack.c.l.s4 1966171168
        %v7059 = vunpack.c.0.s8 %v7058
        %v7060 = vlaneseq
        %v7061 = vshrl.u32 %v7060, 7
        %v7062 = vsub.s32 %v7059, %v7061
        %v7063 = vrot.slane %v6365, %v7062
        %v7065 = vunpack.c.l.s4 1966171168
        %v7066 = vunpack.c.0.s8 %v7065
        %v7067 = vlaneseq
        %v7068 = vshrl.u32 %v7067, 7
        %v7069 = vsub.s32 %v7066, %v7068
        %v7070 = vrot.slane %v7063, %v7069
        %v7072 = vunpack.c.l.s4 1966171168
        %v7073 = vunpack.c.0.s8 %v7072
        %v7074 = vlaneseq
        %v7075 = vshrl.u32 %v7074, 7
        %v7076 = vsub.s32 %v7073, %v7075
        %v7077 = vrot.slane %v6372, %v7076
        %v7079 = vunpack.c.l.s4 1966171168
        %v7080 = vunpack.c.0.s8 %v7079
        %v7081 = vlaneseq
        %v7082 = vshrl.u32 %v7081, 7
        %v7083 = vsub.s32 %v7080, %v7082
        %v7084 = vrot.slane %v7077, %v7083
        %v7086 = vunpack.c.l.s4 1966171168
        %v7087 = vunpack.c.0.s8 %v7086
        %v7088 = vlaneseq
        %v7089 = vshrl.u32 %v7088, 7
        %v7090 = vsub.s32 %v7087, %v7089
        %v7091 = vrot.slane %v6373, %v7090
        %v7093 = vunpack.c.l.s4 1966171168
        %v7094 = vunpack.c.0.s8 %v7093
        %v7095 = vlaneseq
        %v7096 = vshrl.u32 %v7095, 7
        %v7097 = vsub.s32 %v7094, %v7096
        %v7098 = vrot.slane %v7091, %v7097
        %v7100 = vunpack.c.l.s4 1966171168
        %v7101 = vunpack.c.0.s8 %v7100
        %v7102 = vlaneseq
        %v7103 = vshrl.u32 %v7102, 7
        %v7104 = vsub.s32 %v7101, %v7103
        %v7105 = vrot.slane %v6374, %v7104
        %v7107 = vunpack.c.l.s4 1966171168
        %v7108 = vunpack.c.0.s8 %v7107
        %v7109 = vlaneseq
        %v7110 = vshrl.u32 %v7109, 7
        %v7111 = vsub.s32 %v7108, %v7110
        %v7112 = vrot.slane %v7105, %v7111
        %v7114 = vunpack.c.l.s4 1966171168
        %v7115 = vunpack.c.0.s8 %v7114
        %v7116 = vlaneseq
        %v7117 = vshrl.u32 %v7116, 7
        %v7118 = vsub.s32 %v7115, %v7117
        %v7119 = vrot.slane %v6389, %v7118
        %v7121 = vunpack.c.l.s4 1966171168
        %v7122 = vunpack.c.0.s8 %v7121
        %v7123 = vlaneseq
        %v7124 = vshrl.u32 %v7123, 7
        %v7125 = vsub.s32 %v7122, %v7124
        %v7126 = vrot.slane %v7119, %v7125
        %v7128 = vunpack.c.l.s4 1966171168
        %v7129 = vunpack.c.0.s8 %v7128
        %v7130 = vlaneseq
        %v7131 = vshrl.u32 %v7130, 7
        %v7132 = vsub.s32 %v7129, %v7131
        %v7133 = vrot.slane %v6396, %v7132
        %v7135 = vunpack.c.l.s4 1966171168
        %v7136 = vunpack.c.0.s8 %v7135
        %v7137 = vlaneseq
        %v7138 = vshrl.u32 %v7137, 7
        %v7139 = vsub.s32 %v7136, %v7138
        %v7140 = vrot.slane %v7133, %v7139
        %v7142 = vunpack.c.l.s4 1966171168
        %v7143 = vunpack.c.0.s8 %v7142
        %v7144 = vlaneseq
        %v7145 = vshrl.u32 %v7144, 7
        %v7146 = vsub.s32 %v7143, %v7145
        %v7147 = vrot.slane %v6397, %v7146
        %v7149 = vunpack.c.l.s4 1966171168
        %v7150 = vunpack.c.0.s8 %v7149
        %v7151 = vlaneseq
        %v7152 = vshrl.u32 %v7151, 7
        %v7153 = vsub.s32 %v7150, %v7152
        %v7154 = vrot.slane %v7147, %v7153
        %v7156 = vunpack.c.l.s4 1966171168
        %v7157 = vunpack.c.0.s8 %v7156
        %v7158 = vlaneseq
        %v7159 = vshrl.u32 %v7158, 7
        %v7160 = vsub.s32 %v7157, %v7159
        %v7161 = vrot.slane %v6398, %v7160
        %v7163 = vunpack.c.l.s4 1966171168
        %v7164 = vunpack.c.0.s8 %v7163
        %v7165 = vlaneseq
        %v7166 = vshrl.u32 %v7165, 7
        %v7167 = vsub.s32 %v7164, %v7166
        %v7168 = vrot.slane %v7161, %v7167
        %v7170 = vunpack.c.l.s4 1966171168
        %v7171 = vunpack.c.0.s8 %v7170
        %v7172 = vlaneseq
        %v7173 = vshrl.u32 %v7172, 7
        %v7174 = vsub.s32 %v7171, %v7173
        %v7175 = vrot.slane %v6413, %v7174
        %v7177 = vunpack.c.l.s4 1966171168
        %v7178 = vunpack.c.0.s8 %v7177
        %v7179 = vlaneseq
        %v7180 = vshrl.u32 %v7179, 7
        %v7181 = vsub.s32 %v7178, %v7180
        %v7182 = vrot.slane %v7175, %v7181
        %v7184 = vunpack.c.l.s4 1966171168
        %v7185 = vunpack.c.0.s8 %v7184
        %v7186 = vlaneseq
        %v7187 = vshrl.u32 %v7186, 7
        %v7188 = vsub.s32 %v7185, %v7187
        %v7189 = vrot.slane %v6420, %v7188
        %v7191 = vunpack.c.l.s4 1966171168
        %v7192 = vunpack.c.0.s8 %v7191
        %v7193 = vlaneseq
        %v7194 = vshrl.u32 %v7193, 7
        %v7195 = vsub.s32 %v7192, %v7194
        %v7196 = vrot.slane %v7189, %v7195
        %v7198 = vunpack.c.l.s4 1966171168
        %v7199 = vunpack.c.0.s8 %v7198
        %v7200 = vlaneseq
        %v7201 = vshrl.u32 %v7200, 7
        %v7202 = vsub.s32 %v7199, %v7201
        %v7203 = vrot.slane %v6421, %v7202
        %v7205 = vunpack.c.l.s4 1966171168
        %v7206 = vunpack.c.0.s8 %v7205
        %v7207 = vlaneseq
        %v7208 = vshrl.u32 %v7207, 7
        %v7209 = vsub.s32 %v7206, %v7208
        %v7210 = vrot.slane %v7203, %v7209
        %v7212 = vunpack.c.l.s4 1966171168
        %v7213 = vunpack.c.0.s8 %v7212
        %v7214 = vlaneseq
        %v7215 = vshrl.u32 %v7214, 7
        %v7216 = vsub.s32 %v7213, %v7215
        %v7217 = vrot.slane %v6422, %v7216
        %v7219 = vunpack.c.l.s4 1966171168
        %v7220 = vunpack.c.0.s8 %v7219
        %v7221 = vlaneseq
        %v7222 = vshrl.u32 %v7221, 7
        %v7223 = vsub.s32 %v7220, %v7222
        %v7224 = vrot.slane %v7217, %v7223
        %v7226 = vunpack.c.l.s4 1966171168
        %v7227 = vunpack.c.0.s8 %v7226
        %v7228 = vlaneseq
        %v7229 = vshrl.u32 %v7228, 7
        %v7230 = vsub.s32 %v7227, %v7229
        %v7231 = vrot.slane %v6437, %v7230
        %v7233 = vunpack.c.l.s4 1966171168
        %v7234 = vunpack.c.0.s8 %v7233
        %v7235 = vlaneseq
        %v7236 = vshrl.u32 %v7235, 7
        %v7237 = vsub.s32 %v7234, %v7236
        %v7238 = vrot.slane %v7231, %v7237
        %v7240 = vunpack.c.l.s4 1966171168
        %v7241 = vunpack.c.0.s8 %v7240
        %v7242 = vlaneseq
        %v7243 = vshrl.u32 %v7242, 7
        %v7244 = vsub.s32 %v7241, %v7243
        %v7245 = vrot.slane %v6444, %v7244
        %v7247 = vunpack.c.l.s4 1966171168
        %v7248 = vunpack.c.0.s8 %v7247
        %v7249 = vlaneseq
        %v7250 = vshrl.u32 %v7249, 7
        %v7251 = vsub.s32 %v7248, %v7250
        %v7252 = vrot.slane %v7245, %v7251
        %v7254 = vunpack.c.l.s4 1966171168
        %v7255 = vunpack.c.0.s8 %v7254
        %v7256 = vlaneseq
        %v7257 = vshrl.u32 %v7256, 7
        %v7258 = vsub.s32 %v7255, %v7257
        %v7259 = vrot.slane %v6445, %v7258
        %v7261 = vunpack.c.l.s4 1966171168
        %v7262 = vunpack.c.0.s8 %v7261
        %v7263 = vlaneseq
        %v7264 = vshrl.u32 %v7263, 7
        %v7265 = vsub.s32 %v7262, %v7264
        %v7266 = vrot.slane %v7259, %v7265
        %v7268 = vunpack.c.l.s4 1966171168
        %v7269 = vunpack.c.0.s8 %v7268
        %v7270 = vlaneseq
        %v7271 = vshrl.u32 %v7270, 7
        %v7272 = vsub.s32 %v7269, %v7271
        %v7273 = vrot.slane %v6446, %v7272
        %v7275 = vunpack.c.l.s4 1966171168
        %v7276 = vunpack.c.0.s8 %v7275
        %v7277 = vlaneseq
        %v7278 = vshrl.u32 %v7277, 7
        %v7279 = vsub.s32 %v7276, %v7278
        %v7280 = vrot.slane %v7273, %v7279
        %v7282 = vunpack.c.l.s4 1966171168
        %v7283 = vunpack.c.0.s8 %v7282
        %v7284 = vlaneseq
        %v7285 = vshrl.u32 %v7284, 7
        %v7286 = vsub.s32 %v7283, %v7285
        %v7287 = vrot.slane %v6461, %v7286
        %v7289 = vunpack.c.l.s4 1966171168
        %v7290 = vunpack.c.0.s8 %v7289
        %v7291 = vlaneseq
        %v7292 = vshrl.u32 %v7291, 7
        %v7293 = vsub.s32 %v7290, %v7292
        %v7294 = vrot.slane %v7287, %v7293
        %v7296 = vunpack.c.l.s4 1966171168
        %v7297 = vunpack.c.0.s8 %v7296
        %v7298 = vlaneseq
        %v7299 = vshrl.u32 %v7298, 7
        %v7300 = vsub.s32 %v7297, %v7299
        %v7301 = vrot.slane %v6468, %v7300
        %v7303 = vunpack.c.l.s4 1966171168
        %v7304 = vunpack.c.0.s8 %v7303
        %v7305 = vlaneseq
        %v7306 = vshrl.u32 %v7305, 7
        %v7307 = vsub.s32 %v7304, %v7306
        %v7308 = vrot.slane %v7301, %v7307
        %v7310 = vunpack.c.l.s4 1966171168
        %v7311 = vunpack.c.0.s8 %v7310
        %v7312 = vlaneseq
        %v7313 = vshrl.u32 %v7312, 7
        %v7314 = vsub.s32 %v7311, %v7313
        %v7315 = vrot.slane %v6469, %v7314
        %v7317 = vunpack.c.l.s4 1966171168
        %v7318 = vunpack.c.0.s8 %v7317
        %v7319 = vlaneseq
        %v7320 = vshrl.u32 %v7319, 7
        %v7321 = vsub.s32 %v7318, %v7320
        %v7322 = vrot.slane %v7315, %v7321
        %v7324 = vunpack.c.l.s4 1966171168
        %v7325 = vunpack.c.0.s8 %v7324
        %v7326 = vlaneseq
        %v7327 = vshrl.u32 %v7326, 7
        %v7328 = vsub.s32 %v7325, %v7327
        %v7329 = vrot.slane %v6470, %v7328
        %v7331 = vunpack.c.l.s4 1966171168
        %v7332 = vunpack.c.0.s8 %v7331
        %v7333 = vlaneseq
        %v7334 = vshrl.u32 %v7333, 7
        %v7335 = vsub.s32 %v7332, %v7334
        %v7336 = vrot.slane %v7329, %v7335
        %v7338 = vunpack.c.l.s4 1966171168
        %v7339 = vunpack.c.0.s8 %v7338
        %v7340 = vlaneseq
        %v7341 = vshrl.u32 %v7340, 7
        %v7342 = vsub.s32 %v7339, %v7341
        %v7343 = vrot.slane %v6485, %v7342
        %v7345 = vunpack.c.l.s4 1966171168
        %v7346 = vunpack.c.0.s8 %v7345
        %v7347 = vlaneseq
        %v7348 = vshrl.u32 %v7347, 7
        %v7349 = vsub.s32 %v7346, %v7348
        %v7350 = vrot.slane %v7343, %v7349
        %v7352 = vunpack.c.l.s4 1966171168
        %v7353 = vunpack.c.0.s8 %v7352
        %v7354 = vlaneseq
        %v7355 = vshrl.u32 %v7354, 7
        %v7356 = vsub.s32 %v7353, %v7355
        %v7357 = vrot.slane %v6492, %v7356
        %v7359 = vunpack.c.l.s4 1966171168
        %v7360 = vunpack.c.0.s8 %v7359
        %v7361 = vlaneseq
        %v7362 = vshrl.u32 %v7361, 7
        %v7363 = vsub.s32 %v7360, %v7362
        %v7364 = vrot.slane %v7357, %v7363
        %v7366 = vunpack.c.l.s4 1966171168
        %v7367 = vunpack.c.0.s8 %v7366
        %v7368 = vlaneseq
        %v7369 = vshrl.u32 %v7368, 7
        %v7370 = vsub.s32 %v7367, %v7369
        %v7371 = vrot.slane %v6493, %v7370
        %v7373 = vunpack.c.l.s4 1966171168
        %v7374 = vunpack.c.0.s8 %v7373
        %v7375 = vlaneseq
        %v7376 = vshrl.u32 %v7375, 7
        %v7377 = vsub.s32 %v7374, %v7376
        %v7378 = vrot.slane %v7371, %v7377
        %v7380 = vunpack.c.l.s4 1966171168
        %v7381 = vunpack.c.0.s8 %v7380
        %v7382 = vlaneseq
        %v7383 = vshrl.u32 %v7382, 7
        %v7384 = vsub.s32 %v7381, %v7383
        %v7385 = vrot.slane %v6494, %v7384
        %v7387 = vunpack.c.l.s4 1966171168
        %v7388 = vunpack.c.0.s8 %v7387
        %v7389 = vlaneseq
        %v7390 = vshrl.u32 %v7389, 7
        %v7391 = vsub.s32 %v7388, %v7390
        %v7392 = vrot.slane %v7385, %v7391
        %v7393 = vunpack.c.l.b16 %v6510
        %v7394 = vunpack.c.l.b16 %v6524
        %v7395 = vunpack.c.l.b16 %v6538
        %v7396 = vunpack.c.l.b16 %v6552
        %v7397 = vunpack.c.l.b16 %v6566
        %v7398 = vunpack.c.l.b16 %v6580
        %v7399 = vunpack.c.l.b16 %v6594
        %v7400 = vunpack.c.l.b16 %v6608
        %v7401 = vunpack.c.l.b16 %v6622
        %v7402 = vunpack.c.l.b16 %v6636
        %v7403 = vunpack.c.l.b16 %v6650
        %v7404 = vunpack.c.l.b16 %v6664
        %v7405 = vunpack.c.l.b16 %v6678
        %v7406 = vunpack.c.l.b16 %v6692
        %v7407 = vunpack.c.l.b16 %v6706
        %v7408 = vunpack.c.l.b16 %v6720
        %v7409 = vunpack.c.l.b16 %v6734
        %v7410 = vunpack.c.l.b16 %v6748
        %v7411 = vunpack.c.l.b16 %v6762
        %v7412 = vunpack.c.l.b16 %v6776
        %v7413 = vunpack.c.l.b16 %v6790
        %v7414 = vunpack.c.l.b16 %v6804
        %v7415 = vunpack.c.l.b16 %v6818
        %v7416 = vunpack.c.l.b16 %v6832
        %v7417 = vunpack.c.l.b16 %v6846
        %v7418 = vunpack.c.l.b16 %v6860
        %v7419 = vunpack.c.l.b16 %v6874
        %v7420 = vunpack.c.l.b16 %v6888
        %v7421 = vunpack.c.l.b16 %v6902
        %v7422 = vunpack.c.l.b16 %v6916
        %v7423 = vunpack.c.l.b16 %v6930
        %v7424 = vunpack.c.l.b16 %v6944
        %v7425 = vunpack.c.l.b16 %v6958
        %v7426 = vunpack.c.l.b16 %v6972
        %v7427 = vunpack.c.l.b16 %v6986
        %v7428 = vunpack.c.l.b16 %v7000
        %v7429 = vunpack.c.l.b16 %v7014
        %v7430 = vunpack.c.l.b16 %v7028
        %v7431 = vunpack.c.l.b16 %v7042
        %v7432 = vunpack.c.l.b16 %v7056
        %v7433 = vunpack.c.l.b16 %v7070
        %v7434 = vunpack.c.l.b16 %v7084
        %v7435 = vunpack.c.l.b16 %v7098
        %v7436 = vunpack.c.l.b16 %v7112
        %v7437 = vunpack.c.l.b16 %v7126
        %v7438 = vunpack.c.l.b16 %v7140
        %v7439 = vunpack.c.l.b16 %v7154
        %v7440 = vunpack.c.l.b16 %v7168
        %v7441 = vunpack.c.l.b16 %v7182
        %v7442 = vunpack.c.l.b16 %v7196
        %v7443 = vunpack.c.l.b16 %v7210
        %v7444 = vunpack.c.l.b16 %v7224
        %v7445 = vunpack.c.l.b16 %v7238
        %v7446 = vunpack.c.l.b16 %v7252
        %v7447 = vunpack.c.l.b16 %v7266
        %v7448 = vunpack.c.l.b16 %v7280
        %v7449 = vunpack.c.l.b16 %v7294
        %v7450 = vunpack.c.l.b16 %v7308
        %v7451 = vunpack.c.l.b16 %v7322
        %v7452 = vunpack.c.l.b16 %v7336
        %v7453 = vunpack.c.l.b16 %v7350
        %v7454 = vunpack.c.l.b16 %v7364
        %v7455 = vunpack.c.l.b16 %v7378
        %v7456 = vunpack.c.l.b16 %v7392
        %v7457 = vrot.slane %v7394, 7
        %v7458 = vsel %vm2721, %v7457, %v7393
        %v7459 = vrot.slane %v7395, 6
        %v7460 = vsel %vm2724, %v7459, %v7458
        %v7461 = vrot.slane %v7396, 5
        %v7462 = vsel %vm2727, %v7461, %v7460
        %v7463 = vrot.slane %v7397, 4
        %v7464 = vsel %vm2730, %v7463, %v7462
        %v7465 = vrot.slane %v7398, 3
        %v7466 = vsel %vm2733, %v7465, %v7464
        %v7467 = vrot.slane %v7399, 2
        %v7468 = vsel %vm2736, %v7467, %v7466
        %v7469 = vrot.slane %v7400, 1
        %v7470 = vsel %vm2739, %v7469, %v7468
        %v7471 = vrot.slane %v7402, 7
        %v7472 = vsel %vm2721, %v7471, %v7401
        %v7473 = vrot.slane %v7403, 6
        %v7474 = vsel %vm2724, %v7473, %v7472
        %v7475 = vrot.slane %v7404, 5
        %v7476 = vsel %vm2727, %v7475, %v7474
        %v7477 = vrot.slane %v7405, 4
        %v7478 = vsel %vm2730, %v7477, %v7476
        %v7479 = vrot.slane %v7406, 3
        %v7480 = vsel %vm2733, %v7479, %v7478
        %v7481 = vrot.slane %v7407, 2
        %v7482 = vsel %vm2736, %v7481, %v7480
        %v7483 = vrot.slane %v7408, 1
        %v7484 = vsel %vm2739, %v7483, %v7482
        %v7485 = vrot.slane %v7410, 7
        %v7486 = vsel %vm2721, %v7485, %v7409
        %v7487 = vrot.slane %v7411, 6
        %v7488 = vsel %vm2724, %v7487, %v7486
        %v7489 = vrot.slane %v7412, 5
        %v7490 = vsel %vm2727, %v7489, %v7488
        %v7491 = vrot.slane %v7413, 4
        %v7492 = vsel %vm2730, %v7491, %v7490
        %v7493 = vrot.slane %v7414, 3
        %v7494 = vsel %vm2733, %v7493, %v7492
        %v7495 = vrot.slane %v7415, 2
        %v7496 = vsel %vm2736, %v7495, %v7494
        %v7497 = vrot.slane %v7416, 1
        %v7498 = vsel %vm2739, %v7497, %v7496
        %v7499 = vrot.slane %v7418, 7
        %v7500 = vsel %vm2721, %v7499, %v7417
        %v7501 = vrot.slane %v7419, 6
        %v7502 = vsel %vm2724, %v7501, %v7500
        %v7503 = vrot.slane %v7420, 5
        %v7504 = vsel %vm2727, %v7503, %v7502
        %v7505 = vrot.slane %v7421, 4
        %v7506 = vsel %vm2730, %v7505, %v7504
        %v7507 = vrot.slane %v7422, 3
        %v7508 = vsel %vm2733, %v7507, %v7506
        %v7509 = vrot.slane %v7423, 2
        %v7510 = vsel %vm2736, %v7509, %v7508
        %v7511 = vrot.slane %v7424, 1
        %v7512 = vsel %vm2739, %v7511, %v7510
        %v7513 = vrot.slane %v7426, 7
        %v7514 = vsel %vm2721, %v7513, %v7425
        %v7515 = vrot.slane %v7427, 6
        %v7516 = vsel %vm2724, %v7515, %v7514
        %v7517 = vrot.slane %v7428, 5
        %v7518 = vsel %vm2727, %v7517, %v7516
        %v7519 = vrot.slane %v7429, 4
        %v7520 = vsel %vm2730, %v7519, %v7518
        %v7521 = vrot.slane %v7430, 3
        %v7522 = vsel %vm2733, %v7521, %v7520
        %v7523 = vrot.slane %v7431, 2
        %v7524 = vsel %vm2736, %v7523, %v7522
        %v7525 = vrot.slane %v7432, 1
        %v7526 = vsel %vm2739, %v7525, %v7524
        %v7527 = vrot.slane %v7434, 7
        %v7528 = vsel %vm2721, %v7527, %v7433
        %v7529 = vrot.slane %v7435, 6
        %v7530 = vsel %vm2724, %v7529, %v7528
        %v7531 = vrot.slane %v7436, 5
        %v7532 = vsel %vm2727, %v7531, %v7530
        %v7533 = vrot.slane %v7437, 4
        %v7534 = vsel %vm2730, %v7533, %v7532
        %v7535 = vrot.slane %v7438, 3
        %v7536 = vsel %vm2733, %v7535, %v7534
        %v7537 = vrot.slane %v7439, 2
        %v7538 = vsel %vm2736, %v7537, %v7536
        %v7539 = vrot.slane %v7440, 1
        %v7540 = vsel %vm2739, %v7539, %v7538
        %v7541 = vrot.slane %v7442, 7
        %v7542 = vsel %vm2721, %v7541, %v7441
        %v7543 = vrot.slane %v7443, 6
        %v7544 = vsel %vm2724, %v7543, %v7542
        %v7545 = vrot.slane %v7444, 5
        %v7546 = vsel %vm2727, %v7545, %v7544
        %v7547 = vrot.slane %v7445, 4
        %v7548 = vsel %vm2730, %v7547, %v7546
        %v7549 = vrot.slane %v7446, 3
        %v7550 = vsel %vm2733, %v7549, %v7548
        %v7551 = vrot.slane %v7447, 2
        %v7552 = vsel %vm2736, %v7551, %v7550
        %v7553 = vrot.slane %v7448, 1
        %v7554 = vsel %vm2739, %v7553, %v7552
        %v7555 = vrot.slane %v7450, 7
        %v7556 = vsel %vm2721, %v7555, %v7449
        %v7557 = vrot.slane %v7451, 6
        %v7558 = vsel %vm2724, %v7557, %v7556
        %v7559 = vrot.slane %v7452, 5
        %v7560 = vsel %vm2727, %v7559, %v7558
        %v7561 = vrot.slane %v7453, 4
        %v7562 = vsel %vm2730, %v7561, %v7560
        %v7563 = vrot.slane %v7454, 3
        %v7564 = vsel %vm2733, %v7563, %v7562
        %v7565 = vrot.slane %v7455, 2
        %v7566 = vsel %vm2736, %v7565, %v7564
        %v7567 = vrot.slane %v7456, 1
        %v7568 = vsel %vm2739, %v7567, %v7566
        %v7569 = vpack.c.b16 %v7484, %v7470
        %v7570 = vpack.c.b16 %v7512, %v7498
        %v7571 = vpack.c.b16 %v7540, %v7526
        %v7572 = vpack.c.b16 %v7568, %v7554
        %v7575 = vunpack.c.l.b16 %v6495
        %v7576 = vunpack.c.l.b16 %v6496
        %v7577 = vpack.c.b16 %v7576, %v7575
        %v7580 = vsel %vm624, %v7569, 0
        %v7583 = vsel %vm624, %v7570, 0
        %v7586 = vsel %vm624, %v7571, 0
        %v7589 = vsel %vm624, %v7572, 0
        %7591 = vmatprep.subr.bf16.mxu0 0
        %7592 = vmatpush1.bf16.msra.mxu0 0
        %7593 = vmatprep.subr.bf16.mxu0 0
        %7594 = vmatpush1.bf16.msra.mxu0 0
        %7595 = vmatprep.subr.bf16.mxu0 0
        %7596 = vmatpush1.bf16.msra.mxu0 0
        %7597 = vmatprep.subr.bf16.mxu0 0
        %7598 = vmatpush1.bf16.msra.mxu0 0
        %7599 = vmatprep.subr.bf16.mxu0 0
        %7600 = vmatpush1.bf16.msra.mxu0 0
        %7601 = vmatprep.subr.bf16.mxu0 0
        %7602 = vmatpush1.bf16.msra.mxu0 0
        %7603 = vmatprep.subr.bf16.mxu0 0
        %7604 = vmatpush1.bf16.msra.mxu0 0
        %7605 = vmatprep.subr.bf16.mxu0 0
        %7606 = vmatpush1.bf16.msra.mxu0 %v7577
        %7607 = vmatprep.subr.bf16.mxu0 0
        %7608 = vmatpush2.bf16.msra.mxu0 0
        %7609 = vmatprep.subr.bf16.mxu0 0
        %7610 = vmatpush2.bf16.msra.mxu0 0
        %7611 = vmatprep.subr.bf16.mxu0 0
        %7612 = vmatpush2.bf16.msra.mxu0 0
        %7613 = vmatprep.subr.bf16.mxu0 0
        %7614 = vmatpush2.bf16.msra.mxu0 0
        %7615 = vmatprep.subr.bf16.mxu0 0
        %7616 = vmatpush2.bf16.msra.mxu0 0
        %7617 = vmatprep.subr.bf16.mxu0 0
        %7618 = vmatpush2.bf16.msra.mxu0 0
        %7619 = vmatprep.subr.bf16.mxu0 0
        %7620 = vmatpush2.bf16.msra.mxu0 0
        %7621 = vmatprep.subr.bf16.mxu0 0
        %7622 = vmatpush2.bf16.msra.mxu0 0
        %7623 = vmatprep.mubr.bf16.mxu0 0
        %7624 = vmatmul.mubr.bf16.gmra.mxu0 %v7580
        %v7625 = vpop.f32.mrf.mxu0
        %v7626 = vadd.f32 0.0, %v7625
        %v7627 = vpop.f32.mrf.mxu0
        %v7628 = vpop.f32.mrf.mxu0
        %v7629 = vadd.f32 0.0, %v7628
        %v7630 = vpop.f32.mrf.mxu0
        %7631 = vmatprep.mubr.bf16.mxu0 0
        %7632 = vmatmul.mubr.bf16.gmra.mxu0 %v7583
        %v7633 = vpop.f32.mrf.mxu0
        %v7634 = vadd.f32 0.0, %v7633
        %v7635 = vpop.f32.mrf.mxu0
        %v7636 = vpop.f32.mrf.mxu0
        %v7637 = vadd.f32 0.0, %v7636
        %v7638 = vpop.f32.mrf.mxu0
        %7639 = vmatprep.mubr.bf16.mxu0 0
        %7640 = vmatmul.mubr.bf16.gmra.mxu0 %v7586
        %v7641 = vpop.f32.mrf.mxu0
        %v7642 = vadd.f32 0.0, %v7641
        %v7643 = vpop.f32.mrf.mxu0
        %v7644 = vpop.f32.mrf.mxu0
        %v7645 = vadd.f32 0.0, %v7644
        %v7646 = vpop.f32.mrf.mxu0
        %7647 = vmatprep.mubr.bf16.mxu0 0
        %7648 = vmatmul.mubr.bf16.gmra.mxu0 %v7589
        %v7649 = vpop.f32.mrf.mxu0
        %v7650 = vadd.f32 0.0, %v7649
        %v7651 = vpop.f32.mrf.mxu0
        %v7652 = vpop.f32.mrf.mxu0
        %v7653 = vadd.f32 0.0, %v7652
        %v7654 = vpop.f32.mrf.mxu0
        %7655 = vdwg.mxu0
        %v7656 = vld [vmem:[%s11] sm:$0x1]
        %v7658 = vlaneseq
        %v7659 = vshrl.u32 %v7658, 7
        %v7660 = vsub.s32 0, %v7659
        %v7661 = vrot.slane %v7656, %v7660
        %v7663 = vmul.f32 %v7626, %v7661
        %v7664 = vmul.f32 %v7629, %v7661
        %v7665 = vmul.f32 %v7634, %v7661
        %v7666 = vmul.f32 %v7637, %v7661
        %v7667 = vmul.f32 %v7642, %v7661
        %v7668 = vmul.f32 %v7645, %v7661
        %v7669 = vmul.f32 %v7650, %v7661
        %v7670 = vmul.f32 %v7653, %v7661
        %v7671 = vld [vmem:[%s12] sm:$0x1]
        %v7673 = vlaneseq
        %v7674 = vshrl.u32 %v7673, 7
        %v7675 = vsub.s32 0, %v7674
        %v7676 = vrot.slane %v7671, %v7675
        %v7678 = vadd.f32 %v7663, %v7676
        %v7679 = vadd.f32 %v7664, %v7676
        %v7680 = vadd.f32 %v7665, %v7676
        %v7681 = vadd.f32 %v7666, %v7676
        %v7682 = vadd.f32 %v7667, %v7676
        %v7683 = vadd.f32 %v7668, %v7676
        %v7684 = vadd.f32 %v7669, %v7676
        %v7685 = vadd.f32 %v7670, %v7676
        %v7686 = vadd.f32 %v6103, %v7678
        %v7687 = vadd.f32 %v6104, %v7679
        %v7688 = vadd.f32 %v6105, %v7680
        %v7689 = vadd.f32 %v6106, %v7681
        %v7690 = vadd.f32 %v6107, %v7682
        %v7691 = vadd.f32 %v6108, %v7683
        %v7692 = vadd.f32 %v6109, %v7684
        %v7693 = vadd.f32 %v6110, %v7685
        %v7694 = vmax.f32 %v7686, 0.0
        %v7695 = vmax.f32 %v7687, 0.0
        %v7696 = vmax.f32 %v7688, 0.0
        %v7697 = vmax.f32 %v7689, 0.0
        %v7698 = vmax.f32 %v7690, 0.0
        %v7699 = vmax.f32 %v7691, 0.0
        %v7700 = vmax.f32 %v7692, 0.0
        %v7701 = vmax.f32 %v7693, 0.0
        %7702 = vst [vmem:[%s502] sm:$0xff] %v7694
        %7703 = vst [vmem:[%s502 + $0x8] sm:$0xff] %v7695
        %7704 = vst [vmem:[%s502 + $0x10] sm:$0xff] %v7696
        %7705 = vst [vmem:[%s502 + $0x18] sm:$0xff] %v7697
        %7706 = vst [vmem:[%s502 + $0x20] sm:$0xff] %v7698
        %7707 = vst [vmem:[%s502 + $0x28] sm:$0xff] %v7699
        %7708 = vst [vmem:[%s502 + $0x30] sm:$0xff] %v7700
        %7709 = vst [vmem:[%s502 + $0x38] sm:$0xff] %v7701
        %s7710 = sand.u32 %s318, 1
        %s7711 = scalar_lea.sflag [#allocation4], %s7710
        %s7712 = sand.u32 %s318, 1
        %s7713 = smul.addr %s7712, 64
        %s7714 = scalar_lea.vmem [#allocation10], %s7713
        // Predicated region
        $region89: #{tpu_custom_call.1} parent=71 // pred_check
          %p7715 = pneg %p328
        $region90: #{tpu_custom_call.1} parent=71 // pred_check_branch
          %7717 = sbr.rel (%p7715) target = $region92
        $region91: #{tpu_custom_call.1} parent=71 // pred_region
          %s7719 = ssub.s32 1024, 1024
          %7720 = vsyncadd %s7711, %s7719
          %s7721 = smul.addr %s32, 8
          %s7722 = smul.addr %s7721, 128
          %s7723 = scalar_lea.hbm %s13, %s7722
          %s7724 = sshll.u32 %s7714, 4
          %s7725 = int_to_ptr.vmem [resolvable:$true] %s7724
          %7730 = dma.vmem_to_hbm [thread:$0]  %s7725, 1024, %s7723, %s7711, 128, 128, 8
        $region92: #{tpu_custom_call.1} parent=71 // pred_fallthru
          _
      $region72: #{tpu_custom_call.1} parent=5 // pred_fallthru
        _
      %p7731 = scmp.le.s32.totalorder 2, %s27
      // Predicated region
      $region93: #{tpu_custom_call.1} parent=5 // pred_check
        %p7732 = pneg %p7731
      $region94: #{tpu_custom_call.1} parent=5 // pred_check_branch
        %7734 = sbr.rel (%p7732) target = $region96
      $region95: #{tpu_custom_call.1} parent=5 // pred_region
        %s7735 = ssub.s32 %s27, 2
        // Predicated region
        $region97: #{tpu_custom_call.1} parent=95 // pred_check
          %p7736 = pneg %p334
        $region98: #{tpu_custom_call.1} parent=95 // pred_check_branch
          %7738 = sbr.rel (%p7736) target = $region100
        $region99: #{tpu_custom_call.1} parent=95 // pred_region
          %s7739 = sand.u32 %s319, 1
          %s7740 = scalar_lea.sflag [#allocation4], %s7739
          %s7741 = sand.u32 %s319, 1
          %s7742 = smul.addr %s7741, 64
          %s7743 = scalar_lea.vmem [#allocation10], %s7742
          %7744 = dma.done %s7740, 1024
        $region100: #{tpu_custom_call.1} parent=95 // pred_fallthru
          _
      $region96: #{tpu_custom_call.1} parent=5 // pred_fallthru
        _
    $region6: #{tpu_custom_call.1} parent=1 // loop_footer
      %s31 = sadd.s32 1, %s27
    $region7: #{tpu_custom_call.1} parent=1 // loop_footer_branch
      %26 = sbr.rel target = $region3
    $region8: #{tpu_custom_call.1} parent=1 // loop_exit
      _
    %7745 = vsyncpa [#allocation3], 1
    %s7746 = scalar_lea.sflag [#allocation3], 1
    %7747 = vsyncpa %s7746, 1
    %7748 = vsyncpa [#allocation6], 1
    %7749 = vsyncpa [#allocation9], 1
    %7750 = vsyncpa [#allocation4], 1
    %s7751 = scalar_lea.sflag [#allocation4], 1
    %7752 = vsyncpa %s7751, 1

</llo_original>
